<compile_context>
chip_gen: v7x
topology: tpu7x:2x2x1
jax: 0.10.0
libtpu: 0.0.40
codegen_flags: <defaults>
</compile_context>

<pallas_src>
import math
import functools

import jax
import jax.numpy as jnp
from jax.experimental import pallas as pl
from jax.experimental.pallas import tpu as pltpu

NEG_SLOPE = 0.2
INV_SQRT2 = 1.0 / math.sqrt(2.0)
LANE = 128            # pad output-channel dims to multiples of the lane width
TM_MAX = 512          # max rows per matmul M tile
TK_MAX = 512          # max patch features per matmul K tile
MXU_BF16 = False      # optionally feed the MXU bf16 operands (keeps f32 acc)
VMEM_LIMIT = 64 * 1024 * 1024


def _leaky(x):
    return jnp.where(x >= 0, x, NEG_SLOPE * x)


def _round_up(x, m):
    return ((x + m - 1) // m) * m


# ---------------------------------------------------------------------------
# Fused tiled matmul kernel (all convs + final linear)
# ---------------------------------------------------------------------------

def _make_matmul_kernel(pre_act, post_act, combine, nk):
    def kernel(*refs):
        if combine:
            a_ref, w_ref, b_ref, s_ref, o_ref, acc_ref = refs
        else:
            a_ref, w_ref, b_ref, o_ref, acc_ref = refs

        k = pl.program_id(1)

        @pl.when(k == 0)
        def _():
            acc_ref[...] = jnp.zeros_like(acc_ref)

        a = a_ref[...]
        w = w_ref[...]
        if pre_act:                       # LeakyReLU fused on the input tile
            a = _leaky(a)
        if MXU_BF16:
            a = a.astype(jnp.bfloat16)
            w = w.astype(jnp.bfloat16)
        acc_ref[...] += jnp.dot(a, w, preferred_element_type=jnp.float32)

        @pl.when(k == nk - 1)
        def _():
            r = acc_ref[...] + b_ref[...]
            if combine:                   # (residual + shortcut) / sqrt(2)
                r = (r + s_ref[...]) * INV_SQRT2
            if post_act:
                r = _leaky(r)
            o_ref[...] = r.astype(o_ref.dtype)

    return kernel


def fused_matmul(patches, w_pad, b_pad, *, pre_act=False, post_act=False,
                 shortcut=None):
    """patches: (M, K) f32; w_pad: (Kpad, Npad); b_pad: (1, Npad);
    shortcut: optional (M, Npad).  Returns lane-dense (M, Npad) f32."""
    M, K = patches.shape
    Kpad, Npad = w_pad.shape
    assert Kpad >= K and Npad % LANE == 0

    tk = Kpad if Kpad <= TK_MAX else TK_MAX
    assert Kpad % tk == 0
    nk = Kpad // tk

    tm = _round_up(M, 8) if M <= TM_MAX else TM_MAX
    Mpad = _round_up(M, tm)

    a = patches
    if Kpad != K or Mpad != M:
        a = jnp.pad(a, ((0, Mpad - M), (0, Kpad - K)))

    combine = shortcut is not None
    in_specs = [
        pl.BlockSpec((tm, tk), lambda i, k: (i, k)),
        pl.BlockSpec((tk, Npad), lambda i, k: (k, 0)),
        pl.BlockSpec((1, Npad), lambda i, k: (0, 0)),
    ]
    args = [a, w_pad, b_pad]
    if combine:
        assert shortcut.shape == (M, Npad)
        sc = shortcut if Mpad == M else jnp.pad(shortcut, ((0, Mpad - M), (0, 0)))
        in_specs.append(pl.BlockSpec((tm, Npad), lambda i, k: (i, 0)))
        args.append(sc)

    flops = 2 * Mpad * Kpad * Npad
    bytes_accessed = 4 * (Mpad * Kpad + (Mpad // tm) * Kpad * Npad
                          + Mpad * Npad * (2 if combine else 1) + Npad)

    kern = _make_matmul_kernel(pre_act, post_act, combine, nk)
    out = pl.pallas_call(
        kern,
        out_shape=jax.ShapeDtypeStruct((Mpad, Npad), jnp.float32),
        grid=(Mpad // tm, nk),
        in_specs=in_specs,
        out_specs=pl.BlockSpec((tm, Npad), lambda i, k: (i, 0)),
        scratch_shapes=[pltpu.VMEM((tm, Npad), jnp.float32)],
        compiler_params=pltpu.CompilerParams(
            dimension_semantics=("parallel", "arbitrary"),
            vmem_limit_bytes=VMEM_LIMIT),
        cost_estimate=pl.CostEstimate(
            flops=flops, transcendentals=0, bytes_accessed=bytes_accessed),
    )(*args)
    if Mpad != M:
        out = out[:M]
    return out


# ---------------------------------------------------------------------------
# Fused 2x2 average pool (+ optional LeakyReLU) — single input read
# ---------------------------------------------------------------------------

def _pool_kernel(x_ref, o_ref, *, act):
    y = x_ref[...]                                   # (2, W2, 2, Cp)
    s = y[0] + y[1]                                  # pool along H  -> (W2, 2, Cp)
    p = (s[:, 0:1, :] + s[:, 1:2, :]) * 0.25         # pool along W  -> (W2, 1, Cp)
    if act:
        p = _leaky(p)
    o_ref[...] = p


def pool2x2(x2d, dims, *, act):
    """x2d: (B*H*W, Cp) lane-padded activation -> (B*(H//2)*(W//2), Cp)."""
    B, H, W = dims
    Cp = x2d.shape[1]
    H2, W2 = H // 2, W // 2
    if H % 2 or W % 2:  # PyTorch AvgPool2d(2) silently drops the odd remainder
        x2d = x2d.reshape(B, H, W, Cp)[:, :2 * H2, :2 * W2, :]
        x2d = x2d.reshape(B * 2 * H2 * 2 * W2, Cp)
    x5 = x2d.reshape(B * H2, 2, W2, 2, Cp)           # free row-major reshape
    out = pl.pallas_call(
        functools.partial(_pool_kernel, act=act),
        out_shape=jax.ShapeDtypeStruct((B * H2, W2, 1, Cp), jnp.float32),
        grid=(B * H2,),
        in_specs=[pl.BlockSpec((None, 2, W2, 2, Cp),
                               lambda i: (i, 0, 0, 0, 0))],
        out_specs=pl.BlockSpec((None, W2, 1, Cp), lambda i: (i, 0, 0, 0)),
        compiler_params=pltpu.CompilerParams(
            dimension_semantics=("parallel",), vmem_limit_bytes=VMEM_LIMIT),
    )(x5)
    return out.reshape(B * H2 * W2, Cp)


# ---------------------------------------------------------------------------
# Global average pool (AdaptiveAvgPool2d(1))
# ---------------------------------------------------------------------------

def _gap_kernel(x_ref, o_ref):
    o_ref[...] = jnp.mean(x_ref[...], axis=1)


def global_avg_pool(x2d, dims):
    B, H, W = dims
    Cp = x2d.shape[1]
    x3 = x2d.reshape(B, H * W, Cp)
    return pl.pallas_call(
        _gap_kernel,
        out_shape=jax.ShapeDtypeStruct((B, Cp), jnp.float32),
        grid=(1,),
        in_specs=[pl.BlockSpec((B, H * W, Cp), lambda i: (0, 0, 0))],
        out_specs=pl.BlockSpec((B, Cp), lambda i: (0, 0)),
        compiler_params=pltpu.CompilerParams(
            dimension_semantics=("arbitrary",), vmem_limit_bytes=VMEM_LIMIT),
    )(x3)


# ---------------------------------------------------------------------------
# Conv = JAX im2col glue + fused Pallas matmul
# ---------------------------------------------------------------------------

def _im2col(x4, ksize, pad):
    B, H, W, C = x4.shape
    if pad:
        x4 = jnp.pad(x4, ((0, 0), (pad, pad), (pad, pad), (0, 0)))
    Ho = H + 2 * pad - ksize + 1
    Wo = W + 2 * pad - ksize + 1
    taps = [x4[:, i:i + Ho, j:j + Wo, :]
            for i in range(ksize) for j in range(ksize)]
    patches = jnp.concatenate(taps, axis=-1).reshape(B * Ho * Wo,
                                                     ksize * ksize * C)
    return patches, (B, Ho, Wo)


def conv2d(x2d, dims, C, layer, *, pad, pre_act=False, post_act=False,
           shortcut=None):
    """x2d: (B*H*W, Cp) lane-padded activation (true channels = C).
    Returns ((B*Ho*Wo, Npad) lane-padded output, (B, Ho, Wo))."""
    B, H, W = dims
    x4 = x2d[:, :C].reshape(B, H, W, C)
    patches, odims = _im2col(x4, layer["k"], pad)
    out = fused_matmul(patches, layer["w"], layer["b"],
                       pre_act=pre_act, post_act=post_act, shortcut=shortcut)
    return out, odims


# ---------------------------------------------------------------------------
# Model
# ---------------------------------------------------------------------------

def res_blk(x2d, dims, blk):
    d_in, d_out = blk["d_in"], blk["d_out"]
    B, H, W = dims
    # shortcut: [1x1 conv] -> avgpool2x2  (conv consumes the lane-padded slab
    # directly: padded channels are zero and the padded weight rows are zero)
    s2d = x2d
    if "sc_w" in blk:
        s2d = fused_matmul(s2d, blk["sc_w"], blk["sc_b"])
    s2d = pool2x2(s2d, dims, act=False)
    # residual: leaky -> conv1 -> avgpool+leaky (fused) -> conv2 (+combine)
    r2d, _ = conv2d(x2d, dims, d_in, blk["conv1"], pad=1, pre_act=True)
    r2d = pool2x2(r2d, dims, act=True)
    dims2 = (B, H // 2, W // 2)
    out2d, odims = conv2d(r2d, dims2, d_in, blk["conv2"], pad=1, shortcut=s2d)
    return out2d, odims, d_out


def classifier_forward(x_nchw, params):
    B, _, H, W = x_nchw.shape
    x4 = jnp.transpose(x_nchw, (0, 2, 3, 1)).astype(jnp.float32)  # NHWC, C=1
    x2d = x4.reshape(B * H * W, 1)
    dims = (B, H, W)
    # stem 3x3 conv
    x2d, dims = conv2d(x2d, dims, 1, params["stem"], pad=1)
    d = params["dim_in"]
    for blk in params["blocks"]:
        x2d, dims, d = res_blk(x2d, dims, blk)
    # LeakyReLU -> Conv5x5 (valid) -> LeakyReLU   (both activations fused)
    x2d, dims = conv2d(x2d, dims, d, params["conv5"], pad=0,
                       pre_act=True, post_act=True)
    # AdaptiveAvgPool2d(1)
    v = global_avg_pool(x2d, dims)                    # (B, Cp)
    # final 1x1 conv on a 1x1 map == linear layer
    out = fused_matmul(v, params["final_w"], params["final_b"])
    return out[:, :params["num_domains"]]             # == out.view(B, -1)


# ---------------------------------------------------------------------------
# Parameter init (PyTorch-shaped) + one-time packing into lane-padded matrices
# ---------------------------------------------------------------------------

def _uniform_conv_init(key, cout, cin, kh, kw, bias=True):
    k1, k2 = jax.random.split(key)
    bound = 1.0 / math.sqrt(cin * kh * kw)
    w = jax.random.uniform(k1, (cout, cin, kh, kw), jnp.float32, -bound, bound)
    if bias:
        b = jax.random.uniform(k2, (cout,), jnp.float32, -bound, bound)
    else:
        b = jnp.zeros((cout,), jnp.float32)
    return w, b


def _pack_conv(w, b):
    """(Cout, Cin, KH, KW) torch weight -> padded (Kpad, Npad) matmul weight."""
    cout, cin, kh, kw = w.shape
    K, N = kh * kw * cin, cout
    w_mat = jnp.transpose(w, (2, 3, 1, 0)).reshape(K, N)
    Kpad = _round_up(K, LANE)
    if Kpad > TK_MAX:
        Kpad = _round_up(K, TK_MAX)
    Npad = _round_up(N, LANE)
    w_mat = jnp.pad(w_mat, ((0, Kpad - K), (0, Npad - N)))
    b_row = jnp.pad(b, (0, Npad - N)).reshape(1, Npad)
    return {"k": kh, "w": w_mat, "b": b_row}


def init_classifier_params(key, num_domains, dim_in, max_conv_dim, repeat_num):
    keys = jax.random.split(key, 3 + repeat_num)
    params = {"num_domains": num_domains, "dim_in": dim_in}
    w, b = _uniform_conv_init(keys[0], dim_in, 1, 3, 3)
    params["stem"] = _pack_conv(w, b)
    blocks = []
    d_in = dim_in
    for lid in range(repeat_num):
        d_out = min(d_in * 2, max_conv_dim)
        bkeys = jax.random.split(keys[1 + lid], 3)
        blk = {"d_in": d_in, "d_out": d_out}
        w1, b1 = _uniform_conv_init(bkeys[0], d_in, d_in, 3, 3)
        blk["conv1"] = _pack_conv(w1, b1)
        w2, b2 = _uniform_conv_init(bkeys[1], d_out, d_in, 3, 3)
        blk["conv2"] = _pack_conv(w2, b2)
        if d_in != d_out:
            wsc, bsc = _uniform_conv_init(bkeys[2], d_out, d_in, 1, 1,
                                          bias=False)
            sc = _pack_conv(wsc, bsc)
            blk["sc_w"], blk["sc_b"] = sc["w"], sc["b"]
        blocks.append(blk)
        d_in = d_out
    params["blocks"] = blocks
    w5, b5 = _uniform_conv_init(keys[1 + repeat_num], d_in, d_in, 5, 5)
    params["conv5"] = _pack_conv(w5, b5)
    wf, bf = _uniform_conv_init(keys[2 + repeat_num], num_domains, d_in, 1, 1)
    fc = _pack_conv(wf, bf)
    params["final_w"], params["final_b"] = fc["w"], fc["b"]
    return params


if __name__ == "__main__":
    key = jax.random.PRNGKey(0)
    pkey, xkey = jax.random.split(key)

    # Small but structurally faithful configuration.
    num_domains, dim_in, max_conv_dim, repeat_num = 3, 8, 16, 2
    B, H, W = 2, 32, 32  # spatial survives 2x downsample twice + 5x5 valid conv

    params = init_classifier_params(pkey, num_domains, dim_in, max_conv_dim,
                                    repeat_num)
    x = jax.random.normal(xkey, (B, 1, H, W), jnp.float32)  # NCHW like PyTorch

    fwd = jax.jit(lambda inp: classifier_forward(inp, params))
    out = jax.block_until_ready(fwd(x))
    assert out.shape == (B, num_domains), out.shape
    assert out.dtype == jnp.float32
    print("KERNEL_OK")
</pallas_src>

<mosaic_0001>
module attributes {stable_mosaic.version = 11 : i64} {
  func.func @kernel(%arg0: i32, %arg1: i32, %arg2: memref<512x128xf32, #tpu.memory_space<vmem>>, %arg3: memref<128x128xf32, #tpu.memory_space<vmem>>, %arg4: memref<1x128xf32, #tpu.memory_space<vmem>>, %arg5: memref<512x128xf32, #tpu.memory_space<vmem>>, %arg6: memref<512x128xf32, #tpu.memory_space<vmem>>) attributes {dimension_semantics = [#tpu.dimension_semantics<parallel>, #tpu.dimension_semantics<arbitrary>], iteration_bounds = array<i64: 4, 1>, scalar_prefetch = 0 : i64, scratch_operands = 1 : i64, tpu.core_type = #tpu.core_type<tc>, window_params = [{transform_indices = @transform_0, window_bounds = array<i64: 512, 128>}, {transform_indices = @transform_1, window_bounds = array<i64: 128, 128>}, {pipeline_mode = #tpu.pipeline_mode<synchronous>, transform_indices = @transform_2, window_bounds = array<i64: 1, 128>}, {transform_indices = @transform_3, window_bounds = array<i64: 512, 128>}]} {
    %c0_i32 = arith.constant 0 : i32
    %0 = arith.cmpi eq, %arg1, %c0_i32 : i32
    %1 = arith.extui %0 : i1 to i32
    %c0_i32_0 = arith.constant 0 : i32
    %2 = arith.cmpi ne, %1, %c0_i32_0 : i32
    scf.if %2 {
      %cst_10 = arith.constant 0.000000e+00 : f32
      %12 = vector.broadcast %cst_10 : f32 to vector<512x128xf32>
      %c0_11 = arith.constant 0 : index
      %c0_12 = arith.constant 0 : index
      %13 = vector.load %arg6[%c0_11, %c0_12] : memref<512x128xf32, #tpu.memory_space<vmem>>, vector<512x128xf32>
      tpu.vector_store %arg6[%c0_11, %c0_12], %12 {strides = array<i32>} : memref<512x128xf32, #tpu.memory_space<vmem>>, vector<512x128xf32>,
    } else {
    }
    %c0 = arith.constant 0 : index
    %c0_1 = arith.constant 0 : index
    %3 = vector.load %arg2[%c0, %c0_1] : memref<512x128xf32, #tpu.memory_space<vmem>>, vector<512x128xf32>
    %c0_2 = arith.constant 0 : index
    %c0_3 = arith.constant 0 : index
    %4 = vector.load %arg3[%c0_2, %c0_3] : memref<128x128xf32, #tpu.memory_space<vmem>>, vector<128x128xf32>
    %c0_4 = arith.constant 0 : index
    %c0_5 = arith.constant 0 : index
    %5 = vector.load %arg6[%c0_4, %c0_5] : memref<512x128xf32, #tpu.memory_space<vmem>>, vector<512x128xf32>
    %cst = arith.constant dense<0.000000e+00> : vector<512x128xf32>
    %6 = tpu.matmul %3, %4, %cst {dimension_numbers = #tpu.dot_dimension_numbers<[1], [0], [0], [1], [0, 0, 1, 1], [], []>} : vector<512x128xf32>, vector<128x128xf32>, vector<512x128xf32> -> vector<512x128xf32>
    %7 = arith.addf %5, %6 : vector<512x128xf32>
    %c0_6 = arith.constant 0 : index
    %c0_7 = arith.constant 0 : index
    %8 = vector.load %arg6[%c0_6, %c0_7] : memref<512x128xf32, #tpu.memory_space<vmem>>, vector<512x128xf32>
    tpu.vector_store %arg6[%c0_6, %c0_7], %7 {strides = array<i32>} : memref<512x128xf32, #tpu.memory_space<vmem>>, vector<512x128xf32>,
    %c0_i32_8 = arith.constant 0 : i32
    %9 = arith.cmpi eq, %arg1, %c0_i32_8 : i32
    %10 = arith.extui %9 : i1 to i32
    %c0_i32_9 = arith.constant 0 : i32
    %11 = arith.cmpi ne, %10, %c0_i32_9 : i32
    scf.if %11 {
      %c0_10 = arith.constant 0 : index
      %c0_11 = arith.constant 0 : index
      %12 = vector.load %arg6[%c0_10, %c0_11] : memref<512x128xf32, #tpu.memory_space<vmem>>, vector<512x128xf32>
      %c0_12 = arith.constant 0 : index
      %c0_13 = arith.constant 0 : index
      %13 = vector.load %arg4[%c0_12, %c0_13] : memref<1x128xf32, #tpu.memory_space<vmem>>, vector<1x128xf32>
      %14 = vector.broadcast %13 : vector<1x128xf32> to vector<512x128xf32>
      %15 = arith.addf %12, %14 : vector<512x128xf32>
      %c0_14 = arith.constant 0 : index
      %c0_15 = arith.constant 0 : index
      %16 = vector.load %arg5[%c0_14, %c0_15] : memref<512x128xf32, #tpu.memory_space<vmem>>, vector<512x128xf32>
      tpu.vector_store %arg5[%c0_14, %c0_15], %15 {strides = array<i32>} : memref<512x128xf32, #tpu.memory_space<vmem>>, vector<512x128xf32>,
    } else {
    }
    return
  }
  func.func @transform_0(%arg0: i32, %arg1: i32) -> (i32, i32) {
    %c0_i32 = arith.constant 0 : i32
    return %arg0, %arg1 : i32, i32
  }
  func.func @transform_1(%arg0: i32, %arg1: i32) -> (i32, i32) {
    %c0_i32 = arith.constant 0 : i32
    %c0_i32_0 = arith.constant 0 : i32
    return %arg1, %c0_i32 : i32, i32
  }
  func.func @transform_2(%arg0: i32, %arg1: i32) -> (i32, i32) {
    %c0_i32 = arith.constant 0 : i32
    %c0_i32_0 = arith.constant 0 : i32
    %c0_i32_1 = arith.constant 0 : i32
    return %c0_i32, %c0_i32_0 : i32, i32
  }
  func.func @transform_3(%arg0: i32, %arg1: i32) -> (i32, i32) {
    %c0_i32 = arith.constant 0 : i32
    %c0_i32_0 = arith.constant 0 : i32
    return %arg0, %c0_i32 : i32, i32
  }
}

module attributes {stable_mosaic.version = 11 : i64} {
  func.func @kernel(%arg0: i32, %arg1: i32, %arg2: memref<512x128xf32, #tpu.memory_space<vmem>>, %arg3: memref<128x128xf32, #tpu.memory_space<vmem>>, %arg4: memref<1x128xf32, #tpu.memory_space<vmem>>, %arg5: memref<512x128xf32, #tpu.memory_space<vmem>>, %arg6: memref<512x128xf32, #tpu.memory_space<vmem>>) attributes {dimension_semantics = [#tpu.dimension_semantics<parallel>, #tpu.dimension_semantics<arbitrary>], iteration_bounds = array<i64: 4, 1>, scalar_prefetch = 0 : i64, scratch_operands = 1 : i64, tpu.core_type = #tpu.core_type<tc>, window_params = [{transform_indices = @transform_0, window_bounds = array<i64: 512, 128>}, {transform_indices = @transform_1, window_bounds = array<i64: 128, 128>}, {pipeline_mode = #tpu.pipeline_mode<synchronous>, transform_indices = @transform_2, window_bounds = array<i64: 1, 128>}, {transform_indices = @transform_3, window_bounds = array<i64: 512, 128>}]} {
    %c0_i32 = arith.constant 0 : i32
    %0 = arith.cmpi eq, %arg1, %c0_i32 : i32
    %1 = arith.extui %0 : i1 to i32
    %c0_i32_0 = arith.constant 0 : i32
    %2 = arith.cmpi ne, %1, %c0_i32_0 : i32
    scf.if %2 {
      %cst_12 = arith.constant 0.000000e+00 : f32
      %17 = vector.broadcast %cst_12 : f32 to vector<512x128xf32>
      %c0_13 = arith.constant 0 : index
      %c0_14 = arith.constant 0 : index
      %18 = vector.load %arg6[%c0_13, %c0_14] : memref<512x128xf32, #tpu.memory_space<vmem>>, vector<512x128xf32>
      tpu.vector_store %arg6[%c0_13, %c0_14], %17 {strides = array<i32>} : memref<512x128xf32, #tpu.memory_space<vmem>>, vector<512x128xf32>,
    } else {
    }
    %c0 = arith.constant 0 : index
    %c0_1 = arith.constant 0 : index
    %3 = vector.load %arg2[%c0, %c0_1] : memref<512x128xf32, #tpu.memory_space<vmem>>, vector<512x128xf32>
    %c0_2 = arith.constant 0 : index
    %c0_3 = arith.constant 0 : index
    %4 = vector.load %arg3[%c0_2, %c0_3] : memref<128x128xf32, #tpu.memory_space<vmem>>, vector<128x128xf32>
    %cst = arith.constant 0.000000e+00 : f32
    %5 = vector.broadcast %cst : f32 to vector<512x128xf32>
    %6 = arith.cmpf oge, %3, %5 : vector<512x128xf32>
    %cst_4 = arith.constant 2.000000e-01 : f32
    %7 = vector.broadcast %cst_4 : f32 to vector<512x128xf32>
    %8 = arith.mulf %7, %3 : vector<512x128xf32>
    %9 = arith.select %6, %3, %8 : vector<512x128xi1>, vector<512x128xf32>
    %c0_5 = arith.constant 0 : index
    %c0_6 = arith.constant 0 : index
    %10 = vector.load %arg6[%c0_5, %c0_6] : memref<512x128xf32, #tpu.memory_space<vmem>>, vector<512x128xf32>
    %cst_7 = arith.constant dense<0.000000e+00> : vector<512x128xf32>
    %11 = tpu.matmul %9, %4, %cst_7 {dimension_numbers = #tpu.dot_dimension_numbers<[1], [0], [0], [1], [0, 0, 1, 1], [], []>} : vector<512x128xf32>, vector<128x128xf32>, vector<512x128xf32> -> vector<512x128xf32>
    %12 = arith.addf %10, %11 : vector<512x128xf32>
    %c0_8 = arith.constant 0 : index
    %c0_9 = arith.constant 0 : index
    %13 = vector.load %arg6[%c0_8, %c0_9] : memref<512x128xf32, #tpu.memory_space<vmem>>, vector<512x128xf32>
    tpu.vector_store %arg6[%c0_8, %c0_9], %12 {strides = array<i32>} : memref<512x128xf32, #tpu.memory_space<vmem>>, vector<512x128xf32>,
    %c0_i32_10 = arith.constant 0 : i32
    %14 = arith.cmpi eq, %arg1, %c0_i32_10 : i32
    %15 = arith.extui %14 : i1 to i32
    %c0_i32_11 = arith.constant 0 : i32
    %16 = arith.cmpi ne, %15, %c0_i32_11 : i32
    scf.if %16 {
      %c0_12 = arith.constant 0 : index
      %c0_13 = arith.constant 0 : index
      %17 = vector.load %arg6[%c0_12, %c0_13] : memref<512x128xf32, #tpu.memory_space<vmem>>, vector<512x128xf32>
      %c0_14 = arith.constant 0 : index
      %c0_15 = arith.constant 0 : index
      %18 = vector.load %arg4[%c0_14, %c0_15] : memref<1x128xf32, #tpu.memory_space<vmem>>, vector<1x128xf32>
      %19 = vector.broadcast %18 : vector<1x128xf32> to vector<512x128xf32>
      %20 = arith.addf %17, %19 : vector<512x128xf32>
      %c0_16 = arith.constant 0 : index
      %c0_17 = arith.constant 0 : index
      %21 = vector.load %arg5[%c0_16, %c0_17] : memref<512x128xf32, #tpu.memory_space<vmem>>, vector<512x128xf32>
      tpu.vector_store %arg5[%c0_16, %c0_17], %20 {strides = array<i32>} : memref<512x128xf32, #tpu.memory_space<vmem>>, vector<512x128xf32>,
    } else {
    }
    return
  }
  func.func @transform_0(%arg0: i32, %arg1: i32) -> (i32, i32) {
    %c0_i32 = arith.constant 0 : i32
    return %arg0, %arg1 : i32, i32
  }
  func.func @transform_1(%arg0: i32, %arg1: i32) -> (i32, i32) {
    %c0_i32 = arith.constant 0 : i32
    %c0_i32_0 = arith.constant 0 : i32
    return %arg1, %c0_i32 : i32, i32
  }
  func.func @transform_2(%arg0: i32, %arg1: i32) -> (i32, i32) {
    %c0_i32 = arith.constant 0 : i32
    %c0_i32_0 = arith.constant 0 : i32
    %c0_i32_1 = arith.constant 0 : i32
    return %c0_i32, %c0_i32_0 : i32, i32
  }
  func.func @transform_3(%arg0: i32, %arg1: i32) -> (i32, i32) {
    %c0_i32 = arith.constant 0 : i32
    %c0_i32_0 = arith.constant 0 : i32
    return %arg0, %c0_i32 : i32, i32
  }
}

module attributes {stable_mosaic.version = 11 : i64} {
  func.func @_pool_kernel(%arg0: i32, %arg1: memref<1x2x16x2x128xf32, #tpu.memory_space<vmem>>, %arg2: memref<1x16x1x128xf32, #tpu.memory_space<vmem>>) attributes {dimension_semantics = [#tpu.dimension_semantics<parallel>], iteration_bounds = array<i64: 32>, scalar_prefetch = 0 : i64, scratch_operands = 0 : i64, tpu.core_type = #tpu.core_type<tc>, window_params = [{transform_indices = @transform_0, window_bounds = array<i64: 1, 2, 16, 2, 128>}, {transform_indices = @transform_1, window_bounds = array<i64: 1, 16, 1, 128>}]} {
    %c0 = arith.constant 0 : index
    %c0_0 = arith.constant 0 : index
    %c0_1 = arith.constant 0 : index
    %c0_2 = arith.constant 0 : index
    %c0_3 = arith.constant 0 : index
    %0 = vector.load %arg1[%c0, %c0_0, %c0_1, %c0_2, %c0_3] : memref<1x2x16x2x128xf32, #tpu.memory_space<vmem>>, vector<1x2x16x2x128xf32>
    %1 = vector.shape_cast %0 : vector<1x2x16x2x128xf32> to vector<2x16x2x128xf32>
    %2 = vector.extract_strided_slice %1 {offsets = [0, 0, 0, 0], sizes = [1, 16, 2, 128], strides = [1, 1, 1, 1]} : vector<2x16x2x128xf32> to vector<1x16x2x128xf32>
    %3 = vector.shape_cast %2 : vector<1x16x2x128xf32> to vector<16x2x128xf32>
    %4 = vector.extract_strided_slice %1 {offsets = [1, 0, 0, 0], sizes = [1, 16, 2, 128], strides = [1, 1, 1, 1]} : vector<2x16x2x128xf32> to vector<1x16x2x128xf32>
    %5 = vector.shape_cast %4 : vector<1x16x2x128xf32> to vector<16x2x128xf32>
    %6 = arith.addf %3, %5 : vector<16x2x128xf32>
    %7 = vector.extract_strided_slice %6 {offsets = [0, 0, 0], sizes = [16, 1, 128], strides = [1, 1, 1]} : vector<16x2x128xf32> to vector<16x1x128xf32>
    %8 = vector.extract_strided_slice %6 {offsets = [0, 1, 0], sizes = [16, 1, 128], strides = [1, 1, 1]} : vector<16x2x128xf32> to vector<16x1x128xf32>
    %9 = arith.addf %7, %8 : vector<16x1x128xf32>
    %cst = arith.constant 2.500000e-01 : f32
    %10 = vector.broadcast %cst : f32 to vector<16x1x128xf32>
    %11 = arith.mulf %9, %10 : vector<16x1x128xf32>
    %cst_4 = arith.constant 0.000000e+00 : f32
    %12 = vector.broadcast %cst_4 : f32 to vector<16x1x128xf32>
    %13 = arith.cmpf oge, %11, %12 : vector<16x1x128xf32>
    %cst_5 = arith.constant 2.000000e-01 : f32
    %14 = vector.broadcast %cst_5 : f32 to vector<16x1x128xf32>
    %15 = arith.mulf %14, %11 : vector<16x1x128xf32>
    %16 = arith.select %13, %11, %15 : vector<16x1x128xi1>, vector<16x1x128xf32>
    %c0_6 = arith.constant 0 : index
    %c0_7 = arith.constant 0 : index
    %c0_8 = arith.constant 0 : index
    %c0_9 = arith.constant 0 : index
    %17 = vector.load %arg2[%c0_6, %c0_7, %c0_8, %c0_9] : memref<1x16x1x128xf32, #tpu.memory_space<vmem>>, vector<1x16x1x128xf32>
    %18 = vector.shape_cast %17 : vector<1x16x1x128xf32> to vector<16x1x128xf32>
    %19 = vector.shape_cast %16 : vector<16x1x128xf32> to vector<1x16x1x128xf32>
    tpu.vector_store %arg2[%c0_6, %c0_7, %c0_8, %c0_9], %19 {strides = array<i32>} : memref<1x16x1x128xf32, #tpu.memory_space<vmem>>, vector<1x16x1x128xf32>,
    return
  }
  func.func @transform_0(%arg0: i32) -> (i32, i32, i32, i32, i32) {
    %c0_i32 = arith.constant 0 : i32
    %c0_i32_0 = arith.constant 0 : i32
    %c0_i32_1 = arith.constant 0 : i32
    %c0_i32_2 = arith.constant 0 : i32
    %c0_i32_3 = arith.constant 0 : i32
    return %arg0, %c0_i32, %c0_i32_0, %c0_i32_1, %c0_i32_2 : i32, i32, i32, i32, i32
  }
  func.func @transform_1(%arg0: i32) -> (i32, i32, i32, i32) {
    %c0_i32 = arith.constant 0 : i32
    %c0_i32_0 = arith.constant 0 : i32
    %c0_i32_1 = arith.constant 0 : i32
    %c0_i32_2 = arith.constant 0 : i32
    return %arg0, %c0_i32, %c0_i32_0, %c0_i32_1 : i32, i32, i32, i32
  }
}

module attributes {stable_mosaic.version = 11 : i64} {
  func.func @_pool_kernel(%arg0: i32, %arg1: memref<1x2x16x2x128xf32, #tpu.memory_space<vmem>>, %arg2: memref<1x16x1x128xf32, #tpu.memory_space<vmem>>) attributes {dimension_semantics = [#tpu.dimension_semantics<parallel>], iteration_bounds = array<i64: 32>, scalar_prefetch = 0 : i64, scratch_operands = 0 : i64, tpu.core_type = #tpu.core_type<tc>, window_params = [{transform_indices = @transform_0, window_bounds = array<i64: 1, 2, 16, 2, 128>}, {transform_indices = @transform_1, window_bounds = array<i64: 1, 16, 1, 128>}]} {
    %c0 = arith.constant 0 : index
    %c0_0 = arith.constant 0 : index
    %c0_1 = arith.constant 0 : index
    %c0_2 = arith.constant 0 : index
    %c0_3 = arith.constant 0 : index
    %0 = vector.load %arg1[%c0, %c0_0, %c0_1, %c0_2, %c0_3] : memref<1x2x16x2x128xf32, #tpu.memory_space<vmem>>, vector<1x2x16x2x128xf32>
    %1 = vector.shape_cast %0 : vector<1x2x16x2x128xf32> to vector<2x16x2x128xf32>
    %2 = vector.extract_strided_slice %1 {offsets = [0, 0, 0, 0], sizes = [1, 16, 2, 128], strides = [1, 1, 1, 1]} : vector<2x16x2x128xf32> to vector<1x16x2x128xf32>
    %3 = vector.shape_cast %2 : vector<1x16x2x128xf32> to vector<16x2x128xf32>
    %4 = vector.extract_strided_slice %1 {offsets = [1, 0, 0, 0], sizes = [1, 16, 2, 128], strides = [1, 1, 1, 1]} : vector<2x16x2x128xf32> to vector<1x16x2x128xf32>
    %5 = vector.shape_cast %4 : vector<1x16x2x128xf32> to vector<16x2x128xf32>
    %6 = arith.addf %3, %5 : vector<16x2x128xf32>
    %7 = vector.extract_strided_slice %6 {offsets = [0, 0, 0], sizes = [16, 1, 128], strides = [1, 1, 1]} : vector<16x2x128xf32> to vector<16x1x128xf32>
    %8 = vector.extract_strided_slice %6 {offsets = [0, 1, 0], sizes = [16, 1, 128], strides = [1, 1, 1]} : vector<16x2x128xf32> to vector<16x1x128xf32>
    %9 = arith.addf %7, %8 : vector<16x1x128xf32>
    %cst = arith.constant 2.500000e-01 : f32
    %10 = vector.broadcast %cst : f32 to vector<16x1x128xf32>
    %11 = arith.mulf %9, %10 : vector<16x1x128xf32>
    %c0_4 = arith.constant 0 : index
    %c0_5 = arith.constant 0 : index
    %c0_6 = arith.constant 0 : index
    %c0_7 = arith.constant 0 : index
    %12 = vector.load %arg2[%c0_4, %c0_5, %c0_6, %c0_7] : memref<1x16x1x128xf32, #tpu.memory_space<vmem>>, vector<1x16x1x128xf32>
    %13 = vector.shape_cast %12 : vector<1x16x1x128xf32> to vector<16x1x128xf32>
    %14 = vector.shape_cast %11 : vector<16x1x128xf32> to vector<1x16x1x128xf32>
    tpu.vector_store %arg2[%c0_4, %c0_5, %c0_6, %c0_7], %14 {strides = array<i32>} : memref<1x16x1x128xf32, #tpu.memory_space<vmem>>, vector<1x16x1x128xf32>,
    return
  }
  func.func @transform_0(%arg0: i32) -> (i32, i32, i32, i32, i32) {
    %c0_i32 = arith.constant 0 : i32
    %c0_i32_0 = arith.constant 0 : i32
    %c0_i32_1 = arith.constant 0 : i32
    %c0_i32_2 = arith.constant 0 : i32
    %c0_i32_3 = arith.constant 0 : i32
    return %arg0, %c0_i32, %c0_i32_0, %c0_i32_1, %c0_i32_2 : i32, i32, i32, i32, i32
  }
  func.func @transform_1(%arg0: i32) -> (i32, i32, i32, i32) {
    %c0_i32 = arith.constant 0 : i32
    %c0_i32_0 = arith.constant 0 : i32
    %c0_i32_1 = arith.constant 0 : i32
    %c0_i32_2 = arith.constant 0 : i32
    return %arg0, %c0_i32, %c0_i32_0, %c0_i32_1 : i32, i32, i32, i32
  }
}

module attributes {stable_mosaic.version = 11 : i64} {
  func.func @kernel(%arg0: i32, %arg1: i32, %arg2: memref<512x128xf32, #tpu.memory_space<vmem>>, %arg3: memref<128x128xf32, #tpu.memory_space<vmem>>, %arg4: memref<1x128xf32, #tpu.memory_space<vmem>>, %arg5: memref<512x128xf32, #tpu.memory_space<vmem>>, %arg6: memref<512x128xf32, #tpu.memory_space<vmem>>, %arg7: memref<512x128xf32, #tpu.memory_space<vmem>>) attributes {dimension_semantics = [#tpu.dimension_semantics<parallel>, #tpu.dimension_semantics<arbitrary>], iteration_bounds = array<i64: 1, 1>, scalar_prefetch = 0 : i64, scratch_operands = 1 : i64, tpu.core_type = #tpu.core_type<tc>, window_params = [{transform_indices = @transform_0, window_bounds = array<i64: 512, 128>}, {transform_indices = @transform_1, window_bounds = array<i64: 128, 128>}, {pipeline_mode = #tpu.pipeline_mode<synchronous>, transform_indices = @transform_2, window_bounds = array<i64: 1, 128>}, {transform_indices = @transform_3, window_bounds = array<i64: 512, 128>}, {transform_indices = @transform_4, window_bounds = array<i64: 512, 128>}]} {
    %c0_i32 = arith.constant 0 : i32
    %0 = arith.cmpi eq, %arg1, %c0_i32 : i32
    %1 = arith.extui %0 : i1 to i32
    %c0_i32_0 = arith.constant 0 : i32
    %2 = arith.cmpi ne, %1, %c0_i32_0 : i32
    scf.if %2 {
      %cst_10 = arith.constant 0.000000e+00 : f32
      %12 = vector.broadcast %cst_10 : f32 to vector<512x128xf32>
      %c0_11 = arith.constant 0 : index
      %c0_12 = arith.constant 0 : index
      %13 = vector.load %arg7[%c0_11, %c0_12] : memref<512x128xf32, #tpu.memory_space<vmem>>, vector<512x128xf32>
      tpu.vector_store %arg7[%c0_11, %c0_12], %12 {strides = array<i32>} : memref<512x128xf32, #tpu.memory_space<vmem>>, vector<512x128xf32>,
    } else {
    }
    %c0 = arith.constant 0 : index
    %c0_1 = arith.constant 0 : index
    %3 = vector.load %arg2[%c0, %c0_1] : memref<512x128xf32, #tpu.memory_space<vmem>>, vector<512x128xf32>
    %c0_2 = arith.constant 0 : index
    %c0_3 = arith.constant 0 : index
    %4 = vector.load %arg3[%c0_2, %c0_3] : memref<128x128xf32, #tpu.memory_space<vmem>>, vector<128x128xf32>
    %c0_4 = arith.constant 0 : index
    %c0_5 = arith.constant 0 : index
    %5 = vector.load %arg7[%c0_4, %c0_5] : memref<512x128xf32, #tpu.memory_space<vmem>>, vector<512x128xf32>
    %cst = arith.constant dense<0.000000e+00> : vector<512x128xf32>
    %6 = tpu.matmul %3, %4, %cst {dimension_numbers = #tpu.dot_dimension_numbers<[1], [0], [0], [1], [0, 0, 1, 1], [], []>} : vector<512x128xf32>, vector<128x128xf32>, vector<512x128xf32> -> vector<512x128xf32>
    %7 = arith.addf %5, %6 : vector<512x128xf32>
    %c0_6 = arith.constant 0 : index
    %c0_7 = arith.constant 0 : index
    %8 = vector.load %arg7[%c0_6, %c0_7] : memref<512x128xf32, #tpu.memory_space<vmem>>, vector<512x128xf32>
    tpu.vector_store %arg7[%c0_6, %c0_7], %7 {strides = array<i32>} : memref<512x128xf32, #tpu.memory_space<vmem>>, vector<512x128xf32>,
    %c0_i32_8 = arith.constant 0 : i32
    %9 = arith.cmpi eq, %arg1, %c0_i32_8 : i32
    %10 = arith.extui %9 : i1 to i32
    %c0_i32_9 = arith.constant 0 : i32
    %11 = arith.cmpi ne, %10, %c0_i32_9 : i32
    scf.if %11 {
      %c0_10 = arith.constant 0 : index
      %c0_11 = arith.constant 0 : index
      %12 = vector.load %arg7[%c0_10, %c0_11] : memref<512x128xf32, #tpu.memory_space<vmem>>, vector<512x128xf32>
      %c0_12 = arith.constant 0 : index
      %c0_13 = arith.constant 0 : index
      %13 = vector.load %arg4[%c0_12, %c0_13] : memref<1x128xf32, #tpu.memory_space<vmem>>, vector<1x128xf32>
      %14 = vector.broadcast %13 : vector<1x128xf32> to vector<512x128xf32>
      %15 = arith.addf %12, %14 : vector<512x128xf32>
      %c0_14 = arith.constant 0 : index
      %c0_15 = arith.constant 0 : index
      %16 = vector.load %arg5[%c0_14, %c0_15] : memref<512x128xf32, #tpu.memory_space<vmem>>, vector<512x128xf32>
      %17 = arith.addf %15, %16 : vector<512x128xf32>
      %cst_16 = arith.constant 0.707106769 : f32
      %18 = vector.broadcast %cst_16 : f32 to vector<512x128xf32>
      %19 = arith.mulf %17, %18 : vector<512x128xf32>
      %c0_17 = arith.constant 0 : index
      %c0_18 = arith.constant 0 : index
      %20 = vector.load %arg6[%c0_17, %c0_18] : memref<512x128xf32, #tpu.memory_space<vmem>>, vector<512x128xf32>
      tpu.vector_store %arg6[%c0_17, %c0_18], %19 {strides = array<i32>} : memref<512x128xf32, #tpu.memory_space<vmem>>, vector<512x128xf32>,
    } else {
    }
    return
  }
  func.func @transform_0(%arg0: i32, %arg1: i32) -> (i32, i32) {
    %c0_i32 = arith.constant 0 : i32
    return %arg0, %arg1 : i32, i32
  }
  func.func @transform_1(%arg0: i32, %arg1: i32) -> (i32, i32) {
    %c0_i32 = arith.constant 0 : i32
    %c0_i32_0 = arith.constant 0 : i32
    return %arg1, %c0_i32 : i32, i32
  }
  func.func @transform_2(%arg0: i32, %arg1: i32) -> (i32, i32) {
    %c0_i32 = arith.constant 0 : i32
    %c0_i32_0 = arith.constant 0 : i32
    %c0_i32_1 = arith.constant 0 : i32
    return %c0_i32, %c0_i32_0 : i32, i32
  }
  func.func @transform_3(%arg0: i32, %arg1: i32) -> (i32, i32) {
    %c0_i32 = arith.constant 0 : i32
    %c0_i32_0 = arith.constant 0 : i32
    return %arg0, %c0_i32 : i32, i32
  }
  func.func @transform_4(%arg0: i32, %arg1: i32) -> (i32, i32) {
    %c0_i32 = arith.constant 0 : i32
    %c0_i32_0 = arith.constant 0 : i32
    return %arg0, %c0_i32 : i32, i32
  }
}

module attributes {stable_mosaic.version = 11 : i64} {
  func.func @kernel(%arg0: i32, %arg1: i32, %arg2: memref<512x256xf32, #tpu.memory_space<vmem>>, %arg3: memref<256x128xf32, #tpu.memory_space<vmem>>, %arg4: memref<1x128xf32, #tpu.memory_space<vmem>>, %arg5: memref<512x128xf32, #tpu.memory_space<vmem>>, %arg6: memref<512x128xf32, #tpu.memory_space<vmem>>) attributes {dimension_semantics = [#tpu.dimension_semantics<parallel>, #tpu.dimension_semantics<arbitrary>], iteration_bounds = array<i64: 1, 1>, scalar_prefetch = 0 : i64, scratch_operands = 1 : i64, tpu.core_type = #tpu.core_type<tc>, window_params = [{transform_indices = @transform_0, window_bounds = array<i64: 512, 256>}, {transform_indices = @transform_1, window_bounds = array<i64: 256, 128>}, {pipeline_mode = #tpu.pipeline_mode<synchronous>, transform_indices = @transform_2, window_bounds = array<i64: 1, 128>}, {transform_indices = @transform_3, window_bounds = array<i64: 512, 128>}]} {
    %c0_i32 = arith.constant 0 : i32
    %0 = arith.cmpi eq, %arg1, %c0_i32 : i32
    %1 = arith.extui %0 : i1 to i32
    %c0_i32_0 = arith.constant 0 : i32
    %2 = arith.cmpi ne, %1, %c0_i32_0 : i32
    scf.if %2 {
      %cst_12 = arith.constant 0.000000e+00 : f32
      %17 = vector.broadcast %cst_12 : f32 to vector<512x128xf32>
      %c0_13 = arith.constant 0 : index
      %c0_14 = arith.constant 0 : index
      %18 = vector.load %arg6[%c0_13, %c0_14] : memref<512x128xf32, #tpu.memory_space<vmem>>, vector<512x128xf32>
      tpu.vector_store %arg6[%c0_13, %c0_14], %17 {strides = array<i32>} : memref<512x128xf32, #tpu.memory_space<vmem>>, vector<512x128xf32>,
    } else {
    }
    %c0 = arith.constant 0 : index
    %c0_1 = arith.constant 0 : index
    %3 = vector.load %arg2[%c0, %c0_1] : memref<512x256xf32, #tpu.memory_space<vmem>>, vector<512x256xf32>
    %c0_2 = arith.constant 0 : index
    %c0_3 = arith.constant 0 : index
    %4 = vector.load %arg3[%c0_2, %c0_3] : memref<256x128xf32, #tpu.memory_space<vmem>>, vector<256x128xf32>
    %cst = arith.constant 0.000000e+00 : f32
    %5 = vector.broadcast %cst : f32 to vector<512x256xf32>
    %6 = arith.cmpf oge, %3, %5 : vector<512x256xf32>
    %cst_4 = arith.constant 2.000000e-01 : f32
    %7 = vector.broadcast %cst_4 : f32 to vector<512x256xf32>
    %8 = arith.mulf %7, %3 : vector<512x256xf32>
    %9 = arith.select %6, %3, %8 : vector<512x256xi1>, vector<512x256xf32>
    %c0_5 = arith.constant 0 : index
    %c0_6 = arith.constant 0 : index
    %10 = vector.load %arg6[%c0_5, %c0_6] : memref<512x128xf32, #tpu.memory_space<vmem>>, vector<512x128xf32>
    %cst_7 = arith.constant dense<0.000000e+00> : vector<512x128xf32>
    %11 = tpu.matmul %9, %4, %cst_7 {dimension_numbers = #tpu.dot_dimension_numbers<[1], [0], [0], [1], [0, 0, 1, 1], [], []>} : vector<512x256xf32>, vector<256x128xf32>, vector<512x128xf32> -> vector<512x128xf32>
    %12 = arith.addf %10, %11 : vector<512x128xf32>
    %c0_8 = arith.constant 0 : index
    %c0_9 = arith.constant 0 : index
    %13 = vector.load %arg6[%c0_8, %c0_9] : memref<512x128xf32, #tpu.memory_space<vmem>>, vector<512x128xf32>
    tpu.vector_store %arg6[%c0_8, %c0_9], %12 {strides = array<i32>} : memref<512x128xf32, #tpu.memory_space<vmem>>, vector<512x128xf32>,
    %c0_i32_10 = arith.constant 0 : i32
    %14 = arith.cmpi eq, %arg1, %c0_i32_10 : i32
    %15 = arith.extui %14 : i1 to i32
    %c0_i32_11 = arith.constant 0 : i32
    %16 = arith.cmpi ne, %15, %c0_i32_11 : i32
    scf.if %16 {
      %c0_12 = arith.constant 0 : index
      %c0_13 = arith.constant 0 : index
      %17 = vector.load %arg6[%c0_12, %c0_13] : memref<512x128xf32, #tpu.memory_space<vmem>>, vector<512x128xf32>
      %c0_14 = arith.constant 0 : index
      %c0_15 = arith.constant 0 : index
      %18 = vector.load %arg4[%c0_14, %c0_15] : memref<1x128xf32, #tpu.memory_space<vmem>>, vector<1x128xf32>
      %19 = vector.broadcast %18 : vector<1x128xf32> to vector<512x128xf32>
      %20 = arith.addf %17, %19 : vector<512x128xf32>
      %c0_16 = arith.constant 0 : index
      %c0_17 = arith.constant 0 : index
      %21 = vector.load %arg5[%c0_16, %c0_17] : memref<512x128xf32, #tpu.memory_space<vmem>>, vector<512x128xf32>
      tpu.vector_store %arg5[%c0_16, %c0_17], %20 {strides = array<i32>} : memref<512x128xf32, #tpu.memory_space<vmem>>, vector<512x128xf32>,
    } else {
    }
    return
  }
  func.func @transform_0(%arg0: i32, %arg1: i32) -> (i32, i32) {
    %c0_i32 = arith.constant 0 : i32
    return %arg0, %arg1 : i32, i32
  }
  func.func @transform_1(%arg0: i32, %arg1: i32) -> (i32, i32) {
    %c0_i32 = arith.constant 0 : i32
    %c0_i32_0 = arith.constant 0 : i32
    return %arg1, %c0_i32 : i32, i32
  }
  func.func @transform_2(%arg0: i32, %arg1: i32) -> (i32, i32) {
    %c0_i32 = arith.constant 0 : i32
    %c0_i32_0 = arith.constant 0 : i32
    %c0_i32_1 = arith.constant 0 : i32
    return %c0_i32, %c0_i32_0 : i32, i32
  }
  func.func @transform_3(%arg0: i32, %arg1: i32) -> (i32, i32) {
    %c0_i32 = arith.constant 0 : i32
    %c0_i32_0 = arith.constant 0 : i32
    return %arg0, %c0_i32 : i32, i32
  }
}

module attributes {stable_mosaic.version = 11 : i64} {
  func.func @_pool_kernel(%arg0: i32, %arg1: memref<1x2x8x2x128xf32, #tpu.memory_space<vmem>>, %arg2: memref<1x8x1x128xf32, #tpu.memory_space<vmem>>) attributes {dimension_semantics = [#tpu.dimension_semantics<parallel>], iteration_bounds = array<i64: 16>, scalar_prefetch = 0 : i64, scratch_operands = 0 : i64, tpu.core_type = #tpu.core_type<tc>, window_params = [{transform_indices = @transform_0, window_bounds = array<i64: 1, 2, 8, 2, 128>}, {transform_indices = @transform_1, window_bounds = array<i64: 1, 8, 1, 128>}]} {
    %c0 = arith.constant 0 : index
    %c0_0 = arith.constant 0 : index
    %c0_1 = arith.constant 0 : index
    %c0_2 = arith.constant 0 : index
    %c0_3 = arith.constant 0 : index
    %0 = vector.load %arg1[%c0, %c0_0, %c0_1, %c0_2, %c0_3] : memref<1x2x8x2x128xf32, #tpu.memory_space<vmem>>, vector<1x2x8x2x128xf32>
    %1 = vector.shape_cast %0 : vector<1x2x8x2x128xf32> to vector<2x8x2x128xf32>
    %2 = vector.extract_strided_slice %1 {offsets = [0, 0, 0, 0], sizes = [1, 8, 2, 128], strides = [1, 1, 1, 1]} : vector<2x8x2x128xf32> to vector<1x8x2x128xf32>
    %3 = vector.shape_cast %2 : vector<1x8x2x128xf32> to vector<8x2x128xf32>
    %4 = vector.extract_strided_slice %1 {offsets = [1, 0, 0, 0], sizes = [1, 8, 2, 128], strides = [1, 1, 1, 1]} : vector<2x8x2x128xf32> to vector<1x8x2x128xf32>
    %5 = vector.shape_cast %4 : vector<1x8x2x128xf32> to vector<8x2x128xf32>
    %6 = arith.addf %3, %5 : vector<8x2x128xf32>
    %7 = vector.extract_strided_slice %6 {offsets = [0, 0, 0], sizes = [8, 1, 128], strides = [1, 1, 1]} : vector<8x2x128xf32> to vector<8x1x128xf32>
    %8 = vector.extract_strided_slice %6 {offsets = [0, 1, 0], sizes = [8, 1, 128], strides = [1, 1, 1]} : vector<8x2x128xf32> to vector<8x1x128xf32>
    %9 = arith.addf %7, %8 : vector<8x1x128xf32>
    %cst = arith.constant 2.500000e-01 : f32
    %10 = vector.broadcast %cst : f32 to vector<8x1x128xf32>
    %11 = arith.mulf %9, %10 : vector<8x1x128xf32>
    %cst_4 = arith.constant 0.000000e+00 : f32
    %12 = vector.broadcast %cst_4 : f32 to vector<8x1x128xf32>
    %13 = arith.cmpf oge, %11, %12 : vector<8x1x128xf32>
    %cst_5 = arith.constant 2.000000e-01 : f32
    %14 = vector.broadcast %cst_5 : f32 to vector<8x1x128xf32>
    %15 = arith.mulf %14, %11 : vector<8x1x128xf32>
    %16 = arith.select %13, %11, %15 : vector<8x1x128xi1>, vector<8x1x128xf32>
    %c0_6 = arith.constant 0 : index
    %c0_7 = arith.constant 0 : index
    %c0_8 = arith.constant 0 : index
    %c0_9 = arith.constant 0 : index
    %17 = vector.load %arg2[%c0_6, %c0_7, %c0_8, %c0_9] : memref<1x8x1x128xf32, #tpu.memory_space<vmem>>, vector<1x8x1x128xf32>
    %18 = vector.shape_cast %17 : vector<1x8x1x128xf32> to vector<8x1x128xf32>
    %19 = vector.shape_cast %16 : vector<8x1x128xf32> to vector<1x8x1x128xf32>
    tpu.vector_store %arg2[%c0_6, %c0_7, %c0_8, %c0_9], %19 {strides = array<i32>} : memref<1x8x1x128xf32, #tpu.memory_space<vmem>>, vector<1x8x1x128xf32>,
    return
  }
  func.func @transform_0(%arg0: i32) -> (i32, i32, i32, i32, i32) {
    %c0_i32 = arith.constant 0 : i32
    %c0_i32_0 = arith.constant 0 : i32
    %c0_i32_1 = arith.constant 0 : i32
    %c0_i32_2 = arith.constant 0 : i32
    %c0_i32_3 = arith.constant 0 : i32
    return %arg0, %c0_i32, %c0_i32_0, %c0_i32_1, %c0_i32_2 : i32, i32, i32, i32, i32
  }
  func.func @transform_1(%arg0: i32) -> (i32, i32, i32, i32) {
    %c0_i32 = arith.constant 0 : i32
    %c0_i32_0 = arith.constant 0 : i32
    %c0_i32_1 = arith.constant 0 : i32
    %c0_i32_2 = arith.constant 0 : i32
    return %arg0, %c0_i32, %c0_i32_0, %c0_i32_1 : i32, i32, i32, i32
  }
}

module attributes {stable_mosaic.version = 11 : i64} {
  func.func @_pool_kernel(%arg0: i32, %arg1: memref<1x2x8x2x128xf32, #tpu.memory_space<vmem>>, %arg2: memref<1x8x1x128xf32, #tpu.memory_space<vmem>>) attributes {dimension_semantics = [#tpu.dimension_semantics<parallel>], iteration_bounds = array<i64: 16>, scalar_prefetch = 0 : i64, scratch_operands = 0 : i64, tpu.core_type = #tpu.core_type<tc>, window_params = [{transform_indices = @transform_0, window_bounds = array<i64: 1, 2, 8, 2, 128>}, {transform_indices = @transform_1, window_bounds = array<i64: 1, 8, 1, 128>}]} {
    %c0 = arith.constant 0 : index
    %c0_0 = arith.constant 0 : index
    %c0_1 = arith.constant 0 : index
    %c0_2 = arith.constant 0 : index
    %c0_3 = arith.constant 0 : index
    %0 = vector.load %arg1[%c0, %c0_0, %c0_1, %c0_2, %c0_3] : memref<1x2x8x2x128xf32, #tpu.memory_space<vmem>>, vector<1x2x8x2x128xf32>
    %1 = vector.shape_cast %0 : vector<1x2x8x2x128xf32> to vector<2x8x2x128xf32>
    %2 = vector.extract_strided_slice %1 {offsets = [0, 0, 0, 0], sizes = [1, 8, 2, 128], strides = [1, 1, 1, 1]} : vector<2x8x2x128xf32> to vector<1x8x2x128xf32>
    %3 = vector.shape_cast %2 : vector<1x8x2x128xf32> to vector<8x2x128xf32>
    %4 = vector.extract_strided_slice %1 {offsets = [1, 0, 0, 0], sizes = [1, 8, 2, 128], strides = [1, 1, 1, 1]} : vector<2x8x2x128xf32> to vector<1x8x2x128xf32>
    %5 = vector.shape_cast %4 : vector<1x8x2x128xf32> to vector<8x2x128xf32>
    %6 = arith.addf %3, %5 : vector<8x2x128xf32>
    %7 = vector.extract_strided_slice %6 {offsets = [0, 0, 0], sizes = [8, 1, 128], strides = [1, 1, 1]} : vector<8x2x128xf32> to vector<8x1x128xf32>
    %8 = vector.extract_strided_slice %6 {offsets = [0, 1, 0], sizes = [8, 1, 128], strides = [1, 1, 1]} : vector<8x2x128xf32> to vector<8x1x128xf32>
    %9 = arith.addf %7, %8 : vector<8x1x128xf32>
    %cst = arith.constant 2.500000e-01 : f32
    %10 = vector.broadcast %cst : f32 to vector<8x1x128xf32>
    %11 = arith.mulf %9, %10 : vector<8x1x128xf32>
    %c0_4 = arith.constant 0 : index
    %c0_5 = arith.constant 0 : index
    %c0_6 = arith.constant 0 : index
    %c0_7 = arith.constant 0 : index
    %12 = vector.load %arg2[%c0_4, %c0_5, %c0_6, %c0_7] : memref<1x8x1x128xf32, #tpu.memory_space<vmem>>, vector<1x8x1x128xf32>
    %13 = vector.shape_cast %12 : vector<1x8x1x128xf32> to vector<8x1x128xf32>
    %14 = vector.shape_cast %11 : vector<8x1x128xf32> to vector<1x8x1x128xf32>
    tpu.vector_store %arg2[%c0_4, %c0_5, %c0_6, %c0_7], %14 {strides = array<i32>} : memref<1x8x1x128xf32, #tpu.memory_space<vmem>>, vector<1x8x1x128xf32>,
    return
  }
  func.func @transform_0(%arg0: i32) -> (i32, i32, i32, i32, i32) {
    %c0_i32 = arith.constant 0 : i32
    %c0_i32_0 = arith.constant 0 : i32
    %c0_i32_1 = arith.constant 0 : i32
    %c0_i32_2 = arith.constant 0 : i32
    %c0_i32_3 = arith.constant 0 : i32
    return %arg0, %c0_i32, %c0_i32_0, %c0_i32_1, %c0_i32_2 : i32, i32, i32, i32, i32
  }
  func.func @transform_1(%arg0: i32) -> (i32, i32, i32, i32) {
    %c0_i32 = arith.constant 0 : i32
    %c0_i32_0 = arith.constant 0 : i32
    %c0_i32_1 = arith.constant 0 : i32
    %c0_i32_2 = arith.constant 0 : i32
    return %arg0, %c0_i32, %c0_i32_0, %c0_i32_1 : i32, i32, i32, i32
  }
}

module attributes {stable_mosaic.version = 11 : i64} {
  func.func @kernel(%arg0: i32, %arg1: i32, %arg2: memref<128x256xf32, #tpu.memory_space<vmem>>, %arg3: memref<256x128xf32, #tpu.memory_space<vmem>>, %arg4: memref<1x128xf32, #tpu.memory_space<vmem>>, %arg5: memref<128x128xf32, #tpu.memory_space<vmem>>, %arg6: memref<128x128xf32, #tpu.memory_space<vmem>>, %arg7: memref<128x128xf32, #tpu.memory_space<vmem>>) attributes {dimension_semantics = [#tpu.dimension_semantics<parallel>, #tpu.dimension_semantics<arbitrary>], iteration_bounds = array<i64: 1, 1>, scalar_prefetch = 0 : i64, scratch_operands = 1 : i64, tpu.core_type = #tpu.core_type<tc>, window_params = [{transform_indices = @transform_0, window_bounds = array<i64: 128, 256>}, {transform_indices = @transform_1, window_bounds = array<i64: 256, 128>}, {pipeline_mode = #tpu.pipeline_mode<synchronous>, transform_indices = @transform_2, window_bounds = array<i64: 1, 128>}, {transform_indices = @transform_3, window_bounds = array<i64: 128, 128>}, {transform_indices = @transform_4, window_bounds = array<i64: 128, 128>}]} {
    %c0_i32 = arith.constant 0 : i32
    %0 = arith.cmpi eq, %arg1, %c0_i32 : i32
    %1 = arith.extui %0 : i1 to i32
    %c0_i32_0 = arith.constant 0 : i32
    %2 = arith.cmpi ne, %1, %c0_i32_0 : i32
    scf.if %2 {
      %cst_10 = arith.constant 0.000000e+00 : f32
      %12 = vector.broadcast %cst_10 : f32 to vector<128x128xf32>
      %c0_11 = arith.constant 0 : index
      %c0_12 = arith.constant 0 : index
      %13 = vector.load %arg7[%c0_11, %c0_12] : memref<128x128xf32, #tpu.memory_space<vmem>>, vector<128x128xf32>
      tpu.vector_store %arg7[%c0_11, %c0_12], %12 {strides = array<i32>} : memref<128x128xf32, #tpu.memory_space<vmem>>, vector<128x128xf32>,
    } else {
    }
    %c0 = arith.constant 0 : index
    %c0_1 = arith.constant 0 : index
    %3 = vector.load %arg2[%c0, %c0_1] : memref<128x256xf32, #tpu.memory_space<vmem>>, vector<128x256xf32>
    %c0_2 = arith.constant 0 : index
    %c0_3 = arith.constant 0 : index
    %4 = vector.load %arg3[%c0_2, %c0_3] : memref<256x128xf32, #tpu.memory_space<vmem>>, vector<256x128xf32>
    %c0_4 = arith.constant 0 : index
    %c0_5 = arith.constant 0 : index
    %5 = vector.load %arg7[%c0_4, %c0_5] : memref<128x128xf32, #tpu.memory_space<vmem>>, vector<128x128xf32>
    %cst = arith.constant dense<0.000000e+00> : vector<128x128xf32>
    %6 = tpu.matmul %3, %4, %cst {dimension_numbers = #tpu.dot_dimension_numbers<[1], [0], [0], [1], [0, 0, 1, 1], [], []>} : vector<128x256xf32>, vector<256x128xf32>, vector<128x128xf32> -> vector<128x128xf32>
    %7 = arith.addf %5, %6 : vector<128x128xf32>
    %c0_6 = arith.constant 0 : index
    %c0_7 = arith.constant 0 : index
    %8 = vector.load %arg7[%c0_6, %c0_7] : memref<128x128xf32, #tpu.memory_space<vmem>>, vector<128x128xf32>
    tpu.vector_store %arg7[%c0_6, %c0_7], %7 {strides = array<i32>} : memref<128x128xf32, #tpu.memory_space<vmem>>, vector<128x128xf32>,
    %c0_i32_8 = arith.constant 0 : i32
    %9 = arith.cmpi eq, %arg1, %c0_i32_8 : i32
    %10 = arith.extui %9 : i1 to i32
    %c0_i32_9 = arith.constant 0 : i32
    %11 = arith.cmpi ne, %10, %c0_i32_9 : i32
    scf.if %11 {
      %c0_10 = arith.constant 0 : index
      %c0_11 = arith.constant 0 : index
      %12 = vector.load %arg7[%c0_10, %c0_11] : memref<128x128xf32, #tpu.memory_space<vmem>>, vector<128x128xf32>
      %c0_12 = arith.constant 0 : index
      %c0_13 = arith.constant 0 : index
      %13 = vector.load %arg4[%c0_12, %c0_13] : memref<1x128xf32, #tpu.memory_space<vmem>>, vector<1x128xf32>
      %14 = vector.broadcast %13 : vector<1x128xf32> to vector<128x128xf32>
      %15 = arith.addf %12, %14 : vector<128x128xf32>
      %c0_14 = arith.constant 0 : index
      %c0_15 = arith.constant 0 : index
      %16 = vector.load %arg5[%c0_14, %c0_15] : memref<128x128xf32, #tpu.memory_space<vmem>>, vector<128x128xf32>
      %17 = arith.addf %15, %16 : vector<128x128xf32>
      %cst_16 = arith.constant 0.707106769 : f32
      %18 = vector.broadcast %cst_16 : f32 to vector<128x128xf32>
      %19 = arith.mulf %17, %18 : vector<128x128xf32>
      %c0_17 = arith.constant 0 : index
      %c0_18 = arith.constant 0 : index
      %20 = vector.load %arg6[%c0_17, %c0_18] : memref<128x128xf32, #tpu.memory_space<vmem>>, vector<128x128xf32>
      tpu.vector_store %arg6[%c0_17, %c0_18], %19 {strides = array<i32>} : memref<128x128xf32, #tpu.memory_space<vmem>>, vector<128x128xf32>,
    } else {
    }
    return
  }
  func.func @transform_0(%arg0: i32, %arg1: i32) -> (i32, i32) {
    %c0_i32 = arith.constant 0 : i32
    return %arg0, %arg1 : i32, i32
  }
  func.func @transform_1(%arg0: i32, %arg1: i32) -> (i32, i32) {
    %c0_i32 = arith.constant 0 : i32
    %c0_i32_0 = arith.constant 0 : i32
    return %arg1, %c0_i32 : i32, i32
  }
  func.func @transform_2(%arg0: i32, %arg1: i32) -> (i32, i32) {
    %c0_i32 = arith.constant 0 : i32
    %c0_i32_0 = arith.constant 0 : i32
    %c0_i32_1 = arith.constant 0 : i32
    return %c0_i32, %c0_i32_0 : i32, i32
  }
  func.func @transform_3(%arg0: i32, %arg1: i32) -> (i32, i32) {
    %c0_i32 = arith.constant 0 : i32
    %c0_i32_0 = arith.constant 0 : i32
    return %arg0, %c0_i32 : i32, i32
  }
  func.func @transform_4(%arg0: i32, %arg1: i32) -> (i32, i32) {
    %c0_i32 = arith.constant 0 : i32
    %c0_i32_0 = arith.constant 0 : i32
    return %arg0, %c0_i32 : i32, i32
  }
}

module attributes {stable_mosaic.version = 11 : i64} {
  func.func @kernel(%arg0: i32, %arg1: i32, %arg2: memref<32x512xf32, #tpu.memory_space<vmem>>, %arg3: memref<512x128xf32, #tpu.memory_space<vmem>>, %arg4: memref<1x128xf32, #tpu.memory_space<vmem>>, %arg5: memref<32x128xf32, #tpu.memory_space<vmem>>, %arg6: memref<32x128xf32, #tpu.memory_space<vmem>>) attributes {dimension_semantics = [#tpu.dimension_semantics<parallel>, #tpu.dimension_semantics<arbitrary>], iteration_bounds = array<i64: 1, 1>, scalar_prefetch = 0 : i64, scratch_operands = 1 : i64, tpu.core_type = #tpu.core_type<tc>, window_params = [{transform_indices = @transform_0, window_bounds = array<i64: 32, 512>}, {transform_indices = @transform_1, window_bounds = array<i64: 512, 128>}, {pipeline_mode = #tpu.pipeline_mode<synchronous>, transform_indices = @transform_2, window_bounds = array<i64: 1, 128>}, {transform_indices = @transform_3, window_bounds = array<i64: 32, 128>}]} {
    %c0_i32 = arith.constant 0 : i32
    %0 = arith.cmpi eq, %arg1, %c0_i32 : i32
    %1 = arith.extui %0 : i1 to i32
    %c0_i32_0 = arith.constant 0 : i32
    %2 = arith.cmpi ne, %1, %c0_i32_0 : i32
    scf.if %2 {
      %cst_12 = arith.constant 0.000000e+00 : f32
      %17 = vector.broadcast %cst_12 : f32 to vector<32x128xf32>
      %c0_13 = arith.constant 0 : index
      %c0_14 = arith.constant 0 : index
      %18 = vector.load %arg6[%c0_13, %c0_14] : memref<32x128xf32, #tpu.memory_space<vmem>>, vector<32x128xf32>
      tpu.vector_store %arg6[%c0_13, %c0_14], %17 {strides = array<i32>} : memref<32x128xf32, #tpu.memory_space<vmem>>, vector<32x128xf32>,
    } else {
    }
    %c0 = arith.constant 0 : index
    %c0_1 = arith.constant 0 : index
    %3 = vector.load %arg2[%c0, %c0_1] : memref<32x512xf32, #tpu.memory_space<vmem>>, vector<32x512xf32>
    %c0_2 = arith.constant 0 : index
    %c0_3 = arith.constant 0 : index
    %4 = vector.load %arg3[%c0_2, %c0_3] : memref<512x128xf32, #tpu.memory_space<vmem>>, vector<512x128xf32>
    %cst = arith.constant 0.000000e+00 : f32
    %5 = vector.broadcast %cst : f32 to vector<32x512xf32>
    %6 = arith.cmpf oge, %3, %5 : vector<32x512xf32>
    %cst_4 = arith.constant 2.000000e-01 : f32
    %7 = vector.broadcast %cst_4 : f32 to vector<32x512xf32>
    %8 = arith.mulf %7, %3 : vector<32x512xf32>
    %9 = arith.select %6, %3, %8 : vector<32x512xi1>, vector<32x512xf32>
    %c0_5 = arith.constant 0 : index
    %c0_6 = arith.constant 0 : index
    %10 = vector.load %arg6[%c0_5, %c0_6] : memref<32x128xf32, #tpu.memory_space<vmem>>, vector<32x128xf32>
    %cst_7 = arith.constant dense<0.000000e+00> : vector<32x128xf32>
    %11 = tpu.matmul %9, %4, %cst_7 {dimension_numbers = #tpu.dot_dimension_numbers<[1], [0], [0], [1], [0, 0, 1, 1], [], []>} : vector<32x512xf32>, vector<512x128xf32>, vector<32x128xf32> -> vector<32x128xf32>
    %12 = arith.addf %10, %11 : vector<32x128xf32>
    %c0_8 = arith.constant 0 : index
    %c0_9 = arith.constant 0 : index
    %13 = vector.load %arg6[%c0_8, %c0_9] : memref<32x128xf32, #tpu.memory_space<vmem>>, vector<32x128xf32>
    tpu.vector_store %arg6[%c0_8, %c0_9], %12 {strides = array<i32>} : memref<32x128xf32, #tpu.memory_space<vmem>>, vector<32x128xf32>,
    %c0_i32_10 = arith.constant 0 : i32
    %14 = arith.cmpi eq, %arg1, %c0_i32_10 : i32
    %15 = arith.extui %14 : i1 to i32
    %c0_i32_11 = arith.constant 0 : i32
    %16 = arith.cmpi ne, %15, %c0_i32_11 : i32
    scf.if %16 {
      %c0_12 = arith.constant 0 : index
      %c0_13 = arith.constant 0 : index
      %17 = vector.load %arg6[%c0_12, %c0_13] : memref<32x128xf32, #tpu.memory_space<vmem>>, vector<32x128xf32>
      %c0_14 = arith.constant 0 : index
      %c0_15 = arith.constant 0 : index
      %18 = vector.load %arg4[%c0_14, %c0_15] : memref<1x128xf32, #tpu.memory_space<vmem>>, vector<1x128xf32>
      %19 = vector.broadcast %18 : vector<1x128xf32> to vector<32x128xf32>
      %20 = arith.addf %17, %19 : vector<32x128xf32>
      %cst_16 = arith.constant 0.000000e+00 : f32
      %21 = vector.broadcast %cst_16 : f32 to vector<32x128xf32>
      %22 = arith.cmpf oge, %20, %21 : vector<32x128xf32>
      %cst_17 = arith.constant 2.000000e-01 : f32
      %23 = vector.broadcast %cst_17 : f32 to vector<32x128xf32>
      %24 = arith.mulf %23, %20 : vector<32x128xf32>
      %25 = arith.select %22, %20, %24 : vector<32x128xi1>, vector<32x128xf32>
      %c0_18 = arith.constant 0 : index
      %c0_19 = arith.constant 0 : index
      %26 = vector.load %arg5[%c0_18, %c0_19] : memref<32x128xf32, #tpu.memory_space<vmem>>, vector<32x128xf32>
      tpu.vector_store %arg5[%c0_18, %c0_19], %25 {strides = array<i32>} : memref<32x128xf32, #tpu.memory_space<vmem>>, vector<32x128xf32>,
    } else {
    }
    return
  }
  func.func @transform_0(%arg0: i32, %arg1: i32) -> (i32, i32) {
    %c0_i32 = arith.constant 0 : i32
    return %arg0, %arg1 : i32, i32
  }
  func.func @transform_1(%arg0: i32, %arg1: i32) -> (i32, i32) {
    %c0_i32 = arith.constant 0 : i32
    %c0_i32_0 = arith.constant 0 : i32
    return %arg1, %c0_i32 : i32, i32
  }
  func.func @transform_2(%arg0: i32, %arg1: i32) -> (i32, i32) {
    %c0_i32 = arith.constant 0 : i32
    %c0_i32_0 = arith.constant 0 : i32
    %c0_i32_1 = arith.constant 0 : i32
    return %c0_i32, %c0_i32_0 : i32, i32
  }
  func.func @transform_3(%arg0: i32, %arg1: i32) -> (i32, i32) {
    %c0_i32 = arith.constant 0 : i32
    %c0_i32_0 = arith.constant 0 : i32
    return %arg0, %c0_i32 : i32, i32
  }
}

module attributes {stable_mosaic.version = 11 : i64} {
  func.func @_gap_kernel(%arg0: i32, %arg1: memref<2x16x128xf32, #tpu.memory_space<vmem>>, %arg2: memref<2x128xf32, #tpu.memory_space<vmem>>) attributes {dimension_semantics = [#tpu.dimension_semantics<arbitrary>], iteration_bounds = array<i64: 1>, scalar_prefetch = 0 : i64, scratch_operands = 0 : i64, tpu.core_type = #tpu.core_type<tc>, window_params = [{pipeline_mode = #tpu.pipeline_mode<synchronous>, transform_indices = @transform_0, window_bounds = array<i64: 2, 16, 128>}, {pipeline_mode = #tpu.pipeline_mode<synchronous>, transform_indices = @transform_1, window_bounds = array<i64: 2, 128>}]} {
    %c0 = arith.constant 0 : index
    %c0_0 = arith.constant 0 : index
    %c0_1 = arith.constant 0 : index
    %0 = vector.load %arg1[%c0, %c0_0, %c0_1] : memref<2x16x128xf32, #tpu.memory_space<vmem>>, vector<2x16x128xf32>
    %cst = arith.constant dense<0.000000e+00> : vector<2x128xf32>
    %1 = vector.multi_reduction <add>, %0, %cst [1] : vector<2x16x128xf32> to vector<2x128xf32>
    %cst_2 = arith.constant 1.600000e+01 : f32
    %2 = vector.broadcast %cst_2 : f32 to vector<2x128xf32>
    %3 = arith.divf %1, %2 : vector<2x128xf32>
    %c0_3 = arith.constant 0 : index
    %c0_4 = arith.constant 0 : index
    %4 = vector.load %arg2[%c0_3, %c0_4] : memref<2x128xf32, #tpu.memory_space<vmem>>, vector<2x128xf32>
    tpu.vector_store %arg2[%c0_3, %c0_4], %3 {strides = array<i32>} : memref<2x128xf32, #tpu.memory_space<vmem>>, vector<2x128xf32>,
    return
  }
  func.func @transform_0(%arg0: i32) -> (i32, i32, i32) {
    %c0_i32 = arith.constant 0 : i32
    %c0_i32_0 = arith.constant 0 : i32
    %c0_i32_1 = arith.constant 0 : i32
    %c0_i32_2 = arith.constant 0 : i32
    return %c0_i32, %c0_i32_0, %c0_i32_1 : i32, i32, i32
  }
  func.func @transform_1(%arg0: i32) -> (i32, i32) {
    %c0_i32 = arith.constant 0 : i32
    %c0_i32_0 = arith.constant 0 : i32
    %c0_i32_1 = arith.constant 0 : i32
    return %c0_i32, %c0_i32_0 : i32, i32
  }
}

module attributes {stable_mosaic.version = 11 : i64} {
  func.func @kernel(%arg0: i32, %arg1: i32, %arg2: memref<8x128xf32, #tpu.memory_space<vmem>>, %arg3: memref<128x128xf32, #tpu.memory_space<vmem>>, %arg4: memref<1x128xf32, #tpu.memory_space<vmem>>, %arg5: memref<8x128xf32, #tpu.memory_space<vmem>>, %arg6: memref<8x128xf32, #tpu.memory_space<vmem>>) attributes {dimension_semantics = [#tpu.dimension_semantics<parallel>, #tpu.dimension_semantics<arbitrary>], iteration_bounds = array<i64: 1, 1>, scalar_prefetch = 0 : i64, scratch_operands = 1 : i64, tpu.core_type = #tpu.core_type<tc>, window_params = [{transform_indices = @transform_0, window_bounds = array<i64: 8, 128>}, {transform_indices = @transform_1, window_bounds = array<i64: 128, 128>}, {pipeline_mode = #tpu.pipeline_mode<synchronous>, transform_indices = @transform_2, window_bounds = array<i64: 1, 128>}, {transform_indices = @transform_3, window_bounds = array<i64: 8, 128>}]} {
    %c0_i32 = arith.constant 0 : i32
    %0 = arith.cmpi eq, %arg1, %c0_i32 : i32
    %1 = arith.extui %0 : i1 to i32
    %c0_i32_0 = arith.constant 0 : i32
    %2 = arith.cmpi ne, %1, %c0_i32_0 : i32
    scf.if %2 {
      %cst_10 = arith.constant 0.000000e+00 : f32
      %12 = vector.broadcast %cst_10 : f32 to vector<8x128xf32>
      %c0_11 = arith.constant 0 : index
      %c0_12 = arith.constant 0 : index
      %13 = vector.load %arg6[%c0_11, %c0_12] : memref<8x128xf32, #tpu.memory_space<vmem>>, vector<8x128xf32>
      tpu.vector_store %arg6[%c0_11, %c0_12], %12 {strides = array<i32>} : memref<8x128xf32, #tpu.memory_space<vmem>>, vector<8x128xf32>,
    } else {
    }
    %c0 = arith.constant 0 : index
    %c0_1 = arith.constant 0 : index
    %3 = vector.load %arg2[%c0, %c0_1] : memref<8x128xf32, #tpu.memory_space<vmem>>, vector<8x128xf32>
    %c0_2 = arith.constant 0 : index
    %c0_3 = arith.constant 0 : index
    %4 = vector.load %arg3[%c0_2, %c0_3] : memref<128x128xf32, #tpu.memory_space<vmem>>, vector<128x128xf32>
    %c0_4 = arith.constant 0 : index
    %c0_5 = arith.constant 0 : index
    %5 = vector.load %arg6[%c0_4, %c0_5] : memref<8x128xf32, #tpu.memory_space<vmem>>, vector<8x128xf32>
    %cst = arith.constant dense<0.000000e+00> : vector<8x128xf32>
    %6 = tpu.matmul %3, %4, %cst {dimension_numbers = #tpu.dot_dimension_numbers<[1], [0], [0], [1], [0, 0, 1, 1], [], []>} : vector<8x128xf32>, vector<128x128xf32>, vector<8x128xf32> -> vector<8x128xf32>
    %7 = arith.addf %5, %6 : vector<8x128xf32>
    %c0_6 = arith.constant 0 : index
    %c0_7 = arith.constant 0 : index
    %8 = vector.load %arg6[%c0_6, %c0_7] : memref<8x128xf32, #tpu.memory_space<vmem>>, vector<8x128xf32>
    tpu.vector_store %arg6[%c0_6, %c0_7], %7 {strides = array<i32>} : memref<8x128xf32, #tpu.memory_space<vmem>>, vector<8x128xf32>,
    %c0_i32_8 = arith.constant 0 : i32
    %9 = arith.cmpi eq, %arg1, %c0_i32_8 : i32
    %10 = arith.extui %9 : i1 to i32
    %c0_i32_9 = arith.constant 0 : i32
    %11 = arith.cmpi ne, %10, %c0_i32_9 : i32
    scf.if %11 {
      %c0_10 = arith.constant 0 : index
      %c0_11 = arith.constant 0 : index
      %12 = vector.load %arg6[%c0_10, %c0_11] : memref<8x128xf32, #tpu.memory_space<vmem>>, vector<8x128xf32>
      %c0_12 = arith.constant 0 : index
      %c0_13 = arith.constant 0 : index
      %13 = vector.load %arg4[%c0_12, %c0_13] : memref<1x128xf32, #tpu.memory_space<vmem>>, vector<1x128xf32>
      %14 = vector.broadcast %13 : vector<1x128xf32> to vector<8x128xf32>
      %15 = arith.addf %12, %14 : vector<8x128xf32>
      %c0_14 = arith.constant 0 : index
      %c0_15 = arith.constant 0 : index
      %16 = vector.load %arg5[%c0_14, %c0_15] : memref<8x128xf32, #tpu.memory_space<vmem>>, vector<8x128xf32>
      tpu.vector_store %arg5[%c0_14, %c0_15], %15 {strides = array<i32>} : memref<8x128xf32, #tpu.memory_space<vmem>>, vector<8x128xf32>,
    } else {
    }
    return
  }
  func.func @transform_0(%arg0: i32, %arg1: i32) -> (i32, i32) {
    %c0_i32 = arith.constant 0 : i32
    return %arg0, %arg1 : i32, i32
  }
  func.func @transform_1(%arg0: i32, %arg1: i32) -> (i32, i32) {
    %c0_i32 = arith.constant 0 : i32
    %c0_i32_0 = arith.constant 0 : i32
    return %arg1, %c0_i32 : i32, i32
  }
  func.func @transform_2(%arg0: i32, %arg1: i32) -> (i32, i32) {
    %c0_i32 = arith.constant 0 : i32
    %c0_i32_0 = arith.constant 0 : i32
    %c0_i32_1 = arith.constant 0 : i32
    return %c0_i32, %c0_i32_0 : i32, i32
  }
  func.func @transform_3(%arg0: i32, %arg1: i32) -> (i32, i32) {
    %c0_i32 = arith.constant 0 : i32
    %c0_i32_0 = arith.constant 0 : i32
    return %arg0, %c0_i32 : i32, i32
  }
}

</mosaic_0001>

<llo_original>
// kernel: _lambda_.13
$region0: #{_lambda_.13}
  #allocation0 [shape = 'u32[]', space=smem, size = 0x4, offset = 0x4, fixed_abs, tag = 'smem constant byte address 0x4 - core index']
  #allocation1 [shape = 'u32[144,128]{1,0:T(1,128)}', space=vmem, size = 0x12000, scoped, tag = 'internal scratch']
  #allocation2 [shape = 'f32[512,128]{1,0:T(8,128)}', space=vmem, size = 0x40000, scoped, tag = 'scratch operand']
  %s0 = inlined_call_operand.hbm [shape: f32[2048,128], index: 0, kind: input, shape index: {}]
  %s1 = inlined_call_operand.hbm [shape: f32[128,128], index: 1, kind: input, shape index: {}]
  %s2 = inlined_call_operand.hbm [shape: f32[1,128], index: 2, kind: input, shape index: {}]
  %s3 = inlined_call_operand.hbm [shape: f32[2048,128], index: 3, kind: output, shape index: {}]
  %s4 = sld [smem:[#allocation0]]
  $region65: #{_lambda_.13} parent=0
    _
  %s6 = ssub.s32 1, %s4
  %s7 = scalar_select 0, %s6, %s4
  $region1: #{_lambda_.13} parent=0
    #allocation3 [shape = 'u8[524288]{0}', space=vmem, size = 0x80000, scoped, tag = 'input window, operand 0']
    #allocation4 [shape = 's32[2]{0}', space=sflag, size = 0x8, scoped, tag = 'scoped memory for _lambda_.13']
    #allocation5 [shape = 's32[2]{0}', space=sflag, size = 0x8, scoped, tag = 'scoped memory for _lambda_.13']
    #allocation6 [shape = 'u8[65536]{0}', space=vmem, size = 0x10000, scoped, tag = 'input window, operand 1, single buffered']
    #allocation7 [shape = 's32[1]{0}', space=sflag, size = 0x4, scoped, tag = 'scoped memory for _lambda_.13']
    #allocation8 [shape = 'u8[512]{0}', space=vmem, size = 0x400, scoped, tag = 'input window, operand 2, single buffered']
    #allocation9 [shape = 'u8[524288]{0}', space=vmem, size = 0x80000, scoped, tag = 'output window, operand 0']
    %8 = vsyncpa [#allocation4], 0
    %s9 = scalar_lea.sflag [#allocation4], 1
    %10 = vsyncpa %s9, 0
    %11 = vsyncpa [#allocation7], 0
    %12 = vsyncpa [#allocation5], 0
    %s13 = scalar_lea.sflag [#allocation5], 1
    %14 = vsyncpa %s13, 0
    loop: start=0, step=1, limit=6
    $region2: #{_lambda_.13} parent=1 // loop_pre_header
      _
    $region3: #{_lambda_.13} parent=1 // loop_header
      %s16 = sphi 0, %s20
      %p17 = scmp.ge.s32.totalorder %s16, 6
      %s23 = sphi 0, %s35
      %s24 = sphi 0, %s31
      %s25 = sphi 0, %s23
      %s26 = sphi 0, %s24
      %s27 = sphi 0, %s25
      %s28 = sphi 0, %s26
      %s40 = sphi 0, %s42
      %s43 = sphi 0, %s40
      %s44 = sphi 0, %s43
      %s60 = sphi 0, %s44
      %s66 = sphi 0, %s68
      %s69 = sphi 0, %s66
      %s70 = sphi 0, %s69
      %s86 = sphi 0, %s70
      %s90 = sphi 0, %s90
      %s92 = sphi 0, %s90
      %s93 = sphi 0, %s92
      %s107 = sphi 0, %s93
      %s113 = sphi 0, %s115
      %s116 = sphi 0, %s113
      %s117 = sphi 0, %s116
      %s133 = sphi 0, %s117
    $region4: #{_lambda_.13} parent=1 // loop_header_branch
      %19 = sbr.rel (%p17) target = $region8
    $region5: #{_lambda_.13} parent=1 // loop_body
      %s21 = ssub.s32 %s16, 1
      %s22 = ssub.s32 %s16, 2
      %s29 = sadd.s32 1, %s24
      %p30 = scmp.ge.s32.totalorder %s29, 1
      %s31 = scalar_select %p30, 0, %s29
      %s32 = sadd.s32 1, %s23
      %s33 = scalar_select %p30, %s32, %s23
      %p34 = scmp.ge.s32.totalorder %s33, 4
      %s35 = scalar_select %p34, 0, %s33
      %s36 = ssub.s32 %s23, %s35
      %s37 = ssub.s32 %s24, %s31
      %s38 = sor.u32 %s36, %s37
      %p39 = scmp.eq.s32.totalorder %s38, 0
      %s41 = sadd.s32 %s40, 1
      %s42 = scalar_select %p39, %s40, %s41
      %p45 = pneg %p39
      %p46 = scmp.eq.s32.totalorder %s16, 3
      %p47 = por %p45, %p46
      %p48 = scmp.ne.s32.totalorder %s40, %s43
      %p49 = scmp.eq.s32.totalorder %s16, 0
      %p50 = por %p48, %p49
      %p51 = scmp.ne.s32.totalorder %s40, %s43
      %p52 = scmp.eq.s32.totalorder %s21, 3
      %p53 = por %p51, %p52
      %p54 = scmp.ne.s32.totalorder %s43, %s44
      %p55 = scmp.eq.s32.totalorder %s21, 0
      %p56 = por %p54, %p55
      %p57 = scmp.ne.s32.totalorder %s43, %s44
      %p58 = scmp.eq.s32.totalorder %s22, 3
      %p59 = por %p57, %p58
      %p61 = scmp.ne.s32.totalorder %s44, %s60
      %p62 = scmp.eq.s32.totalorder %s22, 0
      %p63 = por %p61, %p62
      %s64 = ssub.s32 %s24, %s31
      %p65 = scmp.eq.s32.totalorder %s64, 0
      %s67 = sadd.s32 %s66, 1
      %s68 = scalar_select %p65, %s66, %s67
      %p71 = pneg %p65
      %p72 = scmp.eq.s32.totalorder %s16, 3
      %p73 = por %p71, %p72
      %p74 = scmp.ne.s32.totalorder %s66, %s69
      %p75 = scmp.eq.s32.totalorder %s16, 0
      %p76 = por %p74, %p75
      %p77 = scmp.ne.s32.totalorder %s66, %s69
      %p78 = scmp.eq.s32.totalorder %s21, 3
      %p79 = por %p77, %p78
      %p80 = scmp.ne.s32.totalorder %s69, %s70
      %p81 = scmp.eq.s32.totalorder %s21, 0
      %p82 = por %p80, %p81
      %p83 = scmp.ne.s32.totalorder %s69, %s70
      %p84 = scmp.eq.s32.totalorder %s22, 3
      %p85 = por %p83, %p84
      %p87 = scmp.ne.s32.totalorder %s70, %s86
      %p88 = scmp.eq.s32.totalorder %s22, 0
      %p89 = por %p87, %p88
      %s91 = sadd.s32 %s90, 1
      %p94 = scmp.eq.s32.totalorder %s16, 3
      %p95 = scmp.ne.s32.totalorder %s90, %s92
      %p96 = scmp.eq.s32.totalorder %s16, 0
      %p97 = por %p95, %p96
      %p98 = scmp.ne.s32.totalorder %s90, %s92
      %p99 = scmp.eq.s32.totalorder %s21, 3
      %p100 = por %p98, %p99
      %p101 = scmp.ne.s32.totalorder %s92, %s93
      %p102 = scmp.eq.s32.totalorder %s21, 0
      %p103 = por %p101, %p102
      %p104 = scmp.ne.s32.totalorder %s92, %s93
      %p105 = scmp.eq.s32.totalorder %s22, 3
      %p106 = por %p104, %p105
      %p108 = scmp.ne.s32.totalorder %s93, %s107
      %p109 = scmp.eq.s32.totalorder %s22, 0
      %p110 = por %p108, %p109
      %s111 = ssub.s32 %s23, %s35
      %p112 = scmp.eq.s32.totalorder %s111, 0
      %s114 = sadd.s32 %s113, 1
      %s115 = scalar_select %p112, %s113, %s114
      %p118 = pneg %p112
      %p119 = scmp.eq.s32.totalorder %s16, 3
      %p120 = por %p118, %p119
      %p121 = scmp.ne.s32.totalorder %s113, %s116
      %p122 = scmp.eq.s32.totalorder %s16, 0
      %p123 = por %p121, %p122
      %p124 = scmp.ne.s32.totalorder %s113, %s116
      %p125 = scmp.eq.s32.totalorder %s21, 3
      %p126 = por %p124, %p125
      %p127 = scmp.ne.s32.totalorder %s116, %s117
      %p128 = scmp.eq.s32.totalorder %s21, 0
      %p129 = por %p127, %p128
      %p130 = scmp.ne.s32.totalorder %s116, %s117
      %p131 = scmp.eq.s32.totalorder %s22, 3
      %p132 = por %p130, %p131
      %p134 = scmp.ne.s32.totalorder %s117, %s133
      %p135 = scmp.eq.s32.totalorder %s22, 0
      %p136 = por %p134, %p135
      %p137 = scmp.le.s32.totalorder 1, %s16
      %p138 = scmp.lt.s32.totalorder %s16, 5
      %p139 = pnand %p137, %p138
      %p140 = pneg %p139
      // Predicated region
      $region9: #{_lambda_.13} parent=5 // pred_check
        _
      $region10: #{_lambda_.13} parent=5 // pred_check_branch
        %142 = sbr.rel (%p139) target = $region12
      $region11: #{_lambda_.13} parent=5 // pred_region
        %s143 = ssub.s32 %s16, 1
        // Predicated region
        $region13: #{_lambda_.13} parent=11 // pred_check
          %p144 = pneg %p82
        $region14: #{_lambda_.13} parent=11 // pred_check_branch
          %146 = sbr.rel (%p144) target = $region16
        $region15: #{_lambda_.13} parent=11 // pred_region
          %s147 = smul.u32 16, %s26
          %s149 = ssub.s32 2048, 2048
          %150 = vsyncadd [#allocation7], %s149
          %s151 = smul.addr %s147, 128
          %s152 = scalar_lea.hbm %s1, %s151
          %s153 = sshll.u32 [#allocation6], 4
          %s154 = int_to_ptr.vmem [resolvable:$true] %s153
          %159 = dma.hbm_to_vmem [thread:$0]  %s152, 2048, %s154, [#allocation7], 128, 128, 8
        $region16: #{_lambda_.13} parent=11 // pred_fallthru
          _
        // Predicated region
        $region17: #{_lambda_.13} parent=11 // pred_check
          %p160 = pneg %p103
        $region18: #{_lambda_.13} parent=11 // pred_check_branch
          %162 = sbr.rel (%p160) target = $region20
        $region19: #{_lambda_.13} parent=11 // pred_region
          %s164 = ssub.s32 16, 16
          %165 = vsyncadd [#allocation7], %s164
          %s167 = sshll.u32 [#allocation8], 4
          %s168 = int_to_ptr.vmem [resolvable:$true] %s167
          %170 = dma.hbm_to_vmem [thread:$0]  %s2, 16, %s168, [#allocation7]
        $region20: #{_lambda_.13} parent=11 // pred_fallthru
          _
      $region12: #{_lambda_.13} parent=5 // pred_fallthru
        _
      %p171 = scmp.lt.s32.totalorder %s16, 4
      // Predicated region
      $region21: #{_lambda_.13} parent=5 // pred_check
        %p172 = pneg %p171
      $region22: #{_lambda_.13} parent=5 // pred_check_branch
        %174 = sbr.rel (%p172) target = $region24
      $region23: #{_lambda_.13} parent=5 // pred_region
        // Predicated region
        $region25: #{_lambda_.13} parent=23 // pred_check
          %p175 = pneg %p50
        $region26: #{_lambda_.13} parent=23 // pred_check_branch
          %177 = sbr.rel (%p175) target = $region28
        $region27: #{_lambda_.13} parent=23 // pred_region
          %s178 = sand.u32 %s40, 1
          %s179 = scalar_lea.sflag [#allocation4], %s178
          %s180 = sand.u32 %s40, 1
          %s181 = smul.addr %s180, 512
          %s182 = scalar_lea.vmem [#allocation3], %s181
          %s183 = smul.u32 64, %s23
          %s185 = ssub.s32 8192, 8192
          %186 = vsyncadd %s179, %s185
          %s187 = sadd.s32 %s24, %s183
          %s188 = smul.addr %s187, 128
          %s189 = scalar_lea.hbm %s0, %s188
          %s190 = sshll.u32 %s182, 4
          %s191 = int_to_ptr.vmem [resolvable:$true] %s190
          %196 = dma.hbm_to_vmem [thread:$0]  %s189, 8192, %s191, %s179, 128, 128, 8
        $region28: #{_lambda_.13} parent=23 // pred_fallthru
          _
      $region24: #{_lambda_.13} parent=5 // pred_fallthru
        _
      %p197 = scmp.le.s32.totalorder 1, %s16
      %p198 = scmp.lt.s32.totalorder %s16, 5
      %p199 = pnand %p197, %p198
      %p200 = pneg %p199
      // Predicated region
      $region29: #{_lambda_.13} parent=5 // pred_check
        _
      $region30: #{_lambda_.13} parent=5 // pred_check_branch
        %202 = sbr.rel (%p199) target = $region32
      $region31: #{_lambda_.13} parent=5 // pred_region
        %s203 = ssub.s32 %s16, 1
        %s204 = sand.u32 %s43, 1
        %s205 = scalar_lea.sflag [#allocation4], %s204
        %s206 = sand.u32 %s43, 1
        %s207 = smul.addr %s206, 512
        %s208 = scalar_lea.vmem [#allocation3], %s207
        // Predicated region
        $region33: #{_lambda_.13} parent=31 // pred_check
          %p209 = pneg %p56
        $region34: #{_lambda_.13} parent=31 // pred_check_branch
          %211 = sbr.rel (%p209) target = $region36
        $region35: #{_lambda_.13} parent=31 // pred_region
          %212 = dma.done %s205, 8192
        $region36: #{_lambda_.13} parent=31 // pred_fallthru
          _
        // Predicated region
        $region37: #{_lambda_.13} parent=31 // pred_check
          %p213 = pneg %p82
        $region38: #{_lambda_.13} parent=31 // pred_check_branch
          %215 = sbr.rel (%p213) target = $region40
        $region39: #{_lambda_.13} parent=31 // pred_region
          %216 = dma.done [#allocation7], 2048
        $region40: #{_lambda_.13} parent=31 // pred_fallthru
          _
        // Predicated region
        $region41: #{_lambda_.13} parent=31 // pred_check
          %p217 = pneg %p103
        $region42: #{_lambda_.13} parent=31 // pred_check_branch
          %219 = sbr.rel (%p217) target = $region44
        $region43: #{_lambda_.13} parent=31 // pred_region
          %220 = dma.done [#allocation7], 16
        $region44: #{_lambda_.13} parent=31 // pred_fallthru
          _
        %s221 = sand.u32 %s43, 1
        %s222 = scalar_lea.sflag [#allocation4], %s221
        %s223 = sand.u32 %s43, 1
        %s224 = smul.addr %s223, 512
        %s225 = scalar_lea.vmem [#allocation3], %s224
        %p226 = pneg %p56
        %p227 = pneg %p53
        %p228 = pneg %p82
        %p229 = pneg %p79
        %p230 = pneg %p103
        %p231 = pneg %p100
        %p232 = pneg %p129
        %p233 = pneg %p126
        %s234 = sand.u32 %s116, 1
        %s235 = scalar_lea.sflag [#allocation5], %s234
        %s236 = sand.u32 %s116, 1
        %s237 = smul.addr %s236, 512
        %s238 = scalar_lea.vmem [#allocation9], %s237
        %s239 = smul.u32 64, %s25
        %s240 = smul.u32 16, %s26
        %s241 = smul.u32 64, %s25
        %p242 = scmp.eq.s32.totalorder %s26, 0
        // Predicated region
        $region45: #{_lambda_.13} parent=31 // pred_check
          %p243 = pneg %p242
        $region46: #{_lambda_.13} parent=31 // pred_check_branch
          %245 = sbr.rel (%p243) target = $region48
        $region47: #{_lambda_.13} parent=31 // pred_region
          %246 = vst [vmem:[#allocation2] sm:$0xff] 0.0
          %247 = vst [vmem:[#allocation2 + $0x8] sm:$0xff] 0.0
          %248 = vst [vmem:[#allocation2 + $0x10] sm:$0xff] 0.0
          %249 = vst [vmem:[#allocation2 + $0x18] sm:$0xff] 0.0
          %250 = vst [vmem:[#allocation2 + $0x20] sm:$0xff] 0.0
          %251 = vst [vmem:[#allocation2 + $0x28] sm:$0xff] 0.0
          %252 = vst [vmem:[#allocation2 + $0x30] sm:$0xff] 0.0
          %253 = vst [vmem:[#allocation2 + $0x38] sm:$0xff] 0.0
          %254 = vst [vmem:[#allocation2 + $0x40] sm:$0xff] 0.0
          %255 = vst [vmem:[#allocation2 + $0x48] sm:$0xff] 0.0
          %256 = vst [vmem:[#allocation2 + $0x50] sm:$0xff] 0.0
          %257 = vst [vmem:[#allocation2 + $0x58] sm:$0xff] 0.0
          %258 = vst [vmem:[#allocation2 + $0x60] sm:$0xff] 0.0
          %259 = vst [vmem:[#allocation2 + $0x68] sm:$0xff] 0.0
          %260 = vst [vmem:[#allocation2 + $0x70] sm:$0xff] 0.0
          %261 = vst [vmem:[#allocation2 + $0x78] sm:$0xff] 0.0
          %262 = vst [vmem:[#allocation2 + $0x80] sm:$0xff] 0.0
          %263 = vst [vmem:[#allocation2 + $0x88] sm:$0xff] 0.0
          %264 = vst [vmem:[#allocation2 + $0x90] sm:$0xff] 0.0
          %265 = vst [vmem:[#allocation2 + $0x98] sm:$0xff] 0.0
          %266 = vst [vmem:[#allocation2 + $0xa0] sm:$0xff] 0.0
          %267 = vst [vmem:[#allocation2 + $0xa8] sm:$0xff] 0.0
          %268 = vst [vmem:[#allocation2 + $0xb0] sm:$0xff] 0.0
          %269 = vst [vmem:[#allocation2 + $0xb8] sm:$0xff] 0.0
          %270 = vst [vmem:[#allocation2 + $0xc0] sm:$0xff] 0.0
          %271 = vst [vmem:[#allocation2 + $0xc8] sm:$0xff] 0.0
          %272 = vst [vmem:[#allocation2 + $0xd0] sm:$0xff] 0.0
          %273 = vst [vmem:[#allocation2 + $0xd8] sm:$0xff] 0.0
          %274 = vst [vmem:[#allocation2 + $0xe0] sm:$0xff] 0.0
          %275 = vst [vmem:[#allocation2 + $0xe8] sm:$0xff] 0.0
          %276 = vst [vmem:[#allocation2 + $0xf0] sm:$0xff] 0.0
          %277 = vst [vmem:[#allocation2 + $0xf8] sm:$0xff] 0.0
          %278 = vst [vmem:[#allocation2 + $0x100] sm:$0xff] 0.0
          %279 = vst [vmem:[#allocation2 + $0x108] sm:$0xff] 0.0
          %280 = vst [vmem:[#allocation2 + $0x110] sm:$0xff] 0.0
          %281 = vst [vmem:[#allocation2 + $0x118] sm:$0xff] 0.0
          %282 = vst [vmem:[#allocation2 + $0x120] sm:$0xff] 0.0
          %283 = vst [vmem:[#allocation2 + $0x128] sm:$0xff] 0.0
          %284 = vst [vmem:[#allocation2 + $0x130] sm:$0xff] 0.0
          %285 = vst [vmem:[#allocation2 + $0x138] sm:$0xff] 0.0
          %286 = vst [vmem:[#allocation2 + $0x140] sm:$0xff] 0.0
          %287 = vst [vmem:[#allocation2 + $0x148] sm:$0xff] 0.0
          %288 = vst [vmem:[#allocation2 + $0x150] sm:$0xff] 0.0
          %289 = vst [vmem:[#allocation2 + $0x158] sm:$0xff] 0.0
          %290 = vst [vmem:[#allocation2 + $0x160] sm:$0xff] 0.0
          %291 = vst [vmem:[#allocation2 + $0x168] sm:$0xff] 0.0
          %292 = vst [vmem:[#allocation2 + $0x170] sm:$0xff] 0.0
          %293 = vst [vmem:[#allocation2 + $0x178] sm:$0xff] 0.0
          %294 = vst [vmem:[#allocation2 + $0x180] sm:$0xff] 0.0
          %295 = vst [vmem:[#allocation2 + $0x188] sm:$0xff] 0.0
          %296 = vst [vmem:[#allocation2 + $0x190] sm:$0xff] 0.0
          %297 = vst [vmem:[#allocation2 + $0x198] sm:$0xff] 0.0
          %298 = vst [vmem:[#allocation2 + $0x1a0] sm:$0xff] 0.0
          %299 = vst [vmem:[#allocation2 + $0x1a8] sm:$0xff] 0.0
          %300 = vst [vmem:[#allocation2 + $0x1b0] sm:$0xff] 0.0
          %301 = vst [vmem:[#allocation2 + $0x1b8] sm:$0xff] 0.0
          %302 = vst [vmem:[#allocation2 + $0x1c0] sm:$0xff] 0.0
          %303 = vst [vmem:[#allocation2 + $0x1c8] sm:$0xff] 0.0
          %304 = vst [vmem:[#allocation2 + $0x1d0] sm:$0xff] 0.0
          %305 = vst [vmem:[#allocation2 + $0x1d8] sm:$0xff] 0.0
          %306 = vst [vmem:[#allocation2 + $0x1e0] sm:$0xff] 0.0
          %307 = vst [vmem:[#allocation2 + $0x1e8] sm:$0xff] 0.0
          %308 = vst [vmem:[#allocation2 + $0x1f0] sm:$0xff] 0.0
          %309 = vst [vmem:[#allocation2 + $0x1f8] sm:$0xff] 0.0
        $region48: #{_lambda_.13} parent=31 // pred_fallthru
          _
        %v310 = vld [vmem:[%s208] sm:$0xff]
        %v311 = vld [vmem:[%s208 + $0x8] sm:$0xff]
        %v312 = vld [vmem:[%s208 + $0x10] sm:$0xff]
        %v313 = vld [vmem:[%s208 + $0x18] sm:$0xff]
        %v314 = vld [vmem:[%s208 + $0x20] sm:$0xff]
        %v315 = vld [vmem:[%s208 + $0x28] sm:$0xff]
        %v316 = vld [vmem:[%s208 + $0x30] sm:$0xff]
        %v317 = vld [vmem:[%s208 + $0x38] sm:$0xff]
        %v318 = vld [vmem:[%s208 + $0x40] sm:$0xff]
        %v319 = vld [vmem:[%s208 + $0x48] sm:$0xff]
        %v320 = vld [vmem:[%s208 + $0x50] sm:$0xff]
        %v321 = vld [vmem:[%s208 + $0x58] sm:$0xff]
        %v322 = vld [vmem:[%s208 + $0x60] sm:$0xff]
        %v323 = vld [vmem:[%s208 + $0x68] sm:$0xff]
        %v324 = vld [vmem:[%s208 + $0x70] sm:$0xff]
        %v325 = vld [vmem:[%s208 + $0x78] sm:$0xff]
        %v326 = vld [vmem:[%s208 + $0x80] sm:$0xff]
        %v327 = vld [vmem:[%s208 + $0x88] sm:$0xff]
        %v328 = vld [vmem:[%s208 + $0x90] sm:$0xff]
        %v329 = vld [vmem:[%s208 + $0x98] sm:$0xff]
        %v330 = vld [vmem:[%s208 + $0xa0] sm:$0xff]
        %v331 = vld [vmem:[%s208 + $0xa8] sm:$0xff]
        %v332 = vld [vmem:[%s208 + $0xb0] sm:$0xff]
        %v333 = vld [vmem:[%s208 + $0xb8] sm:$0xff]
        %v334 = vld [vmem:[%s208 + $0xc0] sm:$0xff]
        %v335 = vld [vmem:[%s208 + $0xc8] sm:$0xff]
        %v336 = vld [vmem:[%s208 + $0xd0] sm:$0xff]
        %v337 = vld [vmem:[%s208 + $0xd8] sm:$0xff]
        %v338 = vld [vmem:[%s208 + $0xe0] sm:$0xff]
        %v339 = vld [vmem:[%s208 + $0xe8] sm:$0xff]
        %v340 = vld [vmem:[%s208 + $0xf0] sm:$0xff]
        %v341 = vld [vmem:[%s208 + $0xf8] sm:$0xff]
        %v342 = vld [vmem:[%s208 + $0x100] sm:$0xff]
        %v343 = vld [vmem:[%s208 + $0x108] sm:$0xff]
        %v344 = vld [vmem:[%s208 + $0x110] sm:$0xff]
        %v345 = vld [vmem:[%s208 + $0x118] sm:$0xff]
        %v346 = vld [vmem:[%s208 + $0x120] sm:$0xff]
        %v347 = vld [vmem:[%s208 + $0x128] sm:$0xff]
        %v348 = vld [vmem:[%s208 + $0x130] sm:$0xff]
        %v349 = vld [vmem:[%s208 + $0x138] sm:$0xff]
        %v350 = vld [vmem:[%s208 + $0x140] sm:$0xff]
        %v351 = vld [vmem:[%s208 + $0x148] sm:$0xff]
        %v352 = vld [vmem:[%s208 + $0x150] sm:$0xff]
        %v353 = vld [vmem:[%s208 + $0x158] sm:$0xff]
        %v354 = vld [vmem:[%s208 + $0x160] sm:$0xff]
        %v355 = vld [vmem:[%s208 + $0x168] sm:$0xff]
        %v356 = vld [vmem:[%s208 + $0x170] sm:$0xff]
        %v357 = vld [vmem:[%s208 + $0x178] sm:$0xff]
        %v358 = vld [vmem:[%s208 + $0x180] sm:$0xff]
        %v359 = vld [vmem:[%s208 + $0x188] sm:$0xff]
        %v360 = vld [vmem:[%s208 + $0x190] sm:$0xff]
        %v361 = vld [vmem:[%s208 + $0x198] sm:$0xff]
        %v362 = vld [vmem:[%s208 + $0x1a0] sm:$0xff]
        %v363 = vld [vmem:[%s208 + $0x1a8] sm:$0xff]
        %v364 = vld [vmem:[%s208 + $0x1b0] sm:$0xff]
        %v365 = vld [vmem:[%s208 + $0x1b8] sm:$0xff]
        %v366 = vld [vmem:[%s208 + $0x1c0] sm:$0xff]
        %v367 = vld [vmem:[%s208 + $0x1c8] sm:$0xff]
        %v368 = vld [vmem:[%s208 + $0x1d0] sm:$0xff]
        %v369 = vld [vmem:[%s208 + $0x1d8] sm:$0xff]
        %v370 = vld [vmem:[%s208 + $0x1e0] sm:$0xff]
        %v371 = vld [vmem:[%s208 + $0x1e8] sm:$0xff]
        %v372 = vld [vmem:[%s208 + $0x1f0] sm:$0xff]
        %v373 = vld [vmem:[%s208 + $0x1f8] sm:$0xff]
        %v374 = vld [vmem:[#allocation6] sm:$0xff]
        %v375 = vld [vmem:[#allocation6 + $0x8] sm:$0xff]
        %v376 = vld [vmem:[#allocation6 + $0x10] sm:$0xff]
        %v377 = vld [vmem:[#allocation6 + $0x18] sm:$0xff]
        %v378 = vld [vmem:[#allocation6 + $0x20] sm:$0xff]
        %v379 = vld [vmem:[#allocation6 + $0x28] sm:$0xff]
        %v380 = vld [vmem:[#allocation6 + $0x30] sm:$0xff]
        %v381 = vld [vmem:[#allocation6 + $0x38] sm:$0xff]
        %v382 = vld [vmem:[#allocation6 + $0x40] sm:$0xff]
        %v383 = vld [vmem:[#allocation6 + $0x48] sm:$0xff]
        %v384 = vld [vmem:[#allocation6 + $0x50] sm:$0xff]
        %v385 = vld [vmem:[#allocation6 + $0x58] sm:$0xff]
        %v386 = vld [vmem:[#allocation6 + $0x60] sm:$0xff]
        %v387 = vld [vmem:[#allocation6 + $0x68] sm:$0xff]
        %v388 = vld [vmem:[#allocation6 + $0x70] sm:$0xff]
        %v389 = vld [vmem:[#allocation6 + $0x78] sm:$0xff]
        %v390 = vld [vmem:[#allocation2] sm:$0xff]
        %v391 = vld [vmem:[#allocation2 + $0x8] sm:$0xff]
        %v392 = vld [vmem:[#allocation2 + $0x10] sm:$0xff]
        %v393 = vld [vmem:[#allocation2 + $0x18] sm:$0xff]
        %v394 = vld [vmem:[#allocation2 + $0x20] sm:$0xff]
        %v395 = vld [vmem:[#allocation2 + $0x28] sm:$0xff]
        %v396 = vld [vmem:[#allocation2 + $0x30] sm:$0xff]
        %v397 = vld [vmem:[#allocation2 + $0x38] sm:$0xff]
        %v398 = vld [vmem:[#allocation2 + $0x40] sm:$0xff]
        %v399 = vld [vmem:[#allocation2 + $0x48] sm:$0xff]
        %v400 = vld [vmem:[#allocation2 + $0x50] sm:$0xff]
        %v401 = vld [vmem:[#allocation2 + $0x58] sm:$0xff]
        %v402 = vld [vmem:[#allocation2 + $0x60] sm:$0xff]
        %v403 = vld [vmem:[#allocation2 + $0x68] sm:$0xff]
        %v404 = vld [vmem:[#allocation2 + $0x70] sm:$0xff]
        %v405 = vld [vmem:[#allocation2 + $0x78] sm:$0xff]
        %v406 = vld [vmem:[#allocation2 + $0x80] sm:$0xff]
        %v407 = vld [vmem:[#allocation2 + $0x88] sm:$0xff]
        %v408 = vld [vmem:[#allocation2 + $0x90] sm:$0xff]
        %v409 = vld [vmem:[#allocation2 + $0x98] sm:$0xff]
        %v410 = vld [vmem:[#allocation2 + $0xa0] sm:$0xff]
        %v411 = vld [vmem:[#allocation2 + $0xa8] sm:$0xff]
        %v412 = vld [vmem:[#allocation2 + $0xb0] sm:$0xff]
        %v413 = vld [vmem:[#allocation2 + $0xb8] sm:$0xff]
        %v414 = vld [vmem:[#allocation2 + $0xc0] sm:$0xff]
        %v415 = vld [vmem:[#allocation2 + $0xc8] sm:$0xff]
        %v416 = vld [vmem:[#allocation2 + $0xd0] sm:$0xff]
        %v417 = vld [vmem:[#allocation2 + $0xd8] sm:$0xff]
        %v418 = vld [vmem:[#allocation2 + $0xe0] sm:$0xff]
        %v419 = vld [vmem:[#allocation2 + $0xe8] sm:$0xff]
        %v420 = vld [vmem:[#allocation2 + $0xf0] sm:$0xff]
        %v421 = vld [vmem:[#allocation2 + $0xf8] sm:$0xff]
        %v422 = vld [vmem:[#allocation2 + $0x100] sm:$0xff]
        %v423 = vld [vmem:[#allocation2 + $0x108] sm:$0xff]
        %v424 = vld [vmem:[#allocation2 + $0x110] sm:$0xff]
        %v425 = vld [vmem:[#allocation2 + $0x118] sm:$0xff]
        %v426 = vld [vmem:[#allocation2 + $0x120] sm:$0xff]
        %v427 = vld [vmem:[#allocation2 + $0x128] sm:$0xff]
        %v428 = vld [vmem:[#allocation2 + $0x130] sm:$0xff]
        %v429 = vld [vmem:[#allocation2 + $0x138] sm:$0xff]
        %v430 = vld [vmem:[#allocation2 + $0x140] sm:$0xff]
        %v431 = vld [vmem:[#allocation2 + $0x148] sm:$0xff]
        %v432 = vld [vmem:[#allocation2 + $0x150] sm:$0xff]
        %v433 = vld [vmem:[#allocation2 + $0x158] sm:$0xff]
        %v434 = vld [vmem:[#allocation2 + $0x160] sm:$0xff]
        %v435 = vld [vmem:[#allocation2 + $0x168] sm:$0xff]
        %v436 = vld [vmem:[#allocation2 + $0x170] sm:$0xff]
        %v437 = vld [vmem:[#allocation2 + $0x178] sm:$0xff]
        %v438 = vld [vmem:[#allocation2 + $0x180] sm:$0xff]
        %v439 = vld [vmem:[#allocation2 + $0x188] sm:$0xff]
        %v440 = vld [vmem:[#allocation2 + $0x190] sm:$0xff]
        %v441 = vld [vmem:[#allocation2 + $0x198] sm:$0xff]
        %v442 = vld [vmem:[#allocation2 + $0x1a0] sm:$0xff]
        %v443 = vld [vmem:[#allocation2 + $0x1a8] sm:$0xff]
        %v444 = vld [vmem:[#allocation2 + $0x1b0] sm:$0xff]
        %v445 = vld [vmem:[#allocation2 + $0x1b8] sm:$0xff]
        %v446 = vld [vmem:[#allocation2 + $0x1c0] sm:$0xff]
        %v447 = vld [vmem:[#allocation2 + $0x1c8] sm:$0xff]
        %v448 = vld [vmem:[#allocation2 + $0x1d0] sm:$0xff]
        %v449 = vld [vmem:[#allocation2 + $0x1d8] sm:$0xff]
        %v450 = vld [vmem:[#allocation2 + $0x1e0] sm:$0xff]
        %v451 = vld [vmem:[#allocation2 + $0x1e8] sm:$0xff]
        %v452 = vld [vmem:[#allocation2 + $0x1f0] sm:$0xff]
        %v453 = vld [vmem:[#allocation2 + $0x1f8] sm:$0xff]
        %454 = vmatprep.subr.mxu0 0.0
        %455 = vmatpush1.msra.mxu0 %v374
        %456 = vmatprep.subr.mxu0 0.0
        %457 = vmatpush1.msra.mxu0 %v375
        %458 = vmatprep.subr.mxu0 0.0
        %459 = vmatpush1.msra.mxu0 %v376
        %460 = vmatprep.subr.mxu0 0.0
        %461 = vmatpush1.msra.mxu0 %v377
        %462 = vmatprep.subr.mxu0 0.0
        %463 = vmatpush1.msra.mxu0 %v378
        %464 = vmatprep.subr.mxu0 0.0
        %465 = vmatpush1.msra.mxu0 %v379
        %466 = vmatprep.subr.mxu0 0.0
        %467 = vmatpush1.msra.mxu0 %v380
        %468 = vmatprep.subr.mxu0 0.0
        %469 = vmatpush1.msra.mxu0 %v381
        %470 = vmatprep.subr.mxu0 0.0
        %471 = vmatpush1.msra.mxu0 %v382
        %472 = vmatprep.subr.mxu0 0.0
        %473 = vmatpush1.msra.mxu0 %v383
        %474 = vmatprep.subr.mxu0 0.0
        %475 = vmatpush1.msra.mxu0 %v384
        %476 = vmatprep.subr.mxu0 0.0
        %477 = vmatpush1.msra.mxu0 %v385
        %478 = vmatprep.subr.mxu0 0.0
        %479 = vmatpush1.msra.mxu0 %v386
        %480 = vmatprep.subr.mxu0 0.0
        %481 = vmatpush1.msra.mxu0 %v387
        %482 = vmatprep.subr.mxu0 0.0
        %483 = vmatpush1.msra.mxu0 %v388
        %484 = vmatprep.subr.mxu0 0.0
        %485 = vmatpush1.msra.mxu0 %v389
        %486 = vmatprep.subr.mxu0 0.0
        %487 = vmatpush1.msra.mxu0 0.0
        %488 = vmatprep.subr.mxu0 0.0
        %489 = vmatpush1.msra.mxu0 0.0
        %490 = vmatprep.subr.mxu0 0.0
        %491 = vmatpush1.msra.mxu0 0.0
        %492 = vmatprep.subr.mxu0 0.0
        %493 = vmatpush1.msra.mxu0 0.0
        %494 = vmatprep.subr.mxu0 0.0
        %495 = vmatpush1.msra.mxu0 0.0
        %496 = vmatprep.subr.mxu0 0.0
        %497 = vmatpush1.msra.mxu0 0.0
        %498 = vmatprep.subr.mxu0 0.0
        %499 = vmatpush1.msra.mxu0 0.0
        %500 = vmatprep.subr.mxu0 0.0
        %501 = vmatpush1.msra.mxu0 0.0
        %502 = vmatprep.subr.mxu0 0.0
        %503 = vmatpush1.msra.mxu0 0.0
        %504 = vmatprep.subr.mxu0 0.0
        %505 = vmatpush1.msra.mxu0 0.0
        %506 = vmatprep.subr.mxu0 0.0
        %507 = vmatpush1.msra.mxu0 0.0
        %508 = vmatprep.subr.mxu0 0.0
        %509 = vmatpush1.msra.mxu0 0.0
        %510 = vmatprep.subr.mxu0 0.0
        %511 = vmatpush1.msra.mxu0 0.0
        %512 = vmatprep.subr.mxu0 0.0
        %513 = vmatpush1.msra.mxu0 0.0
        %514 = vmatprep.subr.mxu0 0.0
        %515 = vmatpush1.msra.mxu0 0.0
        %516 = vmatprep.subr.mxu0 0.0
        %517 = vmatpush1.msra.mxu0 0.0
        %518 = vmatprep.mubr.f32.mxu0 0.0
        %519 = vmatmul.mubr.f32.gmra.mrb[0].mxu0 %v310
        %v520 = vpop.f32.mrb[0].mxu0
        %v521 = vadd.f32 0.0, %v520
        %v522 = vpop.f32.mrb[0].mxu0
        %523 = vmatprep.mubr.f32.mxu0 0.0
        %524 = vmatmul.mubr.f32.gmra.mrb[0].mxu0 %v311
        %v525 = vpop.f32.mrb[0].mxu0
        %v526 = vadd.f32 0.0, %v525
        %v527 = vpop.f32.mrb[0].mxu0
        %528 = vmatprep.mubr.f32.mxu0 0.0
        %529 = vmatmul.mubr.f32.gmra.mrb[0].mxu0 %v312
        %v530 = vpop.f32.mrb[0].mxu0
        %v531 = vadd.f32 0.0, %v530
        %v532 = vpop.f32.mrb[0].mxu0
        %533 = vmatprep.mubr.f32.mxu0 0.0
        %534 = vmatmul.mubr.f32.gmra.mrb[0].mxu0 %v313
        %v535 = vpop.f32.mrb[0].mxu0
        %v536 = vadd.f32 0.0, %v535
        %v537 = vpop.f32.mrb[0].mxu0
        %538 = vmatprep.mubr.f32.mxu0 0.0
        %539 = vmatmul.mubr.f32.gmra.mrb[0].mxu0 %v314
        %v540 = vpop.f32.mrb[0].mxu0
        %v541 = vadd.f32 0.0, %v540
        %v542 = vpop.f32.mrb[0].mxu0
        %543 = vmatprep.mubr.f32.mxu0 0.0
        %544 = vmatmul.mubr.f32.gmra.mrb[0].mxu0 %v315
        %v545 = vpop.f32.mrb[0].mxu0
        %v546 = vadd.f32 0.0, %v545
        %v547 = vpop.f32.mrb[0].mxu0
        %548 = vmatprep.mubr.f32.mxu0 0.0
        %549 = vmatmul.mubr.f32.gmra.mrb[0].mxu0 %v316
        %v550 = vpop.f32.mrb[0].mxu0
        %v551 = vadd.f32 0.0, %v550
        %v552 = vpop.f32.mrb[0].mxu0
        %553 = vmatprep.mubr.f32.mxu0 0.0
        %554 = vmatmul.mubr.f32.gmra.mrb[0].mxu0 %v317
        %v555 = vpop.f32.mrb[0].mxu0
        %v556 = vadd.f32 0.0, %v555
        %v557 = vpop.f32.mrb[0].mxu0
        %558 = vmatprep.mubr.f32.mxu0 0.0
        %559 = vmatmul.mubr.f32.gmra.mrb[0].mxu0 %v318
        %v560 = vpop.f32.mrb[0].mxu0
        %v561 = vadd.f32 0.0, %v560
        %v562 = vpop.f32.mrb[0].mxu0
        %563 = vmatprep.mubr.f32.mxu0 0.0
        %564 = vmatmul.mubr.f32.gmra.mrb[0].mxu0 %v319
        %v565 = vpop.f32.mrb[0].mxu0
        %v566 = vadd.f32 0.0, %v565
        %v567 = vpop.f32.mrb[0].mxu0
        %568 = vmatprep.mubr.f32.mxu0 0.0
        %569 = vmatmul.mubr.f32.gmra.mrb[0].mxu0 %v320
        %v570 = vpop.f32.mrb[0].mxu0
        %v571 = vadd.f32 0.0, %v570
        %v572 = vpop.f32.mrb[0].mxu0
        %573 = vmatprep.mubr.f32.mxu0 0.0
        %574 = vmatmul.mubr.f32.gmra.mrb[0].mxu0 %v321
        %v575 = vpop.f32.mrb[0].mxu0
        %v576 = vadd.f32 0.0, %v575
        %v577 = vpop.f32.mrb[0].mxu0
        %578 = vmatprep.mubr.f32.mxu0 0.0
        %579 = vmatmul.mubr.f32.gmra.mrb[0].mxu0 %v322
        %v580 = vpop.f32.mrb[0].mxu0
        %v581 = vadd.f32 0.0, %v580
        %v582 = vpop.f32.mrb[0].mxu0
        %583 = vmatprep.mubr.f32.mxu0 0.0
        %584 = vmatmul.mubr.f32.gmra.mrb[0].mxu0 %v323
        %v585 = vpop.f32.mrb[0].mxu0
        %v586 = vadd.f32 0.0, %v585
        %v587 = vpop.f32.mrb[0].mxu0
        %588 = vmatprep.mubr.f32.mxu0 0.0
        %589 = vmatmul.mubr.f32.gmra.mrb[0].mxu0 %v324
        %v590 = vpop.f32.mrb[0].mxu0
        %v591 = vadd.f32 0.0, %v590
        %v592 = vpop.f32.mrb[0].mxu0
        %593 = vmatprep.mubr.f32.mxu0 0.0
        %594 = vmatmul.mubr.f32.gmra.mrb[0].mxu0 %v325
        %v595 = vpop.f32.mrb[0].mxu0
        %v596 = vadd.f32 0.0, %v595
        %v597 = vpop.f32.mrb[0].mxu0
        %598 = vmatprep.mubr.f32.mxu0 0.0
        %599 = vmatmul.mubr.f32.gmra.mrb[0].mxu0 %v326
        %v600 = vpop.f32.mrb[0].mxu0
        %v601 = vadd.f32 0.0, %v600
        %v602 = vpop.f32.mrb[0].mxu0
        %603 = vmatprep.mubr.f32.mxu0 0.0
        %604 = vmatmul.mubr.f32.gmra.mrb[0].mxu0 %v327
        %v605 = vpop.f32.mrb[0].mxu0
        %v606 = vadd.f32 0.0, %v605
        %v607 = vpop.f32.mrb[0].mxu0
        %608 = vmatprep.mubr.f32.mxu0 0.0
        %609 = vmatmul.mubr.f32.gmra.mrb[0].mxu0 %v328
        %v610 = vpop.f32.mrb[0].mxu0
        %v611 = vadd.f32 0.0, %v610
        %v612 = vpop.f32.mrb[0].mxu0
        %613 = vmatprep.mubr.f32.mxu0 0.0
        %614 = vmatmul.mubr.f32.gmra.mrb[0].mxu0 %v329
        %v615 = vpop.f32.mrb[0].mxu0
        %v616 = vadd.f32 0.0, %v615
        %v617 = vpop.f32.mrb[0].mxu0
        %618 = vmatprep.mubr.f32.mxu0 0.0
        %619 = vmatmul.mubr.f32.gmra.mrb[0].mxu0 %v330
        %v620 = vpop.f32.mrb[0].mxu0
        %v621 = vadd.f32 0.0, %v620
        %v622 = vpop.f32.mrb[0].mxu0
        %623 = vmatprep.mubr.f32.mxu0 0.0
        %624 = vmatmul.mubr.f32.gmra.mrb[0].mxu0 %v331
        %v625 = vpop.f32.mrb[0].mxu0
        %v626 = vadd.f32 0.0, %v625
        %v627 = vpop.f32.mrb[0].mxu0
        %628 = vmatprep.mubr.f32.mxu0 0.0
        %629 = vmatmul.mubr.f32.gmra.mrb[0].mxu0 %v332
        %v630 = vpop.f32.mrb[0].mxu0
        %v631 = vadd.f32 0.0, %v630
        %v632 = vpop.f32.mrb[0].mxu0
        %633 = vmatprep.mubr.f32.mxu0 0.0
        %634 = vmatmul.mubr.f32.gmra.mrb[0].mxu0 %v333
        %v635 = vpop.f32.mrb[0].mxu0
        %v636 = vadd.f32 0.0, %v635
        %v637 = vpop.f32.mrb[0].mxu0
        %638 = vmatprep.mubr.f32.mxu0 0.0
        %639 = vmatmul.mubr.f32.gmra.mrb[0].mxu0 %v334
        %v640 = vpop.f32.mrb[0].mxu0
        %v641 = vadd.f32 0.0, %v640
        %v642 = vpop.f32.mrb[0].mxu0
        %643 = vmatprep.mubr.f32.mxu0 0.0
        %644 = vmatmul.mubr.f32.gmra.mrb[0].mxu0 %v335
        %v645 = vpop.f32.mrb[0].mxu0
        %v646 = vadd.f32 0.0, %v645
        %v647 = vpop.f32.mrb[0].mxu0
        %648 = vmatprep.mubr.f32.mxu0 0.0
        %649 = vmatmul.mubr.f32.gmra.mrb[0].mxu0 %v336
        %v650 = vpop.f32.mrb[0].mxu0
        %v651 = vadd.f32 0.0, %v650
        %v652 = vpop.f32.mrb[0].mxu0
        %653 = vmatprep.mubr.f32.mxu0 0.0
        %654 = vmatmul.mubr.f32.gmra.mrb[0].mxu0 %v337
        %v655 = vpop.f32.mrb[0].mxu0
        %v656 = vadd.f32 0.0, %v655
        %v657 = vpop.f32.mrb[0].mxu0
        %658 = vmatprep.mubr.f32.mxu0 0.0
        %659 = vmatmul.mubr.f32.gmra.mrb[0].mxu0 %v338
        %v660 = vpop.f32.mrb[0].mxu0
        %v661 = vadd.f32 0.0, %v660
        %v662 = vpop.f32.mrb[0].mxu0
        %663 = vmatprep.mubr.f32.mxu0 0.0
        %664 = vmatmul.mubr.f32.gmra.mrb[0].mxu0 %v339
        %v665 = vpop.f32.mrb[0].mxu0
        %v666 = vadd.f32 0.0, %v665
        %v667 = vpop.f32.mrb[0].mxu0
        %668 = vmatprep.mubr.f32.mxu0 0.0
        %669 = vmatmul.mubr.f32.gmra.mrb[0].mxu0 %v340
        %v670 = vpop.f32.mrb[0].mxu0
        %v671 = vadd.f32 0.0, %v670
        %v672 = vpop.f32.mrb[0].mxu0
        %673 = vmatprep.mubr.f32.mxu0 0.0
        %674 = vmatmul.mubr.f32.gmra.mrb[0].mxu0 %v341
        %v675 = vpop.f32.mrb[0].mxu0
        %v676 = vadd.f32 0.0, %v675
        %v677 = vpop.f32.mrb[0].mxu0
        %678 = vmatprep.mubr.f32.mxu0 0.0
        %679 = vmatmul.mubr.f32.gmra.mrb[0].mxu0 %v342
        %v680 = vpop.f32.mrb[0].mxu0
        %v681 = vadd.f32 0.0, %v680
        %v682 = vpop.f32.mrb[0].mxu0
        %683 = vmatprep.mubr.f32.mxu0 0.0
        %684 = vmatmul.mubr.f32.gmra.mrb[0].mxu0 %v343
        %v685 = vpop.f32.mrb[0].mxu0
        %v686 = vadd.f32 0.0, %v685
        %v687 = vpop.f32.mrb[0].mxu0
        %688 = vmatprep.mubr.f32.mxu0 0.0
        %689 = vmatmul.mubr.f32.gmra.mrb[0].mxu0 %v344
        %v690 = vpop.f32.mrb[0].mxu0
        %v691 = vadd.f32 0.0, %v690
        %v692 = vpop.f32.mrb[0].mxu0
        %693 = vmatprep.mubr.f32.mxu0 0.0
        %694 = vmatmul.mubr.f32.gmra.mrb[0].mxu0 %v345
        %v695 = vpop.f32.mrb[0].mxu0
        %v696 = vadd.f32 0.0, %v695
        %v697 = vpop.f32.mrb[0].mxu0
        %698 = vmatprep.mubr.f32.mxu0 0.0
        %699 = vmatmul.mubr.f32.gmra.mrb[0].mxu0 %v346
        %v700 = vpop.f32.mrb[0].mxu0
        %v701 = vadd.f32 0.0, %v700
        %v702 = vpop.f32.mrb[0].mxu0
        %703 = vmatprep.mubr.f32.mxu0 0.0
        %704 = vmatmul.mubr.f32.gmra.mrb[0].mxu0 %v347
        %v705 = vpop.f32.mrb[0].mxu0
        %v706 = vadd.f32 0.0, %v705
        %v707 = vpop.f32.mrb[0].mxu0
        %708 = vmatprep.mubr.f32.mxu0 0.0
        %709 = vmatmul.mubr.f32.gmra.mrb[0].mxu0 %v348
        %v710 = vpop.f32.mrb[0].mxu0
        %v711 = vadd.f32 0.0, %v710
        %v712 = vpop.f32.mrb[0].mxu0
        %713 = vmatprep.mubr.f32.mxu0 0.0
        %714 = vmatmul.mubr.f32.gmra.mrb[0].mxu0 %v349
        %v715 = vpop.f32.mrb[0].mxu0
        %v716 = vadd.f32 0.0, %v715
        %v717 = vpop.f32.mrb[0].mxu0
        %718 = vmatprep.mubr.f32.mxu0 0.0
        %719 = vmatmul.mubr.f32.gmra.mrb[0].mxu0 %v350
        %v720 = vpop.f32.mrb[0].mxu0
        %v721 = vadd.f32 0.0, %v720
        %v722 = vpop.f32.mrb[0].mxu0
        %723 = vmatprep.mubr.f32.mxu0 0.0
        %724 = vmatmul.mubr.f32.gmra.mrb[0].mxu0 %v351
        %v725 = vpop.f32.mrb[0].mxu0
        %v726 = vadd.f32 0.0, %v725
        %v727 = vpop.f32.mrb[0].mxu0
        %728 = vmatprep.mubr.f32.mxu0 0.0
        %729 = vmatmul.mubr.f32.gmra.mrb[0].mxu0 %v352
        %v730 = vpop.f32.mrb[0].mxu0
        %v731 = vadd.f32 0.0, %v730
        %v732 = vpop.f32.mrb[0].mxu0
        %733 = vmatprep.mubr.f32.mxu0 0.0
        %734 = vmatmul.mubr.f32.gmra.mrb[0].mxu0 %v353
        %v735 = vpop.f32.mrb[0].mxu0
        %v736 = vadd.f32 0.0, %v735
        %v737 = vpop.f32.mrb[0].mxu0
        %738 = vmatprep.mubr.f32.mxu0 0.0
        %739 = vmatmul.mubr.f32.gmra.mrb[0].mxu0 %v354
        %v740 = vpop.f32.mrb[0].mxu0
        %v741 = vadd.f32 0.0, %v740
        %v742 = vpop.f32.mrb[0].mxu0
        %743 = vmatprep.mubr.f32.mxu0 0.0
        %744 = vmatmul.mubr.f32.gmra.mrb[0].mxu0 %v355
        %v745 = vpop.f32.mrb[0].mxu0
        %v746 = vadd.f32 0.0, %v745
        %v747 = vpop.f32.mrb[0].mxu0
        %748 = vmatprep.mubr.f32.mxu0 0.0
        %749 = vmatmul.mubr.f32.gmra.mrb[0].mxu0 %v356
        %v750 = vpop.f32.mrb[0].mxu0
        %v751 = vadd.f32 0.0, %v750
        %v752 = vpop.f32.mrb[0].mxu0
        %753 = vmatprep.mubr.f32.mxu0 0.0
        %754 = vmatmul.mubr.f32.gmra.mrb[0].mxu0 %v357
        %v755 = vpop.f32.mrb[0].mxu0
        %v756 = vadd.f32 0.0, %v755
        %v757 = vpop.f32.mrb[0].mxu0
        %758 = vmatprep.mubr.f32.mxu0 0.0
        %759 = vmatmul.mubr.f32.gmra.mrb[0].mxu0 %v358
        %v760 = vpop.f32.mrb[0].mxu0
        %v761 = vadd.f32 0.0, %v760
        %v762 = vpop.f32.mrb[0].mxu0
        %763 = vmatprep.mubr.f32.mxu0 0.0
        %764 = vmatmul.mubr.f32.gmra.mrb[0].mxu0 %v359
        %v765 = vpop.f32.mrb[0].mxu0
        %v766 = vadd.f32 0.0, %v765
        %v767 = vpop.f32.mrb[0].mxu0
        %768 = vmatprep.mubr.f32.mxu0 0.0
        %769 = vmatmul.mubr.f32.gmra.mrb[0].mxu0 %v360
        %v770 = vpop.f32.mrb[0].mxu0
        %v771 = vadd.f32 0.0, %v770
        %v772 = vpop.f32.mrb[0].mxu0
        %773 = vmatprep.mubr.f32.mxu0 0.0
        %774 = vmatmul.mubr.f32.gmra.mrb[0].mxu0 %v361
        %v775 = vpop.f32.mrb[0].mxu0
        %v776 = vadd.f32 0.0, %v775
        %v777 = vpop.f32.mrb[0].mxu0
        %778 = vmatprep.mubr.f32.mxu0 0.0
        %779 = vmatmul.mubr.f32.gmra.mrb[0].mxu0 %v362
        %v780 = vpop.f32.mrb[0].mxu0
        %v781 = vadd.f32 0.0, %v780
        %v782 = vpop.f32.mrb[0].mxu0
        %783 = vmatprep.mubr.f32.mxu0 0.0
        %784 = vmatmul.mubr.f32.gmra.mrb[0].mxu0 %v363
        %v785 = vpop.f32.mrb[0].mxu0
        %v786 = vadd.f32 0.0, %v785
        %v787 = vpop.f32.mrb[0].mxu0
        %788 = vmatprep.mubr.f32.mxu0 0.0
        %789 = vmatmul.mubr.f32.gmra.mrb[0].mxu0 %v364
        %v790 = vpop.f32.mrb[0].mxu0
        %v791 = vadd.f32 0.0, %v790
        %v792 = vpop.f32.mrb[0].mxu0
        %793 = vmatprep.mubr.f32.mxu0 0.0
        %794 = vmatmul.mubr.f32.gmra.mrb[0].mxu0 %v365
        %v795 = vpop.f32.mrb[0].mxu0
        %v796 = vadd.f32 0.0, %v795
        %v797 = vpop.f32.mrb[0].mxu0
        %798 = vmatprep.mubr.f32.mxu0 0.0
        %799 = vmatmul.mubr.f32.gmra.mrb[0].mxu0 %v366
        %v800 = vpop.f32.mrb[0].mxu0
        %v801 = vadd.f32 0.0, %v800
        %v802 = vpop.f32.mrb[0].mxu0
        %803 = vmatprep.mubr.f32.mxu0 0.0
        %804 = vmatmul.mubr.f32.gmra.mrb[0].mxu0 %v367
        %v805 = vpop.f32.mrb[0].mxu0
        %v806 = vadd.f32 0.0, %v805
        %v807 = vpop.f32.mrb[0].mxu0
        %808 = vmatprep.mubr.f32.mxu0 0.0
        %809 = vmatmul.mubr.f32.gmra.mrb[0].mxu0 %v368
        %v810 = vpop.f32.mrb[0].mxu0
        %v811 = vadd.f32 0.0, %v810
        %v812 = vpop.f32.mrb[0].mxu0
        %813 = vmatprep.mubr.f32.mxu0 0.0
        %814 = vmatmul.mubr.f32.gmra.mrb[0].mxu0 %v369
        %v815 = vpop.f32.mrb[0].mxu0
        %v816 = vadd.f32 0.0, %v815
        %v817 = vpop.f32.mrb[0].mxu0
        %818 = vmatprep.mubr.f32.mxu0 0.0
        %819 = vmatmul.mubr.f32.gmra.mrb[0].mxu0 %v370
        %v820 = vpop.f32.mrb[0].mxu0
        %v821 = vadd.f32 0.0, %v820
        %v822 = vpop.f32.mrb[0].mxu0
        %823 = vmatprep.mubr.f32.mxu0 0.0
        %824 = vmatmul.mubr.f32.gmra.mrb[0].mxu0 %v371
        %v825 = vpop.f32.mrb[0].mxu0
        %v826 = vadd.f32 0.0, %v825
        %v827 = vpop.f32.mrb[0].mxu0
        %828 = vmatprep.mubr.f32.mxu0 0.0
        %829 = vmatmul.mubr.f32.gmra.mrb[0].mxu0 %v372
        %v830 = vpop.f32.mrb[0].mxu0
        %v831 = vadd.f32 0.0, %v830
        %v832 = vpop.f32.mrb[0].mxu0
        %833 = vmatprep.mubr.f32.mxu0 0.0
        %834 = vmatmul.mubr.f32.gmra.mrb[0].mxu0 %v373
        %v835 = vpop.f32.mrb[0].mxu0
        %v836 = vadd.f32 0.0, %v835
        %v837 = vpop.f32.mrb[0].mxu0
        %838 = vdwg.mxu0
        %v839 = vadd.f32 %v390, %v521
        %v840 = vadd.f32 %v391, %v526
        %v841 = vadd.f32 %v392, %v531
        %v842 = vadd.f32 %v393, %v536
        %v843 = vadd.f32 %v394, %v541
        %v844 = vadd.f32 %v395, %v546
        %v845 = vadd.f32 %v396, %v551
        %v846 = vadd.f32 %v397, %v556
        %v847 = vadd.f32 %v398, %v561
        %v848 = vadd.f32 %v399, %v566
        %v849 = vadd.f32 %v400, %v571
        %v850 = vadd.f32 %v401, %v576
        %v851 = vadd.f32 %v402, %v581
        %v852 = vadd.f32 %v403, %v586
        %v853 = vadd.f32 %v404, %v591
        %v854 = vadd.f32 %v405, %v596
        %v855 = vadd.f32 %v406, %v601
        %v856 = vadd.f32 %v407, %v606
        %v857 = vadd.f32 %v408, %v611
        %v858 = vadd.f32 %v409, %v616
        %v859 = vadd.f32 %v410, %v621
        %v860 = vadd.f32 %v411, %v626
        %v861 = vadd.f32 %v412, %v631
        %v862 = vadd.f32 %v413, %v636
        %v863 = vadd.f32 %v414, %v641
        %v864 = vadd.f32 %v415, %v646
        %v865 = vadd.f32 %v416, %v651
        %v866 = vadd.f32 %v417, %v656
        %v867 = vadd.f32 %v418, %v661
        %v868 = vadd.f32 %v419, %v666
        %v869 = vadd.f32 %v420, %v671
        %v870 = vadd.f32 %v421, %v676
        %v871 = vadd.f32 %v422, %v681
        %v872 = vadd.f32 %v423, %v686
        %v873 = vadd.f32 %v424, %v691
        %v874 = vadd.f32 %v425, %v696
        %v875 = vadd.f32 %v426, %v701
        %v876 = vadd.f32 %v427, %v706
        %v877 = vadd.f32 %v428, %v711
        %v878 = vadd.f32 %v429, %v716
        %v879 = vadd.f32 %v430, %v721
        %v880 = vadd.f32 %v431, %v726
        %v881 = vadd.f32 %v432, %v731
        %v882 = vadd.f32 %v433, %v736
        %v883 = vadd.f32 %v434, %v741
        %v884 = vadd.f32 %v435, %v746
        %v885 = vadd.f32 %v436, %v751
        %v886 = vadd.f32 %v437, %v756
        %v887 = vadd.f32 %v438, %v761
        %v888 = vadd.f32 %v439, %v766
        %v889 = vadd.f32 %v440, %v771
        %v890 = vadd.f32 %v441, %v776
        %v891 = vadd.f32 %v442, %v781
        %v892 = vadd.f32 %v443, %v786
        %v893 = vadd.f32 %v444, %v791
        %v894 = vadd.f32 %v445, %v796
        %v895 = vadd.f32 %v446, %v801
        %v896 = vadd.f32 %v447, %v806
        %v897 = vadd.f32 %v448, %v811
        %v898 = vadd.f32 %v449, %v816
        %v899 = vadd.f32 %v450, %v821
        %v900 = vadd.f32 %v451, %v826
        %v901 = vadd.f32 %v452, %v831
        %v902 = vadd.f32 %v453, %v836
        %903 = vst [vmem:[#allocation2] sm:$0xff] %v839
        %904 = vst [vmem:[#allocation2 + $0x8] sm:$0xff] %v840
        %905 = vst [vmem:[#allocation2 + $0x10] sm:$0xff] %v841
        %906 = vst [vmem:[#allocation2 + $0x18] sm:$0xff] %v842
        %907 = vst [vmem:[#allocation2 + $0x20] sm:$0xff] %v843
        %908 = vst [vmem:[#allocation2 + $0x28] sm:$0xff] %v844
        %909 = vst [vmem:[#allocation2 + $0x30] sm:$0xff] %v845
        %910 = vst [vmem:[#allocation2 + $0x38] sm:$0xff] %v846
        %911 = vst [vmem:[#allocation2 + $0x40] sm:$0xff] %v847
        %912 = vst [vmem:[#allocation2 + $0x48] sm:$0xff] %v848
        %913 = vst [vmem:[#allocation2 + $0x50] sm:$0xff] %v849
        %914 = vst [vmem:[#allocation2 + $0x58] sm:$0xff] %v850
        %915 = vst [vmem:[#allocation2 + $0x60] sm:$0xff] %v851
        %916 = vst [vmem:[#allocation2 + $0x68] sm:$0xff] %v852
        %917 = vst [vmem:[#allocation2 + $0x70] sm:$0xff] %v853
        %918 = vst [vmem:[#allocation2 + $0x78] sm:$0xff] %v854
        %919 = vst [vmem:[#allocation2 + $0x80] sm:$0xff] %v855
        %920 = vst [vmem:[#allocation2 + $0x88] sm:$0xff] %v856
        %921 = vst [vmem:[#allocation2 + $0x90] sm:$0xff] %v857
        %922 = vst [vmem:[#allocation2 + $0x98] sm:$0xff] %v858
        %923 = vst [vmem:[#allocation2 + $0xa0] sm:$0xff] %v859
        %924 = vst [vmem:[#allocation2 + $0xa8] sm:$0xff] %v860
        %925 = vst [vmem:[#allocation2 + $0xb0] sm:$0xff] %v861
        %926 = vst [vmem:[#allocation2 + $0xb8] sm:$0xff] %v862
        %927 = vst [vmem:[#allocation2 + $0xc0] sm:$0xff] %v863
        %928 = vst [vmem:[#allocation2 + $0xc8] sm:$0xff] %v864
        %929 = vst [vmem:[#allocation2 + $0xd0] sm:$0xff] %v865
        %930 = vst [vmem:[#allocation2 + $0xd8] sm:$0xff] %v866
        %931 = vst [vmem:[#allocation2 + $0xe0] sm:$0xff] %v867
        %932 = vst [vmem:[#allocation2 + $0xe8] sm:$0xff] %v868
        %933 = vst [vmem:[#allocation2 + $0xf0] sm:$0xff] %v869
        %934 = vst [vmem:[#allocation2 + $0xf8] sm:$0xff] %v870
        %935 = vst [vmem:[#allocation2 + $0x100] sm:$0xff] %v871
        %936 = vst [vmem:[#allocation2 + $0x108] sm:$0xff] %v872
        %937 = vst [vmem:[#allocation2 + $0x110] sm:$0xff] %v873
        %938 = vst [vmem:[#allocation2 + $0x118] sm:$0xff] %v874
        %939 = vst [vmem:[#allocation2 + $0x120] sm:$0xff] %v875
        %940 = vst [vmem:[#allocation2 + $0x128] sm:$0xff] %v876
        %941 = vst [vmem:[#allocation2 + $0x130] sm:$0xff] %v877
        %942 = vst [vmem:[#allocation2 + $0x138] sm:$0xff] %v878
        %943 = vst [vmem:[#allocation2 + $0x140] sm:$0xff] %v879
        %944 = vst [vmem:[#allocation2 + $0x148] sm:$0xff] %v880
        %945 = vst [vmem:[#allocation2 + $0x150] sm:$0xff] %v881
        %946 = vst [vmem:[#allocation2 + $0x158] sm:$0xff] %v882
        %947 = vst [vmem:[#allocation2 + $0x160] sm:$0xff] %v883
        %948 = vst [vmem:[#allocation2 + $0x168] sm:$0xff] %v884
        %949 = vst [vmem:[#allocation2 + $0x170] sm:$0xff] %v885
        %950 = vst [vmem:[#allocation2 + $0x178] sm:$0xff] %v886
        %951 = vst [vmem:[#allocation2 + $0x180] sm:$0xff] %v887
        %952 = vst [vmem:[#allocation2 + $0x188] sm:$0xff] %v888
        %953 = vst [vmem:[#allocation2 + $0x190] sm:$0xff] %v889
        %954 = vst [vmem:[#allocation2 + $0x198] sm:$0xff] %v890
        %955 = vst [vmem:[#allocation2 + $0x1a0] sm:$0xff] %v891
        %956 = vst [vmem:[#allocation2 + $0x1a8] sm:$0xff] %v892
        %957 = vst [vmem:[#allocation2 + $0x1b0] sm:$0xff] %v893
        %958 = vst [vmem:[#allocation2 + $0x1b8] sm:$0xff] %v894
        %959 = vst [vmem:[#allocation2 + $0x1c0] sm:$0xff] %v895
        %960 = vst [vmem:[#allocation2 + $0x1c8] sm:$0xff] %v896
        %961 = vst [vmem:[#allocation2 + $0x1d0] sm:$0xff] %v897
        %962 = vst [vmem:[#allocation2 + $0x1d8] sm:$0xff] %v898
        %963 = vst [vmem:[#allocation2 + $0x1e0] sm:$0xff] %v899
        %964 = vst [vmem:[#allocation2 + $0x1e8] sm:$0xff] %v900
        %965 = vst [vmem:[#allocation2 + $0x1f0] sm:$0xff] %v901
        %966 = vst [vmem:[#allocation2 + $0x1f8] sm:$0xff] %v902
        // Predicated region
        $region49: #{_lambda_.13} parent=31 // pred_check
          %p967 = pneg %p242
        $region50: #{_lambda_.13} parent=31 // pred_check_branch
          %969 = sbr.rel (%p967) target = $region52
        $region51: #{_lambda_.13} parent=31 // pred_region
          %v970 = vld [vmem:[#allocation2] sm:$0xff]
          %v971 = vld [vmem:[#allocation2 + $0x8] sm:$0xff]
          %v972 = vld [vmem:[#allocation2 + $0x10] sm:$0xff]
          %v973 = vld [vmem:[#allocation2 + $0x18] sm:$0xff]
          %v974 = vld [vmem:[#allocation2 + $0x20] sm:$0xff]
          %v975 = vld [vmem:[#allocation2 + $0x28] sm:$0xff]
          %v976 = vld [vmem:[#allocation2 + $0x30] sm:$0xff]
          %v977 = vld [vmem:[#allocation2 + $0x38] sm:$0xff]
          %v978 = vld [vmem:[#allocation2 + $0x40] sm:$0xff]
          %v979 = vld [vmem:[#allocation2 + $0x48] sm:$0xff]
          %v980 = vld [vmem:[#allocation2 + $0x50] sm:$0xff]
          %v981 = vld [vmem:[#allocation2 + $0x58] sm:$0xff]
          %v982 = vld [vmem:[#allocation2 + $0x60] sm:$0xff]
          %v983 = vld [vmem:[#allocation2 + $0x68] sm:$0xff]
          %v984 = vld [vmem:[#allocation2 + $0x70] sm:$0xff]
          %v985 = vld [vmem:[#allocation2 + $0x78] sm:$0xff]
          %v986 = vld [vmem:[#allocation2 + $0x80] sm:$0xff]
          %v987 = vld [vmem:[#allocation2 + $0x88] sm:$0xff]
          %v988 = vld [vmem:[#allocation2 + $0x90] sm:$0xff]
          %v989 = vld [vmem:[#allocation2 + $0x98] sm:$0xff]
          %v990 = vld [vmem:[#allocation2 + $0xa0] sm:$0xff]
          %v991 = vld [vmem:[#allocation2 + $0xa8] sm:$0xff]
          %v992 = vld [vmem:[#allocation2 + $0xb0] sm:$0xff]
          %v993 = vld [vmem:[#allocation2 + $0xb8] sm:$0xff]
          %v994 = vld [vmem:[#allocation2 + $0xc0] sm:$0xff]
          %v995 = vld [vmem:[#allocation2 + $0xc8] sm:$0xff]
          %v996 = vld [vmem:[#allocation2 + $0xd0] sm:$0xff]
          %v997 = vld [vmem:[#allocation2 + $0xd8] sm:$0xff]
          %v998 = vld [vmem:[#allocation2 + $0xe0] sm:$0xff]
          %v999 = vld [vmem:[#allocation2 + $0xe8] sm:$0xff]
          %v1000 = vld [vmem:[#allocation2 + $0xf0] sm:$0xff]
          %v1001 = vld [vmem:[#allocation2 + $0xf8] sm:$0xff]
          %v1002 = vld [vmem:[#allocation2 + $0x100] sm:$0xff]
          %v1003 = vld [vmem:[#allocation2 + $0x108] sm:$0xff]
          %v1004 = vld [vmem:[#allocation2 + $0x110] sm:$0xff]
          %v1005 = vld [vmem:[#allocation2 + $0x118] sm:$0xff]
          %v1006 = vld [vmem:[#allocation2 + $0x120] sm:$0xff]
          %v1007 = vld [vmem:[#allocation2 + $0x128] sm:$0xff]
          %v1008 = vld [vmem:[#allocation2 + $0x130] sm:$0xff]
          %v1009 = vld [vmem:[#allocation2 + $0x138] sm:$0xff]
          %v1010 = vld [vmem:[#allocation2 + $0x140] sm:$0xff]
          %v1011 = vld [vmem:[#allocation2 + $0x148] sm:$0xff]
          %v1012 = vld [vmem:[#allocation2 + $0x150] sm:$0xff]
          %v1013 = vld [vmem:[#allocation2 + $0x158] sm:$0xff]
          %v1014 = vld [vmem:[#allocation2 + $0x160] sm:$0xff]
          %v1015 = vld [vmem:[#allocation2 + $0x168] sm:$0xff]
          %v1016 = vld [vmem:[#allocation2 + $0x170] sm:$0xff]
          %v1017 = vld [vmem:[#allocation2 + $0x178] sm:$0xff]
          %v1018 = vld [vmem:[#allocation2 + $0x180] sm:$0xff]
          %v1019 = vld [vmem:[#allocation2 + $0x188] sm:$0xff]
          %v1020 = vld [vmem:[#allocation2 + $0x190] sm:$0xff]
          %v1021 = vld [vmem:[#allocation2 + $0x198] sm:$0xff]
          %v1022 = vld [vmem:[#allocation2 + $0x1a0] sm:$0xff]
          %v1023 = vld [vmem:[#allocation2 + $0x1a8] sm:$0xff]
          %v1024 = vld [vmem:[#allocation2 + $0x1b0] sm:$0xff]
          %v1025 = vld [vmem:[#allocation2 + $0x1b8] sm:$0xff]
          %v1026 = vld [vmem:[#allocation2 + $0x1c0] sm:$0xff]
          %v1027 = vld [vmem:[#allocation2 + $0x1c8] sm:$0xff]
          %v1028 = vld [vmem:[#allocation2 + $0x1d0] sm:$0xff]
          %v1029 = vld [vmem:[#allocation2 + $0x1d8] sm:$0xff]
          %v1030 = vld [vmem:[#allocation2 + $0x1e0] sm:$0xff]
          %v1031 = vld [vmem:[#allocation2 + $0x1e8] sm:$0xff]
          %v1032 = vld [vmem:[#allocation2 + $0x1f0] sm:$0xff]
          %v1033 = vld [vmem:[#allocation2 + $0x1f8] sm:$0xff]
          %v1034 = vld [vmem:[#allocation8] sm:$0x1]
          %v1036 = vlaneseq
          %v1037 = vshrl.u32 %v1036, 7
          %v1038 = vsub.s32 0, %v1037
          %v1039 = vrot.slane %v1034, %v1038
          %v1041 = vadd.f32 %v970, %v1039
          %v1042 = vadd.f32 %v971, %v1039
          %v1043 = vadd.f32 %v972, %v1039
          %v1044 = vadd.f32 %v973, %v1039
          %v1045 = vadd.f32 %v974, %v1039
          %v1046 = vadd.f32 %v975, %v1039
          %v1047 = vadd.f32 %v976, %v1039
          %v1048 = vadd.f32 %v977, %v1039
          %v1049 = vadd.f32 %v978, %v1039
          %v1050 = vadd.f32 %v979, %v1039
          %v1051 = vadd.f32 %v980, %v1039
          %v1052 = vadd.f32 %v981, %v1039
          %v1053 = vadd.f32 %v982, %v1039
          %v1054 = vadd.f32 %v983, %v1039
          %v1055 = vadd.f32 %v984, %v1039
          %v1056 = vadd.f32 %v985, %v1039
          %v1057 = vadd.f32 %v986, %v1039
          %v1058 = vadd.f32 %v987, %v1039
          %v1059 = vadd.f32 %v988, %v1039
          %v1060 = vadd.f32 %v989, %v1039
          %v1061 = vadd.f32 %v990, %v1039
          %v1062 = vadd.f32 %v991, %v1039
          %v1063 = vadd.f32 %v992, %v1039
          %v1064 = vadd.f32 %v993, %v1039
          %v1065 = vadd.f32 %v994, %v1039
          %v1066 = vadd.f32 %v995, %v1039
          %v1067 = vadd.f32 %v996, %v1039
          %v1068 = vadd.f32 %v997, %v1039
          %v1069 = vadd.f32 %v998, %v1039
          %v1070 = vadd.f32 %v999, %v1039
          %v1071 = vadd.f32 %v1000, %v1039
          %v1072 = vadd.f32 %v1001, %v1039
          %v1073 = vadd.f32 %v1002, %v1039
          %v1074 = vadd.f32 %v1003, %v1039
          %v1075 = vadd.f32 %v1004, %v1039
          %v1076 = vadd.f32 %v1005, %v1039
          %v1077 = vadd.f32 %v1006, %v1039
          %v1078 = vadd.f32 %v1007, %v1039
          %v1079 = vadd.f32 %v1008, %v1039
          %v1080 = vadd.f32 %v1009, %v1039
          %v1081 = vadd.f32 %v1010, %v1039
          %v1082 = vadd.f32 %v1011, %v1039
          %v1083 = vadd.f32 %v1012, %v1039
          %v1084 = vadd.f32 %v1013, %v1039
          %v1085 = vadd.f32 %v1014, %v1039
          %v1086 = vadd.f32 %v1015, %v1039
          %v1087 = vadd.f32 %v1016, %v1039
          %v1088 = vadd.f32 %v1017, %v1039
          %v1089 = vadd.f32 %v1018, %v1039
          %v1090 = vadd.f32 %v1019, %v1039
          %v1091 = vadd.f32 %v1020, %v1039
          %v1092 = vadd.f32 %v1021, %v1039
          %v1093 = vadd.f32 %v1022, %v1039
          %v1094 = vadd.f32 %v1023, %v1039
          %v1095 = vadd.f32 %v1024, %v1039
          %v1096 = vadd.f32 %v1025, %v1039
          %v1097 = vadd.f32 %v1026, %v1039
          %v1098 = vadd.f32 %v1027, %v1039
          %v1099 = vadd.f32 %v1028, %v1039
          %v1100 = vadd.f32 %v1029, %v1039
          %v1101 = vadd.f32 %v1030, %v1039
          %v1102 = vadd.f32 %v1031, %v1039
          %v1103 = vadd.f32 %v1032, %v1039
          %v1104 = vadd.f32 %v1033, %v1039
          %1105 = vst [vmem:[%s238] sm:$0xff] %v1041
          %1106 = vst [vmem:[%s238 + $0x8] sm:$0xff] %v1042
          %1107 = vst [vmem:[%s238 + $0x10] sm:$0xff] %v1043
          %1108 = vst [vmem:[%s238 + $0x18] sm:$0xff] %v1044
          %1109 = vst [vmem:[%s238 + $0x20] sm:$0xff] %v1045
          %1110 = vst [vmem:[%s238 + $0x28] sm:$0xff] %v1046
          %1111 = vst [vmem:[%s238 + $0x30] sm:$0xff] %v1047
          %1112 = vst [vmem:[%s238 + $0x38] sm:$0xff] %v1048
          %1113 = vst [vmem:[%s238 + $0x40] sm:$0xff] %v1049
          %1114 = vst [vmem:[%s238 + $0x48] sm:$0xff] %v1050
          %1115 = vst [vmem:[%s238 + $0x50] sm:$0xff] %v1051
          %1116 = vst [vmem:[%s238 + $0x58] sm:$0xff] %v1052
          %1117 = vst [vmem:[%s238 + $0x60] sm:$0xff] %v1053
          %1118 = vst [vmem:[%s238 + $0x68] sm:$0xff] %v1054
          %1119 = vst [vmem:[%s238 + $0x70] sm:$0xff] %v1055
          %1120 = vst [vmem:[%s238 + $0x78] sm:$0xff] %v1056
          %1121 = vst [vmem:[%s238 + $0x80] sm:$0xff] %v1057
          %1122 = vst [vmem:[%s238 + $0x88] sm:$0xff] %v1058
          %1123 = vst [vmem:[%s238 + $0x90] sm:$0xff] %v1059
          %1124 = vst [vmem:[%s238 + $0x98] sm:$0xff] %v1060
          %1125 = vst [vmem:[%s238 + $0xa0] sm:$0xff] %v1061
          %1126 = vst [vmem:[%s238 + $0xa8] sm:$0xff] %v1062
          %1127 = vst [vmem:[%s238 + $0xb0] sm:$0xff] %v1063
          %1128 = vst [vmem:[%s238 + $0xb8] sm:$0xff] %v1064
          %1129 = vst [vmem:[%s238 + $0xc0] sm:$0xff] %v1065
          %1130 = vst [vmem:[%s238 + $0xc8] sm:$0xff] %v1066
          %1131 = vst [vmem:[%s238 + $0xd0] sm:$0xff] %v1067
          %1132 = vst [vmem:[%s238 + $0xd8] sm:$0xff] %v1068
          %1133 = vst [vmem:[%s238 + $0xe0] sm:$0xff] %v1069
          %1134 = vst [vmem:[%s238 + $0xe8] sm:$0xff] %v1070
          %1135 = vst [vmem:[%s238 + $0xf0] sm:$0xff] %v1071
          %1136 = vst [vmem:[%s238 + $0xf8] sm:$0xff] %v1072
          %1137 = vst [vmem:[%s238 + $0x100] sm:$0xff] %v1073
          %1138 = vst [vmem:[%s238 + $0x108] sm:$0xff] %v1074
          %1139 = vst [vmem:[%s238 + $0x110] sm:$0xff] %v1075
          %1140 = vst [vmem:[%s238 + $0x118] sm:$0xff] %v1076
          %1141 = vst [vmem:[%s238 + $0x120] sm:$0xff] %v1077
          %1142 = vst [vmem:[%s238 + $0x128] sm:$0xff] %v1078
          %1143 = vst [vmem:[%s238 + $0x130] sm:$0xff] %v1079
          %1144 = vst [vmem:[%s238 + $0x138] sm:$0xff] %v1080
          %1145 = vst [vmem:[%s238 + $0x140] sm:$0xff] %v1081
          %1146 = vst [vmem:[%s238 + $0x148] sm:$0xff] %v1082
          %1147 = vst [vmem:[%s238 + $0x150] sm:$0xff] %v1083
          %1148 = vst [vmem:[%s238 + $0x158] sm:$0xff] %v1084
          %1149 = vst [vmem:[%s238 + $0x160] sm:$0xff] %v1085
          %1150 = vst [vmem:[%s238 + $0x168] sm:$0xff] %v1086
          %1151 = vst [vmem:[%s238 + $0x170] sm:$0xff] %v1087
          %1152 = vst [vmem:[%s238 + $0x178] sm:$0xff] %v1088
          %1153 = vst [vmem:[%s238 + $0x180] sm:$0xff] %v1089
          %1154 = vst [vmem:[%s238 + $0x188] sm:$0xff] %v1090
          %1155 = vst [vmem:[%s238 + $0x190] sm:$0xff] %v1091
          %1156 = vst [vmem:[%s238 + $0x198] sm:$0xff] %v1092
          %1157 = vst [vmem:[%s238 + $0x1a0] sm:$0xff] %v1093
          %1158 = vst [vmem:[%s238 + $0x1a8] sm:$0xff] %v1094
          %1159 = vst [vmem:[%s238 + $0x1b0] sm:$0xff] %v1095
          %1160 = vst [vmem:[%s238 + $0x1b8] sm:$0xff] %v1096
          %1161 = vst [vmem:[%s238 + $0x1c0] sm:$0xff] %v1097
          %1162 = vst [vmem:[%s238 + $0x1c8] sm:$0xff] %v1098
          %1163 = vst [vmem:[%s238 + $0x1d0] sm:$0xff] %v1099
          %1164 = vst [vmem:[%s238 + $0x1d8] sm:$0xff] %v1100
          %1165 = vst [vmem:[%s238 + $0x1e0] sm:$0xff] %v1101
          %1166 = vst [vmem:[%s238 + $0x1e8] sm:$0xff] %v1102
          %1167 = vst [vmem:[%s238 + $0x1f0] sm:$0xff] %v1103
          %1168 = vst [vmem:[%s238 + $0x1f8] sm:$0xff] %v1104
        $region52: #{_lambda_.13} parent=31 // pred_fallthru
          _
        %s1169 = sand.u32 %s116, 1
        %s1170 = scalar_lea.sflag [#allocation5], %s1169
        %s1171 = sand.u32 %s116, 1
        %s1172 = smul.addr %s1171, 512
        %s1173 = scalar_lea.vmem [#allocation9], %s1172
        // Predicated region
        $region53: #{_lambda_.13} parent=31 // pred_check
          %p1174 = pneg %p126
        $region54: #{_lambda_.13} parent=31 // pred_check_branch
          %1176 = sbr.rel (%p1174) target = $region56
        $region55: #{_lambda_.13} parent=31 // pred_region
          %s1177 = smul.u32 64, %s25
          %s1179 = ssub.s32 8192, 8192
          %1180 = vsyncadd %s1170, %s1179
          %s1181 = smul.addr %s1177, 128
          %s1182 = scalar_lea.hbm %s3, %s1181
          %s1183 = sshll.u32 %s1173, 4
          %s1184 = int_to_ptr.vmem [resolvable:$true] %s1183
          %1189 = dma.vmem_to_hbm [thread:$0]  %s1184, 8192, %s1182, %s1170, 128, 128, 8
        $region56: #{_lambda_.13} parent=31 // pred_fallthru
          _
      $region32: #{_lambda_.13} parent=5 // pred_fallthru
        _
      %p1190 = scmp.le.s32.totalorder 2, %s16
      // Predicated region
      $region57: #{_lambda_.13} parent=5 // pred_check
        %p1191 = pneg %p1190
      $region58: #{_lambda_.13} parent=5 // pred_check_branch
        %1193 = sbr.rel (%p1191) target = $region60
      $region59: #{_lambda_.13} parent=5 // pred_region
        %s1194 = ssub.s32 %s16, 2
        // Predicated region
        $region61: #{_lambda_.13} parent=59 // pred_check
          %p1195 = pneg %p132
        $region62: #{_lambda_.13} parent=59 // pred_check_branch
          %1197 = sbr.rel (%p1195) target = $region64
        $region63: #{_lambda_.13} parent=59 // pred_region
          %s1198 = sand.u32 %s117, 1
          %s1199 = scalar_lea.sflag [#allocation5], %s1198
          %s1200 = sand.u32 %s117, 1
          %s1201 = smul.addr %s1200, 512
          %s1202 = scalar_lea.vmem [#allocation9], %s1201
          %1203 = dma.done %s1199, 8192
        $region64: #{_lambda_.13} parent=59 // pred_fallthru
          _
      $region60: #{_lambda_.13} parent=5 // pred_fallthru
        _
    $region6: #{_lambda_.13} parent=1 // loop_footer
      %s20 = sadd.s32 1, %s16
    $region7: #{_lambda_.13} parent=1 // loop_footer_branch
      %15 = sbr.rel target = $region3
    $region8: #{_lambda_.13} parent=1 // loop_exit
      _
    %1204 = vsyncpa [#allocation4], 1
    %s1205 = scalar_lea.sflag [#allocation4], 1
    %1206 = vsyncpa %s1205, 1
    %1207 = vsyncpa [#allocation7], 1
    %1208 = vsyncpa [#allocation5], 1
    %s1209 = scalar_lea.sflag [#allocation5], 1
    %1210 = vsyncpa %s1209, 1

// kernel: _lambda_.16
$region0: #{_lambda_.16}
  #allocation0 [shape = 'u32[]', space=smem, size = 0x4, offset = 0x4, fixed_abs, tag = 'smem constant byte address 0x4 - core index']
  #allocation1 [shape = 'u32[144,128]{1,0:T(1,128)}', space=vmem, size = 0x12000, scoped, tag = 'internal scratch']
  #allocation2 [shape = 'f32[512,128]{1,0:T(8,128)}', space=vmem, size = 0x40000, scoped, tag = 'scratch operand']
  %s0 = inlined_call_operand.hbm [shape: f32[2048,128], index: 0, kind: input, shape index: {}]
  %s1 = inlined_call_operand.hbm [shape: f32[128,128], index: 1, kind: input, shape index: {}]
  %s2 = inlined_call_operand.hbm [shape: f32[1,128], index: 2, kind: input, shape index: {}]
  %s3 = inlined_call_operand.hbm [shape: f32[2048,128], index: 3, kind: output, shape index: {}]
  %s4 = sld [smem:[#allocation0]]
  $region65: #{_lambda_.16} parent=0
    _
  %s6 = ssub.s32 1, %s4
  %s7 = scalar_select 0, %s6, %s4
  $region1: #{_lambda_.16} parent=0
    #allocation3 [shape = 'u8[524288]{0}', space=vmem, size = 0x80000, scoped, tag = 'input window, operand 0']
    #allocation4 [shape = 's32[2]{0}', space=sflag, size = 0x8, scoped, tag = 'scoped memory for _lambda_.16']
    #allocation5 [shape = 's32[2]{0}', space=sflag, size = 0x8, scoped, tag = 'scoped memory for _lambda_.16']
    #allocation6 [shape = 'u8[65536]{0}', space=vmem, size = 0x10000, scoped, tag = 'input window, operand 1, single buffered']
    #allocation7 [shape = 's32[1]{0}', space=sflag, size = 0x4, scoped, tag = 'scoped memory for _lambda_.16']
    #allocation8 [shape = 'u8[512]{0}', space=vmem, size = 0x400, scoped, tag = 'input window, operand 2, single buffered']
    #allocation9 [shape = 'u8[524288]{0}', space=vmem, size = 0x80000, scoped, tag = 'output window, operand 0']
    %8 = vsyncpa [#allocation4], 0
    %s9 = scalar_lea.sflag [#allocation4], 1
    %10 = vsyncpa %s9, 0
    %11 = vsyncpa [#allocation7], 0
    %12 = vsyncpa [#allocation5], 0
    %s13 = scalar_lea.sflag [#allocation5], 1
    %14 = vsyncpa %s13, 0
    loop: start=0, step=1, limit=6
    $region2: #{_lambda_.16} parent=1 // loop_pre_header
      _
    $region3: #{_lambda_.16} parent=1 // loop_header
      %s16 = sphi 0, %s20
      %p17 = scmp.ge.s32.totalorder %s16, 6
      %s23 = sphi 0, %s35
      %s24 = sphi 0, %s31
      %s25 = sphi 0, %s23
      %s26 = sphi 0, %s24
      %s27 = sphi 0, %s25
      %s28 = sphi 0, %s26
      %s40 = sphi 0, %s42
      %s43 = sphi 0, %s40
      %s44 = sphi 0, %s43
      %s60 = sphi 0, %s44
      %s66 = sphi 0, %s68
      %s69 = sphi 0, %s66
      %s70 = sphi 0, %s69
      %s86 = sphi 0, %s70
      %s90 = sphi 0, %s90
      %s92 = sphi 0, %s90
      %s93 = sphi 0, %s92
      %s107 = sphi 0, %s93
      %s113 = sphi 0, %s115
      %s116 = sphi 0, %s113
      %s117 = sphi 0, %s116
      %s133 = sphi 0, %s117
    $region4: #{_lambda_.16} parent=1 // loop_header_branch
      %19 = sbr.rel (%p17) target = $region8
    $region5: #{_lambda_.16} parent=1 // loop_body
      %s21 = ssub.s32 %s16, 1
      %s22 = ssub.s32 %s16, 2
      %s29 = sadd.s32 1, %s24
      %p30 = scmp.ge.s32.totalorder %s29, 1
      %s31 = scalar_select %p30, 0, %s29
      %s32 = sadd.s32 1, %s23
      %s33 = scalar_select %p30, %s32, %s23
      %p34 = scmp.ge.s32.totalorder %s33, 4
      %s35 = scalar_select %p34, 0, %s33
      %s36 = ssub.s32 %s23, %s35
      %s37 = ssub.s32 %s24, %s31
      %s38 = sor.u32 %s36, %s37
      %p39 = scmp.eq.s32.totalorder %s38, 0
      %s41 = sadd.s32 %s40, 1
      %s42 = scalar_select %p39, %s40, %s41
      %p45 = pneg %p39
      %p46 = scmp.eq.s32.totalorder %s16, 3
      %p47 = por %p45, %p46
      %p48 = scmp.ne.s32.totalorder %s40, %s43
      %p49 = scmp.eq.s32.totalorder %s16, 0
      %p50 = por %p48, %p49
      %p51 = scmp.ne.s32.totalorder %s40, %s43
      %p52 = scmp.eq.s32.totalorder %s21, 3
      %p53 = por %p51, %p52
      %p54 = scmp.ne.s32.totalorder %s43, %s44
      %p55 = scmp.eq.s32.totalorder %s21, 0
      %p56 = por %p54, %p55
      %p57 = scmp.ne.s32.totalorder %s43, %s44
      %p58 = scmp.eq.s32.totalorder %s22, 3
      %p59 = por %p57, %p58
      %p61 = scmp.ne.s32.totalorder %s44, %s60
      %p62 = scmp.eq.s32.totalorder %s22, 0
      %p63 = por %p61, %p62
      %s64 = ssub.s32 %s24, %s31
      %p65 = scmp.eq.s32.totalorder %s64, 0
      %s67 = sadd.s32 %s66, 1
      %s68 = scalar_select %p65, %s66, %s67
      %p71 = pneg %p65
      %p72 = scmp.eq.s32.totalorder %s16, 3
      %p73 = por %p71, %p72
      %p74 = scmp.ne.s32.totalorder %s66, %s69
      %p75 = scmp.eq.s32.totalorder %s16, 0
      %p76 = por %p74, %p75
      %p77 = scmp.ne.s32.totalorder %s66, %s69
      %p78 = scmp.eq.s32.totalorder %s21, 3
      %p79 = por %p77, %p78
      %p80 = scmp.ne.s32.totalorder %s69, %s70
      %p81 = scmp.eq.s32.totalorder %s21, 0
      %p82 = por %p80, %p81
      %p83 = scmp.ne.s32.totalorder %s69, %s70
      %p84 = scmp.eq.s32.totalorder %s22, 3
      %p85 = por %p83, %p84
      %p87 = scmp.ne.s32.totalorder %s70, %s86
      %p88 = scmp.eq.s32.totalorder %s22, 0
      %p89 = por %p87, %p88
      %s91 = sadd.s32 %s90, 1
      %p94 = scmp.eq.s32.totalorder %s16, 3
      %p95 = scmp.ne.s32.totalorder %s90, %s92
      %p96 = scmp.eq.s32.totalorder %s16, 0
      %p97 = por %p95, %p96
      %p98 = scmp.ne.s32.totalorder %s90, %s92
      %p99 = scmp.eq.s32.totalorder %s21, 3
      %p100 = por %p98, %p99
      %p101 = scmp.ne.s32.totalorder %s92, %s93
      %p102 = scmp.eq.s32.totalorder %s21, 0
      %p103 = por %p101, %p102
      %p104 = scmp.ne.s32.totalorder %s92, %s93
      %p105 = scmp.eq.s32.totalorder %s22, 3
      %p106 = por %p104, %p105
      %p108 = scmp.ne.s32.totalorder %s93, %s107
      %p109 = scmp.eq.s32.totalorder %s22, 0
      %p110 = por %p108, %p109
      %s111 = ssub.s32 %s23, %s35
      %p112 = scmp.eq.s32.totalorder %s111, 0
      %s114 = sadd.s32 %s113, 1
      %s115 = scalar_select %p112, %s113, %s114
      %p118 = pneg %p112
      %p119 = scmp.eq.s32.totalorder %s16, 3
      %p120 = por %p118, %p119
      %p121 = scmp.ne.s32.totalorder %s113, %s116
      %p122 = scmp.eq.s32.totalorder %s16, 0
      %p123 = por %p121, %p122
      %p124 = scmp.ne.s32.totalorder %s113, %s116
      %p125 = scmp.eq.s32.totalorder %s21, 3
      %p126 = por %p124, %p125
      %p127 = scmp.ne.s32.totalorder %s116, %s117
      %p128 = scmp.eq.s32.totalorder %s21, 0
      %p129 = por %p127, %p128
      %p130 = scmp.ne.s32.totalorder %s116, %s117
      %p131 = scmp.eq.s32.totalorder %s22, 3
      %p132 = por %p130, %p131
      %p134 = scmp.ne.s32.totalorder %s117, %s133
      %p135 = scmp.eq.s32.totalorder %s22, 0
      %p136 = por %p134, %p135
      %p137 = scmp.le.s32.totalorder 1, %s16
      %p138 = scmp.lt.s32.totalorder %s16, 5
      %p139 = pnand %p137, %p138
      %p140 = pneg %p139
      // Predicated region
      $region9: #{_lambda_.16} parent=5 // pred_check
        _
      $region10: #{_lambda_.16} parent=5 // pred_check_branch
        %142 = sbr.rel (%p139) target = $region12
      $region11: #{_lambda_.16} parent=5 // pred_region
        %s143 = ssub.s32 %s16, 1
        // Predicated region
        $region13: #{_lambda_.16} parent=11 // pred_check
          %p144 = pneg %p82
        $region14: #{_lambda_.16} parent=11 // pred_check_branch
          %146 = sbr.rel (%p144) target = $region16
        $region15: #{_lambda_.16} parent=11 // pred_region
          %s147 = smul.u32 16, %s26
          %s149 = ssub.s32 2048, 2048
          %150 = vsyncadd [#allocation7], %s149
          %s151 = smul.addr %s147, 128
          %s152 = scalar_lea.hbm %s1, %s151
          %s153 = sshll.u32 [#allocation6], 4
          %s154 = int_to_ptr.vmem [resolvable:$true] %s153
          %159 = dma.hbm_to_vmem [thread:$0]  %s152, 2048, %s154, [#allocation7], 128, 128, 8
        $region16: #{_lambda_.16} parent=11 // pred_fallthru
          _
        // Predicated region
        $region17: #{_lambda_.16} parent=11 // pred_check
          %p160 = pneg %p103
        $region18: #{_lambda_.16} parent=11 // pred_check_branch
          %162 = sbr.rel (%p160) target = $region20
        $region19: #{_lambda_.16} parent=11 // pred_region
          %s164 = ssub.s32 16, 16
          %165 = vsyncadd [#allocation7], %s164
          %s167 = sshll.u32 [#allocation8], 4
          %s168 = int_to_ptr.vmem [resolvable:$true] %s167
          %170 = dma.hbm_to_vmem [thread:$0]  %s2, 16, %s168, [#allocation7]
        $region20: #{_lambda_.16} parent=11 // pred_fallthru
          _
      $region12: #{_lambda_.16} parent=5 // pred_fallthru
        _
      %p171 = scmp.lt.s32.totalorder %s16, 4
      // Predicated region
      $region21: #{_lambda_.16} parent=5 // pred_check
        %p172 = pneg %p171
      $region22: #{_lambda_.16} parent=5 // pred_check_branch
        %174 = sbr.rel (%p172) target = $region24
      $region23: #{_lambda_.16} parent=5 // pred_region
        // Predicated region
        $region25: #{_lambda_.16} parent=23 // pred_check
          %p175 = pneg %p50
        $region26: #{_lambda_.16} parent=23 // pred_check_branch
          %177 = sbr.rel (%p175) target = $region28
        $region27: #{_lambda_.16} parent=23 // pred_region
          %s178 = sand.u32 %s40, 1
          %s179 = scalar_lea.sflag [#allocation4], %s178
          %s180 = sand.u32 %s40, 1
          %s181 = smul.addr %s180, 512
          %s182 = scalar_lea.vmem [#allocation3], %s181
          %s183 = smul.u32 64, %s23
          %s185 = ssub.s32 8192, 8192
          %186 = vsyncadd %s179, %s185
          %s187 = sadd.s32 %s24, %s183
          %s188 = smul.addr %s187, 128
          %s189 = scalar_lea.hbm %s0, %s188
          %s190 = sshll.u32 %s182, 4
          %s191 = int_to_ptr.vmem [resolvable:$true] %s190
          %196 = dma.hbm_to_vmem [thread:$0]  %s189, 8192, %s191, %s179, 128, 128, 8
        $region28: #{_lambda_.16} parent=23 // pred_fallthru
          _
      $region24: #{_lambda_.16} parent=5 // pred_fallthru
        _
      %p197 = scmp.le.s32.totalorder 1, %s16
      %p198 = scmp.lt.s32.totalorder %s16, 5
      %p199 = pnand %p197, %p198
      %p200 = pneg %p199
      // Predicated region
      $region29: #{_lambda_.16} parent=5 // pred_check
        _
      $region30: #{_lambda_.16} parent=5 // pred_check_branch
        %202 = sbr.rel (%p199) target = $region32
      $region31: #{_lambda_.16} parent=5 // pred_region
        %s203 = ssub.s32 %s16, 1
        %s204 = sand.u32 %s43, 1
        %s205 = scalar_lea.sflag [#allocation4], %s204
        %s206 = sand.u32 %s43, 1
        %s207 = smul.addr %s206, 512
        %s208 = scalar_lea.vmem [#allocation3], %s207
        // Predicated region
        $region33: #{_lambda_.16} parent=31 // pred_check
          %p209 = pneg %p56
        $region34: #{_lambda_.16} parent=31 // pred_check_branch
          %211 = sbr.rel (%p209) target = $region36
        $region35: #{_lambda_.16} parent=31 // pred_region
          %212 = dma.done %s205, 8192
        $region36: #{_lambda_.16} parent=31 // pred_fallthru
          _
        // Predicated region
        $region37: #{_lambda_.16} parent=31 // pred_check
          %p213 = pneg %p82
        $region38: #{_lambda_.16} parent=31 // pred_check_branch
          %215 = sbr.rel (%p213) target = $region40
        $region39: #{_lambda_.16} parent=31 // pred_region
          %216 = dma.done [#allocation7], 2048
        $region40: #{_lambda_.16} parent=31 // pred_fallthru
          _
        // Predicated region
        $region41: #{_lambda_.16} parent=31 // pred_check
          %p217 = pneg %p103
        $region42: #{_lambda_.16} parent=31 // pred_check_branch
          %219 = sbr.rel (%p217) target = $region44
        $region43: #{_lambda_.16} parent=31 // pred_region
          %220 = dma.done [#allocation7], 16
        $region44: #{_lambda_.16} parent=31 // pred_fallthru
          _
        %s221 = sand.u32 %s43, 1
        %s222 = scalar_lea.sflag [#allocation4], %s221
        %s223 = sand.u32 %s43, 1
        %s224 = smul.addr %s223, 512
        %s225 = scalar_lea.vmem [#allocation3], %s224
        %p226 = pneg %p56
        %p227 = pneg %p53
        %p228 = pneg %p82
        %p229 = pneg %p79
        %p230 = pneg %p103
        %p231 = pneg %p100
        %p232 = pneg %p129
        %p233 = pneg %p126
        %s234 = sand.u32 %s116, 1
        %s235 = scalar_lea.sflag [#allocation5], %s234
        %s236 = sand.u32 %s116, 1
        %s237 = smul.addr %s236, 512
        %s238 = scalar_lea.vmem [#allocation9], %s237
        %s239 = smul.u32 64, %s25
        %s240 = smul.u32 16, %s26
        %s241 = smul.u32 64, %s25
        %p242 = scmp.eq.s32.totalorder %s26, 0
        // Predicated region
        $region45: #{_lambda_.16} parent=31 // pred_check
          %p243 = pneg %p242
        $region46: #{_lambda_.16} parent=31 // pred_check_branch
          %245 = sbr.rel (%p243) target = $region48
        $region47: #{_lambda_.16} parent=31 // pred_region
          %246 = vst [vmem:[#allocation2] sm:$0xff] 0.0
          %247 = vst [vmem:[#allocation2 + $0x8] sm:$0xff] 0.0
          %248 = vst [vmem:[#allocation2 + $0x10] sm:$0xff] 0.0
          %249 = vst [vmem:[#allocation2 + $0x18] sm:$0xff] 0.0
          %250 = vst [vmem:[#allocation2 + $0x20] sm:$0xff] 0.0
          %251 = vst [vmem:[#allocation2 + $0x28] sm:$0xff] 0.0
          %252 = vst [vmem:[#allocation2 + $0x30] sm:$0xff] 0.0
          %253 = vst [vmem:[#allocation2 + $0x38] sm:$0xff] 0.0
          %254 = vst [vmem:[#allocation2 + $0x40] sm:$0xff] 0.0
          %255 = vst [vmem:[#allocation2 + $0x48] sm:$0xff] 0.0
          %256 = vst [vmem:[#allocation2 + $0x50] sm:$0xff] 0.0
          %257 = vst [vmem:[#allocation2 + $0x58] sm:$0xff] 0.0
          %258 = vst [vmem:[#allocation2 + $0x60] sm:$0xff] 0.0
          %259 = vst [vmem:[#allocation2 + $0x68] sm:$0xff] 0.0
          %260 = vst [vmem:[#allocation2 + $0x70] sm:$0xff] 0.0
          %261 = vst [vmem:[#allocation2 + $0x78] sm:$0xff] 0.0
          %262 = vst [vmem:[#allocation2 + $0x80] sm:$0xff] 0.0
          %263 = vst [vmem:[#allocation2 + $0x88] sm:$0xff] 0.0
          %264 = vst [vmem:[#allocation2 + $0x90] sm:$0xff] 0.0
          %265 = vst [vmem:[#allocation2 + $0x98] sm:$0xff] 0.0
          %266 = vst [vmem:[#allocation2 + $0xa0] sm:$0xff] 0.0
          %267 = vst [vmem:[#allocation2 + $0xa8] sm:$0xff] 0.0
          %268 = vst [vmem:[#allocation2 + $0xb0] sm:$0xff] 0.0
          %269 = vst [vmem:[#allocation2 + $0xb8] sm:$0xff] 0.0
          %270 = vst [vmem:[#allocation2 + $0xc0] sm:$0xff] 0.0
          %271 = vst [vmem:[#allocation2 + $0xc8] sm:$0xff] 0.0
          %272 = vst [vmem:[#allocation2 + $0xd0] sm:$0xff] 0.0
          %273 = vst [vmem:[#allocation2 + $0xd8] sm:$0xff] 0.0
          %274 = vst [vmem:[#allocation2 + $0xe0] sm:$0xff] 0.0
          %275 = vst [vmem:[#allocation2 + $0xe8] sm:$0xff] 0.0
          %276 = vst [vmem:[#allocation2 + $0xf0] sm:$0xff] 0.0
          %277 = vst [vmem:[#allocation2 + $0xf8] sm:$0xff] 0.0
          %278 = vst [vmem:[#allocation2 + $0x100] sm:$0xff] 0.0
          %279 = vst [vmem:[#allocation2 + $0x108] sm:$0xff] 0.0
          %280 = vst [vmem:[#allocation2 + $0x110] sm:$0xff] 0.0
          %281 = vst [vmem:[#allocation2 + $0x118] sm:$0xff] 0.0
          %282 = vst [vmem:[#allocation2 + $0x120] sm:$0xff] 0.0
          %283 = vst [vmem:[#allocation2 + $0x128] sm:$0xff] 0.0
          %284 = vst [vmem:[#allocation2 + $0x130] sm:$0xff] 0.0
          %285 = vst [vmem:[#allocation2 + $0x138] sm:$0xff] 0.0
          %286 = vst [vmem:[#allocation2 + $0x140] sm:$0xff] 0.0
          %287 = vst [vmem:[#allocation2 + $0x148] sm:$0xff] 0.0
          %288 = vst [vmem:[#allocation2 + $0x150] sm:$0xff] 0.0
          %289 = vst [vmem:[#allocation2 + $0x158] sm:$0xff] 0.0
          %290 = vst [vmem:[#allocation2 + $0x160] sm:$0xff] 0.0
          %291 = vst [vmem:[#allocation2 + $0x168] sm:$0xff] 0.0
          %292 = vst [vmem:[#allocation2 + $0x170] sm:$0xff] 0.0
          %293 = vst [vmem:[#allocation2 + $0x178] sm:$0xff] 0.0
          %294 = vst [vmem:[#allocation2 + $0x180] sm:$0xff] 0.0
          %295 = vst [vmem:[#allocation2 + $0x188] sm:$0xff] 0.0
          %296 = vst [vmem:[#allocation2 + $0x190] sm:$0xff] 0.0
          %297 = vst [vmem:[#allocation2 + $0x198] sm:$0xff] 0.0
          %298 = vst [vmem:[#allocation2 + $0x1a0] sm:$0xff] 0.0
          %299 = vst [vmem:[#allocation2 + $0x1a8] sm:$0xff] 0.0
          %300 = vst [vmem:[#allocation2 + $0x1b0] sm:$0xff] 0.0
          %301 = vst [vmem:[#allocation2 + $0x1b8] sm:$0xff] 0.0
          %302 = vst [vmem:[#allocation2 + $0x1c0] sm:$0xff] 0.0
          %303 = vst [vmem:[#allocation2 + $0x1c8] sm:$0xff] 0.0
          %304 = vst [vmem:[#allocation2 + $0x1d0] sm:$0xff] 0.0
          %305 = vst [vmem:[#allocation2 + $0x1d8] sm:$0xff] 0.0
          %306 = vst [vmem:[#allocation2 + $0x1e0] sm:$0xff] 0.0
          %307 = vst [vmem:[#allocation2 + $0x1e8] sm:$0xff] 0.0
          %308 = vst [vmem:[#allocation2 + $0x1f0] sm:$0xff] 0.0
          %309 = vst [vmem:[#allocation2 + $0x1f8] sm:$0xff] 0.0
        $region48: #{_lambda_.16} parent=31 // pred_fallthru
          _
        %v310 = vld [vmem:[%s208] sm:$0xff]
        %v311 = vld [vmem:[%s208 + $0x8] sm:$0xff]
        %v312 = vld [vmem:[%s208 + $0x10] sm:$0xff]
        %v313 = vld [vmem:[%s208 + $0x18] sm:$0xff]
        %v314 = vld [vmem:[%s208 + $0x20] sm:$0xff]
        %v315 = vld [vmem:[%s208 + $0x28] sm:$0xff]
        %v316 = vld [vmem:[%s208 + $0x30] sm:$0xff]
        %v317 = vld [vmem:[%s208 + $0x38] sm:$0xff]
        %v318 = vld [vmem:[%s208 + $0x40] sm:$0xff]
        %v319 = vld [vmem:[%s208 + $0x48] sm:$0xff]
        %v320 = vld [vmem:[%s208 + $0x50] sm:$0xff]
        %v321 = vld [vmem:[%s208 + $0x58] sm:$0xff]
        %v322 = vld [vmem:[%s208 + $0x60] sm:$0xff]
        %v323 = vld [vmem:[%s208 + $0x68] sm:$0xff]
        %v324 = vld [vmem:[%s208 + $0x70] sm:$0xff]
        %v325 = vld [vmem:[%s208 + $0x78] sm:$0xff]
        %v326 = vld [vmem:[%s208 + $0x80] sm:$0xff]
        %v327 = vld [vmem:[%s208 + $0x88] sm:$0xff]
        %v328 = vld [vmem:[%s208 + $0x90] sm:$0xff]
        %v329 = vld [vmem:[%s208 + $0x98] sm:$0xff]
        %v330 = vld [vmem:[%s208 + $0xa0] sm:$0xff]
        %v331 = vld [vmem:[%s208 + $0xa8] sm:$0xff]
        %v332 = vld [vmem:[%s208 + $0xb0] sm:$0xff]
        %v333 = vld [vmem:[%s208 + $0xb8] sm:$0xff]
        %v334 = vld [vmem:[%s208 + $0xc0] sm:$0xff]
        %v335 = vld [vmem:[%s208 + $0xc8] sm:$0xff]
        %v336 = vld [vmem:[%s208 + $0xd0] sm:$0xff]
        %v337 = vld [vmem:[%s208 + $0xd8] sm:$0xff]
        %v338 = vld [vmem:[%s208 + $0xe0] sm:$0xff]
        %v339 = vld [vmem:[%s208 + $0xe8] sm:$0xff]
        %v340 = vld [vmem:[%s208 + $0xf0] sm:$0xff]
        %v341 = vld [vmem:[%s208 + $0xf8] sm:$0xff]
        %v342 = vld [vmem:[%s208 + $0x100] sm:$0xff]
        %v343 = vld [vmem:[%s208 + $0x108] sm:$0xff]
        %v344 = vld [vmem:[%s208 + $0x110] sm:$0xff]
        %v345 = vld [vmem:[%s208 + $0x118] sm:$0xff]
        %v346 = vld [vmem:[%s208 + $0x120] sm:$0xff]
        %v347 = vld [vmem:[%s208 + $0x128] sm:$0xff]
        %v348 = vld [vmem:[%s208 + $0x130] sm:$0xff]
        %v349 = vld [vmem:[%s208 + $0x138] sm:$0xff]
        %v350 = vld [vmem:[%s208 + $0x140] sm:$0xff]
        %v351 = vld [vmem:[%s208 + $0x148] sm:$0xff]
        %v352 = vld [vmem:[%s208 + $0x150] sm:$0xff]
        %v353 = vld [vmem:[%s208 + $0x158] sm:$0xff]
        %v354 = vld [vmem:[%s208 + $0x160] sm:$0xff]
        %v355 = vld [vmem:[%s208 + $0x168] sm:$0xff]
        %v356 = vld [vmem:[%s208 + $0x170] sm:$0xff]
        %v357 = vld [vmem:[%s208 + $0x178] sm:$0xff]
        %v358 = vld [vmem:[%s208 + $0x180] sm:$0xff]
        %v359 = vld [vmem:[%s208 + $0x188] sm:$0xff]
        %v360 = vld [vmem:[%s208 + $0x190] sm:$0xff]
        %v361 = vld [vmem:[%s208 + $0x198] sm:$0xff]
        %v362 = vld [vmem:[%s208 + $0x1a0] sm:$0xff]
        %v363 = vld [vmem:[%s208 + $0x1a8] sm:$0xff]
        %v364 = vld [vmem:[%s208 + $0x1b0] sm:$0xff]
        %v365 = vld [vmem:[%s208 + $0x1b8] sm:$0xff]
        %v366 = vld [vmem:[%s208 + $0x1c0] sm:$0xff]
        %v367 = vld [vmem:[%s208 + $0x1c8] sm:$0xff]
        %v368 = vld [vmem:[%s208 + $0x1d0] sm:$0xff]
        %v369 = vld [vmem:[%s208 + $0x1d8] sm:$0xff]
        %v370 = vld [vmem:[%s208 + $0x1e0] sm:$0xff]
        %v371 = vld [vmem:[%s208 + $0x1e8] sm:$0xff]
        %v372 = vld [vmem:[%s208 + $0x1f0] sm:$0xff]
        %v373 = vld [vmem:[%s208 + $0x1f8] sm:$0xff]
        %v374 = vld [vmem:[#allocation6] sm:$0xff]
        %v375 = vld [vmem:[#allocation6 + $0x8] sm:$0xff]
        %v376 = vld [vmem:[#allocation6 + $0x10] sm:$0xff]
        %v377 = vld [vmem:[#allocation6 + $0x18] sm:$0xff]
        %v378 = vld [vmem:[#allocation6 + $0x20] sm:$0xff]
        %v379 = vld [vmem:[#allocation6 + $0x28] sm:$0xff]
        %v380 = vld [vmem:[#allocation6 + $0x30] sm:$0xff]
        %v381 = vld [vmem:[#allocation6 + $0x38] sm:$0xff]
        %v382 = vld [vmem:[#allocation6 + $0x40] sm:$0xff]
        %v383 = vld [vmem:[#allocation6 + $0x48] sm:$0xff]
        %v384 = vld [vmem:[#allocation6 + $0x50] sm:$0xff]
        %v385 = vld [vmem:[#allocation6 + $0x58] sm:$0xff]
        %v386 = vld [vmem:[#allocation6 + $0x60] sm:$0xff]
        %v387 = vld [vmem:[#allocation6 + $0x68] sm:$0xff]
        %v388 = vld [vmem:[#allocation6 + $0x70] sm:$0xff]
        %v389 = vld [vmem:[#allocation6 + $0x78] sm:$0xff]
        %vm390 = vcmp.ge.f32.partialorder %v310, 0.0
        %vm391 = vcmp.ge.f32.partialorder %v311, 0.0
        %vm392 = vcmp.ge.f32.partialorder %v312, 0.0
        %vm393 = vcmp.ge.f32.partialorder %v313, 0.0
        %vm394 = vcmp.ge.f32.partialorder %v314, 0.0
        %vm395 = vcmp.ge.f32.partialorder %v315, 0.0
        %vm396 = vcmp.ge.f32.partialorder %v316, 0.0
        %vm397 = vcmp.ge.f32.partialorder %v317, 0.0
        %vm398 = vcmp.ge.f32.partialorder %v318, 0.0
        %vm399 = vcmp.ge.f32.partialorder %v319, 0.0
        %vm400 = vcmp.ge.f32.partialorder %v320, 0.0
        %vm401 = vcmp.ge.f32.partialorder %v321, 0.0
        %vm402 = vcmp.ge.f32.partialorder %v322, 0.0
        %vm403 = vcmp.ge.f32.partialorder %v323, 0.0
        %vm404 = vcmp.ge.f32.partialorder %v324, 0.0
        %vm405 = vcmp.ge.f32.partialorder %v325, 0.0
        %vm406 = vcmp.ge.f32.partialorder %v326, 0.0
        %vm407 = vcmp.ge.f32.partialorder %v327, 0.0
        %vm408 = vcmp.ge.f32.partialorder %v328, 0.0
        %vm409 = vcmp.ge.f32.partialorder %v329, 0.0
        %vm410 = vcmp.ge.f32.partialorder %v330, 0.0
        %vm411 = vcmp.ge.f32.partialorder %v331, 0.0
        %vm412 = vcmp.ge.f32.partialorder %v332, 0.0
        %vm413 = vcmp.ge.f32.partialorder %v333, 0.0
        %vm414 = vcmp.ge.f32.partialorder %v334, 0.0
        %vm415 = vcmp.ge.f32.partialorder %v335, 0.0
        %vm416 = vcmp.ge.f32.partialorder %v336, 0.0
        %vm417 = vcmp.ge.f32.partialorder %v337, 0.0
        %vm418 = vcmp.ge.f32.partialorder %v338, 0.0
        %vm419 = vcmp.ge.f32.partialorder %v339, 0.0
        %vm420 = vcmp.ge.f32.partialorder %v340, 0.0
        %vm421 = vcmp.ge.f32.partialorder %v341, 0.0
        %vm422 = vcmp.ge.f32.partialorder %v342, 0.0
        %vm423 = vcmp.ge.f32.partialorder %v343, 0.0
        %vm424 = vcmp.ge.f32.partialorder %v344, 0.0
        %vm425 = vcmp.ge.f32.partialorder %v345, 0.0
        %vm426 = vcmp.ge.f32.partialorder %v346, 0.0
        %vm427 = vcmp.ge.f32.partialorder %v347, 0.0
        %vm428 = vcmp.ge.f32.partialorder %v348, 0.0
        %vm429 = vcmp.ge.f32.partialorder %v349, 0.0
        %vm430 = vcmp.ge.f32.partialorder %v350, 0.0
        %vm431 = vcmp.ge.f32.partialorder %v351, 0.0
        %vm432 = vcmp.ge.f32.partialorder %v352, 0.0
        %vm433 = vcmp.ge.f32.partialorder %v353, 0.0
        %vm434 = vcmp.ge.f32.partialorder %v354, 0.0
        %vm435 = vcmp.ge.f32.partialorder %v355, 0.0
        %vm436 = vcmp.ge.f32.partialorder %v356, 0.0
        %vm437 = vcmp.ge.f32.partialorder %v357, 0.0
        %vm438 = vcmp.ge.f32.partialorder %v358, 0.0
        %vm439 = vcmp.ge.f32.partialorder %v359, 0.0
        %vm440 = vcmp.ge.f32.partialorder %v360, 0.0
        %vm441 = vcmp.ge.f32.partialorder %v361, 0.0
        %vm442 = vcmp.ge.f32.partialorder %v362, 0.0
        %vm443 = vcmp.ge.f32.partialorder %v363, 0.0
        %vm444 = vcmp.ge.f32.partialorder %v364, 0.0
        %vm445 = vcmp.ge.f32.partialorder %v365, 0.0
        %vm446 = vcmp.ge.f32.partialorder %v366, 0.0
        %vm447 = vcmp.ge.f32.partialorder %v367, 0.0
        %vm448 = vcmp.ge.f32.partialorder %v368, 0.0
        %vm449 = vcmp.ge.f32.partialorder %v369, 0.0
        %vm450 = vcmp.ge.f32.partialorder %v370, 0.0
        %vm451 = vcmp.ge.f32.partialorder %v371, 0.0
        %vm452 = vcmp.ge.f32.partialorder %v372, 0.0
        %vm453 = vcmp.ge.f32.partialorder %v373, 0.0
        %v454 = vmul.f32 %v310, 0.2
        %v455 = vmul.f32 %v311, 0.2
        %v456 = vmul.f32 %v312, 0.2
        %v457 = vmul.f32 %v313, 0.2
        %v458 = vmul.f32 %v314, 0.2
        %v459 = vmul.f32 %v315, 0.2
        %v460 = vmul.f32 %v316, 0.2
        %v461 = vmul.f32 %v317, 0.2
        %v462 = vmul.f32 %v318, 0.2
        %v463 = vmul.f32 %v319, 0.2
        %v464 = vmul.f32 %v320, 0.2
        %v465 = vmul.f32 %v321, 0.2
        %v466 = vmul.f32 %v322, 0.2
        %v467 = vmul.f32 %v323, 0.2
        %v468 = vmul.f32 %v324, 0.2
        %v469 = vmul.f32 %v325, 0.2
        %v470 = vmul.f32 %v326, 0.2
        %v471 = vmul.f32 %v327, 0.2
        %v472 = vmul.f32 %v328, 0.2
        %v473 = vmul.f32 %v329, 0.2
        %v474 = vmul.f32 %v330, 0.2
        %v475 = vmul.f32 %v331, 0.2
        %v476 = vmul.f32 %v332, 0.2
        %v477 = vmul.f32 %v333, 0.2
        %v478 = vmul.f32 %v334, 0.2
        %v479 = vmul.f32 %v335, 0.2
        %v480 = vmul.f32 %v336, 0.2
        %v481 = vmul.f32 %v337, 0.2
        %v482 = vmul.f32 %v338, 0.2
        %v483 = vmul.f32 %v339, 0.2
        %v484 = vmul.f32 %v340, 0.2
        %v485 = vmul.f32 %v341, 0.2
        %v486 = vmul.f32 %v342, 0.2
        %v487 = vmul.f32 %v343, 0.2
        %v488 = vmul.f32 %v344, 0.2
        %v489 = vmul.f32 %v345, 0.2
        %v490 = vmul.f32 %v346, 0.2
        %v491 = vmul.f32 %v347, 0.2
        %v492 = vmul.f32 %v348, 0.2
        %v493 = vmul.f32 %v349, 0.2
        %v494 = vmul.f32 %v350, 0.2
        %v495 = vmul.f32 %v351, 0.2
        %v496 = vmul.f32 %v352, 0.2
        %v497 = vmul.f32 %v353, 0.2
        %v498 = vmul.f32 %v354, 0.2
        %v499 = vmul.f32 %v355, 0.2
        %v500 = vmul.f32 %v356, 0.2
        %v501 = vmul.f32 %v357, 0.2
        %v502 = vmul.f32 %v358, 0.2
        %v503 = vmul.f32 %v359, 0.2
        %v504 = vmul.f32 %v360, 0.2
        %v505 = vmul.f32 %v361, 0.2
        %v506 = vmul.f32 %v362, 0.2
        %v507 = vmul.f32 %v363, 0.2
        %v508 = vmul.f32 %v364, 0.2
        %v509 = vmul.f32 %v365, 0.2
        %v510 = vmul.f32 %v366, 0.2
        %v511 = vmul.f32 %v367, 0.2
        %v512 = vmul.f32 %v368, 0.2
        %v513 = vmul.f32 %v369, 0.2
        %v514 = vmul.f32 %v370, 0.2
        %v515 = vmul.f32 %v371, 0.2
        %v516 = vmul.f32 %v372, 0.2
        %v517 = vmul.f32 %v373, 0.2
        %v518 = vsel %vm390, %v310, %v454
        %v519 = vsel %vm391, %v311, %v455
        %v520 = vsel %vm392, %v312, %v456
        %v521 = vsel %vm393, %v313, %v457
        %v522 = vsel %vm394, %v314, %v458
        %v523 = vsel %vm395, %v315, %v459
        %v524 = vsel %vm396, %v316, %v460
        %v525 = vsel %vm397, %v317, %v461
        %v526 = vsel %vm398, %v318, %v462
        %v527 = vsel %vm399, %v319, %v463
        %v528 = vsel %vm400, %v320, %v464
        %v529 = vsel %vm401, %v321, %v465
        %v530 = vsel %vm402, %v322, %v466
        %v531 = vsel %vm403, %v323, %v467
        %v532 = vsel %vm404, %v324, %v468
        %v533 = vsel %vm405, %v325, %v469
        %v534 = vsel %vm406, %v326, %v470
        %v535 = vsel %vm407, %v327, %v471
        %v536 = vsel %vm408, %v328, %v472
        %v537 = vsel %vm409, %v329, %v473
        %v538 = vsel %vm410, %v330, %v474
        %v539 = vsel %vm411, %v331, %v475
        %v540 = vsel %vm412, %v332, %v476
        %v541 = vsel %vm413, %v333, %v477
        %v542 = vsel %vm414, %v334, %v478
        %v543 = vsel %vm415, %v335, %v479
        %v544 = vsel %vm416, %v336, %v480
        %v545 = vsel %vm417, %v337, %v481
        %v546 = vsel %vm418, %v338, %v482
        %v547 = vsel %vm419, %v339, %v483
        %v548 = vsel %vm420, %v340, %v484
        %v549 = vsel %vm421, %v341, %v485
        %v550 = vsel %vm422, %v342, %v486
        %v551 = vsel %vm423, %v343, %v487
        %v552 = vsel %vm424, %v344, %v488
        %v553 = vsel %vm425, %v345, %v489
        %v554 = vsel %vm426, %v346, %v490
        %v555 = vsel %vm427, %v347, %v491
        %v556 = vsel %vm428, %v348, %v492
        %v557 = vsel %vm429, %v349, %v493
        %v558 = vsel %vm430, %v350, %v494
        %v559 = vsel %vm431, %v351, %v495
        %v560 = vsel %vm432, %v352, %v496
        %v561 = vsel %vm433, %v353, %v497
        %v562 = vsel %vm434, %v354, %v498
        %v563 = vsel %vm435, %v355, %v499
        %v564 = vsel %vm436, %v356, %v500
        %v565 = vsel %vm437, %v357, %v501
        %v566 = vsel %vm438, %v358, %v502
        %v567 = vsel %vm439, %v359, %v503
        %v568 = vsel %vm440, %v360, %v504
        %v569 = vsel %vm441, %v361, %v505
        %v570 = vsel %vm442, %v362, %v506
        %v571 = vsel %vm443, %v363, %v507
        %v572 = vsel %vm444, %v364, %v508
        %v573 = vsel %vm445, %v365, %v509
        %v574 = vsel %vm446, %v366, %v510
        %v575 = vsel %vm447, %v367, %v511
        %v576 = vsel %vm448, %v368, %v512
        %v577 = vsel %vm449, %v369, %v513
        %v578 = vsel %vm450, %v370, %v514
        %v579 = vsel %vm451, %v371, %v515
        %v580 = vsel %vm452, %v372, %v516
        %v581 = vsel %vm453, %v373, %v517
        %v582 = vld [vmem:[#allocation2] sm:$0xff]
        %v583 = vld [vmem:[#allocation2 + $0x8] sm:$0xff]
        %v584 = vld [vmem:[#allocation2 + $0x10] sm:$0xff]
        %v585 = vld [vmem:[#allocation2 + $0x18] sm:$0xff]
        %v586 = vld [vmem:[#allocation2 + $0x20] sm:$0xff]
        %v587 = vld [vmem:[#allocation2 + $0x28] sm:$0xff]
        %v588 = vld [vmem:[#allocation2 + $0x30] sm:$0xff]
        %v589 = vld [vmem:[#allocation2 + $0x38] sm:$0xff]
        %v590 = vld [vmem:[#allocation2 + $0x40] sm:$0xff]
        %v591 = vld [vmem:[#allocation2 + $0x48] sm:$0xff]
        %v592 = vld [vmem:[#allocation2 + $0x50] sm:$0xff]
        %v593 = vld [vmem:[#allocation2 + $0x58] sm:$0xff]
        %v594 = vld [vmem:[#allocation2 + $0x60] sm:$0xff]
        %v595 = vld [vmem:[#allocation2 + $0x68] sm:$0xff]
        %v596 = vld [vmem:[#allocation2 + $0x70] sm:$0xff]
        %v597 = vld [vmem:[#allocation2 + $0x78] sm:$0xff]
        %v598 = vld [vmem:[#allocation2 + $0x80] sm:$0xff]
        %v599 = vld [vmem:[#allocation2 + $0x88] sm:$0xff]
        %v600 = vld [vmem:[#allocation2 + $0x90] sm:$0xff]
        %v601 = vld [vmem:[#allocation2 + $0x98] sm:$0xff]
        %v602 = vld [vmem:[#allocation2 + $0xa0] sm:$0xff]
        %v603 = vld [vmem:[#allocation2 + $0xa8] sm:$0xff]
        %v604 = vld [vmem:[#allocation2 + $0xb0] sm:$0xff]
        %v605 = vld [vmem:[#allocation2 + $0xb8] sm:$0xff]
        %v606 = vld [vmem:[#allocation2 + $0xc0] sm:$0xff]
        %v607 = vld [vmem:[#allocation2 + $0xc8] sm:$0xff]
        %v608 = vld [vmem:[#allocation2 + $0xd0] sm:$0xff]
        %v609 = vld [vmem:[#allocation2 + $0xd8] sm:$0xff]
        %v610 = vld [vmem:[#allocation2 + $0xe0] sm:$0xff]
        %v611 = vld [vmem:[#allocation2 + $0xe8] sm:$0xff]
        %v612 = vld [vmem:[#allocation2 + $0xf0] sm:$0xff]
        %v613 = vld [vmem:[#allocation2 + $0xf8] sm:$0xff]
        %v614 = vld [vmem:[#allocation2 + $0x100] sm:$0xff]
        %v615 = vld [vmem:[#allocation2 + $0x108] sm:$0xff]
        %v616 = vld [vmem:[#allocation2 + $0x110] sm:$0xff]
        %v617 = vld [vmem:[#allocation2 + $0x118] sm:$0xff]
        %v618 = vld [vmem:[#allocation2 + $0x120] sm:$0xff]
        %v619 = vld [vmem:[#allocation2 + $0x128] sm:$0xff]
        %v620 = vld [vmem:[#allocation2 + $0x130] sm:$0xff]
        %v621 = vld [vmem:[#allocation2 + $0x138] sm:$0xff]
        %v622 = vld [vmem:[#allocation2 + $0x140] sm:$0xff]
        %v623 = vld [vmem:[#allocation2 + $0x148] sm:$0xff]
        %v624 = vld [vmem:[#allocation2 + $0x150] sm:$0xff]
        %v625 = vld [vmem:[#allocation2 + $0x158] sm:$0xff]
        %v626 = vld [vmem:[#allocation2 + $0x160] sm:$0xff]
        %v627 = vld [vmem:[#allocation2 + $0x168] sm:$0xff]
        %v628 = vld [vmem:[#allocation2 + $0x170] sm:$0xff]
        %v629 = vld [vmem:[#allocation2 + $0x178] sm:$0xff]
        %v630 = vld [vmem:[#allocation2 + $0x180] sm:$0xff]
        %v631 = vld [vmem:[#allocation2 + $0x188] sm:$0xff]
        %v632 = vld [vmem:[#allocation2 + $0x190] sm:$0xff]
        %v633 = vld [vmem:[#allocation2 + $0x198] sm:$0xff]
        %v634 = vld [vmem:[#allocation2 + $0x1a0] sm:$0xff]
        %v635 = vld [vmem:[#allocation2 + $0x1a8] sm:$0xff]
        %v636 = vld [vmem:[#allocation2 + $0x1b0] sm:$0xff]
        %v637 = vld [vmem:[#allocation2 + $0x1b8] sm:$0xff]
        %v638 = vld [vmem:[#allocation2 + $0x1c0] sm:$0xff]
        %v639 = vld [vmem:[#allocation2 + $0x1c8] sm:$0xff]
        %v640 = vld [vmem:[#allocation2 + $0x1d0] sm:$0xff]
        %v641 = vld [vmem:[#allocation2 + $0x1d8] sm:$0xff]
        %v642 = vld [vmem:[#allocation2 + $0x1e0] sm:$0xff]
        %v643 = vld [vmem:[#allocation2 + $0x1e8] sm:$0xff]
        %v644 = vld [vmem:[#allocation2 + $0x1f0] sm:$0xff]
        %v645 = vld [vmem:[#allocation2 + $0x1f8] sm:$0xff]
        %646 = vmatprep.subr.mxu0 0.0
        %647 = vmatpush1.msra.mxu0 %v374
        %648 = vmatprep.subr.mxu0 0.0
        %649 = vmatpush1.msra.mxu0 %v375
        %650 = vmatprep.subr.mxu0 0.0
        %651 = vmatpush1.msra.mxu0 %v376
        %652 = vmatprep.subr.mxu0 0.0
        %653 = vmatpush1.msra.mxu0 %v377
        %654 = vmatprep.subr.mxu0 0.0
        %655 = vmatpush1.msra.mxu0 %v378
        %656 = vmatprep.subr.mxu0 0.0
        %657 = vmatpush1.msra.mxu0 %v379
        %658 = vmatprep.subr.mxu0 0.0
        %659 = vmatpush1.msra.mxu0 %v380
        %660 = vmatprep.subr.mxu0 0.0
        %661 = vmatpush1.msra.mxu0 %v381
        %662 = vmatprep.subr.mxu0 0.0
        %663 = vmatpush1.msra.mxu0 %v382
        %664 = vmatprep.subr.mxu0 0.0
        %665 = vmatpush1.msra.mxu0 %v383
        %666 = vmatprep.subr.mxu0 0.0
        %667 = vmatpush1.msra.mxu0 %v384
        %668 = vmatprep.subr.mxu0 0.0
        %669 = vmatpush1.msra.mxu0 %v385
        %670 = vmatprep.subr.mxu0 0.0
        %671 = vmatpush1.msra.mxu0 %v386
        %672 = vmatprep.subr.mxu0 0.0
        %673 = vmatpush1.msra.mxu0 %v387
        %674 = vmatprep.subr.mxu0 0.0
        %675 = vmatpush1.msra.mxu0 %v388
        %676 = vmatprep.subr.mxu0 0.0
        %677 = vmatpush1.msra.mxu0 %v389
        %678 = vmatprep.subr.mxu0 0.0
        %679 = vmatpush1.msra.mxu0 0.0
        %680 = vmatprep.subr.mxu0 0.0
        %681 = vmatpush1.msra.mxu0 0.0
        %682 = vmatprep.subr.mxu0 0.0
        %683 = vmatpush1.msra.mxu0 0.0
        %684 = vmatprep.subr.mxu0 0.0
        %685 = vmatpush1.msra.mxu0 0.0
        %686 = vmatprep.subr.mxu0 0.0
        %687 = vmatpush1.msra.mxu0 0.0
        %688 = vmatprep.subr.mxu0 0.0
        %689 = vmatpush1.msra.mxu0 0.0
        %690 = vmatprep.subr.mxu0 0.0
        %691 = vmatpush1.msra.mxu0 0.0
        %692 = vmatprep.subr.mxu0 0.0
        %693 = vmatpush1.msra.mxu0 0.0
        %694 = vmatprep.subr.mxu0 0.0
        %695 = vmatpush1.msra.mxu0 0.0
        %696 = vmatprep.subr.mxu0 0.0
        %697 = vmatpush1.msra.mxu0 0.0
        %698 = vmatprep.subr.mxu0 0.0
        %699 = vmatpush1.msra.mxu0 0.0
        %700 = vmatprep.subr.mxu0 0.0
        %701 = vmatpush1.msra.mxu0 0.0
        %702 = vmatprep.subr.mxu0 0.0
        %703 = vmatpush1.msra.mxu0 0.0
        %704 = vmatprep.subr.mxu0 0.0
        %705 = vmatpush1.msra.mxu0 0.0
        %706 = vmatprep.subr.mxu0 0.0
        %707 = vmatpush1.msra.mxu0 0.0
        %708 = vmatprep.subr.mxu0 0.0
        %709 = vmatpush1.msra.mxu0 0.0
        %710 = vmatprep.mubr.f32.mxu0 0.0
        %711 = vmatmul.mubr.f32.gmra.mrb[0].mxu0 %v518
        %v712 = vpop.f32.mrb[0].mxu0
        %v713 = vadd.f32 0.0, %v712
        %v714 = vpop.f32.mrb[0].mxu0
        %715 = vmatprep.mubr.f32.mxu0 0.0
        %716 = vmatmul.mubr.f32.gmra.mrb[0].mxu0 %v519
        %v717 = vpop.f32.mrb[0].mxu0
        %v718 = vadd.f32 0.0, %v717
        %v719 = vpop.f32.mrb[0].mxu0
        %720 = vmatprep.mubr.f32.mxu0 0.0
        %721 = vmatmul.mubr.f32.gmra.mrb[0].mxu0 %v520
        %v722 = vpop.f32.mrb[0].mxu0
        %v723 = vadd.f32 0.0, %v722
        %v724 = vpop.f32.mrb[0].mxu0
        %725 = vmatprep.mubr.f32.mxu0 0.0
        %726 = vmatmul.mubr.f32.gmra.mrb[0].mxu0 %v521
        %v727 = vpop.f32.mrb[0].mxu0
        %v728 = vadd.f32 0.0, %v727
        %v729 = vpop.f32.mrb[0].mxu0
        %730 = vmatprep.mubr.f32.mxu0 0.0
        %731 = vmatmul.mubr.f32.gmra.mrb[0].mxu0 %v522
        %v732 = vpop.f32.mrb[0].mxu0
        %v733 = vadd.f32 0.0, %v732
        %v734 = vpop.f32.mrb[0].mxu0
        %735 = vmatprep.mubr.f32.mxu0 0.0
        %736 = vmatmul.mubr.f32.gmra.mrb[0].mxu0 %v523
        %v737 = vpop.f32.mrb[0].mxu0
        %v738 = vadd.f32 0.0, %v737
        %v739 = vpop.f32.mrb[0].mxu0
        %740 = vmatprep.mubr.f32.mxu0 0.0
        %741 = vmatmul.mubr.f32.gmra.mrb[0].mxu0 %v524
        %v742 = vpop.f32.mrb[0].mxu0
        %v743 = vadd.f32 0.0, %v742
        %v744 = vpop.f32.mrb[0].mxu0
        %745 = vmatprep.mubr.f32.mxu0 0.0
        %746 = vmatmul.mubr.f32.gmra.mrb[0].mxu0 %v525
        %v747 = vpop.f32.mrb[0].mxu0
        %v748 = vadd.f32 0.0, %v747
        %v749 = vpop.f32.mrb[0].mxu0
        %750 = vmatprep.mubr.f32.mxu0 0.0
        %751 = vmatmul.mubr.f32.gmra.mrb[0].mxu0 %v526
        %v752 = vpop.f32.mrb[0].mxu0
        %v753 = vadd.f32 0.0, %v752
        %v754 = vpop.f32.mrb[0].mxu0
        %755 = vmatprep.mubr.f32.mxu0 0.0
        %756 = vmatmul.mubr.f32.gmra.mrb[0].mxu0 %v527
        %v757 = vpop.f32.mrb[0].mxu0
        %v758 = vadd.f32 0.0, %v757
        %v759 = vpop.f32.mrb[0].mxu0
        %760 = vmatprep.mubr.f32.mxu0 0.0
        %761 = vmatmul.mubr.f32.gmra.mrb[0].mxu0 %v528
        %v762 = vpop.f32.mrb[0].mxu0
        %v763 = vadd.f32 0.0, %v762
        %v764 = vpop.f32.mrb[0].mxu0
        %765 = vmatprep.mubr.f32.mxu0 0.0
        %766 = vmatmul.mubr.f32.gmra.mrb[0].mxu0 %v529
        %v767 = vpop.f32.mrb[0].mxu0
        %v768 = vadd.f32 0.0, %v767
        %v769 = vpop.f32.mrb[0].mxu0
        %770 = vmatprep.mubr.f32.mxu0 0.0
        %771 = vmatmul.mubr.f32.gmra.mrb[0].mxu0 %v530
        %v772 = vpop.f32.mrb[0].mxu0
        %v773 = vadd.f32 0.0, %v772
        %v774 = vpop.f32.mrb[0].mxu0
        %775 = vmatprep.mubr.f32.mxu0 0.0
        %776 = vmatmul.mubr.f32.gmra.mrb[0].mxu0 %v531
        %v777 = vpop.f32.mrb[0].mxu0
        %v778 = vadd.f32 0.0, %v777
        %v779 = vpop.f32.mrb[0].mxu0
        %780 = vmatprep.mubr.f32.mxu0 0.0
        %781 = vmatmul.mubr.f32.gmra.mrb[0].mxu0 %v532
        %v782 = vpop.f32.mrb[0].mxu0
        %v783 = vadd.f32 0.0, %v782
        %v784 = vpop.f32.mrb[0].mxu0
        %785 = vmatprep.mubr.f32.mxu0 0.0
        %786 = vmatmul.mubr.f32.gmra.mrb[0].mxu0 %v533
        %v787 = vpop.f32.mrb[0].mxu0
        %v788 = vadd.f32 0.0, %v787
        %v789 = vpop.f32.mrb[0].mxu0
        %790 = vmatprep.mubr.f32.mxu0 0.0
        %791 = vmatmul.mubr.f32.gmra.mrb[0].mxu0 %v534
        %v792 = vpop.f32.mrb[0].mxu0
        %v793 = vadd.f32 0.0, %v792
        %v794 = vpop.f32.mrb[0].mxu0
        %795 = vmatprep.mubr.f32.mxu0 0.0
        %796 = vmatmul.mubr.f32.gmra.mrb[0].mxu0 %v535
        %v797 = vpop.f32.mrb[0].mxu0
        %v798 = vadd.f32 0.0, %v797
        %v799 = vpop.f32.mrb[0].mxu0
        %800 = vmatprep.mubr.f32.mxu0 0.0
        %801 = vmatmul.mubr.f32.gmra.mrb[0].mxu0 %v536
        %v802 = vpop.f32.mrb[0].mxu0
        %v803 = vadd.f32 0.0, %v802
        %v804 = vpop.f32.mrb[0].mxu0
        %805 = vmatprep.mubr.f32.mxu0 0.0
        %806 = vmatmul.mubr.f32.gmra.mrb[0].mxu0 %v537
        %v807 = vpop.f32.mrb[0].mxu0
        %v808 = vadd.f32 0.0, %v807
        %v809 = vpop.f32.mrb[0].mxu0
        %810 = vmatprep.mubr.f32.mxu0 0.0
        %811 = vmatmul.mubr.f32.gmra.mrb[0].mxu0 %v538
        %v812 = vpop.f32.mrb[0].mxu0
        %v813 = vadd.f32 0.0, %v812
        %v814 = vpop.f32.mrb[0].mxu0
        %815 = vmatprep.mubr.f32.mxu0 0.0
        %816 = vmatmul.mubr.f32.gmra.mrb[0].mxu0 %v539
        %v817 = vpop.f32.mrb[0].mxu0
        %v818 = vadd.f32 0.0, %v817
        %v819 = vpop.f32.mrb[0].mxu0
        %820 = vmatprep.mubr.f32.mxu0 0.0
        %821 = vmatmul.mubr.f32.gmra.mrb[0].mxu0 %v540
        %v822 = vpop.f32.mrb[0].mxu0
        %v823 = vadd.f32 0.0, %v822
        %v824 = vpop.f32.mrb[0].mxu0
        %825 = vmatprep.mubr.f32.mxu0 0.0
        %826 = vmatmul.mubr.f32.gmra.mrb[0].mxu0 %v541
        %v827 = vpop.f32.mrb[0].mxu0
        %v828 = vadd.f32 0.0, %v827
        %v829 = vpop.f32.mrb[0].mxu0
        %830 = vmatprep.mubr.f32.mxu0 0.0
        %831 = vmatmul.mubr.f32.gmra.mrb[0].mxu0 %v542
        %v832 = vpop.f32.mrb[0].mxu0
        %v833 = vadd.f32 0.0, %v832
        %v834 = vpop.f32.mrb[0].mxu0
        %835 = vmatprep.mubr.f32.mxu0 0.0
        %836 = vmatmul.mubr.f32.gmra.mrb[0].mxu0 %v543
        %v837 = vpop.f32.mrb[0].mxu0
        %v838 = vadd.f32 0.0, %v837
        %v839 = vpop.f32.mrb[0].mxu0
        %840 = vmatprep.mubr.f32.mxu0 0.0
        %841 = vmatmul.mubr.f32.gmra.mrb[0].mxu0 %v544
        %v842 = vpop.f32.mrb[0].mxu0
        %v843 = vadd.f32 0.0, %v842
        %v844 = vpop.f32.mrb[0].mxu0
        %845 = vmatprep.mubr.f32.mxu0 0.0
        %846 = vmatmul.mubr.f32.gmra.mrb[0].mxu0 %v545
        %v847 = vpop.f32.mrb[0].mxu0
        %v848 = vadd.f32 0.0, %v847
        %v849 = vpop.f32.mrb[0].mxu0
        %850 = vmatprep.mubr.f32.mxu0 0.0
        %851 = vmatmul.mubr.f32.gmra.mrb[0].mxu0 %v546
        %v852 = vpop.f32.mrb[0].mxu0
        %v853 = vadd.f32 0.0, %v852
        %v854 = vpop.f32.mrb[0].mxu0
        %855 = vmatprep.mubr.f32.mxu0 0.0
        %856 = vmatmul.mubr.f32.gmra.mrb[0].mxu0 %v547
        %v857 = vpop.f32.mrb[0].mxu0
        %v858 = vadd.f32 0.0, %v857
        %v859 = vpop.f32.mrb[0].mxu0
        %860 = vmatprep.mubr.f32.mxu0 0.0
        %861 = vmatmul.mubr.f32.gmra.mrb[0].mxu0 %v548
        %v862 = vpop.f32.mrb[0].mxu0
        %v863 = vadd.f32 0.0, %v862
        %v864 = vpop.f32.mrb[0].mxu0
        %865 = vmatprep.mubr.f32.mxu0 0.0
        %866 = vmatmul.mubr.f32.gmra.mrb[0].mxu0 %v549
        %v867 = vpop.f32.mrb[0].mxu0
        %v868 = vadd.f32 0.0, %v867
        %v869 = vpop.f32.mrb[0].mxu0
        %870 = vmatprep.mubr.f32.mxu0 0.0
        %871 = vmatmul.mubr.f32.gmra.mrb[0].mxu0 %v550
        %v872 = vpop.f32.mrb[0].mxu0
        %v873 = vadd.f32 0.0, %v872
        %v874 = vpop.f32.mrb[0].mxu0
        %875 = vmatprep.mubr.f32.mxu0 0.0
        %876 = vmatmul.mubr.f32.gmra.mrb[0].mxu0 %v551
        %v877 = vpop.f32.mrb[0].mxu0
        %v878 = vadd.f32 0.0, %v877
        %v879 = vpop.f32.mrb[0].mxu0
        %880 = vmatprep.mubr.f32.mxu0 0.0
        %881 = vmatmul.mubr.f32.gmra.mrb[0].mxu0 %v552
        %v882 = vpop.f32.mrb[0].mxu0
        %v883 = vadd.f32 0.0, %v882
        %v884 = vpop.f32.mrb[0].mxu0
        %885 = vmatprep.mubr.f32.mxu0 0.0
        %886 = vmatmul.mubr.f32.gmra.mrb[0].mxu0 %v553
        %v887 = vpop.f32.mrb[0].mxu0
        %v888 = vadd.f32 0.0, %v887
        %v889 = vpop.f32.mrb[0].mxu0
        %890 = vmatprep.mubr.f32.mxu0 0.0
        %891 = vmatmul.mubr.f32.gmra.mrb[0].mxu0 %v554
        %v892 = vpop.f32.mrb[0].mxu0
        %v893 = vadd.f32 0.0, %v892
        %v894 = vpop.f32.mrb[0].mxu0
        %895 = vmatprep.mubr.f32.mxu0 0.0
        %896 = vmatmul.mubr.f32.gmra.mrb[0].mxu0 %v555
        %v897 = vpop.f32.mrb[0].mxu0
        %v898 = vadd.f32 0.0, %v897
        %v899 = vpop.f32.mrb[0].mxu0
        %900 = vmatprep.mubr.f32.mxu0 0.0
        %901 = vmatmul.mubr.f32.gmra.mrb[0].mxu0 %v556
        %v902 = vpop.f32.mrb[0].mxu0
        %v903 = vadd.f32 0.0, %v902
        %v904 = vpop.f32.mrb[0].mxu0
        %905 = vmatprep.mubr.f32.mxu0 0.0
        %906 = vmatmul.mubr.f32.gmra.mrb[0].mxu0 %v557
        %v907 = vpop.f32.mrb[0].mxu0
        %v908 = vadd.f32 0.0, %v907
        %v909 = vpop.f32.mrb[0].mxu0
        %910 = vmatprep.mubr.f32.mxu0 0.0
        %911 = vmatmul.mubr.f32.gmra.mrb[0].mxu0 %v558
        %v912 = vpop.f32.mrb[0].mxu0
        %v913 = vadd.f32 0.0, %v912
        %v914 = vpop.f32.mrb[0].mxu0
        %915 = vmatprep.mubr.f32.mxu0 0.0
        %916 = vmatmul.mubr.f32.gmra.mrb[0].mxu0 %v559
        %v917 = vpop.f32.mrb[0].mxu0
        %v918 = vadd.f32 0.0, %v917
        %v919 = vpop.f32.mrb[0].mxu0
        %920 = vmatprep.mubr.f32.mxu0 0.0
        %921 = vmatmul.mubr.f32.gmra.mrb[0].mxu0 %v560
        %v922 = vpop.f32.mrb[0].mxu0
        %v923 = vadd.f32 0.0, %v922
        %v924 = vpop.f32.mrb[0].mxu0
        %925 = vmatprep.mubr.f32.mxu0 0.0
        %926 = vmatmul.mubr.f32.gmra.mrb[0].mxu0 %v561
        %v927 = vpop.f32.mrb[0].mxu0
        %v928 = vadd.f32 0.0, %v927
        %v929 = vpop.f32.mrb[0].mxu0
        %930 = vmatprep.mubr.f32.mxu0 0.0
        %931 = vmatmul.mubr.f32.gmra.mrb[0].mxu0 %v562
        %v932 = vpop.f32.mrb[0].mxu0
        %v933 = vadd.f32 0.0, %v932
        %v934 = vpop.f32.mrb[0].mxu0
        %935 = vmatprep.mubr.f32.mxu0 0.0
        %936 = vmatmul.mubr.f32.gmra.mrb[0].mxu0 %v563
        %v937 = vpop.f32.mrb[0].mxu0
        %v938 = vadd.f32 0.0, %v937
        %v939 = vpop.f32.mrb[0].mxu0
        %940 = vmatprep.mubr.f32.mxu0 0.0
        %941 = vmatmul.mubr.f32.gmra.mrb[0].mxu0 %v564
        %v942 = vpop.f32.mrb[0].mxu0
        %v943 = vadd.f32 0.0, %v942
        %v944 = vpop.f32.mrb[0].mxu0
        %945 = vmatprep.mubr.f32.mxu0 0.0
        %946 = vmatmul.mubr.f32.gmra.mrb[0].mxu0 %v565
        %v947 = vpop.f32.mrb[0].mxu0
        %v948 = vadd.f32 0.0, %v947
        %v949 = vpop.f32.mrb[0].mxu0
        %950 = vmatprep.mubr.f32.mxu0 0.0
        %951 = vmatmul.mubr.f32.gmra.mrb[0].mxu0 %v566
        %v952 = vpop.f32.mrb[0].mxu0
        %v953 = vadd.f32 0.0, %v952
        %v954 = vpop.f32.mrb[0].mxu0
        %955 = vmatprep.mubr.f32.mxu0 0.0
        %956 = vmatmul.mubr.f32.gmra.mrb[0].mxu0 %v567
        %v957 = vpop.f32.mrb[0].mxu0
        %v958 = vadd.f32 0.0, %v957
        %v959 = vpop.f32.mrb[0].mxu0
        %960 = vmatprep.mubr.f32.mxu0 0.0
        %961 = vmatmul.mubr.f32.gmra.mrb[0].mxu0 %v568
        %v962 = vpop.f32.mrb[0].mxu0
        %v963 = vadd.f32 0.0, %v962
        %v964 = vpop.f32.mrb[0].mxu0
        %965 = vmatprep.mubr.f32.mxu0 0.0
        %966 = vmatmul.mubr.f32.gmra.mrb[0].mxu0 %v569
        %v967 = vpop.f32.mrb[0].mxu0
        %v968 = vadd.f32 0.0, %v967
        %v969 = vpop.f32.mrb[0].mxu0
        %970 = vmatprep.mubr.f32.mxu0 0.0
        %971 = vmatmul.mubr.f32.gmra.mrb[0].mxu0 %v570
        %v972 = vpop.f32.mrb[0].mxu0
        %v973 = vadd.f32 0.0, %v972
        %v974 = vpop.f32.mrb[0].mxu0
        %975 = vmatprep.mubr.f32.mxu0 0.0
        %976 = vmatmul.mubr.f32.gmra.mrb[0].mxu0 %v571
        %v977 = vpop.f32.mrb[0].mxu0
        %v978 = vadd.f32 0.0, %v977
        %v979 = vpop.f32.mrb[0].mxu0
        %980 = vmatprep.mubr.f32.mxu0 0.0
        %981 = vmatmul.mubr.f32.gmra.mrb[0].mxu0 %v572
        %v982 = vpop.f32.mrb[0].mxu0
        %v983 = vadd.f32 0.0, %v982
        %v984 = vpop.f32.mrb[0].mxu0
        %985 = vmatprep.mubr.f32.mxu0 0.0
        %986 = vmatmul.mubr.f32.gmra.mrb[0].mxu0 %v573
        %v987 = vpop.f32.mrb[0].mxu0
        %v988 = vadd.f32 0.0, %v987
        %v989 = vpop.f32.mrb[0].mxu0
        %990 = vmatprep.mubr.f32.mxu0 0.0
        %991 = vmatmul.mubr.f32.gmra.mrb[0].mxu0 %v574
        %v992 = vpop.f32.mrb[0].mxu0
        %v993 = vadd.f32 0.0, %v992
        %v994 = vpop.f32.mrb[0].mxu0
        %995 = vmatprep.mubr.f32.mxu0 0.0
        %996 = vmatmul.mubr.f32.gmra.mrb[0].mxu0 %v575
        %v997 = vpop.f32.mrb[0].mxu0
        %v998 = vadd.f32 0.0, %v997
        %v999 = vpop.f32.mrb[0].mxu0
        %1000 = vmatprep.mubr.f32.mxu0 0.0
        %1001 = vmatmul.mubr.f32.gmra.mrb[0].mxu0 %v576
        %v1002 = vpop.f32.mrb[0].mxu0
        %v1003 = vadd.f32 0.0, %v1002
        %v1004 = vpop.f32.mrb[0].mxu0
        %1005 = vmatprep.mubr.f32.mxu0 0.0
        %1006 = vmatmul.mubr.f32.gmra.mrb[0].mxu0 %v577
        %v1007 = vpop.f32.mrb[0].mxu0
        %v1008 = vadd.f32 0.0, %v1007
        %v1009 = vpop.f32.mrb[0].mxu0
        %1010 = vmatprep.mubr.f32.mxu0 0.0
        %1011 = vmatmul.mubr.f32.gmra.mrb[0].mxu0 %v578
        %v1012 = vpop.f32.mrb[0].mxu0
        %v1013 = vadd.f32 0.0, %v1012
        %v1014 = vpop.f32.mrb[0].mxu0
        %1015 = vmatprep.mubr.f32.mxu0 0.0
        %1016 = vmatmul.mubr.f32.gmra.mrb[0].mxu0 %v579
        %v1017 = vpop.f32.mrb[0].mxu0
        %v1018 = vadd.f32 0.0, %v1017
        %v1019 = vpop.f32.mrb[0].mxu0
        %1020 = vmatprep.mubr.f32.mxu0 0.0
        %1021 = vmatmul.mubr.f32.gmra.mrb[0].mxu0 %v580
        %v1022 = vpop.f32.mrb[0].mxu0
        %v1023 = vadd.f32 0.0, %v1022
        %v1024 = vpop.f32.mrb[0].mxu0
        %1025 = vmatprep.mubr.f32.mxu0 0.0
        %1026 = vmatmul.mubr.f32.gmra.mrb[0].mxu0 %v581
        %v1027 = vpop.f32.mrb[0].mxu0
        %v1028 = vadd.f32 0.0, %v1027
        %v1029 = vpop.f32.mrb[0].mxu0
        %1030 = vdwg.mxu0
        %v1031 = vadd.f32 %v582, %v713
        %v1032 = vadd.f32 %v583, %v718
        %v1033 = vadd.f32 %v584, %v723
        %v1034 = vadd.f32 %v585, %v728
        %v1035 = vadd.f32 %v586, %v733
        %v1036 = vadd.f32 %v587, %v738
        %v1037 = vadd.f32 %v588, %v743
        %v1038 = vadd.f32 %v589, %v748
        %v1039 = vadd.f32 %v590, %v753
        %v1040 = vadd.f32 %v591, %v758
        %v1041 = vadd.f32 %v592, %v763
        %v1042 = vadd.f32 %v593, %v768
        %v1043 = vadd.f32 %v594, %v773
        %v1044 = vadd.f32 %v595, %v778
        %v1045 = vadd.f32 %v596, %v783
        %v1046 = vadd.f32 %v597, %v788
        %v1047 = vadd.f32 %v598, %v793
        %v1048 = vadd.f32 %v599, %v798
        %v1049 = vadd.f32 %v600, %v803
        %v1050 = vadd.f32 %v601, %v808
        %v1051 = vadd.f32 %v602, %v813
        %v1052 = vadd.f32 %v603, %v818
        %v1053 = vadd.f32 %v604, %v823
        %v1054 = vadd.f32 %v605, %v828
        %v1055 = vadd.f32 %v606, %v833
        %v1056 = vadd.f32 %v607, %v838
        %v1057 = vadd.f32 %v608, %v843
        %v1058 = vadd.f32 %v609, %v848
        %v1059 = vadd.f32 %v610, %v853
        %v1060 = vadd.f32 %v611, %v858
        %v1061 = vadd.f32 %v612, %v863
        %v1062 = vadd.f32 %v613, %v868
        %v1063 = vadd.f32 %v614, %v873
        %v1064 = vadd.f32 %v615, %v878
        %v1065 = vadd.f32 %v616, %v883
        %v1066 = vadd.f32 %v617, %v888
        %v1067 = vadd.f32 %v618, %v893
        %v1068 = vadd.f32 %v619, %v898
        %v1069 = vadd.f32 %v620, %v903
        %v1070 = vadd.f32 %v621, %v908
        %v1071 = vadd.f32 %v622, %v913
        %v1072 = vadd.f32 %v623, %v918
        %v1073 = vadd.f32 %v624, %v923
        %v1074 = vadd.f32 %v625, %v928
        %v1075 = vadd.f32 %v626, %v933
        %v1076 = vadd.f32 %v627, %v938
        %v1077 = vadd.f32 %v628, %v943
        %v1078 = vadd.f32 %v629, %v948
        %v1079 = vadd.f32 %v630, %v953
        %v1080 = vadd.f32 %v631, %v958
        %v1081 = vadd.f32 %v632, %v963
        %v1082 = vadd.f32 %v633, %v968
        %v1083 = vadd.f32 %v634, %v973
        %v1084 = vadd.f32 %v635, %v978
        %v1085 = vadd.f32 %v636, %v983
        %v1086 = vadd.f32 %v637, %v988
        %v1087 = vadd.f32 %v638, %v993
        %v1088 = vadd.f32 %v639, %v998
        %v1089 = vadd.f32 %v640, %v1003
        %v1090 = vadd.f32 %v641, %v1008
        %v1091 = vadd.f32 %v642, %v1013
        %v1092 = vadd.f32 %v643, %v1018
        %v1093 = vadd.f32 %v644, %v1023
        %v1094 = vadd.f32 %v645, %v1028
        %1095 = vst [vmem:[#allocation2] sm:$0xff] %v1031
        %1096 = vst [vmem:[#allocation2 + $0x8] sm:$0xff] %v1032
        %1097 = vst [vmem:[#allocation2 + $0x10] sm:$0xff] %v1033
        %1098 = vst [vmem:[#allocation2 + $0x18] sm:$0xff] %v1034
        %1099 = vst [vmem:[#allocation2 + $0x20] sm:$0xff] %v1035
        %1100 = vst [vmem:[#allocation2 + $0x28] sm:$0xff] %v1036
        %1101 = vst [vmem:[#allocation2 + $0x30] sm:$0xff] %v1037
        %1102 = vst [vmem:[#allocation2 + $0x38] sm:$0xff] %v1038
        %1103 = vst [vmem:[#allocation2 + $0x40] sm:$0xff] %v1039
        %1104 = vst [vmem:[#allocation2 + $0x48] sm:$0xff] %v1040
        %1105 = vst [vmem:[#allocation2 + $0x50] sm:$0xff] %v1041
        %1106 = vst [vmem:[#allocation2 + $0x58] sm:$0xff] %v1042
        %1107 = vst [vmem:[#allocation2 + $0x60] sm:$0xff] %v1043
        %1108 = vst [vmem:[#allocation2 + $0x68] sm:$0xff] %v1044
        %1109 = vst [vmem:[#allocation2 + $0x70] sm:$0xff] %v1045
        %1110 = vst [vmem:[#allocation2 + $0x78] sm:$0xff] %v1046
        %1111 = vst [vmem:[#allocation2 + $0x80] sm:$0xff] %v1047
        %1112 = vst [vmem:[#allocation2 + $0x88] sm:$0xff] %v1048
        %1113 = vst [vmem:[#allocation2 + $0x90] sm:$0xff] %v1049
        %1114 = vst [vmem:[#allocation2 + $0x98] sm:$0xff] %v1050
        %1115 = vst [vmem:[#allocation2 + $0xa0] sm:$0xff] %v1051
        %1116 = vst [vmem:[#allocation2 + $0xa8] sm:$0xff] %v1052
        %1117 = vst [vmem:[#allocation2 + $0xb0] sm:$0xff] %v1053
        %1118 = vst [vmem:[#allocation2 + $0xb8] sm:$0xff] %v1054
        %1119 = vst [vmem:[#allocation2 + $0xc0] sm:$0xff] %v1055
        %1120 = vst [vmem:[#allocation2 + $0xc8] sm:$0xff] %v1056
        %1121 = vst [vmem:[#allocation2 + $0xd0] sm:$0xff] %v1057
        %1122 = vst [vmem:[#allocation2 + $0xd8] sm:$0xff] %v1058
        %1123 = vst [vmem:[#allocation2 + $0xe0] sm:$0xff] %v1059
        %1124 = vst [vmem:[#allocation2 + $0xe8] sm:$0xff] %v1060
        %1125 = vst [vmem:[#allocation2 + $0xf0] sm:$0xff] %v1061
        %1126 = vst [vmem:[#allocation2 + $0xf8] sm:$0xff] %v1062
        %1127 = vst [vmem:[#allocation2 + $0x100] sm:$0xff] %v1063
        %1128 = vst [vmem:[#allocation2 + $0x108] sm:$0xff] %v1064
        %1129 = vst [vmem:[#allocation2 + $0x110] sm:$0xff] %v1065
        %1130 = vst [vmem:[#allocation2 + $0x118] sm:$0xff] %v1066
        %1131 = vst [vmem:[#allocation2 + $0x120] sm:$0xff] %v1067
        %1132 = vst [vmem:[#allocation2 + $0x128] sm:$0xff] %v1068
        %1133 = vst [vmem:[#allocation2 + $0x130] sm:$0xff] %v1069
        %1134 = vst [vmem:[#allocation2 + $0x138] sm:$0xff] %v1070
        %1135 = vst [vmem:[#allocation2 + $0x140] sm:$0xff] %v1071
        %1136 = vst [vmem:[#allocation2 + $0x148] sm:$0xff] %v1072
        %1137 = vst [vmem:[#allocation2 + $0x150] sm:$0xff] %v1073
        %1138 = vst [vmem:[#allocation2 + $0x158] sm:$0xff] %v1074
        %1139 = vst [vmem:[#allocation2 + $0x160] sm:$0xff] %v1075
        %1140 = vst [vmem:[#allocation2 + $0x168] sm:$0xff] %v1076
        %1141 = vst [vmem:[#allocation2 + $0x170] sm:$0xff] %v1077
        %1142 = vst [vmem:[#allocation2 + $0x178] sm:$0xff] %v1078
        %1143 = vst [vmem:[#allocation2 + $0x180] sm:$0xff] %v1079
        %1144 = vst [vmem:[#allocation2 + $0x188] sm:$0xff] %v1080
        %1145 = vst [vmem:[#allocation2 + $0x190] sm:$0xff] %v1081
        %1146 = vst [vmem:[#allocation2 + $0x198] sm:$0xff] %v1082
        %1147 = vst [vmem:[#allocation2 + $0x1a0] sm:$0xff] %v1083
        %1148 = vst [vmem:[#allocation2 + $0x1a8] sm:$0xff] %v1084
        %1149 = vst [vmem:[#allocation2 + $0x1b0] sm:$0xff] %v1085
        %1150 = vst [vmem:[#allocation2 + $0x1b8] sm:$0xff] %v1086
        %1151 = vst [vmem:[#allocation2 + $0x1c0] sm:$0xff] %v1087
        %1152 = vst [vmem:[#allocation2 + $0x1c8] sm:$0xff] %v1088
        %1153 = vst [vmem:[#allocation2 + $0x1d0] sm:$0xff] %v1089
        %1154 = vst [vmem:[#allocation2 + $0x1d8] sm:$0xff] %v1090
        %1155 = vst [vmem:[#allocation2 + $0x1e0] sm:$0xff] %v1091
        %1156 = vst [vmem:[#allocation2 + $0x1e8] sm:$0xff] %v1092
        %1157 = vst [vmem:[#allocation2 + $0x1f0] sm:$0xff] %v1093
        %1158 = vst [vmem:[#allocation2 + $0x1f8] sm:$0xff] %v1094
        // Predicated region
        $region49: #{_lambda_.16} parent=31 // pred_check
          %p1159 = pneg %p242
        $region50: #{_lambda_.16} parent=31 // pred_check_branch
          %1161 = sbr.rel (%p1159) target = $region52
        $region51: #{_lambda_.16} parent=31 // pred_region
          %v1162 = vld [vmem:[#allocation2] sm:$0xff]
          %v1163 = vld [vmem:[#allocation2 + $0x8] sm:$0xff]
          %v1164 = vld [vmem:[#allocation2 + $0x10] sm:$0xff]
          %v1165 = vld [vmem:[#allocation2 + $0x18] sm:$0xff]
          %v1166 = vld [vmem:[#allocation2 + $0x20] sm:$0xff]
          %v1167 = vld [vmem:[#allocation2 + $0x28] sm:$0xff]
          %v1168 = vld [vmem:[#allocation2 + $0x30] sm:$0xff]
          %v1169 = vld [vmem:[#allocation2 + $0x38] sm:$0xff]
          %v1170 = vld [vmem:[#allocation2 + $0x40] sm:$0xff]
          %v1171 = vld [vmem:[#allocation2 + $0x48] sm:$0xff]
          %v1172 = vld [vmem:[#allocation2 + $0x50] sm:$0xff]
          %v1173 = vld [vmem:[#allocation2 + $0x58] sm:$0xff]
          %v1174 = vld [vmem:[#allocation2 + $0x60] sm:$0xff]
          %v1175 = vld [vmem:[#allocation2 + $0x68] sm:$0xff]
          %v1176 = vld [vmem:[#allocation2 + $0x70] sm:$0xff]
          %v1177 = vld [vmem:[#allocation2 + $0x78] sm:$0xff]
          %v1178 = vld [vmem:[#allocation2 + $0x80] sm:$0xff]
          %v1179 = vld [vmem:[#allocation2 + $0x88] sm:$0xff]
          %v1180 = vld [vmem:[#allocation2 + $0x90] sm:$0xff]
          %v1181 = vld [vmem:[#allocation2 + $0x98] sm:$0xff]
          %v1182 = vld [vmem:[#allocation2 + $0xa0] sm:$0xff]
          %v1183 = vld [vmem:[#allocation2 + $0xa8] sm:$0xff]
          %v1184 = vld [vmem:[#allocation2 + $0xb0] sm:$0xff]
          %v1185 = vld [vmem:[#allocation2 + $0xb8] sm:$0xff]
          %v1186 = vld [vmem:[#allocation2 + $0xc0] sm:$0xff]
          %v1187 = vld [vmem:[#allocation2 + $0xc8] sm:$0xff]
          %v1188 = vld [vmem:[#allocation2 + $0xd0] sm:$0xff]
          %v1189 = vld [vmem:[#allocation2 + $0xd8] sm:$0xff]
          %v1190 = vld [vmem:[#allocation2 + $0xe0] sm:$0xff]
          %v1191 = vld [vmem:[#allocation2 + $0xe8] sm:$0xff]
          %v1192 = vld [vmem:[#allocation2 + $0xf0] sm:$0xff]
          %v1193 = vld [vmem:[#allocation2 + $0xf8] sm:$0xff]
          %v1194 = vld [vmem:[#allocation2 + $0x100] sm:$0xff]
          %v1195 = vld [vmem:[#allocation2 + $0x108] sm:$0xff]
          %v1196 = vld [vmem:[#allocation2 + $0x110] sm:$0xff]
          %v1197 = vld [vmem:[#allocation2 + $0x118] sm:$0xff]
          %v1198 = vld [vmem:[#allocation2 + $0x120] sm:$0xff]
          %v1199 = vld [vmem:[#allocation2 + $0x128] sm:$0xff]
          %v1200 = vld [vmem:[#allocation2 + $0x130] sm:$0xff]
          %v1201 = vld [vmem:[#allocation2 + $0x138] sm:$0xff]
          %v1202 = vld [vmem:[#allocation2 + $0x140] sm:$0xff]
          %v1203 = vld [vmem:[#allocation2 + $0x148] sm:$0xff]
          %v1204 = vld [vmem:[#allocation2 + $0x150] sm:$0xff]
          %v1205 = vld [vmem:[#allocation2 + $0x158] sm:$0xff]
          %v1206 = vld [vmem:[#allocation2 + $0x160] sm:$0xff]
          %v1207 = vld [vmem:[#allocation2 + $0x168] sm:$0xff]
          %v1208 = vld [vmem:[#allocation2 + $0x170] sm:$0xff]
          %v1209 = vld [vmem:[#allocation2 + $0x178] sm:$0xff]
          %v1210 = vld [vmem:[#allocation2 + $0x180] sm:$0xff]
          %v1211 = vld [vmem:[#allocation2 + $0x188] sm:$0xff]
          %v1212 = vld [vmem:[#allocation2 + $0x190] sm:$0xff]
          %v1213 = vld [vmem:[#allocation2 + $0x198] sm:$0xff]
          %v1214 = vld [vmem:[#allocation2 + $0x1a0] sm:$0xff]
          %v1215 = vld [vmem:[#allocation2 + $0x1a8] sm:$0xff]
          %v1216 = vld [vmem:[#allocation2 + $0x1b0] sm:$0xff]
          %v1217 = vld [vmem:[#allocation2 + $0x1b8] sm:$0xff]
          %v1218 = vld [vmem:[#allocation2 + $0x1c0] sm:$0xff]
          %v1219 = vld [vmem:[#allocation2 + $0x1c8] sm:$0xff]
          %v1220 = vld [vmem:[#allocation2 + $0x1d0] sm:$0xff]
          %v1221 = vld [vmem:[#allocation2 + $0x1d8] sm:$0xff]
          %v1222 = vld [vmem:[#allocation2 + $0x1e0] sm:$0xff]
          %v1223 = vld [vmem:[#allocation2 + $0x1e8] sm:$0xff]
          %v1224 = vld [vmem:[#allocation2 + $0x1f0] sm:$0xff]
          %v1225 = vld [vmem:[#allocation2 + $0x1f8] sm:$0xff]
          %v1226 = vld [vmem:[#allocation8] sm:$0x1]
          %v1228 = vlaneseq
          %v1229 = vshrl.u32 %v1228, 7
          %v1230 = vsub.s32 0, %v1229
          %v1231 = vrot.slane %v1226, %v1230
          %v1233 = vadd.f32 %v1162, %v1231
          %v1234 = vadd.f32 %v1163, %v1231
          %v1235 = vadd.f32 %v1164, %v1231
          %v1236 = vadd.f32 %v1165, %v1231
          %v1237 = vadd.f32 %v1166, %v1231
          %v1238 = vadd.f32 %v1167, %v1231
          %v1239 = vadd.f32 %v1168, %v1231
          %v1240 = vadd.f32 %v1169, %v1231
          %v1241 = vadd.f32 %v1170, %v1231
          %v1242 = vadd.f32 %v1171, %v1231
          %v1243 = vadd.f32 %v1172, %v1231
          %v1244 = vadd.f32 %v1173, %v1231
          %v1245 = vadd.f32 %v1174, %v1231
          %v1246 = vadd.f32 %v1175, %v1231
          %v1247 = vadd.f32 %v1176, %v1231
          %v1248 = vadd.f32 %v1177, %v1231
          %v1249 = vadd.f32 %v1178, %v1231
          %v1250 = vadd.f32 %v1179, %v1231
          %v1251 = vadd.f32 %v1180, %v1231
          %v1252 = vadd.f32 %v1181, %v1231
          %v1253 = vadd.f32 %v1182, %v1231
          %v1254 = vadd.f32 %v1183, %v1231
          %v1255 = vadd.f32 %v1184, %v1231
          %v1256 = vadd.f32 %v1185, %v1231
          %v1257 = vadd.f32 %v1186, %v1231
          %v1258 = vadd.f32 %v1187, %v1231
          %v1259 = vadd.f32 %v1188, %v1231
          %v1260 = vadd.f32 %v1189, %v1231
          %v1261 = vadd.f32 %v1190, %v1231
          %v1262 = vadd.f32 %v1191, %v1231
          %v1263 = vadd.f32 %v1192, %v1231
          %v1264 = vadd.f32 %v1193, %v1231
          %v1265 = vadd.f32 %v1194, %v1231
          %v1266 = vadd.f32 %v1195, %v1231
          %v1267 = vadd.f32 %v1196, %v1231
          %v1268 = vadd.f32 %v1197, %v1231
          %v1269 = vadd.f32 %v1198, %v1231
          %v1270 = vadd.f32 %v1199, %v1231
          %v1271 = vadd.f32 %v1200, %v1231
          %v1272 = vadd.f32 %v1201, %v1231
          %v1273 = vadd.f32 %v1202, %v1231
          %v1274 = vadd.f32 %v1203, %v1231
          %v1275 = vadd.f32 %v1204, %v1231
          %v1276 = vadd.f32 %v1205, %v1231
          %v1277 = vadd.f32 %v1206, %v1231
          %v1278 = vadd.f32 %v1207, %v1231
          %v1279 = vadd.f32 %v1208, %v1231
          %v1280 = vadd.f32 %v1209, %v1231
          %v1281 = vadd.f32 %v1210, %v1231
          %v1282 = vadd.f32 %v1211, %v1231
          %v1283 = vadd.f32 %v1212, %v1231
          %v1284 = vadd.f32 %v1213, %v1231
          %v1285 = vadd.f32 %v1214, %v1231
          %v1286 = vadd.f32 %v1215, %v1231
          %v1287 = vadd.f32 %v1216, %v1231
          %v1288 = vadd.f32 %v1217, %v1231
          %v1289 = vadd.f32 %v1218, %v1231
          %v1290 = vadd.f32 %v1219, %v1231
          %v1291 = vadd.f32 %v1220, %v1231
          %v1292 = vadd.f32 %v1221, %v1231
          %v1293 = vadd.f32 %v1222, %v1231
          %v1294 = vadd.f32 %v1223, %v1231
          %v1295 = vadd.f32 %v1224, %v1231
          %v1296 = vadd.f32 %v1225, %v1231
          %1297 = vst [vmem:[%s238] sm:$0xff] %v1233
          %1298 = vst [vmem:[%s238 + $0x8] sm:$0xff] %v1234
          %1299 = vst [vmem:[%s238 + $0x10] sm:$0xff] %v1235
          %1300 = vst [vmem:[%s238 + $0x18] sm:$0xff] %v1236
          %1301 = vst [vmem:[%s238 + $0x20] sm:$0xff] %v1237
          %1302 = vst [vmem:[%s238 + $0x28] sm:$0xff] %v1238
          %1303 = vst [vmem:[%s238 + $0x30] sm:$0xff] %v1239
          %1304 = vst [vmem:[%s238 + $0x38] sm:$0xff] %v1240
          %1305 = vst [vmem:[%s238 + $0x40] sm:$0xff] %v1241
          %1306 = vst [vmem:[%s238 + $0x48] sm:$0xff] %v1242
          %1307 = vst [vmem:[%s238 + $0x50] sm:$0xff] %v1243
          %1308 = vst [vmem:[%s238 + $0x58] sm:$0xff] %v1244
          %1309 = vst [vmem:[%s238 + $0x60] sm:$0xff] %v1245
          %1310 = vst [vmem:[%s238 + $0x68] sm:$0xff] %v1246
          %1311 = vst [vmem:[%s238 + $0x70] sm:$0xff] %v1247
          %1312 = vst [vmem:[%s238 + $0x78] sm:$0xff] %v1248
          %1313 = vst [vmem:[%s238 + $0x80] sm:$0xff] %v1249
          %1314 = vst [vmem:[%s238 + $0x88] sm:$0xff] %v1250
          %1315 = vst [vmem:[%s238 + $0x90] sm:$0xff] %v1251
          %1316 = vst [vmem:[%s238 + $0x98] sm:$0xff] %v1252
          %1317 = vst [vmem:[%s238 + $0xa0] sm:$0xff] %v1253
          %1318 = vst [vmem:[%s238 + $0xa8] sm:$0xff] %v1254
          %1319 = vst [vmem:[%s238 + $0xb0] sm:$0xff] %v1255
          %1320 = vst [vmem:[%s238 + $0xb8] sm:$0xff] %v1256
          %1321 = vst [vmem:[%s238 + $0xc0] sm:$0xff] %v1257
          %1322 = vst [vmem:[%s238 + $0xc8] sm:$0xff] %v1258
          %1323 = vst [vmem:[%s238 + $0xd0] sm:$0xff] %v1259
          %1324 = vst [vmem:[%s238 + $0xd8] sm:$0xff] %v1260
          %1325 = vst [vmem:[%s238 + $0xe0] sm:$0xff] %v1261
          %1326 = vst [vmem:[%s238 + $0xe8] sm:$0xff] %v1262
          %1327 = vst [vmem:[%s238 + $0xf0] sm:$0xff] %v1263
          %1328 = vst [vmem:[%s238 + $0xf8] sm:$0xff] %v1264
          %1329 = vst [vmem:[%s238 + $0x100] sm:$0xff] %v1265
          %1330 = vst [vmem:[%s238 + $0x108] sm:$0xff] %v1266
          %1331 = vst [vmem:[%s238 + $0x110] sm:$0xff] %v1267
          %1332 = vst [vmem:[%s238 + $0x118] sm:$0xff] %v1268
          %1333 = vst [vmem:[%s238 + $0x120] sm:$0xff] %v1269
          %1334 = vst [vmem:[%s238 + $0x128] sm:$0xff] %v1270
          %1335 = vst [vmem:[%s238 + $0x130] sm:$0xff] %v1271
          %1336 = vst [vmem:[%s238 + $0x138] sm:$0xff] %v1272
          %1337 = vst [vmem:[%s238 + $0x140] sm:$0xff] %v1273
          %1338 = vst [vmem:[%s238 + $0x148] sm:$0xff] %v1274
          %1339 = vst [vmem:[%s238 + $0x150] sm:$0xff] %v1275
          %1340 = vst [vmem:[%s238 + $0x158] sm:$0xff] %v1276
          %1341 = vst [vmem:[%s238 + $0x160] sm:$0xff] %v1277
          %1342 = vst [vmem:[%s238 + $0x168] sm:$0xff] %v1278
          %1343 = vst [vmem:[%s238 + $0x170] sm:$0xff] %v1279
          %1344 = vst [vmem:[%s238 + $0x178] sm:$0xff] %v1280
          %1345 = vst [vmem:[%s238 + $0x180] sm:$0xff] %v1281
          %1346 = vst [vmem:[%s238 + $0x188] sm:$0xff] %v1282
          %1347 = vst [vmem:[%s238 + $0x190] sm:$0xff] %v1283
          %1348 = vst [vmem:[%s238 + $0x198] sm:$0xff] %v1284
          %1349 = vst [vmem:[%s238 + $0x1a0] sm:$0xff] %v1285
          %1350 = vst [vmem:[%s238 + $0x1a8] sm:$0xff] %v1286
          %1351 = vst [vmem:[%s238 + $0x1b0] sm:$0xff] %v1287
          %1352 = vst [vmem:[%s238 + $0x1b8] sm:$0xff] %v1288
          %1353 = vst [vmem:[%s238 + $0x1c0] sm:$0xff] %v1289
          %1354 = vst [vmem:[%s238 + $0x1c8] sm:$0xff] %v1290
          %1355 = vst [vmem:[%s238 + $0x1d0] sm:$0xff] %v1291
          %1356 = vst [vmem:[%s238 + $0x1d8] sm:$0xff] %v1292
          %1357 = vst [vmem:[%s238 + $0x1e0] sm:$0xff] %v1293
          %1358 = vst [vmem:[%s238 + $0x1e8] sm:$0xff] %v1294
          %1359 = vst [vmem:[%s238 + $0x1f0] sm:$0xff] %v1295
          %1360 = vst [vmem:[%s238 + $0x1f8] sm:$0xff] %v1296
        $region52: #{_lambda_.16} parent=31 // pred_fallthru
          _
        %s1361 = sand.u32 %s116, 1
        %s1362 = scalar_lea.sflag [#allocation5], %s1361
        %s1363 = sand.u32 %s116, 1
        %s1364 = smul.addr %s1363, 512
        %s1365 = scalar_lea.vmem [#allocation9], %s1364
        // Predicated region
        $region53: #{_lambda_.16} parent=31 // pred_check
          %p1366 = pneg %p126
        $region54: #{_lambda_.16} parent=31 // pred_check_branch
          %1368 = sbr.rel (%p1366) target = $region56
        $region55: #{_lambda_.16} parent=31 // pred_region
          %s1369 = smul.u32 64, %s25
          %s1371 = ssub.s32 8192, 8192
          %1372 = vsyncadd %s1362, %s1371
          %s1373 = smul.addr %s1369, 128
          %s1374 = scalar_lea.hbm %s3, %s1373
          %s1375 = sshll.u32 %s1365, 4
          %s1376 = int_to_ptr.vmem [resolvable:$true] %s1375
          %1381 = dma.vmem_to_hbm [thread:$0]  %s1376, 8192, %s1374, %s1362, 128, 128, 8
        $region56: #{_lambda_.16} parent=31 // pred_fallthru
          _
      $region32: #{_lambda_.16} parent=5 // pred_fallthru
        _
      %p1382 = scmp.le.s32.totalorder 2, %s16
      // Predicated region
      $region57: #{_lambda_.16} parent=5 // pred_check
        %p1383 = pneg %p1382
      $region58: #{_lambda_.16} parent=5 // pred_check_branch
        %1385 = sbr.rel (%p1383) target = $region60
      $region59: #{_lambda_.16} parent=5 // pred_region
        %s1386 = ssub.s32 %s16, 2
        // Predicated region
        $region61: #{_lambda_.16} parent=59 // pred_check
          %p1387 = pneg %p132
        $region62: #{_lambda_.16} parent=59 // pred_check_branch
          %1389 = sbr.rel (%p1387) target = $region64
        $region63: #{_lambda_.16} parent=59 // pred_region
          %s1390 = sand.u32 %s117, 1
          %s1391 = scalar_lea.sflag [#allocation5], %s1390
          %s1392 = sand.u32 %s117, 1
          %s1393 = smul.addr %s1392, 512
          %s1394 = scalar_lea.vmem [#allocation9], %s1393
          %1395 = dma.done %s1391, 8192
        $region64: #{_lambda_.16} parent=59 // pred_fallthru
          _
      $region60: #{_lambda_.16} parent=5 // pred_fallthru
        _
    $region6: #{_lambda_.16} parent=1 // loop_footer
      %s20 = sadd.s32 1, %s16
    $region7: #{_lambda_.16} parent=1 // loop_footer_branch
      %15 = sbr.rel target = $region3
    $region8: #{_lambda_.16} parent=1 // loop_exit
      _
    %1396 = vsyncpa [#allocation4], 1
    %s1397 = scalar_lea.sflag [#allocation4], 1
    %1398 = vsyncpa %s1397, 1
    %1399 = vsyncpa [#allocation7], 1
    %1400 = vsyncpa [#allocation5], 1
    %s1401 = scalar_lea.sflag [#allocation5], 1
    %1402 = vsyncpa %s1401, 1

// kernel: _lambda_.17
$region0: #{_lambda_.17}
  #allocation0 [shape = 'u32[]', space=smem, size = 0x4, offset = 0x4, fixed_abs, tag = 'smem constant byte address 0x4 - core index']
  #allocation1 [shape = 'u32[144,128]{1,0:T(1,128)}', space=vmem, size = 0x12000, scoped, tag = 'internal scratch']
  %s0 = inlined_call_operand.hbm [shape: f32[32,2,16,2,128], index: 0, kind: input, shape index: {}]
  %s1 = inlined_call_operand.hbm [shape: f32[32,16,1,128], index: 1, kind: output, shape index: {}]
  %s2 = sld [smem:[#allocation0]]
  $region41: #{_lambda_.17} parent=0
    _
  %s4 = ssub.s32 1, %s2
  %s5 = scalar_select 0, %s4, %s2
  $region1: #{_lambda_.17} parent=0
    #allocation2 [shape = 'u8[65536]{0}', space=vmem, size = 0x10000, scoped, tag = 'input window, operand 0']
    #allocation3 [shape = 's32[2]{0}', space=sflag, size = 0x8, scoped, tag = 'scoped memory for _lambda_.17']
    #allocation4 [shape = 's32[2]{0}', space=sflag, size = 0x8, scoped, tag = 'scoped memory for _lambda_.17']
    #allocation5 [shape = 'u8[16384]{0}', space=vmem, size = 0x4000, scoped, tag = 'output window, operand 0']
    %6 = vsyncpa [#allocation3], 0
    %s7 = scalar_lea.sflag [#allocation3], 1
    %8 = vsyncpa %s7, 0
    %9 = vsyncpa [#allocation4], 0
    %s10 = scalar_lea.sflag [#allocation4], 1
    %11 = vsyncpa %s10, 0
    loop: start=0, step=1, limit=34
    $region2: #{_lambda_.17} parent=1 // loop_pre_header
      _
    $region3: #{_lambda_.17} parent=1 // loop_header
      %s13 = sphi 0, %s17
      %p14 = scmp.ge.s32.totalorder %s13, 34
      %s23 = sphi 0, %s25
      %s26 = sphi 0, %s23
      %s27 = sphi 0, %s26
      %s43 = sphi 0, %s27
      %s49 = sphi 0, %s51
      %s52 = sphi 0, %s49
      %s53 = sphi 0, %s52
      %s69 = sphi 0, %s53
    $region4: #{_lambda_.17} parent=1 // loop_header_branch
      %16 = sbr.rel (%p14) target = $region8
    $region5: #{_lambda_.17} parent=1 // loop_body
      %s18 = ssub.s32 %s13, 1
      %s19 = ssub.s32 %s13, 2
      %s20 = sadd.s32 %s13, 1
      %s21 = ssub.s32 %s13, %s20
      %p22 = scmp.eq.s32.totalorder %s21, 0
      %s24 = sadd.s32 %s23, 1
      %s25 = scalar_select %p22, %s23, %s24
      %p28 = pneg %p22
      %p29 = scmp.eq.s32.totalorder %s13, 31
      %p30 = por %p28, %p29
      %p31 = scmp.ne.s32.totalorder %s23, %s26
      %p32 = scmp.eq.s32.totalorder %s13, 0
      %p33 = por %p31, %p32
      %p34 = scmp.ne.s32.totalorder %s23, %s26
      %p35 = scmp.eq.s32.totalorder %s18, 31
      %p36 = por %p34, %p35
      %p37 = scmp.ne.s32.totalorder %s26, %s27
      %p38 = scmp.eq.s32.totalorder %s18, 0
      %p39 = por %p37, %p38
      %p40 = scmp.ne.s32.totalorder %s26, %s27
      %p41 = scmp.eq.s32.totalorder %s19, 31
      %p42 = por %p40, %p41
      %p44 = scmp.ne.s32.totalorder %s27, %s43
      %p45 = scmp.eq.s32.totalorder %s19, 0
      %p46 = por %p44, %p45
      %s47 = ssub.s32 %s13, %s20
      %p48 = scmp.eq.s32.totalorder %s47, 0
      %s50 = sadd.s32 %s49, 1
      %s51 = scalar_select %p48, %s49, %s50
      %p54 = pneg %p48
      %p55 = scmp.eq.s32.totalorder %s13, 31
      %p56 = por %p54, %p55
      %p57 = scmp.ne.s32.totalorder %s49, %s52
      %p58 = scmp.eq.s32.totalorder %s13, 0
      %p59 = por %p57, %p58
      %p60 = scmp.ne.s32.totalorder %s49, %s52
      %p61 = scmp.eq.s32.totalorder %s18, 31
      %p62 = por %p60, %p61
      %p63 = scmp.ne.s32.totalorder %s52, %s53
      %p64 = scmp.eq.s32.totalorder %s18, 0
      %p65 = por %p63, %p64
      %p66 = scmp.ne.s32.totalorder %s52, %s53
      %p67 = scmp.eq.s32.totalorder %s19, 31
      %p68 = por %p66, %p67
      %p70 = scmp.ne.s32.totalorder %s53, %s69
      %p71 = scmp.eq.s32.totalorder %s19, 0
      %p72 = por %p70, %p71
      %p73 = scmp.le.s32.totalorder 1, %s13
      %p74 = scmp.lt.s32.totalorder %s13, 33
      %p75 = pnand %p73, %p74
      %p76 = pneg %p75
      // Predicated region
      $region9: #{_lambda_.17} parent=5 // pred_check
        _
      $region10: #{_lambda_.17} parent=5 // pred_check_branch
        %78 = sbr.rel (%p75) target = $region12
      $region11: #{_lambda_.17} parent=5 // pred_region
        %s79 = ssub.s32 %s13, 1
      $region12: #{_lambda_.17} parent=5 // pred_fallthru
        _
      %p80 = scmp.lt.s32.totalorder %s13, 32
      // Predicated region
      $region13: #{_lambda_.17} parent=5 // pred_check
        %p81 = pneg %p80
      $region14: #{_lambda_.17} parent=5 // pred_check_branch
        %83 = sbr.rel (%p81) target = $region16
      $region15: #{_lambda_.17} parent=5 // pred_region
        // Predicated region
        $region17: #{_lambda_.17} parent=15 // pred_check
          %p84 = pneg %p33
        $region18: #{_lambda_.17} parent=15 // pred_check_branch
          %86 = sbr.rel (%p84) target = $region20
        $region19: #{_lambda_.17} parent=15 // pred_region
          %s87 = sand.u32 %s23, 1
          %s88 = scalar_lea.sflag [#allocation3], %s87
          %s89 = sand.u32 %s23, 1
          %s90 = smul.addr %s89, 64
          %s91 = scalar_lea.vmem [#allocation2], %s90
          %s93 = ssub.s32 1024, 1024
          %94 = vsyncadd %s88, %s93
          %s95 = smul.addr %s13, 32
          %s96 = smul.addr %s95, 32
          %s97 = scalar_lea.hbm %s0, %s96
          %s98 = sshll.u32 %s91, 4
          %s99 = int_to_ptr.vmem [resolvable:$true] %s98
          %104 = dma.hbm_to_vmem [thread:$0]  %s97, 1024, %s99, %s88, 32, 32, 2
        $region20: #{_lambda_.17} parent=15 // pred_fallthru
          _
      $region16: #{_lambda_.17} parent=5 // pred_fallthru
        _
      %p105 = scmp.le.s32.totalorder 1, %s13
      %p106 = scmp.lt.s32.totalorder %s13, 33
      %p107 = pnand %p105, %p106
      %p108 = pneg %p107
      // Predicated region
      $region21: #{_lambda_.17} parent=5 // pred_check
        _
      $region22: #{_lambda_.17} parent=5 // pred_check_branch
        %110 = sbr.rel (%p107) target = $region24
      $region23: #{_lambda_.17} parent=5 // pred_region
        %s111 = ssub.s32 %s13, 1
        %s112 = sand.u32 %s26, 1
        %s113 = scalar_lea.sflag [#allocation3], %s112
        %s114 = sand.u32 %s26, 1
        %s115 = smul.addr %s114, 64
        %s116 = scalar_lea.vmem [#allocation2], %s115
        // Predicated region
        $region25: #{_lambda_.17} parent=23 // pred_check
          %p117 = pneg %p39
        $region26: #{_lambda_.17} parent=23 // pred_check_branch
          %119 = sbr.rel (%p117) target = $region28
        $region27: #{_lambda_.17} parent=23 // pred_region
          %120 = dma.done %s113, 1024
        $region28: #{_lambda_.17} parent=23 // pred_fallthru
          _
        %s121 = sand.u32 %s26, 1
        %s122 = scalar_lea.sflag [#allocation3], %s121
        %s123 = sand.u32 %s26, 1
        %s124 = smul.addr %s123, 64
        %s125 = scalar_lea.vmem [#allocation2], %s124
        %p126 = pneg %p39
        %p127 = pneg %p36
        %p128 = pneg %p65
        %p129 = pneg %p62
        %s130 = sand.u32 %s52, 1
        %s131 = scalar_lea.sflag [#allocation4], %s130
        %s132 = sand.u32 %s52, 1
        %s133 = smul.addr %s132, 16
        %s134 = scalar_lea.vmem [#allocation5], %s133
        %v135 = vld [vmem:[%s116] sm:$0x3]
        %v136 = vld [vmem:[%s116 + $0x2] sm:$0x3]
        %v137 = vld [vmem:[%s116 + $0x4] sm:$0x3]
        %v138 = vld [vmem:[%s116 + $0x6] sm:$0x3]
        %v139 = vld [vmem:[%s116 + $0x8] sm:$0x3]
        %v140 = vld [vmem:[%s116 + $0xa] sm:$0x3]
        %v141 = vld [vmem:[%s116 + $0xc] sm:$0x3]
        %v142 = vld [vmem:[%s116 + $0xe] sm:$0x3]
        %v143 = vld [vmem:[%s116 + $0x10] sm:$0x3]
        %v144 = vld [vmem:[%s116 + $0x12] sm:$0x3]
        %v145 = vld [vmem:[%s116 + $0x14] sm:$0x3]
        %v146 = vld [vmem:[%s116 + $0x16] sm:$0x3]
        %v147 = vld [vmem:[%s116 + $0x18] sm:$0x3]
        %v148 = vld [vmem:[%s116 + $0x1a] sm:$0x3]
        %v149 = vld [vmem:[%s116 + $0x1c] sm:$0x3]
        %v150 = vld [vmem:[%s116 + $0x1e] sm:$0x3]
        %v151 = vld [vmem:[%s116 + $0x20] sm:$0x3]
        %v152 = vld [vmem:[%s116 + $0x22] sm:$0x3]
        %v153 = vld [vmem:[%s116 + $0x24] sm:$0x3]
        %v154 = vld [vmem:[%s116 + $0x26] sm:$0x3]
        %v155 = vld [vmem:[%s116 + $0x28] sm:$0x3]
        %v156 = vld [vmem:[%s116 + $0x2a] sm:$0x3]
        %v157 = vld [vmem:[%s116 + $0x2c] sm:$0x3]
        %v158 = vld [vmem:[%s116 + $0x2e] sm:$0x3]
        %v159 = vld [vmem:[%s116 + $0x30] sm:$0x3]
        %v160 = vld [vmem:[%s116 + $0x32] sm:$0x3]
        %v161 = vld [vmem:[%s116 + $0x34] sm:$0x3]
        %v162 = vld [vmem:[%s116 + $0x36] sm:$0x3]
        %v163 = vld [vmem:[%s116 + $0x38] sm:$0x3]
        %v164 = vld [vmem:[%s116 + $0x3a] sm:$0x3]
        %v165 = vld [vmem:[%s116 + $0x3c] sm:$0x3]
        %v166 = vld [vmem:[%s116 + $0x3e] sm:$0x3]
        %v167 = vadd.f32 %v135, %v151
        %v168 = vadd.f32 %v136, %v152
        %v169 = vadd.f32 %v137, %v153
        %v170 = vadd.f32 %v138, %v154
        %v171 = vadd.f32 %v139, %v155
        %v172 = vadd.f32 %v140, %v156
        %v173 = vadd.f32 %v141, %v157
        %v174 = vadd.f32 %v142, %v158
        %v175 = vadd.f32 %v143, %v159
        %v176 = vadd.f32 %v144, %v160
        %v177 = vadd.f32 %v145, %v161
        %v178 = vadd.f32 %v146, %v162
        %v179 = vadd.f32 %v147, %v163
        %v180 = vadd.f32 %v148, %v164
        %v181 = vadd.f32 %v149, %v165
        %v182 = vadd.f32 %v150, %v166
        %v199 = vrot.slane %v167, 1
        %v200 = vrot.slane %v168, 1
        %v201 = vrot.slane %v169, 1
        %v202 = vrot.slane %v170, 1
        %v203 = vrot.slane %v171, 1
        %v204 = vrot.slane %v172, 1
        %v205 = vrot.slane %v173, 1
        %v206 = vrot.slane %v174, 1
        %v207 = vrot.slane %v175, 1
        %v208 = vrot.slane %v176, 1
        %v209 = vrot.slane %v177, 1
        %v210 = vrot.slane %v178, 1
        %v211 = vrot.slane %v179, 1
        %v212 = vrot.slane %v180, 1
        %v213 = vrot.slane %v181, 1
        %v214 = vrot.slane %v182, 1
        %v231 = vadd.f32 %v167, %v199
        %v232 = vadd.f32 %v168, %v200
        %v233 = vadd.f32 %v169, %v201
        %v234 = vadd.f32 %v170, %v202
        %v235 = vadd.f32 %v171, %v203
        %v236 = vadd.f32 %v172, %v204
        %v237 = vadd.f32 %v173, %v205
        %v238 = vadd.f32 %v174, %v206
        %v239 = vadd.f32 %v175, %v207
        %v240 = vadd.f32 %v176, %v208
        %v241 = vadd.f32 %v177, %v209
        %v242 = vadd.f32 %v178, %v210
        %v243 = vadd.f32 %v179, %v211
        %v244 = vadd.f32 %v180, %v212
        %v245 = vadd.f32 %v181, %v213
        %v246 = vadd.f32 %v182, %v214
        %v247 = vmul.f32 %v231, 0.25
        %v248 = vmul.f32 %v232, 0.25
        %v249 = vmul.f32 %v233, 0.25
        %v250 = vmul.f32 %v234, 0.25
        %v251 = vmul.f32 %v235, 0.25
        %v252 = vmul.f32 %v236, 0.25
        %v253 = vmul.f32 %v237, 0.25
        %v254 = vmul.f32 %v238, 0.25
        %v255 = vmul.f32 %v239, 0.25
        %v256 = vmul.f32 %v240, 0.25
        %v257 = vmul.f32 %v241, 0.25
        %v258 = vmul.f32 %v242, 0.25
        %v259 = vmul.f32 %v243, 0.25
        %v260 = vmul.f32 %v244, 0.25
        %v261 = vmul.f32 %v245, 0.25
        %v262 = vmul.f32 %v246, 0.25
        %vm263 = vcmp.ge.f32.partialorder %v247, 0.0
        %vm264 = vcmp.ge.f32.partialorder %v248, 0.0
        %vm265 = vcmp.ge.f32.partialorder %v249, 0.0
        %vm266 = vcmp.ge.f32.partialorder %v250, 0.0
        %vm267 = vcmp.ge.f32.partialorder %v251, 0.0
        %vm268 = vcmp.ge.f32.partialorder %v252, 0.0
        %vm269 = vcmp.ge.f32.partialorder %v253, 0.0
        %vm270 = vcmp.ge.f32.partialorder %v254, 0.0
        %vm271 = vcmp.ge.f32.partialorder %v255, 0.0
        %vm272 = vcmp.ge.f32.partialorder %v256, 0.0
        %vm273 = vcmp.ge.f32.partialorder %v257, 0.0
        %vm274 = vcmp.ge.f32.partialorder %v258, 0.0
        %vm275 = vcmp.ge.f32.partialorder %v259, 0.0
        %vm276 = vcmp.ge.f32.partialorder %v260, 0.0
        %vm277 = vcmp.ge.f32.partialorder %v261, 0.0
        %vm278 = vcmp.ge.f32.partialorder %v262, 0.0
        %v279 = vmul.f32 %v247, 0.2
        %v280 = vmul.f32 %v248, 0.2
        %v281 = vmul.f32 %v249, 0.2
        %v282 = vmul.f32 %v250, 0.2
        %v283 = vmul.f32 %v251, 0.2
        %v284 = vmul.f32 %v252, 0.2
        %v285 = vmul.f32 %v253, 0.2
        %v286 = vmul.f32 %v254, 0.2
        %v287 = vmul.f32 %v255, 0.2
        %v288 = vmul.f32 %v256, 0.2
        %v289 = vmul.f32 %v257, 0.2
        %v290 = vmul.f32 %v258, 0.2
        %v291 = vmul.f32 %v259, 0.2
        %v292 = vmul.f32 %v260, 0.2
        %v293 = vmul.f32 %v261, 0.2
        %v294 = vmul.f32 %v262, 0.2
        %v295 = vsel %vm263, %v247, %v279
        %v296 = vsel %vm264, %v248, %v280
        %v297 = vsel %vm265, %v249, %v281
        %v298 = vsel %vm266, %v250, %v282
        %v299 = vsel %vm267, %v251, %v283
        %v300 = vsel %vm268, %v252, %v284
        %v301 = vsel %vm269, %v253, %v285
        %v302 = vsel %vm270, %v254, %v286
        %v303 = vsel %vm271, %v255, %v287
        %v304 = vsel %vm272, %v256, %v288
        %v305 = vsel %vm273, %v257, %v289
        %v306 = vsel %vm274, %v258, %v290
        %v307 = vsel %vm275, %v259, %v291
        %v308 = vsel %vm276, %v260, %v292
        %v309 = vsel %vm277, %v261, %v293
        %v310 = vsel %vm278, %v262, %v294
        %311 = vst [vmem:[%s134] sm:$0x1] %v295
        %312 = vst [vmem:[%s134 + $0x1] sm:$0x1] %v296
        %313 = vst [vmem:[%s134 + $0x2] sm:$0x1] %v297
        %314 = vst [vmem:[%s134 + $0x3] sm:$0x1] %v298
        %315 = vst [vmem:[%s134 + $0x4] sm:$0x1] %v299
        %316 = vst [vmem:[%s134 + $0x5] sm:$0x1] %v300
        %317 = vst [vmem:[%s134 + $0x6] sm:$0x1] %v301
        %318 = vst [vmem:[%s134 + $0x7] sm:$0x1] %v302
        %319 = vst [vmem:[%s134 + $0x8] sm:$0x1] %v303
        %320 = vst [vmem:[%s134 + $0x9] sm:$0x1] %v304
        %321 = vst [vmem:[%s134 + $0xa] sm:$0x1] %v305
        %322 = vst [vmem:[%s134 + $0xb] sm:$0x1] %v306
        %323 = vst [vmem:[%s134 + $0xc] sm:$0x1] %v307
        %324 = vst [vmem:[%s134 + $0xd] sm:$0x1] %v308
        %325 = vst [vmem:[%s134 + $0xe] sm:$0x1] %v309
        %326 = vst [vmem:[%s134 + $0xf] sm:$0x1] %v310
        %s327 = sand.u32 %s52, 1
        %s328 = scalar_lea.sflag [#allocation4], %s327
        %s329 = sand.u32 %s52, 1
        %s330 = smul.addr %s329, 16
        %s331 = scalar_lea.vmem [#allocation5], %s330
        // Predicated region
        $region29: #{_lambda_.17} parent=23 // pred_check
          %p332 = pneg %p62
        $region30: #{_lambda_.17} parent=23 // pred_check_branch
          %334 = sbr.rel (%p332) target = $region32
        $region31: #{_lambda_.17} parent=23 // pred_region
          %s336 = ssub.s32 256, 256
          %337 = vsyncadd %s328, %s336
          %s338 = smul.addr %s18, 16
          %s339 = smul.addr %s338, 16
          %s340 = scalar_lea.hbm %s1, %s339
          %s341 = sshll.u32 %s331, 4
          %s342 = int_to_ptr.vmem [resolvable:$true] %s341
          %347 = dma.vmem_to_hbm [thread:$0]  %s342, 256, %s340, %s328, 16, 16, 1
        $region32: #{_lambda_.17} parent=23 // pred_fallthru
          _
      $region24: #{_lambda_.17} parent=5 // pred_fallthru
        _
      %p348 = scmp.le.s32.totalorder 2, %s13
      // Predicated region
      $region33: #{_lambda_.17} parent=5 // pred_check
        %p349 = pneg %p348
      $region34: #{_lambda_.17} parent=5 // pred_check_branch
        %351 = sbr.rel (%p349) target = $region36
      $region35: #{_lambda_.17} parent=5 // pred_region
        %s352 = ssub.s32 %s13, 2
        // Predicated region
        $region37: #{_lambda_.17} parent=35 // pred_check
          %p353 = pneg %p68
        $region38: #{_lambda_.17} parent=35 // pred_check_branch
          %355 = sbr.rel (%p353) target = $region40
        $region39: #{_lambda_.17} parent=35 // pred_region
          %s356 = sand.u32 %s53, 1
          %s357 = scalar_lea.sflag [#allocation4], %s356
          %s358 = sand.u32 %s53, 1
          %s359 = smul.addr %s358, 16
          %s360 = scalar_lea.vmem [#allocation5], %s359
          %361 = dma.done %s357, 256
        $region40: #{_lambda_.17} parent=35 // pred_fallthru
          _
      $region36: #{_lambda_.17} parent=5 // pred_fallthru
        _
    $region6: #{_lambda_.17} parent=1 // loop_footer
      %s17 = sadd.s32 1, %s13
    $region7: #{_lambda_.17} parent=1 // loop_footer_branch
      %12 = sbr.rel target = $region3
    $region8: #{_lambda_.17} parent=1 // loop_exit
      _
    %362 = vsyncpa [#allocation3], 1
    %s363 = scalar_lea.sflag [#allocation3], 1
    %364 = vsyncpa %s363, 1
    %365 = vsyncpa [#allocation4], 1
    %s366 = scalar_lea.sflag [#allocation4], 1
    %367 = vsyncpa %s366, 1

// kernel: _lambda_.15
$region0: #{_lambda_.15}
  #allocation0 [shape = 'u32[]', space=smem, size = 0x4, offset = 0x4, fixed_abs, tag = 'smem constant byte address 0x4 - core index']
  #allocation1 [shape = 'u32[144,128]{1,0:T(1,128)}', space=vmem, size = 0x12000, scoped, tag = 'internal scratch']
  %s0 = inlined_call_operand.hbm [shape: f32[32,2,16,2,128], index: 0, kind: input, shape index: {}]
  %s1 = inlined_call_operand.hbm [shape: f32[32,16,1,128], index: 1, kind: output, shape index: {}]
  %s2 = sld [smem:[#allocation0]]
  $region41: #{_lambda_.15} parent=0
    _
  %s4 = ssub.s32 1, %s2
  %s5 = scalar_select 0, %s4, %s2
  $region1: #{_lambda_.15} parent=0
    #allocation2 [shape = 'u8[65536]{0}', space=vmem, size = 0x10000, scoped, tag = 'input window, operand 0']
    #allocation3 [shape = 's32[2]{0}', space=sflag, size = 0x8, scoped, tag = 'scoped memory for _lambda_.15']
    #allocation4 [shape = 's32[2]{0}', space=sflag, size = 0x8, scoped, tag = 'scoped memory for _lambda_.15']
    #allocation5 [shape = 'u8[16384]{0}', space=vmem, size = 0x4000, scoped, tag = 'output window, operand 0']
    %6 = vsyncpa [#allocation3], 0
    %s7 = scalar_lea.sflag [#allocation3], 1
    %8 = vsyncpa %s7, 0
    %9 = vsyncpa [#allocation4], 0
    %s10 = scalar_lea.sflag [#allocation4], 1
    %11 = vsyncpa %s10, 0
    loop: start=0, step=1, limit=34
    $region2: #{_lambda_.15} parent=1 // loop_pre_header
      _
    $region3: #{_lambda_.15} parent=1 // loop_header
      %s13 = sphi 0, %s17
      %p14 = scmp.ge.s32.totalorder %s13, 34
      %s23 = sphi 0, %s25
      %s26 = sphi 0, %s23
      %s27 = sphi 0, %s26
      %s43 = sphi 0, %s27
      %s49 = sphi 0, %s51
      %s52 = sphi 0, %s49
      %s53 = sphi 0, %s52
      %s69 = sphi 0, %s53
    $region4: #{_lambda_.15} parent=1 // loop_header_branch
      %16 = sbr.rel (%p14) target = $region8
    $region5: #{_lambda_.15} parent=1 // loop_body
      %s18 = ssub.s32 %s13, 1
      %s19 = ssub.s32 %s13, 2
      %s20 = sadd.s32 %s13, 1
      %s21 = ssub.s32 %s13, %s20
      %p22 = scmp.eq.s32.totalorder %s21, 0
      %s24 = sadd.s32 %s23, 1
      %s25 = scalar_select %p22, %s23, %s24
      %p28 = pneg %p22
      %p29 = scmp.eq.s32.totalorder %s13, 31
      %p30 = por %p28, %p29
      %p31 = scmp.ne.s32.totalorder %s23, %s26
      %p32 = scmp.eq.s32.totalorder %s13, 0
      %p33 = por %p31, %p32
      %p34 = scmp.ne.s32.totalorder %s23, %s26
      %p35 = scmp.eq.s32.totalorder %s18, 31
      %p36 = por %p34, %p35
      %p37 = scmp.ne.s32.totalorder %s26, %s27
      %p38 = scmp.eq.s32.totalorder %s18, 0
      %p39 = por %p37, %p38
      %p40 = scmp.ne.s32.totalorder %s26, %s27
      %p41 = scmp.eq.s32.totalorder %s19, 31
      %p42 = por %p40, %p41
      %p44 = scmp.ne.s32.totalorder %s27, %s43
      %p45 = scmp.eq.s32.totalorder %s19, 0
      %p46 = por %p44, %p45
      %s47 = ssub.s32 %s13, %s20
      %p48 = scmp.eq.s32.totalorder %s47, 0
      %s50 = sadd.s32 %s49, 1
      %s51 = scalar_select %p48, %s49, %s50
      %p54 = pneg %p48
      %p55 = scmp.eq.s32.totalorder %s13, 31
      %p56 = por %p54, %p55
      %p57 = scmp.ne.s32.totalorder %s49, %s52
      %p58 = scmp.eq.s32.totalorder %s13, 0
      %p59 = por %p57, %p58
      %p60 = scmp.ne.s32.totalorder %s49, %s52
      %p61 = scmp.eq.s32.totalorder %s18, 31
      %p62 = por %p60, %p61
      %p63 = scmp.ne.s32.totalorder %s52, %s53
      %p64 = scmp.eq.s32.totalorder %s18, 0
      %p65 = por %p63, %p64
      %p66 = scmp.ne.s32.totalorder %s52, %s53
      %p67 = scmp.eq.s32.totalorder %s19, 31
      %p68 = por %p66, %p67
      %p70 = scmp.ne.s32.totalorder %s53, %s69
      %p71 = scmp.eq.s32.totalorder %s19, 0
      %p72 = por %p70, %p71
      %p73 = scmp.le.s32.totalorder 1, %s13
      %p74 = scmp.lt.s32.totalorder %s13, 33
      %p75 = pnand %p73, %p74
      %p76 = pneg %p75
      // Predicated region
      $region9: #{_lambda_.15} parent=5 // pred_check
        _
      $region10: #{_lambda_.15} parent=5 // pred_check_branch
        %78 = sbr.rel (%p75) target = $region12
      $region11: #{_lambda_.15} parent=5 // pred_region
        %s79 = ssub.s32 %s13, 1
      $region12: #{_lambda_.15} parent=5 // pred_fallthru
        _
      %p80 = scmp.lt.s32.totalorder %s13, 32
      // Predicated region
      $region13: #{_lambda_.15} parent=5 // pred_check
        %p81 = pneg %p80
      $region14: #{_lambda_.15} parent=5 // pred_check_branch
        %83 = sbr.rel (%p81) target = $region16
      $region15: #{_lambda_.15} parent=5 // pred_region
        // Predicated region
        $region17: #{_lambda_.15} parent=15 // pred_check
          %p84 = pneg %p33
        $region18: #{_lambda_.15} parent=15 // pred_check_branch
          %86 = sbr.rel (%p84) target = $region20
        $region19: #{_lambda_.15} parent=15 // pred_region
          %s87 = sand.u32 %s23, 1
          %s88 = scalar_lea.sflag [#allocation3], %s87
          %s89 = sand.u32 %s23, 1
          %s90 = smul.addr %s89, 64
          %s91 = scalar_lea.vmem [#allocation2], %s90
          %s93 = ssub.s32 1024, 1024
          %94 = vsyncadd %s88, %s93
          %s95 = smul.addr %s13, 32
          %s96 = smul.addr %s95, 32
          %s97 = scalar_lea.hbm %s0, %s96
          %s98 = sshll.u32 %s91, 4
          %s99 = int_to_ptr.vmem [resolvable:$true] %s98
          %104 = dma.hbm_to_vmem [thread:$0]  %s97, 1024, %s99, %s88, 32, 32, 2
        $region20: #{_lambda_.15} parent=15 // pred_fallthru
          _
      $region16: #{_lambda_.15} parent=5 // pred_fallthru
        _
      %p105 = scmp.le.s32.totalorder 1, %s13
      %p106 = scmp.lt.s32.totalorder %s13, 33
      %p107 = pnand %p105, %p106
      %p108 = pneg %p107
      // Predicated region
      $region21: #{_lambda_.15} parent=5 // pred_check
        _
      $region22: #{_lambda_.15} parent=5 // pred_check_branch
        %110 = sbr.rel (%p107) target = $region24
      $region23: #{_lambda_.15} parent=5 // pred_region
        %s111 = ssub.s32 %s13, 1
        %s112 = sand.u32 %s26, 1
        %s113 = scalar_lea.sflag [#allocation3], %s112
        %s114 = sand.u32 %s26, 1
        %s115 = smul.addr %s114, 64
        %s116 = scalar_lea.vmem [#allocation2], %s115
        // Predicated region
        $region25: #{_lambda_.15} parent=23 // pred_check
          %p117 = pneg %p39
        $region26: #{_lambda_.15} parent=23 // pred_check_branch
          %119 = sbr.rel (%p117) target = $region28
        $region27: #{_lambda_.15} parent=23 // pred_region
          %120 = dma.done %s113, 1024
        $region28: #{_lambda_.15} parent=23 // pred_fallthru
          _
        %s121 = sand.u32 %s26, 1
        %s122 = scalar_lea.sflag [#allocation3], %s121
        %s123 = sand.u32 %s26, 1
        %s124 = smul.addr %s123, 64
        %s125 = scalar_lea.vmem [#allocation2], %s124
        %p126 = pneg %p39
        %p127 = pneg %p36
        %p128 = pneg %p65
        %p129 = pneg %p62
        %s130 = sand.u32 %s52, 1
        %s131 = scalar_lea.sflag [#allocation4], %s130
        %s132 = sand.u32 %s52, 1
        %s133 = smul.addr %s132, 16
        %s134 = scalar_lea.vmem [#allocation5], %s133
        %v135 = vld [vmem:[%s116] sm:$0x3]
        %v136 = vld [vmem:[%s116 + $0x2] sm:$0x3]
        %v137 = vld [vmem:[%s116 + $0x4] sm:$0x3]
        %v138 = vld [vmem:[%s116 + $0x6] sm:$0x3]
        %v139 = vld [vmem:[%s116 + $0x8] sm:$0x3]
        %v140 = vld [vmem:[%s116 + $0xa] sm:$0x3]
        %v141 = vld [vmem:[%s116 + $0xc] sm:$0x3]
        %v142 = vld [vmem:[%s116 + $0xe] sm:$0x3]
        %v143 = vld [vmem:[%s116 + $0x10] sm:$0x3]
        %v144 = vld [vmem:[%s116 + $0x12] sm:$0x3]
        %v145 = vld [vmem:[%s116 + $0x14] sm:$0x3]
        %v146 = vld [vmem:[%s116 + $0x16] sm:$0x3]
        %v147 = vld [vmem:[%s116 + $0x18] sm:$0x3]
        %v148 = vld [vmem:[%s116 + $0x1a] sm:$0x3]
        %v149 = vld [vmem:[%s116 + $0x1c] sm:$0x3]
        %v150 = vld [vmem:[%s116 + $0x1e] sm:$0x3]
        %v151 = vld [vmem:[%s116 + $0x20] sm:$0x3]
        %v152 = vld [vmem:[%s116 + $0x22] sm:$0x3]
        %v153 = vld [vmem:[%s116 + $0x24] sm:$0x3]
        %v154 = vld [vmem:[%s116 + $0x26] sm:$0x3]
        %v155 = vld [vmem:[%s116 + $0x28] sm:$0x3]
        %v156 = vld [vmem:[%s116 + $0x2a] sm:$0x3]
        %v157 = vld [vmem:[%s116 + $0x2c] sm:$0x3]
        %v158 = vld [vmem:[%s116 + $0x2e] sm:$0x3]
        %v159 = vld [vmem:[%s116 + $0x30] sm:$0x3]
        %v160 = vld [vmem:[%s116 + $0x32] sm:$0x3]
        %v161 = vld [vmem:[%s116 + $0x34] sm:$0x3]
        %v162 = vld [vmem:[%s116 + $0x36] sm:$0x3]
        %v163 = vld [vmem:[%s116 + $0x38] sm:$0x3]
        %v164 = vld [vmem:[%s116 + $0x3a] sm:$0x3]
        %v165 = vld [vmem:[%s116 + $0x3c] sm:$0x3]
        %v166 = vld [vmem:[%s116 + $0x3e] sm:$0x3]
        %v167 = vadd.f32 %v135, %v151
        %v168 = vadd.f32 %v136, %v152
        %v169 = vadd.f32 %v137, %v153
        %v170 = vadd.f32 %v138, %v154
        %v171 = vadd.f32 %v139, %v155
        %v172 = vadd.f32 %v140, %v156
        %v173 = vadd.f32 %v141, %v157
        %v174 = vadd.f32 %v142, %v158
        %v175 = vadd.f32 %v143, %v159
        %v176 = vadd.f32 %v144, %v160
        %v177 = vadd.f32 %v145, %v161
        %v178 = vadd.f32 %v146, %v162
        %v179 = vadd.f32 %v147, %v163
        %v180 = vadd.f32 %v148, %v164
        %v181 = vadd.f32 %v149, %v165
        %v182 = vadd.f32 %v150, %v166
        %v199 = vrot.slane %v167, 1
        %v200 = vrot.slane %v168, 1
        %v201 = vrot.slane %v169, 1
        %v202 = vrot.slane %v170, 1
        %v203 = vrot.slane %v171, 1
        %v204 = vrot.slane %v172, 1
        %v205 = vrot.slane %v173, 1
        %v206 = vrot.slane %v174, 1
        %v207 = vrot.slane %v175, 1
        %v208 = vrot.slane %v176, 1
        %v209 = vrot.slane %v177, 1
        %v210 = vrot.slane %v178, 1
        %v211 = vrot.slane %v179, 1
        %v212 = vrot.slane %v180, 1
        %v213 = vrot.slane %v181, 1
        %v214 = vrot.slane %v182, 1
        %v231 = vadd.f32 %v167, %v199
        %v232 = vadd.f32 %v168, %v200
        %v233 = vadd.f32 %v169, %v201
        %v234 = vadd.f32 %v170, %v202
        %v235 = vadd.f32 %v171, %v203
        %v236 = vadd.f32 %v172, %v204
        %v237 = vadd.f32 %v173, %v205
        %v238 = vadd.f32 %v174, %v206
        %v239 = vadd.f32 %v175, %v207
        %v240 = vadd.f32 %v176, %v208
        %v241 = vadd.f32 %v177, %v209
        %v242 = vadd.f32 %v178, %v210
        %v243 = vadd.f32 %v179, %v211
        %v244 = vadd.f32 %v180, %v212
        %v245 = vadd.f32 %v181, %v213
        %v246 = vadd.f32 %v182, %v214
        %v247 = vmul.f32 %v231, 0.25
        %v248 = vmul.f32 %v232, 0.25
        %v249 = vmul.f32 %v233, 0.25
        %v250 = vmul.f32 %v234, 0.25
        %v251 = vmul.f32 %v235, 0.25
        %v252 = vmul.f32 %v236, 0.25
        %v253 = vmul.f32 %v237, 0.25
        %v254 = vmul.f32 %v238, 0.25
        %v255 = vmul.f32 %v239, 0.25
        %v256 = vmul.f32 %v240, 0.25
        %v257 = vmul.f32 %v241, 0.25
        %v258 = vmul.f32 %v242, 0.25
        %v259 = vmul.f32 %v243, 0.25
        %v260 = vmul.f32 %v244, 0.25
        %v261 = vmul.f32 %v245, 0.25
        %v262 = vmul.f32 %v246, 0.25
        %263 = vst [vmem:[%s134] sm:$0x1] %v247
        %264 = vst [vmem:[%s134 + $0x1] sm:$0x1] %v248
        %265 = vst [vmem:[%s134 + $0x2] sm:$0x1] %v249
        %266 = vst [vmem:[%s134 + $0x3] sm:$0x1] %v250
        %267 = vst [vmem:[%s134 + $0x4] sm:$0x1] %v251
        %268 = vst [vmem:[%s134 + $0x5] sm:$0x1] %v252
        %269 = vst [vmem:[%s134 + $0x6] sm:$0x1] %v253
        %270 = vst [vmem:[%s134 + $0x7] sm:$0x1] %v254
        %271 = vst [vmem:[%s134 + $0x8] sm:$0x1] %v255
        %272 = vst [vmem:[%s134 + $0x9] sm:$0x1] %v256
        %273 = vst [vmem:[%s134 + $0xa] sm:$0x1] %v257
        %274 = vst [vmem:[%s134 + $0xb] sm:$0x1] %v258
        %275 = vst [vmem:[%s134 + $0xc] sm:$0x1] %v259
        %276 = vst [vmem:[%s134 + $0xd] sm:$0x1] %v260
        %277 = vst [vmem:[%s134 + $0xe] sm:$0x1] %v261
        %278 = vst [vmem:[%s134 + $0xf] sm:$0x1] %v262
        %s279 = sand.u32 %s52, 1
        %s280 = scalar_lea.sflag [#allocation4], %s279
        %s281 = sand.u32 %s52, 1
        %s282 = smul.addr %s281, 16
        %s283 = scalar_lea.vmem [#allocation5], %s282
        // Predicated region
        $region29: #{_lambda_.15} parent=23 // pred_check
          %p284 = pneg %p62
        $region30: #{_lambda_.15} parent=23 // pred_check_branch
          %286 = sbr.rel (%p284) target = $region32
        $region31: #{_lambda_.15} parent=23 // pred_region
          %s288 = ssub.s32 256, 256
          %289 = vsyncadd %s280, %s288
          %s290 = smul.addr %s18, 16
          %s291 = smul.addr %s290, 16
          %s292 = scalar_lea.hbm %s1, %s291
          %s293 = sshll.u32 %s283, 4
          %s294 = int_to_ptr.vmem [resolvable:$true] %s293
          %299 = dma.vmem_to_hbm [thread:$0]  %s294, 256, %s292, %s280, 16, 16, 1
        $region32: #{_lambda_.15} parent=23 // pred_fallthru
          _
      $region24: #{_lambda_.15} parent=5 // pred_fallthru
        _
      %p300 = scmp.le.s32.totalorder 2, %s13
      // Predicated region
      $region33: #{_lambda_.15} parent=5 // pred_check
        %p301 = pneg %p300
      $region34: #{_lambda_.15} parent=5 // pred_check_branch
        %303 = sbr.rel (%p301) target = $region36
      $region35: #{_lambda_.15} parent=5 // pred_region
        %s304 = ssub.s32 %s13, 2
        // Predicated region
        $region37: #{_lambda_.15} parent=35 // pred_check
          %p305 = pneg %p68
        $region38: #{_lambda_.15} parent=35 // pred_check_branch
          %307 = sbr.rel (%p305) target = $region40
        $region39: #{_lambda_.15} parent=35 // pred_region
          %s308 = sand.u32 %s53, 1
          %s309 = scalar_lea.sflag [#allocation4], %s308
          %s310 = sand.u32 %s53, 1
          %s311 = smul.addr %s310, 16
          %s312 = scalar_lea.vmem [#allocation5], %s311
          %313 = dma.done %s309, 256
        $region40: #{_lambda_.15} parent=35 // pred_fallthru
          _
      $region36: #{_lambda_.15} parent=5 // pred_fallthru
        _
    $region6: #{_lambda_.15} parent=1 // loop_footer
      %s17 = sadd.s32 1, %s13
    $region7: #{_lambda_.15} parent=1 // loop_footer_branch
      %12 = sbr.rel target = $region3
    $region8: #{_lambda_.15} parent=1 // loop_exit
      _
    %314 = vsyncpa [#allocation3], 1
    %s315 = scalar_lea.sflag [#allocation3], 1
    %316 = vsyncpa %s315, 1
    %317 = vsyncpa [#allocation4], 1
    %s318 = scalar_lea.sflag [#allocation4], 1
    %319 = vsyncpa %s318, 1

// kernel: _lambda_.18
$region0: #{_lambda_.18}
  #allocation0 [shape = 'u32[]', space=smem, size = 0x4, offset = 0x4, fixed_abs, tag = 'smem constant byte address 0x4 - core index']
  #allocation1 [shape = 'u32[144,128]{1,0:T(1,128)}', space=vmem, size = 0x12000, scoped, tag = 'internal scratch']
  #allocation2 [shape = 'f32[512,128]{1,0:T(8,128)}', space=vmem, size = 0x40000, scoped, tag = 'scratch operand']
  %s0 = inlined_call_operand.hbm [shape: f32[512,128], index: 0, kind: input, shape index: {}]
  %s1 = inlined_call_operand.hbm [shape: f32[128,128], index: 1, kind: input, shape index: {}]
  %s2 = inlined_call_operand.hbm [shape: f32[1,128], index: 2, kind: input, shape index: {}]
  %s3 = inlined_call_operand.hbm [shape: f32[512,128], index: 3, kind: input, shape index: {}]
  %s4 = inlined_call_operand.hbm [shape: f32[512,128], index: 4, kind: output, shape index: {}]
  %s5 = sld [smem:[#allocation0]]
  $region50: #{_lambda_.18} parent=0
    _
  %s7 = ssub.s32 1, %s5
  %s8 = scalar_select 0, %s7, %s5
  $region1: #{_lambda_.18} parent=0
    #allocation3 [shape = 'u8[262144]{0}', space=vmem, size = 0x40000, scoped, tag = 'input window, operand 0, single buffered']
    #allocation4 [shape = 's32[1]{0}', space=sflag, size = 0x4, scoped, tag = 'scoped memory for _lambda_.18']
    #allocation5 [shape = 's32[1]{0}', space=sflag, size = 0x4, scoped, tag = 'scoped memory for _lambda_.18']
    #allocation6 [shape = 'u8[65536]{0}', space=vmem, size = 0x10000, scoped, tag = 'input window, operand 1, single buffered']
    #allocation7 [shape = 's32[1]{0}', space=sflag, size = 0x4, scoped, tag = 'scoped memory for _lambda_.18']
    #allocation8 [shape = 'u8[512]{0}', space=vmem, size = 0x400, scoped, tag = 'input window, operand 2, single buffered']
    #allocation9 [shape = 'u8[262144]{0}', space=vmem, size = 0x40000, scoped, tag = 'input window, operand 3, single buffered']
    #allocation10 [shape = 's32[1]{0}', space=sflag, size = 0x4, scoped, tag = 'scoped memory for _lambda_.18']
    #allocation11 [shape = 'u8[262144]{0}', space=vmem, size = 0x40000, scoped, tag = 'output window, operand 0, single buffered']
    %9 = vsyncpa [#allocation4], 0
    %10 = vsyncpa [#allocation7], 0
    %11 = vsyncpa [#allocation10], 0
    %12 = vsyncpa [#allocation5], 0
    // Predicated region
    $region2: #{_lambda_.18} parent=1 // pred_check
      _
    $region3: #{_lambda_.18} parent=1 // pred_check_branch
      %14 = sbr.rel (0) target = $region5
    $region4: #{_lambda_.18} parent=1 // pred_region
      %s16 = ssub.s32 8192, 8192
      %17 = vsyncadd [#allocation4], %s16
      %s18 = sshll.u32 [#allocation3], 4
      %s19 = int_to_ptr.vmem [resolvable:$true] %s18
      %24 = dma.hbm_to_vmem [thread:$0]  %s0, 8192, %s19, [#allocation4], 128, 128, 8
    $region5: #{_lambda_.18} parent=1 // pred_fallthru
      _
    // Predicated region
    $region6: #{_lambda_.18} parent=1 // pred_check
      _
    $region7: #{_lambda_.18} parent=1 // pred_check_branch
      %26 = sbr.rel (0) target = $region9
    $region8: #{_lambda_.18} parent=1 // pred_region
      %s28 = ssub.s32 2048, 2048
      %29 = vsyncadd [#allocation7], %s28
      %s30 = sshll.u32 [#allocation6], 4
      %s31 = int_to_ptr.vmem [resolvable:$true] %s30
      %36 = dma.hbm_to_vmem [thread:$0]  %s1, 2048, %s31, [#allocation7], 128, 128, 8
    $region9: #{_lambda_.18} parent=1 // pred_fallthru
      _
    // Predicated region
    $region10: #{_lambda_.18} parent=1 // pred_check
      _
    $region11: #{_lambda_.18} parent=1 // pred_check_branch
      %38 = sbr.rel (0) target = $region13
    $region12: #{_lambda_.18} parent=1 // pred_region
      %s40 = ssub.s32 16, 16
      %41 = vsyncadd [#allocation7], %s40
      %s43 = sshll.u32 [#allocation8], 4
      %s44 = int_to_ptr.vmem [resolvable:$true] %s43
      %46 = dma.hbm_to_vmem [thread:$0]  %s2, 16, %s44, [#allocation7]
    $region13: #{_lambda_.18} parent=1 // pred_fallthru
      _
    // Predicated region
    $region14: #{_lambda_.18} parent=1 // pred_check
      _
    $region15: #{_lambda_.18} parent=1 // pred_check_branch
      %48 = sbr.rel (0) target = $region17
    $region16: #{_lambda_.18} parent=1 // pred_region
      %s50 = ssub.s32 8192, 8192
      %51 = vsyncadd [#allocation10], %s50
      %s52 = sshll.u32 [#allocation9], 4
      %s53 = int_to_ptr.vmem [resolvable:$true] %s52
      %58 = dma.hbm_to_vmem [thread:$0]  %s3, 8192, %s53, [#allocation10], 128, 128, 8
    $region17: #{_lambda_.18} parent=1 // pred_fallthru
      _
    // Predicated region
    $region18: #{_lambda_.18} parent=1 // pred_check
      _
    $region19: #{_lambda_.18} parent=1 // pred_check_branch
      %60 = sbr.rel (0) target = $region21
    $region20: #{_lambda_.18} parent=1 // pred_region
      %61 = dma.done [#allocation4], 8192
    $region21: #{_lambda_.18} parent=1 // pred_fallthru
      _
    // Predicated region
    $region22: #{_lambda_.18} parent=1 // pred_check
      _
    $region23: #{_lambda_.18} parent=1 // pred_check_branch
      %63 = sbr.rel (0) target = $region25
    $region24: #{_lambda_.18} parent=1 // pred_region
      %64 = dma.done [#allocation7], 2048
    $region25: #{_lambda_.18} parent=1 // pred_fallthru
      _
    // Predicated region
    $region26: #{_lambda_.18} parent=1 // pred_check
      _
    $region27: #{_lambda_.18} parent=1 // pred_check_branch
      %66 = sbr.rel (0) target = $region29
    $region28: #{_lambda_.18} parent=1 // pred_region
      %67 = dma.done [#allocation7], 16
    $region29: #{_lambda_.18} parent=1 // pred_fallthru
      _
    // Predicated region
    $region30: #{_lambda_.18} parent=1 // pred_check
      _
    $region31: #{_lambda_.18} parent=1 // pred_check_branch
      %69 = sbr.rel (0) target = $region33
    $region32: #{_lambda_.18} parent=1 // pred_region
      %70 = dma.done [#allocation10], 8192
    $region33: #{_lambda_.18} parent=1 // pred_fallthru
      _
    %p71 = scmp.eq.s32.totalorder 0, 0
    // Predicated region
    $region34: #{_lambda_.18} parent=1 // pred_check
      %p72 = pneg %p71
    $region35: #{_lambda_.18} parent=1 // pred_check_branch
      %74 = sbr.rel (%p72) target = $region37
    $region36: #{_lambda_.18} parent=1 // pred_region
      %75 = vst [vmem:[#allocation2] sm:$0xff] 0.0
      %76 = vst [vmem:[#allocation2 + $0x8] sm:$0xff] 0.0
      %77 = vst [vmem:[#allocation2 + $0x10] sm:$0xff] 0.0
      %78 = vst [vmem:[#allocation2 + $0x18] sm:$0xff] 0.0
      %79 = vst [vmem:[#allocation2 + $0x20] sm:$0xff] 0.0
      %80 = vst [vmem:[#allocation2 + $0x28] sm:$0xff] 0.0
      %81 = vst [vmem:[#allocation2 + $0x30] sm:$0xff] 0.0
      %82 = vst [vmem:[#allocation2 + $0x38] sm:$0xff] 0.0
      %83 = vst [vmem:[#allocation2 + $0x40] sm:$0xff] 0.0
      %84 = vst [vmem:[#allocation2 + $0x48] sm:$0xff] 0.0
      %85 = vst [vmem:[#allocation2 + $0x50] sm:$0xff] 0.0
      %86 = vst [vmem:[#allocation2 + $0x58] sm:$0xff] 0.0
      %87 = vst [vmem:[#allocation2 + $0x60] sm:$0xff] 0.0
      %88 = vst [vmem:[#allocation2 + $0x68] sm:$0xff] 0.0
      %89 = vst [vmem:[#allocation2 + $0x70] sm:$0xff] 0.0
      %90 = vst [vmem:[#allocation2 + $0x78] sm:$0xff] 0.0
      %91 = vst [vmem:[#allocation2 + $0x80] sm:$0xff] 0.0
      %92 = vst [vmem:[#allocation2 + $0x88] sm:$0xff] 0.0
      %93 = vst [vmem:[#allocation2 + $0x90] sm:$0xff] 0.0
      %94 = vst [vmem:[#allocation2 + $0x98] sm:$0xff] 0.0
      %95 = vst [vmem:[#allocation2 + $0xa0] sm:$0xff] 0.0
      %96 = vst [vmem:[#allocation2 + $0xa8] sm:$0xff] 0.0
      %97 = vst [vmem:[#allocation2 + $0xb0] sm:$0xff] 0.0
      %98 = vst [vmem:[#allocation2 + $0xb8] sm:$0xff] 0.0
      %99 = vst [vmem:[#allocation2 + $0xc0] sm:$0xff] 0.0
      %100 = vst [vmem:[#allocation2 + $0xc8] sm:$0xff] 0.0
      %101 = vst [vmem:[#allocation2 + $0xd0] sm:$0xff] 0.0
      %102 = vst [vmem:[#allocation2 + $0xd8] sm:$0xff] 0.0
      %103 = vst [vmem:[#allocation2 + $0xe0] sm:$0xff] 0.0
      %104 = vst [vmem:[#allocation2 + $0xe8] sm:$0xff] 0.0
      %105 = vst [vmem:[#allocation2 + $0xf0] sm:$0xff] 0.0
      %106 = vst [vmem:[#allocation2 + $0xf8] sm:$0xff] 0.0
      %107 = vst [vmem:[#allocation2 + $0x100] sm:$0xff] 0.0
      %108 = vst [vmem:[#allocation2 + $0x108] sm:$0xff] 0.0
      %109 = vst [vmem:[#allocation2 + $0x110] sm:$0xff] 0.0
      %110 = vst [vmem:[#allocation2 + $0x118] sm:$0xff] 0.0
      %111 = vst [vmem:[#allocation2 + $0x120] sm:$0xff] 0.0
      %112 = vst [vmem:[#allocation2 + $0x128] sm:$0xff] 0.0
      %113 = vst [vmem:[#allocation2 + $0x130] sm:$0xff] 0.0
      %114 = vst [vmem:[#allocation2 + $0x138] sm:$0xff] 0.0
      %115 = vst [vmem:[#allocation2 + $0x140] sm:$0xff] 0.0
      %116 = vst [vmem:[#allocation2 + $0x148] sm:$0xff] 0.0
      %117 = vst [vmem:[#allocation2 + $0x150] sm:$0xff] 0.0
      %118 = vst [vmem:[#allocation2 + $0x158] sm:$0xff] 0.0
      %119 = vst [vmem:[#allocation2 + $0x160] sm:$0xff] 0.0
      %120 = vst [vmem:[#allocation2 + $0x168] sm:$0xff] 0.0
      %121 = vst [vmem:[#allocation2 + $0x170] sm:$0xff] 0.0
      %122 = vst [vmem:[#allocation2 + $0x178] sm:$0xff] 0.0
      %123 = vst [vmem:[#allocation2 + $0x180] sm:$0xff] 0.0
      %124 = vst [vmem:[#allocation2 + $0x188] sm:$0xff] 0.0
      %125 = vst [vmem:[#allocation2 + $0x190] sm:$0xff] 0.0
      %126 = vst [vmem:[#allocation2 + $0x198] sm:$0xff] 0.0
      %127 = vst [vmem:[#allocation2 + $0x1a0] sm:$0xff] 0.0
      %128 = vst [vmem:[#allocation2 + $0x1a8] sm:$0xff] 0.0
      %129 = vst [vmem:[#allocation2 + $0x1b0] sm:$0xff] 0.0
      %130 = vst [vmem:[#allocation2 + $0x1b8] sm:$0xff] 0.0
      %131 = vst [vmem:[#allocation2 + $0x1c0] sm:$0xff] 0.0
      %132 = vst [vmem:[#allocation2 + $0x1c8] sm:$0xff] 0.0
      %133 = vst [vmem:[#allocation2 + $0x1d0] sm:$0xff] 0.0
      %134 = vst [vmem:[#allocation2 + $0x1d8] sm:$0xff] 0.0
      %135 = vst [vmem:[#allocation2 + $0x1e0] sm:$0xff] 0.0
      %136 = vst [vmem:[#allocation2 + $0x1e8] sm:$0xff] 0.0
      %137 = vst [vmem:[#allocation2 + $0x1f0] sm:$0xff] 0.0
      %138 = vst [vmem:[#allocation2 + $0x1f8] sm:$0xff] 0.0
    $region37: #{_lambda_.18} parent=1 // pred_fallthru
      _
    %v139 = vld [vmem:[#allocation3] sm:$0xff]
    %v140 = vld [vmem:[#allocation3 + $0x8] sm:$0xff]
    %v141 = vld [vmem:[#allocation3 + $0x10] sm:$0xff]
    %v142 = vld [vmem:[#allocation3 + $0x18] sm:$0xff]
    %v143 = vld [vmem:[#allocation3 + $0x20] sm:$0xff]
    %v144 = vld [vmem:[#allocation3 + $0x28] sm:$0xff]
    %v145 = vld [vmem:[#allocation3 + $0x30] sm:$0xff]
    %v146 = vld [vmem:[#allocation3 + $0x38] sm:$0xff]
    %v147 = vld [vmem:[#allocation3 + $0x40] sm:$0xff]
    %v148 = vld [vmem:[#allocation3 + $0x48] sm:$0xff]
    %v149 = vld [vmem:[#allocation3 + $0x50] sm:$0xff]
    %v150 = vld [vmem:[#allocation3 + $0x58] sm:$0xff]
    %v151 = vld [vmem:[#allocation3 + $0x60] sm:$0xff]
    %v152 = vld [vmem:[#allocation3 + $0x68] sm:$0xff]
    %v153 = vld [vmem:[#allocation3 + $0x70] sm:$0xff]
    %v154 = vld [vmem:[#allocation3 + $0x78] sm:$0xff]
    %v155 = vld [vmem:[#allocation3 + $0x80] sm:$0xff]
    %v156 = vld [vmem:[#allocation3 + $0x88] sm:$0xff]
    %v157 = vld [vmem:[#allocation3 + $0x90] sm:$0xff]
    %v158 = vld [vmem:[#allocation3 + $0x98] sm:$0xff]
    %v159 = vld [vmem:[#allocation3 + $0xa0] sm:$0xff]
    %v160 = vld [vmem:[#allocation3 + $0xa8] sm:$0xff]
    %v161 = vld [vmem:[#allocation3 + $0xb0] sm:$0xff]
    %v162 = vld [vmem:[#allocation3 + $0xb8] sm:$0xff]
    %v163 = vld [vmem:[#allocation3 + $0xc0] sm:$0xff]
    %v164 = vld [vmem:[#allocation3 + $0xc8] sm:$0xff]
    %v165 = vld [vmem:[#allocation3 + $0xd0] sm:$0xff]
    %v166 = vld [vmem:[#allocation3 + $0xd8] sm:$0xff]
    %v167 = vld [vmem:[#allocation3 + $0xe0] sm:$0xff]
    %v168 = vld [vmem:[#allocation3 + $0xe8] sm:$0xff]
    %v169 = vld [vmem:[#allocation3 + $0xf0] sm:$0xff]
    %v170 = vld [vmem:[#allocation3 + $0xf8] sm:$0xff]
    %v171 = vld [vmem:[#allocation3 + $0x100] sm:$0xff]
    %v172 = vld [vmem:[#allocation3 + $0x108] sm:$0xff]
    %v173 = vld [vmem:[#allocation3 + $0x110] sm:$0xff]
    %v174 = vld [vmem:[#allocation3 + $0x118] sm:$0xff]
    %v175 = vld [vmem:[#allocation3 + $0x120] sm:$0xff]
    %v176 = vld [vmem:[#allocation3 + $0x128] sm:$0xff]
    %v177 = vld [vmem:[#allocation3 + $0x130] sm:$0xff]
    %v178 = vld [vmem:[#allocation3 + $0x138] sm:$0xff]
    %v179 = vld [vmem:[#allocation3 + $0x140] sm:$0xff]
    %v180 = vld [vmem:[#allocation3 + $0x148] sm:$0xff]
    %v181 = vld [vmem:[#allocation3 + $0x150] sm:$0xff]
    %v182 = vld [vmem:[#allocation3 + $0x158] sm:$0xff]
    %v183 = vld [vmem:[#allocation3 + $0x160] sm:$0xff]
    %v184 = vld [vmem:[#allocation3 + $0x168] sm:$0xff]
    %v185 = vld [vmem:[#allocation3 + $0x170] sm:$0xff]
    %v186 = vld [vmem:[#allocation3 + $0x178] sm:$0xff]
    %v187 = vld [vmem:[#allocation3 + $0x180] sm:$0xff]
    %v188 = vld [vmem:[#allocation3 + $0x188] sm:$0xff]
    %v189 = vld [vmem:[#allocation3 + $0x190] sm:$0xff]
    %v190 = vld [vmem:[#allocation3 + $0x198] sm:$0xff]
    %v191 = vld [vmem:[#allocation3 + $0x1a0] sm:$0xff]
    %v192 = vld [vmem:[#allocation3 + $0x1a8] sm:$0xff]
    %v193 = vld [vmem:[#allocation3 + $0x1b0] sm:$0xff]
    %v194 = vld [vmem:[#allocation3 + $0x1b8] sm:$0xff]
    %v195 = vld [vmem:[#allocation3 + $0x1c0] sm:$0xff]
    %v196 = vld [vmem:[#allocation3 + $0x1c8] sm:$0xff]
    %v197 = vld [vmem:[#allocation3 + $0x1d0] sm:$0xff]
    %v198 = vld [vmem:[#allocation3 + $0x1d8] sm:$0xff]
    %v199 = vld [vmem:[#allocation3 + $0x1e0] sm:$0xff]
    %v200 = vld [vmem:[#allocation3 + $0x1e8] sm:$0xff]
    %v201 = vld [vmem:[#allocation3 + $0x1f0] sm:$0xff]
    %v202 = vld [vmem:[#allocation3 + $0x1f8] sm:$0xff]
    %v203 = vld [vmem:[#allocation6] sm:$0xff]
    %v204 = vld [vmem:[#allocation6 + $0x8] sm:$0xff]
    %v205 = vld [vmem:[#allocation6 + $0x10] sm:$0xff]
    %v206 = vld [vmem:[#allocation6 + $0x18] sm:$0xff]
    %v207 = vld [vmem:[#allocation6 + $0x20] sm:$0xff]
    %v208 = vld [vmem:[#allocation6 + $0x28] sm:$0xff]
    %v209 = vld [vmem:[#allocation6 + $0x30] sm:$0xff]
    %v210 = vld [vmem:[#allocation6 + $0x38] sm:$0xff]
    %v211 = vld [vmem:[#allocation6 + $0x40] sm:$0xff]
    %v212 = vld [vmem:[#allocation6 + $0x48] sm:$0xff]
    %v213 = vld [vmem:[#allocation6 + $0x50] sm:$0xff]
    %v214 = vld [vmem:[#allocation6 + $0x58] sm:$0xff]
    %v215 = vld [vmem:[#allocation6 + $0x60] sm:$0xff]
    %v216 = vld [vmem:[#allocation6 + $0x68] sm:$0xff]
    %v217 = vld [vmem:[#allocation6 + $0x70] sm:$0xff]
    %v218 = vld [vmem:[#allocation6 + $0x78] sm:$0xff]
    %v219 = vld [vmem:[#allocation2] sm:$0xff]
    %v220 = vld [vmem:[#allocation2 + $0x8] sm:$0xff]
    %v221 = vld [vmem:[#allocation2 + $0x10] sm:$0xff]
    %v222 = vld [vmem:[#allocation2 + $0x18] sm:$0xff]
    %v223 = vld [vmem:[#allocation2 + $0x20] sm:$0xff]
    %v224 = vld [vmem:[#allocation2 + $0x28] sm:$0xff]
    %v225 = vld [vmem:[#allocation2 + $0x30] sm:$0xff]
    %v226 = vld [vmem:[#allocation2 + $0x38] sm:$0xff]
    %v227 = vld [vmem:[#allocation2 + $0x40] sm:$0xff]
    %v228 = vld [vmem:[#allocation2 + $0x48] sm:$0xff]
    %v229 = vld [vmem:[#allocation2 + $0x50] sm:$0xff]
    %v230 = vld [vmem:[#allocation2 + $0x58] sm:$0xff]
    %v231 = vld [vmem:[#allocation2 + $0x60] sm:$0xff]
    %v232 = vld [vmem:[#allocation2 + $0x68] sm:$0xff]
    %v233 = vld [vmem:[#allocation2 + $0x70] sm:$0xff]
    %v234 = vld [vmem:[#allocation2 + $0x78] sm:$0xff]
    %v235 = vld [vmem:[#allocation2 + $0x80] sm:$0xff]
    %v236 = vld [vmem:[#allocation2 + $0x88] sm:$0xff]
    %v237 = vld [vmem:[#allocation2 + $0x90] sm:$0xff]
    %v238 = vld [vmem:[#allocation2 + $0x98] sm:$0xff]
    %v239 = vld [vmem:[#allocation2 + $0xa0] sm:$0xff]
    %v240 = vld [vmem:[#allocation2 + $0xa8] sm:$0xff]
    %v241 = vld [vmem:[#allocation2 + $0xb0] sm:$0xff]
    %v242 = vld [vmem:[#allocation2 + $0xb8] sm:$0xff]
    %v243 = vld [vmem:[#allocation2 + $0xc0] sm:$0xff]
    %v244 = vld [vmem:[#allocation2 + $0xc8] sm:$0xff]
    %v245 = vld [vmem:[#allocation2 + $0xd0] sm:$0xff]
    %v246 = vld [vmem:[#allocation2 + $0xd8] sm:$0xff]
    %v247 = vld [vmem:[#allocation2 + $0xe0] sm:$0xff]
    %v248 = vld [vmem:[#allocation2 + $0xe8] sm:$0xff]
    %v249 = vld [vmem:[#allocation2 + $0xf0] sm:$0xff]
    %v250 = vld [vmem:[#allocation2 + $0xf8] sm:$0xff]
    %v251 = vld [vmem:[#allocation2 + $0x100] sm:$0xff]
    %v252 = vld [vmem:[#allocation2 + $0x108] sm:$0xff]
    %v253 = vld [vmem:[#allocation2 + $0x110] sm:$0xff]
    %v254 = vld [vmem:[#allocation2 + $0x118] sm:$0xff]
    %v255 = vld [vmem:[#allocation2 + $0x120] sm:$0xff]
    %v256 = vld [vmem:[#allocation2 + $0x128] sm:$0xff]
    %v257 = vld [vmem:[#allocation2 + $0x130] sm:$0xff]
    %v258 = vld [vmem:[#allocation2 + $0x138] sm:$0xff]
    %v259 = vld [vmem:[#allocation2 + $0x140] sm:$0xff]
    %v260 = vld [vmem:[#allocation2 + $0x148] sm:$0xff]
    %v261 = vld [vmem:[#allocation2 + $0x150] sm:$0xff]
    %v262 = vld [vmem:[#allocation2 + $0x158] sm:$0xff]
    %v263 = vld [vmem:[#allocation2 + $0x160] sm:$0xff]
    %v264 = vld [vmem:[#allocation2 + $0x168] sm:$0xff]
    %v265 = vld [vmem:[#allocation2 + $0x170] sm:$0xff]
    %v266 = vld [vmem:[#allocation2 + $0x178] sm:$0xff]
    %v267 = vld [vmem:[#allocation2 + $0x180] sm:$0xff]
    %v268 = vld [vmem:[#allocation2 + $0x188] sm:$0xff]
    %v269 = vld [vmem:[#allocation2 + $0x190] sm:$0xff]
    %v270 = vld [vmem:[#allocation2 + $0x198] sm:$0xff]
    %v271 = vld [vmem:[#allocation2 + $0x1a0] sm:$0xff]
    %v272 = vld [vmem:[#allocation2 + $0x1a8] sm:$0xff]
    %v273 = vld [vmem:[#allocation2 + $0x1b0] sm:$0xff]
    %v274 = vld [vmem:[#allocation2 + $0x1b8] sm:$0xff]
    %v275 = vld [vmem:[#allocation2 + $0x1c0] sm:$0xff]
    %v276 = vld [vmem:[#allocation2 + $0x1c8] sm:$0xff]
    %v277 = vld [vmem:[#allocation2 + $0x1d0] sm:$0xff]
    %v278 = vld [vmem:[#allocation2 + $0x1d8] sm:$0xff]
    %v279 = vld [vmem:[#allocation2 + $0x1e0] sm:$0xff]
    %v280 = vld [vmem:[#allocation2 + $0x1e8] sm:$0xff]
    %v281 = vld [vmem:[#allocation2 + $0x1f0] sm:$0xff]
    %v282 = vld [vmem:[#allocation2 + $0x1f8] sm:$0xff]
    %283 = vmatprep.subr.mxu0 0.0
    %284 = vmatpush1.msra.mxu0 %v203
    %285 = vmatprep.subr.mxu0 0.0
    %286 = vmatpush1.msra.mxu0 %v204
    %287 = vmatprep.subr.mxu0 0.0
    %288 = vmatpush1.msra.mxu0 %v205
    %289 = vmatprep.subr.mxu0 0.0
    %290 = vmatpush1.msra.mxu0 %v206
    %291 = vmatprep.subr.mxu0 0.0
    %292 = vmatpush1.msra.mxu0 %v207
    %293 = vmatprep.subr.mxu0 0.0
    %294 = vmatpush1.msra.mxu0 %v208
    %295 = vmatprep.subr.mxu0 0.0
    %296 = vmatpush1.msra.mxu0 %v209
    %297 = vmatprep.subr.mxu0 0.0
    %298 = vmatpush1.msra.mxu0 %v210
    %299 = vmatprep.subr.mxu0 0.0
    %300 = vmatpush1.msra.mxu0 %v211
    %301 = vmatprep.subr.mxu0 0.0
    %302 = vmatpush1.msra.mxu0 %v212
    %303 = vmatprep.subr.mxu0 0.0
    %304 = vmatpush1.msra.mxu0 %v213
    %305 = vmatprep.subr.mxu0 0.0
    %306 = vmatpush1.msra.mxu0 %v214
    %307 = vmatprep.subr.mxu0 0.0
    %308 = vmatpush1.msra.mxu0 %v215
    %309 = vmatprep.subr.mxu0 0.0
    %310 = vmatpush1.msra.mxu0 %v216
    %311 = vmatprep.subr.mxu0 0.0
    %312 = vmatpush1.msra.mxu0 %v217
    %313 = vmatprep.subr.mxu0 0.0
    %314 = vmatpush1.msra.mxu0 %v218
    %315 = vmatprep.subr.mxu0 0.0
    %316 = vmatpush1.msra.mxu0 0.0
    %317 = vmatprep.subr.mxu0 0.0
    %318 = vmatpush1.msra.mxu0 0.0
    %319 = vmatprep.subr.mxu0 0.0
    %320 = vmatpush1.msra.mxu0 0.0
    %321 = vmatprep.subr.mxu0 0.0
    %322 = vmatpush1.msra.mxu0 0.0
    %323 = vmatprep.subr.mxu0 0.0
    %324 = vmatpush1.msra.mxu0 0.0
    %325 = vmatprep.subr.mxu0 0.0
    %326 = vmatpush1.msra.mxu0 0.0
    %327 = vmatprep.subr.mxu0 0.0
    %328 = vmatpush1.msra.mxu0 0.0
    %329 = vmatprep.subr.mxu0 0.0
    %330 = vmatpush1.msra.mxu0 0.0
    %331 = vmatprep.subr.mxu0 0.0
    %332 = vmatpush1.msra.mxu0 0.0
    %333 = vmatprep.subr.mxu0 0.0
    %334 = vmatpush1.msra.mxu0 0.0
    %335 = vmatprep.subr.mxu0 0.0
    %336 = vmatpush1.msra.mxu0 0.0
    %337 = vmatprep.subr.mxu0 0.0
    %338 = vmatpush1.msra.mxu0 0.0
    %339 = vmatprep.subr.mxu0 0.0
    %340 = vmatpush1.msra.mxu0 0.0
    %341 = vmatprep.subr.mxu0 0.0
    %342 = vmatpush1.msra.mxu0 0.0
    %343 = vmatprep.subr.mxu0 0.0
    %344 = vmatpush1.msra.mxu0 0.0
    %345 = vmatprep.subr.mxu0 0.0
    %346 = vmatpush1.msra.mxu0 0.0
    %347 = vmatprep.mubr.f32.mxu0 0.0
    %348 = vmatmul.mubr.f32.gmra.mrb[0].mxu0 %v139
    %v349 = vpop.f32.mrb[0].mxu0
    %v350 = vadd.f32 0.0, %v349
    %v351 = vpop.f32.mrb[0].mxu0
    %352 = vmatprep.mubr.f32.mxu0 0.0
    %353 = vmatmul.mubr.f32.gmra.mrb[0].mxu0 %v140
    %v354 = vpop.f32.mrb[0].mxu0
    %v355 = vadd.f32 0.0, %v354
    %v356 = vpop.f32.mrb[0].mxu0
    %357 = vmatprep.mubr.f32.mxu0 0.0
    %358 = vmatmul.mubr.f32.gmra.mrb[0].mxu0 %v141
    %v359 = vpop.f32.mrb[0].mxu0
    %v360 = vadd.f32 0.0, %v359
    %v361 = vpop.f32.mrb[0].mxu0
    %362 = vmatprep.mubr.f32.mxu0 0.0
    %363 = vmatmul.mubr.f32.gmra.mrb[0].mxu0 %v142
    %v364 = vpop.f32.mrb[0].mxu0
    %v365 = vadd.f32 0.0, %v364
    %v366 = vpop.f32.mrb[0].mxu0
    %367 = vmatprep.mubr.f32.mxu0 0.0
    %368 = vmatmul.mubr.f32.gmra.mrb[0].mxu0 %v143
    %v369 = vpop.f32.mrb[0].mxu0
    %v370 = vadd.f32 0.0, %v369
    %v371 = vpop.f32.mrb[0].mxu0
    %372 = vmatprep.mubr.f32.mxu0 0.0
    %373 = vmatmul.mubr.f32.gmra.mrb[0].mxu0 %v144
    %v374 = vpop.f32.mrb[0].mxu0
    %v375 = vadd.f32 0.0, %v374
    %v376 = vpop.f32.mrb[0].mxu0
    %377 = vmatprep.mubr.f32.mxu0 0.0
    %378 = vmatmul.mubr.f32.gmra.mrb[0].mxu0 %v145
    %v379 = vpop.f32.mrb[0].mxu0
    %v380 = vadd.f32 0.0, %v379
    %v381 = vpop.f32.mrb[0].mxu0
    %382 = vmatprep.mubr.f32.mxu0 0.0
    %383 = vmatmul.mubr.f32.gmra.mrb[0].mxu0 %v146
    %v384 = vpop.f32.mrb[0].mxu0
    %v385 = vadd.f32 0.0, %v384
    %v386 = vpop.f32.mrb[0].mxu0
    %387 = vmatprep.mubr.f32.mxu0 0.0
    %388 = vmatmul.mubr.f32.gmra.mrb[0].mxu0 %v147
    %v389 = vpop.f32.mrb[0].mxu0
    %v390 = vadd.f32 0.0, %v389
    %v391 = vpop.f32.mrb[0].mxu0
    %392 = vmatprep.mubr.f32.mxu0 0.0
    %393 = vmatmul.mubr.f32.gmra.mrb[0].mxu0 %v148
    %v394 = vpop.f32.mrb[0].mxu0
    %v395 = vadd.f32 0.0, %v394
    %v396 = vpop.f32.mrb[0].mxu0
    %397 = vmatprep.mubr.f32.mxu0 0.0
    %398 = vmatmul.mubr.f32.gmra.mrb[0].mxu0 %v149
    %v399 = vpop.f32.mrb[0].mxu0
    %v400 = vadd.f32 0.0, %v399
    %v401 = vpop.f32.mrb[0].mxu0
    %402 = vmatprep.mubr.f32.mxu0 0.0
    %403 = vmatmul.mubr.f32.gmra.mrb[0].mxu0 %v150
    %v404 = vpop.f32.mrb[0].mxu0
    %v405 = vadd.f32 0.0, %v404
    %v406 = vpop.f32.mrb[0].mxu0
    %407 = vmatprep.mubr.f32.mxu0 0.0
    %408 = vmatmul.mubr.f32.gmra.mrb[0].mxu0 %v151
    %v409 = vpop.f32.mrb[0].mxu0
    %v410 = vadd.f32 0.0, %v409
    %v411 = vpop.f32.mrb[0].mxu0
    %412 = vmatprep.mubr.f32.mxu0 0.0
    %413 = vmatmul.mubr.f32.gmra.mrb[0].mxu0 %v152
    %v414 = vpop.f32.mrb[0].mxu0
    %v415 = vadd.f32 0.0, %v414
    %v416 = vpop.f32.mrb[0].mxu0
    %417 = vmatprep.mubr.f32.mxu0 0.0
    %418 = vmatmul.mubr.f32.gmra.mrb[0].mxu0 %v153
    %v419 = vpop.f32.mrb[0].mxu0
    %v420 = vadd.f32 0.0, %v419
    %v421 = vpop.f32.mrb[0].mxu0
    %422 = vmatprep.mubr.f32.mxu0 0.0
    %423 = vmatmul.mubr.f32.gmra.mrb[0].mxu0 %v154
    %v424 = vpop.f32.mrb[0].mxu0
    %v425 = vadd.f32 0.0, %v424
    %v426 = vpop.f32.mrb[0].mxu0
    %427 = vmatprep.mubr.f32.mxu0 0.0
    %428 = vmatmul.mubr.f32.gmra.mrb[0].mxu0 %v155
    %v429 = vpop.f32.mrb[0].mxu0
    %v430 = vadd.f32 0.0, %v429
    %v431 = vpop.f32.mrb[0].mxu0
    %432 = vmatprep.mubr.f32.mxu0 0.0
    %433 = vmatmul.mubr.f32.gmra.mrb[0].mxu0 %v156
    %v434 = vpop.f32.mrb[0].mxu0
    %v435 = vadd.f32 0.0, %v434
    %v436 = vpop.f32.mrb[0].mxu0
    %437 = vmatprep.mubr.f32.mxu0 0.0
    %438 = vmatmul.mubr.f32.gmra.mrb[0].mxu0 %v157
    %v439 = vpop.f32.mrb[0].mxu0
    %v440 = vadd.f32 0.0, %v439
    %v441 = vpop.f32.mrb[0].mxu0
    %442 = vmatprep.mubr.f32.mxu0 0.0
    %443 = vmatmul.mubr.f32.gmra.mrb[0].mxu0 %v158
    %v444 = vpop.f32.mrb[0].mxu0
    %v445 = vadd.f32 0.0, %v444
    %v446 = vpop.f32.mrb[0].mxu0
    %447 = vmatprep.mubr.f32.mxu0 0.0
    %448 = vmatmul.mubr.f32.gmra.mrb[0].mxu0 %v159
    %v449 = vpop.f32.mrb[0].mxu0
    %v450 = vadd.f32 0.0, %v449
    %v451 = vpop.f32.mrb[0].mxu0
    %452 = vmatprep.mubr.f32.mxu0 0.0
    %453 = vmatmul.mubr.f32.gmra.mrb[0].mxu0 %v160
    %v454 = vpop.f32.mrb[0].mxu0
    %v455 = vadd.f32 0.0, %v454
    %v456 = vpop.f32.mrb[0].mxu0
    %457 = vmatprep.mubr.f32.mxu0 0.0
    %458 = vmatmul.mubr.f32.gmra.mrb[0].mxu0 %v161
    %v459 = vpop.f32.mrb[0].mxu0
    %v460 = vadd.f32 0.0, %v459
    %v461 = vpop.f32.mrb[0].mxu0
    %462 = vmatprep.mubr.f32.mxu0 0.0
    %463 = vmatmul.mubr.f32.gmra.mrb[0].mxu0 %v162
    %v464 = vpop.f32.mrb[0].mxu0
    %v465 = vadd.f32 0.0, %v464
    %v466 = vpop.f32.mrb[0].mxu0
    %467 = vmatprep.mubr.f32.mxu0 0.0
    %468 = vmatmul.mubr.f32.gmra.mrb[0].mxu0 %v163
    %v469 = vpop.f32.mrb[0].mxu0
    %v470 = vadd.f32 0.0, %v469
    %v471 = vpop.f32.mrb[0].mxu0
    %472 = vmatprep.mubr.f32.mxu0 0.0
    %473 = vmatmul.mubr.f32.gmra.mrb[0].mxu0 %v164
    %v474 = vpop.f32.mrb[0].mxu0
    %v475 = vadd.f32 0.0, %v474
    %v476 = vpop.f32.mrb[0].mxu0
    %477 = vmatprep.mubr.f32.mxu0 0.0
    %478 = vmatmul.mubr.f32.gmra.mrb[0].mxu0 %v165
    %v479 = vpop.f32.mrb[0].mxu0
    %v480 = vadd.f32 0.0, %v479
    %v481 = vpop.f32.mrb[0].mxu0
    %482 = vmatprep.mubr.f32.mxu0 0.0
    %483 = vmatmul.mubr.f32.gmra.mrb[0].mxu0 %v166
    %v484 = vpop.f32.mrb[0].mxu0
    %v485 = vadd.f32 0.0, %v484
    %v486 = vpop.f32.mrb[0].mxu0
    %487 = vmatprep.mubr.f32.mxu0 0.0
    %488 = vmatmul.mubr.f32.gmra.mrb[0].mxu0 %v167
    %v489 = vpop.f32.mrb[0].mxu0
    %v490 = vadd.f32 0.0, %v489
    %v491 = vpop.f32.mrb[0].mxu0
    %492 = vmatprep.mubr.f32.mxu0 0.0
    %493 = vmatmul.mubr.f32.gmra.mrb[0].mxu0 %v168
    %v494 = vpop.f32.mrb[0].mxu0
    %v495 = vadd.f32 0.0, %v494
    %v496 = vpop.f32.mrb[0].mxu0
    %497 = vmatprep.mubr.f32.mxu0 0.0
    %498 = vmatmul.mubr.f32.gmra.mrb[0].mxu0 %v169
    %v499 = vpop.f32.mrb[0].mxu0
    %v500 = vadd.f32 0.0, %v499
    %v501 = vpop.f32.mrb[0].mxu0
    %502 = vmatprep.mubr.f32.mxu0 0.0
    %503 = vmatmul.mubr.f32.gmra.mrb[0].mxu0 %v170
    %v504 = vpop.f32.mrb[0].mxu0
    %v505 = vadd.f32 0.0, %v504
    %v506 = vpop.f32.mrb[0].mxu0
    %507 = vmatprep.mubr.f32.mxu0 0.0
    %508 = vmatmul.mubr.f32.gmra.mrb[0].mxu0 %v171
    %v509 = vpop.f32.mrb[0].mxu0
    %v510 = vadd.f32 0.0, %v509
    %v511 = vpop.f32.mrb[0].mxu0
    %512 = vmatprep.mubr.f32.mxu0 0.0
    %513 = vmatmul.mubr.f32.gmra.mrb[0].mxu0 %v172
    %v514 = vpop.f32.mrb[0].mxu0
    %v515 = vadd.f32 0.0, %v514
    %v516 = vpop.f32.mrb[0].mxu0
    %517 = vmatprep.mubr.f32.mxu0 0.0
    %518 = vmatmul.mubr.f32.gmra.mrb[0].mxu0 %v173
    %v519 = vpop.f32.mrb[0].mxu0
    %v520 = vadd.f32 0.0, %v519
    %v521 = vpop.f32.mrb[0].mxu0
    %522 = vmatprep.mubr.f32.mxu0 0.0
    %523 = vmatmul.mubr.f32.gmra.mrb[0].mxu0 %v174
    %v524 = vpop.f32.mrb[0].mxu0
    %v525 = vadd.f32 0.0, %v524
    %v526 = vpop.f32.mrb[0].mxu0
    %527 = vmatprep.mubr.f32.mxu0 0.0
    %528 = vmatmul.mubr.f32.gmra.mrb[0].mxu0 %v175
    %v529 = vpop.f32.mrb[0].mxu0
    %v530 = vadd.f32 0.0, %v529
    %v531 = vpop.f32.mrb[0].mxu0
    %532 = vmatprep.mubr.f32.mxu0 0.0
    %533 = vmatmul.mubr.f32.gmra.mrb[0].mxu0 %v176
    %v534 = vpop.f32.mrb[0].mxu0
    %v535 = vadd.f32 0.0, %v534
    %v536 = vpop.f32.mrb[0].mxu0
    %537 = vmatprep.mubr.f32.mxu0 0.0
    %538 = vmatmul.mubr.f32.gmra.mrb[0].mxu0 %v177
    %v539 = vpop.f32.mrb[0].mxu0
    %v540 = vadd.f32 0.0, %v539
    %v541 = vpop.f32.mrb[0].mxu0
    %542 = vmatprep.mubr.f32.mxu0 0.0
    %543 = vmatmul.mubr.f32.gmra.mrb[0].mxu0 %v178
    %v544 = vpop.f32.mrb[0].mxu0
    %v545 = vadd.f32 0.0, %v544
    %v546 = vpop.f32.mrb[0].mxu0
    %547 = vmatprep.mubr.f32.mxu0 0.0
    %548 = vmatmul.mubr.f32.gmra.mrb[0].mxu0 %v179
    %v549 = vpop.f32.mrb[0].mxu0
    %v550 = vadd.f32 0.0, %v549
    %v551 = vpop.f32.mrb[0].mxu0
    %552 = vmatprep.mubr.f32.mxu0 0.0
    %553 = vmatmul.mubr.f32.gmra.mrb[0].mxu0 %v180
    %v554 = vpop.f32.mrb[0].mxu0
    %v555 = vadd.f32 0.0, %v554
    %v556 = vpop.f32.mrb[0].mxu0
    %557 = vmatprep.mubr.f32.mxu0 0.0
    %558 = vmatmul.mubr.f32.gmra.mrb[0].mxu0 %v181
    %v559 = vpop.f32.mrb[0].mxu0
    %v560 = vadd.f32 0.0, %v559
    %v561 = vpop.f32.mrb[0].mxu0
    %562 = vmatprep.mubr.f32.mxu0 0.0
    %563 = vmatmul.mubr.f32.gmra.mrb[0].mxu0 %v182
    %v564 = vpop.f32.mrb[0].mxu0
    %v565 = vadd.f32 0.0, %v564
    %v566 = vpop.f32.mrb[0].mxu0
    %567 = vmatprep.mubr.f32.mxu0 0.0
    %568 = vmatmul.mubr.f32.gmra.mrb[0].mxu0 %v183
    %v569 = vpop.f32.mrb[0].mxu0
    %v570 = vadd.f32 0.0, %v569
    %v571 = vpop.f32.mrb[0].mxu0
    %572 = vmatprep.mubr.f32.mxu0 0.0
    %573 = vmatmul.mubr.f32.gmra.mrb[0].mxu0 %v184
    %v574 = vpop.f32.mrb[0].mxu0
    %v575 = vadd.f32 0.0, %v574
    %v576 = vpop.f32.mrb[0].mxu0
    %577 = vmatprep.mubr.f32.mxu0 0.0
    %578 = vmatmul.mubr.f32.gmra.mrb[0].mxu0 %v185
    %v579 = vpop.f32.mrb[0].mxu0
    %v580 = vadd.f32 0.0, %v579
    %v581 = vpop.f32.mrb[0].mxu0
    %582 = vmatprep.mubr.f32.mxu0 0.0
    %583 = vmatmul.mubr.f32.gmra.mrb[0].mxu0 %v186
    %v584 = vpop.f32.mrb[0].mxu0
    %v585 = vadd.f32 0.0, %v584
    %v586 = vpop.f32.mrb[0].mxu0
    %587 = vmatprep.mubr.f32.mxu0 0.0
    %588 = vmatmul.mubr.f32.gmra.mrb[0].mxu0 %v187
    %v589 = vpop.f32.mrb[0].mxu0
    %v590 = vadd.f32 0.0, %v589
    %v591 = vpop.f32.mrb[0].mxu0
    %592 = vmatprep.mubr.f32.mxu0 0.0
    %593 = vmatmul.mubr.f32.gmra.mrb[0].mxu0 %v188
    %v594 = vpop.f32.mrb[0].mxu0
    %v595 = vadd.f32 0.0, %v594
    %v596 = vpop.f32.mrb[0].mxu0
    %597 = vmatprep.mubr.f32.mxu0 0.0
    %598 = vmatmul.mubr.f32.gmra.mrb[0].mxu0 %v189
    %v599 = vpop.f32.mrb[0].mxu0
    %v600 = vadd.f32 0.0, %v599
    %v601 = vpop.f32.mrb[0].mxu0
    %602 = vmatprep.mubr.f32.mxu0 0.0
    %603 = vmatmul.mubr.f32.gmra.mrb[0].mxu0 %v190
    %v604 = vpop.f32.mrb[0].mxu0
    %v605 = vadd.f32 0.0, %v604
    %v606 = vpop.f32.mrb[0].mxu0
    %607 = vmatprep.mubr.f32.mxu0 0.0
    %608 = vmatmul.mubr.f32.gmra.mrb[0].mxu0 %v191
    %v609 = vpop.f32.mrb[0].mxu0
    %v610 = vadd.f32 0.0, %v609
    %v611 = vpop.f32.mrb[0].mxu0
    %612 = vmatprep.mubr.f32.mxu0 0.0
    %613 = vmatmul.mubr.f32.gmra.mrb[0].mxu0 %v192
    %v614 = vpop.f32.mrb[0].mxu0
    %v615 = vadd.f32 0.0, %v614
    %v616 = vpop.f32.mrb[0].mxu0
    %617 = vmatprep.mubr.f32.mxu0 0.0
    %618 = vmatmul.mubr.f32.gmra.mrb[0].mxu0 %v193
    %v619 = vpop.f32.mrb[0].mxu0
    %v620 = vadd.f32 0.0, %v619
    %v621 = vpop.f32.mrb[0].mxu0
    %622 = vmatprep.mubr.f32.mxu0 0.0
    %623 = vmatmul.mubr.f32.gmra.mrb[0].mxu0 %v194
    %v624 = vpop.f32.mrb[0].mxu0
    %v625 = vadd.f32 0.0, %v624
    %v626 = vpop.f32.mrb[0].mxu0
    %627 = vmatprep.mubr.f32.mxu0 0.0
    %628 = vmatmul.mubr.f32.gmra.mrb[0].mxu0 %v195
    %v629 = vpop.f32.mrb[0].mxu0
    %v630 = vadd.f32 0.0, %v629
    %v631 = vpop.f32.mrb[0].mxu0
    %632 = vmatprep.mubr.f32.mxu0 0.0
    %633 = vmatmul.mubr.f32.gmra.mrb[0].mxu0 %v196
    %v634 = vpop.f32.mrb[0].mxu0
    %v635 = vadd.f32 0.0, %v634
    %v636 = vpop.f32.mrb[0].mxu0
    %637 = vmatprep.mubr.f32.mxu0 0.0
    %638 = vmatmul.mubr.f32.gmra.mrb[0].mxu0 %v197
    %v639 = vpop.f32.mrb[0].mxu0
    %v640 = vadd.f32 0.0, %v639
    %v641 = vpop.f32.mrb[0].mxu0
    %642 = vmatprep.mubr.f32.mxu0 0.0
    %643 = vmatmul.mubr.f32.gmra.mrb[0].mxu0 %v198
    %v644 = vpop.f32.mrb[0].mxu0
    %v645 = vadd.f32 0.0, %v644
    %v646 = vpop.f32.mrb[0].mxu0
    %647 = vmatprep.mubr.f32.mxu0 0.0
    %648 = vmatmul.mubr.f32.gmra.mrb[0].mxu0 %v199
    %v649 = vpop.f32.mrb[0].mxu0
    %v650 = vadd.f32 0.0, %v649
    %v651 = vpop.f32.mrb[0].mxu0
    %652 = vmatprep.mubr.f32.mxu0 0.0
    %653 = vmatmul.mubr.f32.gmra.mrb[0].mxu0 %v200
    %v654 = vpop.f32.mrb[0].mxu0
    %v655 = vadd.f32 0.0, %v654
    %v656 = vpop.f32.mrb[0].mxu0
    %657 = vmatprep.mubr.f32.mxu0 0.0
    %658 = vmatmul.mubr.f32.gmra.mrb[0].mxu0 %v201
    %v659 = vpop.f32.mrb[0].mxu0
    %v660 = vadd.f32 0.0, %v659
    %v661 = vpop.f32.mrb[0].mxu0
    %662 = vmatprep.mubr.f32.mxu0 0.0
    %663 = vmatmul.mubr.f32.gmra.mrb[0].mxu0 %v202
    %v664 = vpop.f32.mrb[0].mxu0
    %v665 = vadd.f32 0.0, %v664
    %v666 = vpop.f32.mrb[0].mxu0
    %667 = vdwg.mxu0
    %v668 = vadd.f32 %v219, %v350
    %v669 = vadd.f32 %v220, %v355
    %v670 = vadd.f32 %v221, %v360
    %v671 = vadd.f32 %v222, %v365
    %v672 = vadd.f32 %v223, %v370
    %v673 = vadd.f32 %v224, %v375
    %v674 = vadd.f32 %v225, %v380
    %v675 = vadd.f32 %v226, %v385
    %v676 = vadd.f32 %v227, %v390
    %v677 = vadd.f32 %v228, %v395
    %v678 = vadd.f32 %v229, %v400
    %v679 = vadd.f32 %v230, %v405
    %v680 = vadd.f32 %v231, %v410
    %v681 = vadd.f32 %v232, %v415
    %v682 = vadd.f32 %v233, %v420
    %v683 = vadd.f32 %v234, %v425
    %v684 = vadd.f32 %v235, %v430
    %v685 = vadd.f32 %v236, %v435
    %v686 = vadd.f32 %v237, %v440
    %v687 = vadd.f32 %v238, %v445
    %v688 = vadd.f32 %v239, %v450
    %v689 = vadd.f32 %v240, %v455
    %v690 = vadd.f32 %v241, %v460
    %v691 = vadd.f32 %v242, %v465
    %v692 = vadd.f32 %v243, %v470
    %v693 = vadd.f32 %v244, %v475
    %v694 = vadd.f32 %v245, %v480
    %v695 = vadd.f32 %v246, %v485
    %v696 = vadd.f32 %v247, %v490
    %v697 = vadd.f32 %v248, %v495
    %v698 = vadd.f32 %v249, %v500
    %v699 = vadd.f32 %v250, %v505
    %v700 = vadd.f32 %v251, %v510
    %v701 = vadd.f32 %v252, %v515
    %v702 = vadd.f32 %v253, %v520
    %v703 = vadd.f32 %v254, %v525
    %v704 = vadd.f32 %v255, %v530
    %v705 = vadd.f32 %v256, %v535
    %v706 = vadd.f32 %v257, %v540
    %v707 = vadd.f32 %v258, %v545
    %v708 = vadd.f32 %v259, %v550
    %v709 = vadd.f32 %v260, %v555
    %v710 = vadd.f32 %v261, %v560
    %v711 = vadd.f32 %v262, %v565
    %v712 = vadd.f32 %v263, %v570
    %v713 = vadd.f32 %v264, %v575
    %v714 = vadd.f32 %v265, %v580
    %v715 = vadd.f32 %v266, %v585
    %v716 = vadd.f32 %v267, %v590
    %v717 = vadd.f32 %v268, %v595
    %v718 = vadd.f32 %v269, %v600
    %v719 = vadd.f32 %v270, %v605
    %v720 = vadd.f32 %v271, %v610
    %v721 = vadd.f32 %v272, %v615
    %v722 = vadd.f32 %v273, %v620
    %v723 = vadd.f32 %v274, %v625
    %v724 = vadd.f32 %v275, %v630
    %v725 = vadd.f32 %v276, %v635
    %v726 = vadd.f32 %v277, %v640
    %v727 = vadd.f32 %v278, %v645
    %v728 = vadd.f32 %v279, %v650
    %v729 = vadd.f32 %v280, %v655
    %v730 = vadd.f32 %v281, %v660
    %v731 = vadd.f32 %v282, %v665
    %732 = vst [vmem:[#allocation2] sm:$0xff] %v668
    %733 = vst [vmem:[#allocation2 + $0x8] sm:$0xff] %v669
    %734 = vst [vmem:[#allocation2 + $0x10] sm:$0xff] %v670
    %735 = vst [vmem:[#allocation2 + $0x18] sm:$0xff] %v671
    %736 = vst [vmem:[#allocation2 + $0x20] sm:$0xff] %v672
    %737 = vst [vmem:[#allocation2 + $0x28] sm:$0xff] %v673
    %738 = vst [vmem:[#allocation2 + $0x30] sm:$0xff] %v674
    %739 = vst [vmem:[#allocation2 + $0x38] sm:$0xff] %v675
    %740 = vst [vmem:[#allocation2 + $0x40] sm:$0xff] %v676
    %741 = vst [vmem:[#allocation2 + $0x48] sm:$0xff] %v677
    %742 = vst [vmem:[#allocation2 + $0x50] sm:$0xff] %v678
    %743 = vst [vmem:[#allocation2 + $0x58] sm:$0xff] %v679
    %744 = vst [vmem:[#allocation2 + $0x60] sm:$0xff] %v680
    %745 = vst [vmem:[#allocation2 + $0x68] sm:$0xff] %v681
    %746 = vst [vmem:[#allocation2 + $0x70] sm:$0xff] %v682
    %747 = vst [vmem:[#allocation2 + $0x78] sm:$0xff] %v683
    %748 = vst [vmem:[#allocation2 + $0x80] sm:$0xff] %v684
    %749 = vst [vmem:[#allocation2 + $0x88] sm:$0xff] %v685
    %750 = vst [vmem:[#allocation2 + $0x90] sm:$0xff] %v686
    %751 = vst [vmem:[#allocation2 + $0x98] sm:$0xff] %v687
    %752 = vst [vmem:[#allocation2 + $0xa0] sm:$0xff] %v688
    %753 = vst [vmem:[#allocation2 + $0xa8] sm:$0xff] %v689
    %754 = vst [vmem:[#allocation2 + $0xb0] sm:$0xff] %v690
    %755 = vst [vmem:[#allocation2 + $0xb8] sm:$0xff] %v691
    %756 = vst [vmem:[#allocation2 + $0xc0] sm:$0xff] %v692
    %757 = vst [vmem:[#allocation2 + $0xc8] sm:$0xff] %v693
    %758 = vst [vmem:[#allocation2 + $0xd0] sm:$0xff] %v694
    %759 = vst [vmem:[#allocation2 + $0xd8] sm:$0xff] %v695
    %760 = vst [vmem:[#allocation2 + $0xe0] sm:$0xff] %v696
    %761 = vst [vmem:[#allocation2 + $0xe8] sm:$0xff] %v697
    %762 = vst [vmem:[#allocation2 + $0xf0] sm:$0xff] %v698
    %763 = vst [vmem:[#allocation2 + $0xf8] sm:$0xff] %v699
    %764 = vst [vmem:[#allocation2 + $0x100] sm:$0xff] %v700
    %765 = vst [vmem:[#allocation2 + $0x108] sm:$0xff] %v701
    %766 = vst [vmem:[#allocation2 + $0x110] sm:$0xff] %v702
    %767 = vst [vmem:[#allocation2 + $0x118] sm:$0xff] %v703
    %768 = vst [vmem:[#allocation2 + $0x120] sm:$0xff] %v704
    %769 = vst [vmem:[#allocation2 + $0x128] sm:$0xff] %v705
    %770 = vst [vmem:[#allocation2 + $0x130] sm:$0xff] %v706
    %771 = vst [vmem:[#allocation2 + $0x138] sm:$0xff] %v707
    %772 = vst [vmem:[#allocation2 + $0x140] sm:$0xff] %v708
    %773 = vst [vmem:[#allocation2 + $0x148] sm:$0xff] %v709
    %774 = vst [vmem:[#allocation2 + $0x150] sm:$0xff] %v710
    %775 = vst [vmem:[#allocation2 + $0x158] sm:$0xff] %v711
    %776 = vst [vmem:[#allocation2 + $0x160] sm:$0xff] %v712
    %777 = vst [vmem:[#allocation2 + $0x168] sm:$0xff] %v713
    %778 = vst [vmem:[#allocation2 + $0x170] sm:$0xff] %v714
    %779 = vst [vmem:[#allocation2 + $0x178] sm:$0xff] %v715
    %780 = vst [vmem:[#allocation2 + $0x180] sm:$0xff] %v716
    %781 = vst [vmem:[#allocation2 + $0x188] sm:$0xff] %v717
    %782 = vst [vmem:[#allocation2 + $0x190] sm:$0xff] %v718
    %783 = vst [vmem:[#allocation2 + $0x198] sm:$0xff] %v719
    %784 = vst [vmem:[#allocation2 + $0x1a0] sm:$0xff] %v720
    %785 = vst [vmem:[#allocation2 + $0x1a8] sm:$0xff] %v721
    %786 = vst [vmem:[#allocation2 + $0x1b0] sm:$0xff] %v722
    %787 = vst [vmem:[#allocation2 + $0x1b8] sm:$0xff] %v723
    %788 = vst [vmem:[#allocation2 + $0x1c0] sm:$0xff] %v724
    %789 = vst [vmem:[#allocation2 + $0x1c8] sm:$0xff] %v725
    %790 = vst [vmem:[#allocation2 + $0x1d0] sm:$0xff] %v726
    %791 = vst [vmem:[#allocation2 + $0x1d8] sm:$0xff] %v727
    %792 = vst [vmem:[#allocation2 + $0x1e0] sm:$0xff] %v728
    %793 = vst [vmem:[#allocation2 + $0x1e8] sm:$0xff] %v729
    %794 = vst [vmem:[#allocation2 + $0x1f0] sm:$0xff] %v730
    %795 = vst [vmem:[#allocation2 + $0x1f8] sm:$0xff] %v731
    // Predicated region
    $region38: #{_lambda_.18} parent=1 // pred_check
      %p796 = pneg %p71
    $region39: #{_lambda_.18} parent=1 // pred_check_branch
      %798 = sbr.rel (%p796) target = $region41
    $region40: #{_lambda_.18} parent=1 // pred_region
      %v799 = vld [vmem:[#allocation2] sm:$0xff]
      %v800 = vld [vmem:[#allocation2 + $0x8] sm:$0xff]
      %v801 = vld [vmem:[#allocation2 + $0x10] sm:$0xff]
      %v802 = vld [vmem:[#allocation2 + $0x18] sm:$0xff]
      %v803 = vld [vmem:[#allocation2 + $0x20] sm:$0xff]
      %v804 = vld [vmem:[#allocation2 + $0x28] sm:$0xff]
      %v805 = vld [vmem:[#allocation2 + $0x30] sm:$0xff]
      %v806 = vld [vmem:[#allocation2 + $0x38] sm:$0xff]
      %v807 = vld [vmem:[#allocation2 + $0x40] sm:$0xff]
      %v808 = vld [vmem:[#allocation2 + $0x48] sm:$0xff]
      %v809 = vld [vmem:[#allocation2 + $0x50] sm:$0xff]
      %v810 = vld [vmem:[#allocation2 + $0x58] sm:$0xff]
      %v811 = vld [vmem:[#allocation2 + $0x60] sm:$0xff]
      %v812 = vld [vmem:[#allocation2 + $0x68] sm:$0xff]
      %v813 = vld [vmem:[#allocation2 + $0x70] sm:$0xff]
      %v814 = vld [vmem:[#allocation2 + $0x78] sm:$0xff]
      %v815 = vld [vmem:[#allocation2 + $0x80] sm:$0xff]
      %v816 = vld [vmem:[#allocation2 + $0x88] sm:$0xff]
      %v817 = vld [vmem:[#allocation2 + $0x90] sm:$0xff]
      %v818 = vld [vmem:[#allocation2 + $0x98] sm:$0xff]
      %v819 = vld [vmem:[#allocation2 + $0xa0] sm:$0xff]
      %v820 = vld [vmem:[#allocation2 + $0xa8] sm:$0xff]
      %v821 = vld [vmem:[#allocation2 + $0xb0] sm:$0xff]
      %v822 = vld [vmem:[#allocation2 + $0xb8] sm:$0xff]
      %v823 = vld [vmem:[#allocation2 + $0xc0] sm:$0xff]
      %v824 = vld [vmem:[#allocation2 + $0xc8] sm:$0xff]
      %v825 = vld [vmem:[#allocation2 + $0xd0] sm:$0xff]
      %v826 = vld [vmem:[#allocation2 + $0xd8] sm:$0xff]
      %v827 = vld [vmem:[#allocation2 + $0xe0] sm:$0xff]
      %v828 = vld [vmem:[#allocation2 + $0xe8] sm:$0xff]
      %v829 = vld [vmem:[#allocation2 + $0xf0] sm:$0xff]
      %v830 = vld [vmem:[#allocation2 + $0xf8] sm:$0xff]
      %v831 = vld [vmem:[#allocation2 + $0x100] sm:$0xff]
      %v832 = vld [vmem:[#allocation2 + $0x108] sm:$0xff]
      %v833 = vld [vmem:[#allocation2 + $0x110] sm:$0xff]
      %v834 = vld [vmem:[#allocation2 + $0x118] sm:$0xff]
      %v835 = vld [vmem:[#allocation2 + $0x120] sm:$0xff]
      %v836 = vld [vmem:[#allocation2 + $0x128] sm:$0xff]
      %v837 = vld [vmem:[#allocation2 + $0x130] sm:$0xff]
      %v838 = vld [vmem:[#allocation2 + $0x138] sm:$0xff]
      %v839 = vld [vmem:[#allocation2 + $0x140] sm:$0xff]
      %v840 = vld [vmem:[#allocation2 + $0x148] sm:$0xff]
      %v841 = vld [vmem:[#allocation2 + $0x150] sm:$0xff]
      %v842 = vld [vmem:[#allocation2 + $0x158] sm:$0xff]
      %v843 = vld [vmem:[#allocation2 + $0x160] sm:$0xff]
      %v844 = vld [vmem:[#allocation2 + $0x168] sm:$0xff]
      %v845 = vld [vmem:[#allocation2 + $0x170] sm:$0xff]
      %v846 = vld [vmem:[#allocation2 + $0x178] sm:$0xff]
      %v847 = vld [vmem:[#allocation2 + $0x180] sm:$0xff]
      %v848 = vld [vmem:[#allocation2 + $0x188] sm:$0xff]
      %v849 = vld [vmem:[#allocation2 + $0x190] sm:$0xff]
      %v850 = vld [vmem:[#allocation2 + $0x198] sm:$0xff]
      %v851 = vld [vmem:[#allocation2 + $0x1a0] sm:$0xff]
      %v852 = vld [vmem:[#allocation2 + $0x1a8] sm:$0xff]
      %v853 = vld [vmem:[#allocation2 + $0x1b0] sm:$0xff]
      %v854 = vld [vmem:[#allocation2 + $0x1b8] sm:$0xff]
      %v855 = vld [vmem:[#allocation2 + $0x1c0] sm:$0xff]
      %v856 = vld [vmem:[#allocation2 + $0x1c8] sm:$0xff]
      %v857 = vld [vmem:[#allocation2 + $0x1d0] sm:$0xff]
      %v858 = vld [vmem:[#allocation2 + $0x1d8] sm:$0xff]
      %v859 = vld [vmem:[#allocation2 + $0x1e0] sm:$0xff]
      %v860 = vld [vmem:[#allocation2 + $0x1e8] sm:$0xff]
      %v861 = vld [vmem:[#allocation2 + $0x1f0] sm:$0xff]
      %v862 = vld [vmem:[#allocation2 + $0x1f8] sm:$0xff]
      %v863 = vld [vmem:[#allocation8] sm:$0x1]
      %v865 = vlaneseq
      %v866 = vshrl.u32 %v865, 7
      %v867 = vsub.s32 0, %v866
      %v868 = vrot.slane %v863, %v867
      %v870 = vadd.f32 %v799, %v868
      %v871 = vadd.f32 %v800, %v868
      %v872 = vadd.f32 %v801, %v868
      %v873 = vadd.f32 %v802, %v868
      %v874 = vadd.f32 %v803, %v868
      %v875 = vadd.f32 %v804, %v868
      %v876 = vadd.f32 %v805, %v868
      %v877 = vadd.f32 %v806, %v868
      %v878 = vadd.f32 %v807, %v868
      %v879 = vadd.f32 %v808, %v868
      %v880 = vadd.f32 %v809, %v868
      %v881 = vadd.f32 %v810, %v868
      %v882 = vadd.f32 %v811, %v868
      %v883 = vadd.f32 %v812, %v868
      %v884 = vadd.f32 %v813, %v868
      %v885 = vadd.f32 %v814, %v868
      %v886 = vadd.f32 %v815, %v868
      %v887 = vadd.f32 %v816, %v868
      %v888 = vadd.f32 %v817, %v868
      %v889 = vadd.f32 %v818, %v868
      %v890 = vadd.f32 %v819, %v868
      %v891 = vadd.f32 %v820, %v868
      %v892 = vadd.f32 %v821, %v868
      %v893 = vadd.f32 %v822, %v868
      %v894 = vadd.f32 %v823, %v868
      %v895 = vadd.f32 %v824, %v868
      %v896 = vadd.f32 %v825, %v868
      %v897 = vadd.f32 %v826, %v868
      %v898 = vadd.f32 %v827, %v868
      %v899 = vadd.f32 %v828, %v868
      %v900 = vadd.f32 %v829, %v868
      %v901 = vadd.f32 %v830, %v868
      %v902 = vadd.f32 %v831, %v868
      %v903 = vadd.f32 %v832, %v868
      %v904 = vadd.f32 %v833, %v868
      %v905 = vadd.f32 %v834, %v868
      %v906 = vadd.f32 %v835, %v868
      %v907 = vadd.f32 %v836, %v868
      %v908 = vadd.f32 %v837, %v868
      %v909 = vadd.f32 %v838, %v868
      %v910 = vadd.f32 %v839, %v868
      %v911 = vadd.f32 %v840, %v868
      %v912 = vadd.f32 %v841, %v868
      %v913 = vadd.f32 %v842, %v868
      %v914 = vadd.f32 %v843, %v868
      %v915 = vadd.f32 %v844, %v868
      %v916 = vadd.f32 %v845, %v868
      %v917 = vadd.f32 %v846, %v868
      %v918 = vadd.f32 %v847, %v868
      %v919 = vadd.f32 %v848, %v868
      %v920 = vadd.f32 %v849, %v868
      %v921 = vadd.f32 %v850, %v868
      %v922 = vadd.f32 %v851, %v868
      %v923 = vadd.f32 %v852, %v868
      %v924 = vadd.f32 %v853, %v868
      %v925 = vadd.f32 %v854, %v868
      %v926 = vadd.f32 %v855, %v868
      %v927 = vadd.f32 %v856, %v868
      %v928 = vadd.f32 %v857, %v868
      %v929 = vadd.f32 %v858, %v868
      %v930 = vadd.f32 %v859, %v868
      %v931 = vadd.f32 %v860, %v868
      %v932 = vadd.f32 %v861, %v868
      %v933 = vadd.f32 %v862, %v868
      %v934 = vld [vmem:[#allocation9] sm:$0xff]
      %v935 = vld [vmem:[#allocation9 + $0x8] sm:$0xff]
      %v936 = vld [vmem:[#allocation9 + $0x10] sm:$0xff]
      %v937 = vld [vmem:[#allocation9 + $0x18] sm:$0xff]
      %v938 = vld [vmem:[#allocation9 + $0x20] sm:$0xff]
      %v939 = vld [vmem:[#allocation9 + $0x28] sm:$0xff]
      %v940 = vld [vmem:[#allocation9 + $0x30] sm:$0xff]
      %v941 = vld [vmem:[#allocation9 + $0x38] sm:$0xff]
      %v942 = vld [vmem:[#allocation9 + $0x40] sm:$0xff]
      %v943 = vld [vmem:[#allocation9 + $0x48] sm:$0xff]
      %v944 = vld [vmem:[#allocation9 + $0x50] sm:$0xff]
      %v945 = vld [vmem:[#allocation9 + $0x58] sm:$0xff]
      %v946 = vld [vmem:[#allocation9 + $0x60] sm:$0xff]
      %v947 = vld [vmem:[#allocation9 + $0x68] sm:$0xff]
      %v948 = vld [vmem:[#allocation9 + $0x70] sm:$0xff]
      %v949 = vld [vmem:[#allocation9 + $0x78] sm:$0xff]
      %v950 = vld [vmem:[#allocation9 + $0x80] sm:$0xff]
      %v951 = vld [vmem:[#allocation9 + $0x88] sm:$0xff]
      %v952 = vld [vmem:[#allocation9 + $0x90] sm:$0xff]
      %v953 = vld [vmem:[#allocation9 + $0x98] sm:$0xff]
      %v954 = vld [vmem:[#allocation9 + $0xa0] sm:$0xff]
      %v955 = vld [vmem:[#allocation9 + $0xa8] sm:$0xff]
      %v956 = vld [vmem:[#allocation9 + $0xb0] sm:$0xff]
      %v957 = vld [vmem:[#allocation9 + $0xb8] sm:$0xff]
      %v958 = vld [vmem:[#allocation9 + $0xc0] sm:$0xff]
      %v959 = vld [vmem:[#allocation9 + $0xc8] sm:$0xff]
      %v960 = vld [vmem:[#allocation9 + $0xd0] sm:$0xff]
      %v961 = vld [vmem:[#allocation9 + $0xd8] sm:$0xff]
      %v962 = vld [vmem:[#allocation9 + $0xe0] sm:$0xff]
      %v963 = vld [vmem:[#allocation9 + $0xe8] sm:$0xff]
      %v964 = vld [vmem:[#allocation9 + $0xf0] sm:$0xff]
      %v965 = vld [vmem:[#allocation9 + $0xf8] sm:$0xff]
      %v966 = vld [vmem:[#allocation9 + $0x100] sm:$0xff]
      %v967 = vld [vmem:[#allocation9 + $0x108] sm:$0xff]
      %v968 = vld [vmem:[#allocation9 + $0x110] sm:$0xff]
      %v969 = vld [vmem:[#allocation9 + $0x118] sm:$0xff]
      %v970 = vld [vmem:[#allocation9 + $0x120] sm:$0xff]
      %v971 = vld [vmem:[#allocation9 + $0x128] sm:$0xff]
      %v972 = vld [vmem:[#allocation9 + $0x130] sm:$0xff]
      %v973 = vld [vmem:[#allocation9 + $0x138] sm:$0xff]
      %v974 = vld [vmem:[#allocation9 + $0x140] sm:$0xff]
      %v975 = vld [vmem:[#allocation9 + $0x148] sm:$0xff]
      %v976 = vld [vmem:[#allocation9 + $0x150] sm:$0xff]
      %v977 = vld [vmem:[#allocation9 + $0x158] sm:$0xff]
      %v978 = vld [vmem:[#allocation9 + $0x160] sm:$0xff]
      %v979 = vld [vmem:[#allocation9 + $0x168] sm:$0xff]
      %v980 = vld [vmem:[#allocation9 + $0x170] sm:$0xff]
      %v981 = vld [vmem:[#allocation9 + $0x178] sm:$0xff]
      %v982 = vld [vmem:[#allocation9 + $0x180] sm:$0xff]
      %v983 = vld [vmem:[#allocation9 + $0x188] sm:$0xff]
      %v984 = vld [vmem:[#allocation9 + $0x190] sm:$0xff]
      %v985 = vld [vmem:[#allocation9 + $0x198] sm:$0xff]
      %v986 = vld [vmem:[#allocation9 + $0x1a0] sm:$0xff]
      %v987 = vld [vmem:[#allocation9 + $0x1a8] sm:$0xff]
      %v988 = vld [vmem:[#allocation9 + $0x1b0] sm:$0xff]
      %v989 = vld [vmem:[#allocation9 + $0x1b8] sm:$0xff]
      %v990 = vld [vmem:[#allocation9 + $0x1c0] sm:$0xff]
      %v991 = vld [vmem:[#allocation9 + $0x1c8] sm:$0xff]
      %v992 = vld [vmem:[#allocation9 + $0x1d0] sm:$0xff]
      %v993 = vld [vmem:[#allocation9 + $0x1d8] sm:$0xff]
      %v994 = vld [vmem:[#allocation9 + $0x1e0] sm:$0xff]
      %v995 = vld [vmem:[#allocation9 + $0x1e8] sm:$0xff]
      %v996 = vld [vmem:[#allocation9 + $0x1f0] sm:$0xff]
      %v997 = vld [vmem:[#allocation9 + $0x1f8] sm:$0xff]
      %v998 = vadd.f32 %v870, %v934
      %v999 = vadd.f32 %v871, %v935
      %v1000 = vadd.f32 %v872, %v936
      %v1001 = vadd.f32 %v873, %v937
      %v1002 = vadd.f32 %v874, %v938
      %v1003 = vadd.f32 %v875, %v939
      %v1004 = vadd.f32 %v876, %v940
      %v1005 = vadd.f32 %v877, %v941
      %v1006 = vadd.f32 %v878, %v942
      %v1007 = vadd.f32 %v879, %v943
      %v1008 = vadd.f32 %v880, %v944
      %v1009 = vadd.f32 %v881, %v945
      %v1010 = vadd.f32 %v882, %v946
      %v1011 = vadd.f32 %v883, %v947
      %v1012 = vadd.f32 %v884, %v948
      %v1013 = vadd.f32 %v885, %v949
      %v1014 = vadd.f32 %v886, %v950
      %v1015 = vadd.f32 %v887, %v951
      %v1016 = vadd.f32 %v888, %v952
      %v1017 = vadd.f32 %v889, %v953
      %v1018 = vadd.f32 %v890, %v954
      %v1019 = vadd.f32 %v891, %v955
      %v1020 = vadd.f32 %v892, %v956
      %v1021 = vadd.f32 %v893, %v957
      %v1022 = vadd.f32 %v894, %v958
      %v1023 = vadd.f32 %v895, %v959
      %v1024 = vadd.f32 %v896, %v960
      %v1025 = vadd.f32 %v897, %v961
      %v1026 = vadd.f32 %v898, %v962
      %v1027 = vadd.f32 %v899, %v963
      %v1028 = vadd.f32 %v900, %v964
      %v1029 = vadd.f32 %v901, %v965
      %v1030 = vadd.f32 %v902, %v966
      %v1031 = vadd.f32 %v903, %v967
      %v1032 = vadd.f32 %v904, %v968
      %v1033 = vadd.f32 %v905, %v969
      %v1034 = vadd.f32 %v906, %v970
      %v1035 = vadd.f32 %v907, %v971
      %v1036 = vadd.f32 %v908, %v972
      %v1037 = vadd.f32 %v909, %v973
      %v1038 = vadd.f32 %v910, %v974
      %v1039 = vadd.f32 %v911, %v975
      %v1040 = vadd.f32 %v912, %v976
      %v1041 = vadd.f32 %v913, %v977
      %v1042 = vadd.f32 %v914, %v978
      %v1043 = vadd.f32 %v915, %v979
      %v1044 = vadd.f32 %v916, %v980
      %v1045 = vadd.f32 %v917, %v981
      %v1046 = vadd.f32 %v918, %v982
      %v1047 = vadd.f32 %v919, %v983
      %v1048 = vadd.f32 %v920, %v984
      %v1049 = vadd.f32 %v921, %v985
      %v1050 = vadd.f32 %v922, %v986
      %v1051 = vadd.f32 %v923, %v987
      %v1052 = vadd.f32 %v924, %v988
      %v1053 = vadd.f32 %v925, %v989
      %v1054 = vadd.f32 %v926, %v990
      %v1055 = vadd.f32 %v927, %v991
      %v1056 = vadd.f32 %v928, %v992
      %v1057 = vadd.f32 %v929, %v993
      %v1058 = vadd.f32 %v930, %v994
      %v1059 = vadd.f32 %v931, %v995
      %v1060 = vadd.f32 %v932, %v996
      %v1061 = vadd.f32 %v933, %v997
      %v1062 = vmul.f32 %v998, 0.70710677
      %v1063 = vmul.f32 %v999, 0.70710677
      %v1064 = vmul.f32 %v1000, 0.70710677
      %v1065 = vmul.f32 %v1001, 0.70710677
      %v1066 = vmul.f32 %v1002, 0.70710677
      %v1067 = vmul.f32 %v1003, 0.70710677
      %v1068 = vmul.f32 %v1004, 0.70710677
      %v1069 = vmul.f32 %v1005, 0.70710677
      %v1070 = vmul.f32 %v1006, 0.70710677
      %v1071 = vmul.f32 %v1007, 0.70710677
      %v1072 = vmul.f32 %v1008, 0.70710677
      %v1073 = vmul.f32 %v1009, 0.70710677
      %v1074 = vmul.f32 %v1010, 0.70710677
      %v1075 = vmul.f32 %v1011, 0.70710677
      %v1076 = vmul.f32 %v1012, 0.70710677
      %v1077 = vmul.f32 %v1013, 0.70710677
      %v1078 = vmul.f32 %v1014, 0.70710677
      %v1079 = vmul.f32 %v1015, 0.70710677
      %v1080 = vmul.f32 %v1016, 0.70710677
      %v1081 = vmul.f32 %v1017, 0.70710677
      %v1082 = vmul.f32 %v1018, 0.70710677
      %v1083 = vmul.f32 %v1019, 0.70710677
      %v1084 = vmul.f32 %v1020, 0.70710677
      %v1085 = vmul.f32 %v1021, 0.70710677
      %v1086 = vmul.f32 %v1022, 0.70710677
      %v1087 = vmul.f32 %v1023, 0.70710677
      %v1088 = vmul.f32 %v1024, 0.70710677
      %v1089 = vmul.f32 %v1025, 0.70710677
      %v1090 = vmul.f32 %v1026, 0.70710677
      %v1091 = vmul.f32 %v1027, 0.70710677
      %v1092 = vmul.f32 %v1028, 0.70710677
      %v1093 = vmul.f32 %v1029, 0.70710677
      %v1094 = vmul.f32 %v1030, 0.70710677
      %v1095 = vmul.f32 %v1031, 0.70710677
      %v1096 = vmul.f32 %v1032, 0.70710677
      %v1097 = vmul.f32 %v1033, 0.70710677
      %v1098 = vmul.f32 %v1034, 0.70710677
      %v1099 = vmul.f32 %v1035, 0.70710677
      %v1100 = vmul.f32 %v1036, 0.70710677
      %v1101 = vmul.f32 %v1037, 0.70710677
      %v1102 = vmul.f32 %v1038, 0.70710677
      %v1103 = vmul.f32 %v1039, 0.70710677
      %v1104 = vmul.f32 %v1040, 0.70710677
      %v1105 = vmul.f32 %v1041, 0.70710677
      %v1106 = vmul.f32 %v1042, 0.70710677
      %v1107 = vmul.f32 %v1043, 0.70710677
      %v1108 = vmul.f32 %v1044, 0.70710677
      %v1109 = vmul.f32 %v1045, 0.70710677
      %v1110 = vmul.f32 %v1046, 0.70710677
      %v1111 = vmul.f32 %v1047, 0.70710677
      %v1112 = vmul.f32 %v1048, 0.70710677
      %v1113 = vmul.f32 %v1049, 0.70710677
      %v1114 = vmul.f32 %v1050, 0.70710677
      %v1115 = vmul.f32 %v1051, 0.70710677
      %v1116 = vmul.f32 %v1052, 0.70710677
      %v1117 = vmul.f32 %v1053, 0.70710677
      %v1118 = vmul.f32 %v1054, 0.70710677
      %v1119 = vmul.f32 %v1055, 0.70710677
      %v1120 = vmul.f32 %v1056, 0.70710677
      %v1121 = vmul.f32 %v1057, 0.70710677
      %v1122 = vmul.f32 %v1058, 0.70710677
      %v1123 = vmul.f32 %v1059, 0.70710677
      %v1124 = vmul.f32 %v1060, 0.70710677
      %v1125 = vmul.f32 %v1061, 0.70710677
      %1126 = vst [vmem:[#allocation11] sm:$0xff] %v1062
      %1127 = vst [vmem:[#allocation11 + $0x8] sm:$0xff] %v1063
      %1128 = vst [vmem:[#allocation11 + $0x10] sm:$0xff] %v1064
      %1129 = vst [vmem:[#allocation11 + $0x18] sm:$0xff] %v1065
      %1130 = vst [vmem:[#allocation11 + $0x20] sm:$0xff] %v1066
      %1131 = vst [vmem:[#allocation11 + $0x28] sm:$0xff] %v1067
      %1132 = vst [vmem:[#allocation11 + $0x30] sm:$0xff] %v1068
      %1133 = vst [vmem:[#allocation11 + $0x38] sm:$0xff] %v1069
      %1134 = vst [vmem:[#allocation11 + $0x40] sm:$0xff] %v1070
      %1135 = vst [vmem:[#allocation11 + $0x48] sm:$0xff] %v1071
      %1136 = vst [vmem:[#allocation11 + $0x50] sm:$0xff] %v1072
      %1137 = vst [vmem:[#allocation11 + $0x58] sm:$0xff] %v1073
      %1138 = vst [vmem:[#allocation11 + $0x60] sm:$0xff] %v1074
      %1139 = vst [vmem:[#allocation11 + $0x68] sm:$0xff] %v1075
      %1140 = vst [vmem:[#allocation11 + $0x70] sm:$0xff] %v1076
      %1141 = vst [vmem:[#allocation11 + $0x78] sm:$0xff] %v1077
      %1142 = vst [vmem:[#allocation11 + $0x80] sm:$0xff] %v1078
      %1143 = vst [vmem:[#allocation11 + $0x88] sm:$0xff] %v1079
      %1144 = vst [vmem:[#allocation11 + $0x90] sm:$0xff] %v1080
      %1145 = vst [vmem:[#allocation11 + $0x98] sm:$0xff] %v1081
      %1146 = vst [vmem:[#allocation11 + $0xa0] sm:$0xff] %v1082
      %1147 = vst [vmem:[#allocation11 + $0xa8] sm:$0xff] %v1083
      %1148 = vst [vmem:[#allocation11 + $0xb0] sm:$0xff] %v1084
      %1149 = vst [vmem:[#allocation11 + $0xb8] sm:$0xff] %v1085
      %1150 = vst [vmem:[#allocation11 + $0xc0] sm:$0xff] %v1086
      %1151 = vst [vmem:[#allocation11 + $0xc8] sm:$0xff] %v1087
      %1152 = vst [vmem:[#allocation11 + $0xd0] sm:$0xff] %v1088
      %1153 = vst [vmem:[#allocation11 + $0xd8] sm:$0xff] %v1089
      %1154 = vst [vmem:[#allocation11 + $0xe0] sm:$0xff] %v1090
      %1155 = vst [vmem:[#allocation11 + $0xe8] sm:$0xff] %v1091
      %1156 = vst [vmem:[#allocation11 + $0xf0] sm:$0xff] %v1092
      %1157 = vst [vmem:[#allocation11 + $0xf8] sm:$0xff] %v1093
      %1158 = vst [vmem:[#allocation11 + $0x100] sm:$0xff] %v1094
      %1159 = vst [vmem:[#allocation11 + $0x108] sm:$0xff] %v1095
      %1160 = vst [vmem:[#allocation11 + $0x110] sm:$0xff] %v1096
      %1161 = vst [vmem:[#allocation11 + $0x118] sm:$0xff] %v1097
      %1162 = vst [vmem:[#allocation11 + $0x120] sm:$0xff] %v1098
      %1163 = vst [vmem:[#allocation11 + $0x128] sm:$0xff] %v1099
      %1164 = vst [vmem:[#allocation11 + $0x130] sm:$0xff] %v1100
      %1165 = vst [vmem:[#allocation11 + $0x138] sm:$0xff] %v1101
      %1166 = vst [vmem:[#allocation11 + $0x140] sm:$0xff] %v1102
      %1167 = vst [vmem:[#allocation11 + $0x148] sm:$0xff] %v1103
      %1168 = vst [vmem:[#allocation11 + $0x150] sm:$0xff] %v1104
      %1169 = vst [vmem:[#allocation11 + $0x158] sm:$0xff] %v1105
      %1170 = vst [vmem:[#allocation11 + $0x160] sm:$0xff] %v1106
      %1171 = vst [vmem:[#allocation11 + $0x168] sm:$0xff] %v1107
      %1172 = vst [vmem:[#allocation11 + $0x170] sm:$0xff] %v1108
      %1173 = vst [vmem:[#allocation11 + $0x178] sm:$0xff] %v1109
      %1174 = vst [vmem:[#allocation11 + $0x180] sm:$0xff] %v1110
      %1175 = vst [vmem:[#allocation11 + $0x188] sm:$0xff] %v1111
      %1176 = vst [vmem:[#allocation11 + $0x190] sm:$0xff] %v1112
      %1177 = vst [vmem:[#allocation11 + $0x198] sm:$0xff] %v1113
      %1178 = vst [vmem:[#allocation11 + $0x1a0] sm:$0xff] %v1114
      %1179 = vst [vmem:[#allocation11 + $0x1a8] sm:$0xff] %v1115
      %1180 = vst [vmem:[#allocation11 + $0x1b0] sm:$0xff] %v1116
      %1181 = vst [vmem:[#allocation11 + $0x1b8] sm:$0xff] %v1117
      %1182 = vst [vmem:[#allocation11 + $0x1c0] sm:$0xff] %v1118
      %1183 = vst [vmem:[#allocation11 + $0x1c8] sm:$0xff] %v1119
      %1184 = vst [vmem:[#allocation11 + $0x1d0] sm:$0xff] %v1120
      %1185 = vst [vmem:[#allocation11 + $0x1d8] sm:$0xff] %v1121
      %1186 = vst [vmem:[#allocation11 + $0x1e0] sm:$0xff] %v1122
      %1187 = vst [vmem:[#allocation11 + $0x1e8] sm:$0xff] %v1123
      %1188 = vst [vmem:[#allocation11 + $0x1f0] sm:$0xff] %v1124
      %1189 = vst [vmem:[#allocation11 + $0x1f8] sm:$0xff] %v1125
    $region41: #{_lambda_.18} parent=1 // pred_fallthru
      _
    // Predicated region
    $region42: #{_lambda_.18} parent=1 // pred_check
      _
    $region43: #{_lambda_.18} parent=1 // pred_check_branch
      %1191 = sbr.rel (0) target = $region45
    $region44: #{_lambda_.18} parent=1 // pred_region
      %s1193 = ssub.s32 8192, 8192
      %1194 = vsyncadd [#allocation5], %s1193
      %s1195 = sshll.u32 [#allocation11], 4
      %s1196 = int_to_ptr.vmem [resolvable:$true] %s1195
      %1201 = dma.vmem_to_hbm [thread:$0]  %s1196, 8192, %s4, [#allocation5], 128, 128, 8
    $region45: #{_lambda_.18} parent=1 // pred_fallthru
      _
    // Predicated region
    $region46: #{_lambda_.18} parent=1 // pred_check
      _
    $region47: #{_lambda_.18} parent=1 // pred_check_branch
      %1203 = sbr.rel (0) target = $region49
    $region48: #{_lambda_.18} parent=1 // pred_region
      %1204 = dma.done [#allocation5], 8192
    $region49: #{_lambda_.18} parent=1 // pred_fallthru
      _
    %1205 = vsyncpa [#allocation4], 1
    %1206 = vsyncpa [#allocation7], 1
    %1207 = vsyncpa [#allocation10], 1
    %1208 = vsyncpa [#allocation5], 1

// kernel: _lambda_.21
$region0: #{_lambda_.21}
  #allocation0 [shape = 'u32[]', space=smem, size = 0x4, offset = 0x4, fixed_abs, tag = 'smem constant byte address 0x4 - core index']
  #allocation1 [shape = 'u32[144,128]{1,0:T(1,128)}', space=vmem, size = 0x12000, scoped, tag = 'internal scratch']
  %s0 = inlined_call_operand.hbm [shape: f32[16,2,8,2,128], index: 0, kind: input, shape index: {}]
  %s1 = inlined_call_operand.hbm [shape: f32[16,8,1,128], index: 1, kind: output, shape index: {}]
  %s2 = sld [smem:[#allocation0]]
  $region41: #{_lambda_.21} parent=0
    _
  %s4 = ssub.s32 1, %s2
  %s5 = scalar_select 0, %s4, %s2
  $region1: #{_lambda_.21} parent=0
    #allocation2 [shape = 'u8[32768]{0}', space=vmem, size = 0x8000, scoped, tag = 'input window, operand 0']
    #allocation3 [shape = 's32[2]{0}', space=sflag, size = 0x8, scoped, tag = 'scoped memory for _lambda_.21']
    #allocation4 [shape = 's32[2]{0}', space=sflag, size = 0x8, scoped, tag = 'scoped memory for _lambda_.21']
    #allocation5 [shape = 'u8[8192]{0}', space=vmem, size = 0x2000, scoped, tag = 'output window, operand 0']
    %6 = vsyncpa [#allocation3], 0
    %s7 = scalar_lea.sflag [#allocation3], 1
    %8 = vsyncpa %s7, 0
    %9 = vsyncpa [#allocation4], 0
    %s10 = scalar_lea.sflag [#allocation4], 1
    %11 = vsyncpa %s10, 0
    loop: start=0, step=1, limit=18
    $region2: #{_lambda_.21} parent=1 // loop_pre_header
      _
    $region3: #{_lambda_.21} parent=1 // loop_header
      %s13 = sphi 0, %s17
      %p14 = scmp.ge.s32.totalorder %s13, 18
      %s23 = sphi 0, %s25
      %s26 = sphi 0, %s23
      %s27 = sphi 0, %s26
      %s43 = sphi 0, %s27
      %s49 = sphi 0, %s51
      %s52 = sphi 0, %s49
      %s53 = sphi 0, %s52
      %s69 = sphi 0, %s53
    $region4: #{_lambda_.21} parent=1 // loop_header_branch
      %16 = sbr.rel (%p14) target = $region8
    $region5: #{_lambda_.21} parent=1 // loop_body
      %s18 = ssub.s32 %s13, 1
      %s19 = ssub.s32 %s13, 2
      %s20 = sadd.s32 %s13, 1
      %s21 = ssub.s32 %s13, %s20
      %p22 = scmp.eq.s32.totalorder %s21, 0
      %s24 = sadd.s32 %s23, 1
      %s25 = scalar_select %p22, %s23, %s24
      %p28 = pneg %p22
      %p29 = scmp.eq.s32.totalorder %s13, 15
      %p30 = por %p28, %p29
      %p31 = scmp.ne.s32.totalorder %s23, %s26
      %p32 = scmp.eq.s32.totalorder %s13, 0
      %p33 = por %p31, %p32
      %p34 = scmp.ne.s32.totalorder %s23, %s26
      %p35 = scmp.eq.s32.totalorder %s18, 15
      %p36 = por %p34, %p35
      %p37 = scmp.ne.s32.totalorder %s26, %s27
      %p38 = scmp.eq.s32.totalorder %s18, 0
      %p39 = por %p37, %p38
      %p40 = scmp.ne.s32.totalorder %s26, %s27
      %p41 = scmp.eq.s32.totalorder %s19, 15
      %p42 = por %p40, %p41
      %p44 = scmp.ne.s32.totalorder %s27, %s43
      %p45 = scmp.eq.s32.totalorder %s19, 0
      %p46 = por %p44, %p45
      %s47 = ssub.s32 %s13, %s20
      %p48 = scmp.eq.s32.totalorder %s47, 0
      %s50 = sadd.s32 %s49, 1
      %s51 = scalar_select %p48, %s49, %s50
      %p54 = pneg %p48
      %p55 = scmp.eq.s32.totalorder %s13, 15
      %p56 = por %p54, %p55
      %p57 = scmp.ne.s32.totalorder %s49, %s52
      %p58 = scmp.eq.s32.totalorder %s13, 0
      %p59 = por %p57, %p58
      %p60 = scmp.ne.s32.totalorder %s49, %s52
      %p61 = scmp.eq.s32.totalorder %s18, 15
      %p62 = por %p60, %p61
      %p63 = scmp.ne.s32.totalorder %s52, %s53
      %p64 = scmp.eq.s32.totalorder %s18, 0
      %p65 = por %p63, %p64
      %p66 = scmp.ne.s32.totalorder %s52, %s53
      %p67 = scmp.eq.s32.totalorder %s19, 15
      %p68 = por %p66, %p67
      %p70 = scmp.ne.s32.totalorder %s53, %s69
      %p71 = scmp.eq.s32.totalorder %s19, 0
      %p72 = por %p70, %p71
      %p73 = scmp.le.s32.totalorder 1, %s13
      %p74 = scmp.lt.s32.totalorder %s13, 17
      %p75 = pnand %p73, %p74
      %p76 = pneg %p75
      // Predicated region
      $region9: #{_lambda_.21} parent=5 // pred_check
        _
      $region10: #{_lambda_.21} parent=5 // pred_check_branch
        %78 = sbr.rel (%p75) target = $region12
      $region11: #{_lambda_.21} parent=5 // pred_region
        %s79 = ssub.s32 %s13, 1
      $region12: #{_lambda_.21} parent=5 // pred_fallthru
        _
      %p80 = scmp.lt.s32.totalorder %s13, 16
      // Predicated region
      $region13: #{_lambda_.21} parent=5 // pred_check
        %p81 = pneg %p80
      $region14: #{_lambda_.21} parent=5 // pred_check_branch
        %83 = sbr.rel (%p81) target = $region16
      $region15: #{_lambda_.21} parent=5 // pred_region
        // Predicated region
        $region17: #{_lambda_.21} parent=15 // pred_check
          %p84 = pneg %p33
        $region18: #{_lambda_.21} parent=15 // pred_check_branch
          %86 = sbr.rel (%p84) target = $region20
        $region19: #{_lambda_.21} parent=15 // pred_region
          %s87 = sand.u32 %s23, 1
          %s88 = scalar_lea.sflag [#allocation3], %s87
          %s89 = sand.u32 %s23, 1
          %s90 = smul.addr %s89, 32
          %s91 = scalar_lea.vmem [#allocation2], %s90
          %s93 = ssub.s32 512, 512
          %94 = vsyncadd %s88, %s93
          %s95 = smul.addr %s13, 16
          %s96 = smul.addr %s95, 32
          %s97 = scalar_lea.hbm %s0, %s96
          %s98 = sshll.u32 %s91, 4
          %s99 = int_to_ptr.vmem [resolvable:$true] %s98
          %104 = dma.hbm_to_vmem [thread:$0]  %s97, 512, %s99, %s88, 32, 32, 2
        $region20: #{_lambda_.21} parent=15 // pred_fallthru
          _
      $region16: #{_lambda_.21} parent=5 // pred_fallthru
        _
      %p105 = scmp.le.s32.totalorder 1, %s13
      %p106 = scmp.lt.s32.totalorder %s13, 17
      %p107 = pnand %p105, %p106
      %p108 = pneg %p107
      // Predicated region
      $region21: #{_lambda_.21} parent=5 // pred_check
        _
      $region22: #{_lambda_.21} parent=5 // pred_check_branch
        %110 = sbr.rel (%p107) target = $region24
      $region23: #{_lambda_.21} parent=5 // pred_region
        %s111 = ssub.s32 %s13, 1
        %s112 = sand.u32 %s26, 1
        %s113 = scalar_lea.sflag [#allocation3], %s112
        %s114 = sand.u32 %s26, 1
        %s115 = smul.addr %s114, 32
        %s116 = scalar_lea.vmem [#allocation2], %s115
        // Predicated region
        $region25: #{_lambda_.21} parent=23 // pred_check
          %p117 = pneg %p39
        $region26: #{_lambda_.21} parent=23 // pred_check_branch
          %119 = sbr.rel (%p117) target = $region28
        $region27: #{_lambda_.21} parent=23 // pred_region
          %120 = dma.done %s113, 512
        $region28: #{_lambda_.21} parent=23 // pred_fallthru
          _
        %s121 = sand.u32 %s26, 1
        %s122 = scalar_lea.sflag [#allocation3], %s121
        %s123 = sand.u32 %s26, 1
        %s124 = smul.addr %s123, 32
        %s125 = scalar_lea.vmem [#allocation2], %s124
        %p126 = pneg %p39
        %p127 = pneg %p36
        %p128 = pneg %p65
        %p129 = pneg %p62
        %s130 = sand.u32 %s52, 1
        %s131 = scalar_lea.sflag [#allocation4], %s130
        %s132 = sand.u32 %s52, 1
        %s133 = smul.addr %s132, 8
        %s134 = scalar_lea.vmem [#allocation5], %s133
        %v135 = vld [vmem:[%s116] sm:$0x3]
        %v136 = vld [vmem:[%s116 + $0x2] sm:$0x3]
        %v137 = vld [vmem:[%s116 + $0x4] sm:$0x3]
        %v138 = vld [vmem:[%s116 + $0x6] sm:$0x3]
        %v139 = vld [vmem:[%s116 + $0x8] sm:$0x3]
        %v140 = vld [vmem:[%s116 + $0xa] sm:$0x3]
        %v141 = vld [vmem:[%s116 + $0xc] sm:$0x3]
        %v142 = vld [vmem:[%s116 + $0xe] sm:$0x3]
        %v143 = vld [vmem:[%s116 + $0x10] sm:$0x3]
        %v144 = vld [vmem:[%s116 + $0x12] sm:$0x3]
        %v145 = vld [vmem:[%s116 + $0x14] sm:$0x3]
        %v146 = vld [vmem:[%s116 + $0x16] sm:$0x3]
        %v147 = vld [vmem:[%s116 + $0x18] sm:$0x3]
        %v148 = vld [vmem:[%s116 + $0x1a] sm:$0x3]
        %v149 = vld [vmem:[%s116 + $0x1c] sm:$0x3]
        %v150 = vld [vmem:[%s116 + $0x1e] sm:$0x3]
        %v151 = vadd.f32 %v135, %v143
        %v152 = vadd.f32 %v136, %v144
        %v153 = vadd.f32 %v137, %v145
        %v154 = vadd.f32 %v138, %v146
        %v155 = vadd.f32 %v139, %v147
        %v156 = vadd.f32 %v140, %v148
        %v157 = vadd.f32 %v141, %v149
        %v158 = vadd.f32 %v142, %v150
        %v167 = vrot.slane %v151, 1
        %v168 = vrot.slane %v152, 1
        %v169 = vrot.slane %v153, 1
        %v170 = vrot.slane %v154, 1
        %v171 = vrot.slane %v155, 1
        %v172 = vrot.slane %v156, 1
        %v173 = vrot.slane %v157, 1
        %v174 = vrot.slane %v158, 1
        %v183 = vadd.f32 %v151, %v167
        %v184 = vadd.f32 %v152, %v168
        %v185 = vadd.f32 %v153, %v169
        %v186 = vadd.f32 %v154, %v170
        %v187 = vadd.f32 %v155, %v171
        %v188 = vadd.f32 %v156, %v172
        %v189 = vadd.f32 %v157, %v173
        %v190 = vadd.f32 %v158, %v174
        %v191 = vmul.f32 %v183, 0.25
        %v192 = vmul.f32 %v184, 0.25
        %v193 = vmul.f32 %v185, 0.25
        %v194 = vmul.f32 %v186, 0.25
        %v195 = vmul.f32 %v187, 0.25
        %v196 = vmul.f32 %v188, 0.25
        %v197 = vmul.f32 %v189, 0.25
        %v198 = vmul.f32 %v190, 0.25
        %vm199 = vcmp.ge.f32.partialorder %v191, 0.0
        %vm200 = vcmp.ge.f32.partialorder %v192, 0.0
        %vm201 = vcmp.ge.f32.partialorder %v193, 0.0
        %vm202 = vcmp.ge.f32.partialorder %v194, 0.0
        %vm203 = vcmp.ge.f32.partialorder %v195, 0.0
        %vm204 = vcmp.ge.f32.partialorder %v196, 0.0
        %vm205 = vcmp.ge.f32.partialorder %v197, 0.0
        %vm206 = vcmp.ge.f32.partialorder %v198, 0.0
        %v207 = vmul.f32 %v191, 0.2
        %v208 = vmul.f32 %v192, 0.2
        %v209 = vmul.f32 %v193, 0.2
        %v210 = vmul.f32 %v194, 0.2
        %v211 = vmul.f32 %v195, 0.2
        %v212 = vmul.f32 %v196, 0.2
        %v213 = vmul.f32 %v197, 0.2
        %v214 = vmul.f32 %v198, 0.2
        %v215 = vsel %vm199, %v191, %v207
        %v216 = vsel %vm200, %v192, %v208
        %v217 = vsel %vm201, %v193, %v209
        %v218 = vsel %vm202, %v194, %v210
        %v219 = vsel %vm203, %v195, %v211
        %v220 = vsel %vm204, %v196, %v212
        %v221 = vsel %vm205, %v197, %v213
        %v222 = vsel %vm206, %v198, %v214
        %223 = vst [vmem:[%s134] sm:$0x1] %v215
        %224 = vst [vmem:[%s134 + $0x1] sm:$0x1] %v216
        %225 = vst [vmem:[%s134 + $0x2] sm:$0x1] %v217
        %226 = vst [vmem:[%s134 + $0x3] sm:$0x1] %v218
        %227 = vst [vmem:[%s134 + $0x4] sm:$0x1] %v219
        %228 = vst [vmem:[%s134 + $0x5] sm:$0x1] %v220
        %229 = vst [vmem:[%s134 + $0x6] sm:$0x1] %v221
        %230 = vst [vmem:[%s134 + $0x7] sm:$0x1] %v222
        %s231 = sand.u32 %s52, 1
        %s232 = scalar_lea.sflag [#allocation4], %s231
        %s233 = sand.u32 %s52, 1
        %s234 = smul.addr %s233, 8
        %s235 = scalar_lea.vmem [#allocation5], %s234
        // Predicated region
        $region29: #{_lambda_.21} parent=23 // pred_check
          %p236 = pneg %p62
        $region30: #{_lambda_.21} parent=23 // pred_check_branch
          %238 = sbr.rel (%p236) target = $region32
        $region31: #{_lambda_.21} parent=23 // pred_region
          %s240 = ssub.s32 128, 128
          %241 = vsyncadd %s232, %s240
          %s242 = smul.addr %s18, 8
          %s243 = smul.addr %s242, 16
          %s244 = scalar_lea.hbm %s1, %s243
          %s245 = sshll.u32 %s235, 4
          %s246 = int_to_ptr.vmem [resolvable:$true] %s245
          %251 = dma.vmem_to_hbm [thread:$0]  %s246, 128, %s244, %s232, 16, 16, 1
        $region32: #{_lambda_.21} parent=23 // pred_fallthru
          _
      $region24: #{_lambda_.21} parent=5 // pred_fallthru
        _
      %p252 = scmp.le.s32.totalorder 2, %s13
      // Predicated region
      $region33: #{_lambda_.21} parent=5 // pred_check
        %p253 = pneg %p252
      $region34: #{_lambda_.21} parent=5 // pred_check_branch
        %255 = sbr.rel (%p253) target = $region36
      $region35: #{_lambda_.21} parent=5 // pred_region
        %s256 = ssub.s32 %s13, 2
        // Predicated region
        $region37: #{_lambda_.21} parent=35 // pred_check
          %p257 = pneg %p68
        $region38: #{_lambda_.21} parent=35 // pred_check_branch
          %259 = sbr.rel (%p257) target = $region40
        $region39: #{_lambda_.21} parent=35 // pred_region
          %s260 = sand.u32 %s53, 1
          %s261 = scalar_lea.sflag [#allocation4], %s260
          %s262 = sand.u32 %s53, 1
          %s263 = smul.addr %s262, 8
          %s264 = scalar_lea.vmem [#allocation5], %s263
          %265 = dma.done %s261, 128
        $region40: #{_lambda_.21} parent=35 // pred_fallthru
          _
      $region36: #{_lambda_.21} parent=5 // pred_fallthru
        _
    $region6: #{_lambda_.21} parent=1 // loop_footer
      %s17 = sadd.s32 1, %s13
    $region7: #{_lambda_.21} parent=1 // loop_footer_branch
      %12 = sbr.rel target = $region3
    $region8: #{_lambda_.21} parent=1 // loop_exit
      _
    %266 = vsyncpa [#allocation3], 1
    %s267 = scalar_lea.sflag [#allocation3], 1
    %268 = vsyncpa %s267, 1
    %269 = vsyncpa [#allocation4], 1
    %s270 = scalar_lea.sflag [#allocation4], 1
    %271 = vsyncpa %s270, 1

// kernel: _lambda_.19
$region0: #{_lambda_.19}
  #allocation0 [shape = 'u32[]', space=smem, size = 0x4, offset = 0x4, fixed_abs, tag = 'smem constant byte address 0x4 - core index']
  #allocation1 [shape = 'u32[144,128]{1,0:T(1,128)}', space=vmem, size = 0x12000, scoped, tag = 'internal scratch']
  %s0 = inlined_call_operand.hbm [shape: f32[16,2,8,2,128], index: 0, kind: input, shape index: {}]
  %s1 = inlined_call_operand.hbm [shape: f32[16,8,1,128], index: 1, kind: output, shape index: {}]
  %s2 = sld [smem:[#allocation0]]
  $region41: #{_lambda_.19} parent=0
    _
  %s4 = ssub.s32 1, %s2
  %s5 = scalar_select 0, %s4, %s2
  $region1: #{_lambda_.19} parent=0
    #allocation2 [shape = 'u8[32768]{0}', space=vmem, size = 0x8000, scoped, tag = 'input window, operand 0']
    #allocation3 [shape = 's32[2]{0}', space=sflag, size = 0x8, scoped, tag = 'scoped memory for _lambda_.19']
    #allocation4 [shape = 's32[2]{0}', space=sflag, size = 0x8, scoped, tag = 'scoped memory for _lambda_.19']
    #allocation5 [shape = 'u8[8192]{0}', space=vmem, size = 0x2000, scoped, tag = 'output window, operand 0']
    %6 = vsyncpa [#allocation3], 0
    %s7 = scalar_lea.sflag [#allocation3], 1
    %8 = vsyncpa %s7, 0
    %9 = vsyncpa [#allocation4], 0
    %s10 = scalar_lea.sflag [#allocation4], 1
    %11 = vsyncpa %s10, 0
    loop: start=0, step=1, limit=18
    $region2: #{_lambda_.19} parent=1 // loop_pre_header
      _
    $region3: #{_lambda_.19} parent=1 // loop_header
      %s13 = sphi 0, %s17
      %p14 = scmp.ge.s32.totalorder %s13, 18
      %s23 = sphi 0, %s25
      %s26 = sphi 0, %s23
      %s27 = sphi 0, %s26
      %s43 = sphi 0, %s27
      %s49 = sphi 0, %s51
      %s52 = sphi 0, %s49
      %s53 = sphi 0, %s52
      %s69 = sphi 0, %s53
    $region4: #{_lambda_.19} parent=1 // loop_header_branch
      %16 = sbr.rel (%p14) target = $region8
    $region5: #{_lambda_.19} parent=1 // loop_body
      %s18 = ssub.s32 %s13, 1
      %s19 = ssub.s32 %s13, 2
      %s20 = sadd.s32 %s13, 1
      %s21 = ssub.s32 %s13, %s20
      %p22 = scmp.eq.s32.totalorder %s21, 0
      %s24 = sadd.s32 %s23, 1
      %s25 = scalar_select %p22, %s23, %s24
      %p28 = pneg %p22
      %p29 = scmp.eq.s32.totalorder %s13, 15
      %p30 = por %p28, %p29
      %p31 = scmp.ne.s32.totalorder %s23, %s26
      %p32 = scmp.eq.s32.totalorder %s13, 0
      %p33 = por %p31, %p32
      %p34 = scmp.ne.s32.totalorder %s23, %s26
      %p35 = scmp.eq.s32.totalorder %s18, 15
      %p36 = por %p34, %p35
      %p37 = scmp.ne.s32.totalorder %s26, %s27
      %p38 = scmp.eq.s32.totalorder %s18, 0
      %p39 = por %p37, %p38
      %p40 = scmp.ne.s32.totalorder %s26, %s27
      %p41 = scmp.eq.s32.totalorder %s19, 15
      %p42 = por %p40, %p41
      %p44 = scmp.ne.s32.totalorder %s27, %s43
      %p45 = scmp.eq.s32.totalorder %s19, 0
      %p46 = por %p44, %p45
      %s47 = ssub.s32 %s13, %s20
      %p48 = scmp.eq.s32.totalorder %s47, 0
      %s50 = sadd.s32 %s49, 1
      %s51 = scalar_select %p48, %s49, %s50
      %p54 = pneg %p48
      %p55 = scmp.eq.s32.totalorder %s13, 15
      %p56 = por %p54, %p55
      %p57 = scmp.ne.s32.totalorder %s49, %s52
      %p58 = scmp.eq.s32.totalorder %s13, 0
      %p59 = por %p57, %p58
      %p60 = scmp.ne.s32.totalorder %s49, %s52
      %p61 = scmp.eq.s32.totalorder %s18, 15
      %p62 = por %p60, %p61
      %p63 = scmp.ne.s32.totalorder %s52, %s53
      %p64 = scmp.eq.s32.totalorder %s18, 0
      %p65 = por %p63, %p64
      %p66 = scmp.ne.s32.totalorder %s52, %s53
      %p67 = scmp.eq.s32.totalorder %s19, 15
      %p68 = por %p66, %p67
      %p70 = scmp.ne.s32.totalorder %s53, %s69
      %p71 = scmp.eq.s32.totalorder %s19, 0
      %p72 = por %p70, %p71
      %p73 = scmp.le.s32.totalorder 1, %s13
      %p74 = scmp.lt.s32.totalorder %s13, 17
      %p75 = pnand %p73, %p74
      %p76 = pneg %p75
      // Predicated region
      $region9: #{_lambda_.19} parent=5 // pred_check
        _
      $region10: #{_lambda_.19} parent=5 // pred_check_branch
        %78 = sbr.rel (%p75) target = $region12
      $region11: #{_lambda_.19} parent=5 // pred_region
        %s79 = ssub.s32 %s13, 1
      $region12: #{_lambda_.19} parent=5 // pred_fallthru
        _
      %p80 = scmp.lt.s32.totalorder %s13, 16
      // Predicated region
      $region13: #{_lambda_.19} parent=5 // pred_check
        %p81 = pneg %p80
      $region14: #{_lambda_.19} parent=5 // pred_check_branch
        %83 = sbr.rel (%p81) target = $region16
      $region15: #{_lambda_.19} parent=5 // pred_region
        // Predicated region
        $region17: #{_lambda_.19} parent=15 // pred_check
          %p84 = pneg %p33
        $region18: #{_lambda_.19} parent=15 // pred_check_branch
          %86 = sbr.rel (%p84) target = $region20
        $region19: #{_lambda_.19} parent=15 // pred_region
          %s87 = sand.u32 %s23, 1
          %s88 = scalar_lea.sflag [#allocation3], %s87
          %s89 = sand.u32 %s23, 1
          %s90 = smul.addr %s89, 32
          %s91 = scalar_lea.vmem [#allocation2], %s90
          %s93 = ssub.s32 512, 512
          %94 = vsyncadd %s88, %s93
          %s95 = smul.addr %s13, 16
          %s96 = smul.addr %s95, 32
          %s97 = scalar_lea.hbm %s0, %s96
          %s98 = sshll.u32 %s91, 4
          %s99 = int_to_ptr.vmem [resolvable:$true] %s98
          %104 = dma.hbm_to_vmem [thread:$0]  %s97, 512, %s99, %s88, 32, 32, 2
        $region20: #{_lambda_.19} parent=15 // pred_fallthru
          _
      $region16: #{_lambda_.19} parent=5 // pred_fallthru
        _
      %p105 = scmp.le.s32.totalorder 1, %s13
      %p106 = scmp.lt.s32.totalorder %s13, 17
      %p107 = pnand %p105, %p106
      %p108 = pneg %p107
      // Predicated region
      $region21: #{_lambda_.19} parent=5 // pred_check
        _
      $region22: #{_lambda_.19} parent=5 // pred_check_branch
        %110 = sbr.rel (%p107) target = $region24
      $region23: #{_lambda_.19} parent=5 // pred_region
        %s111 = ssub.s32 %s13, 1
        %s112 = sand.u32 %s26, 1
        %s113 = scalar_lea.sflag [#allocation3], %s112
        %s114 = sand.u32 %s26, 1
        %s115 = smul.addr %s114, 32
        %s116 = scalar_lea.vmem [#allocation2], %s115
        // Predicated region
        $region25: #{_lambda_.19} parent=23 // pred_check
          %p117 = pneg %p39
        $region26: #{_lambda_.19} parent=23 // pred_check_branch
          %119 = sbr.rel (%p117) target = $region28
        $region27: #{_lambda_.19} parent=23 // pred_region
          %120 = dma.done %s113, 512
        $region28: #{_lambda_.19} parent=23 // pred_fallthru
          _
        %s121 = sand.u32 %s26, 1
        %s122 = scalar_lea.sflag [#allocation3], %s121
        %s123 = sand.u32 %s26, 1
        %s124 = smul.addr %s123, 32
        %s125 = scalar_lea.vmem [#allocation2], %s124
        %p126 = pneg %p39
        %p127 = pneg %p36
        %p128 = pneg %p65
        %p129 = pneg %p62
        %s130 = sand.u32 %s52, 1
        %s131 = scalar_lea.sflag [#allocation4], %s130
        %s132 = sand.u32 %s52, 1
        %s133 = smul.addr %s132, 8
        %s134 = scalar_lea.vmem [#allocation5], %s133
        %v135 = vld [vmem:[%s116] sm:$0x3]
        %v136 = vld [vmem:[%s116 + $0x2] sm:$0x3]
        %v137 = vld [vmem:[%s116 + $0x4] sm:$0x3]
        %v138 = vld [vmem:[%s116 + $0x6] sm:$0x3]
        %v139 = vld [vmem:[%s116 + $0x8] sm:$0x3]
        %v140 = vld [vmem:[%s116 + $0xa] sm:$0x3]
        %v141 = vld [vmem:[%s116 + $0xc] sm:$0x3]
        %v142 = vld [vmem:[%s116 + $0xe] sm:$0x3]
        %v143 = vld [vmem:[%s116 + $0x10] sm:$0x3]
        %v144 = vld [vmem:[%s116 + $0x12] sm:$0x3]
        %v145 = vld [vmem:[%s116 + $0x14] sm:$0x3]
        %v146 = vld [vmem:[%s116 + $0x16] sm:$0x3]
        %v147 = vld [vmem:[%s116 + $0x18] sm:$0x3]
        %v148 = vld [vmem:[%s116 + $0x1a] sm:$0x3]
        %v149 = vld [vmem:[%s116 + $0x1c] sm:$0x3]
        %v150 = vld [vmem:[%s116 + $0x1e] sm:$0x3]
        %v151 = vadd.f32 %v135, %v143
        %v152 = vadd.f32 %v136, %v144
        %v153 = vadd.f32 %v137, %v145
        %v154 = vadd.f32 %v138, %v146
        %v155 = vadd.f32 %v139, %v147
        %v156 = vadd.f32 %v140, %v148
        %v157 = vadd.f32 %v141, %v149
        %v158 = vadd.f32 %v142, %v150
        %v167 = vrot.slane %v151, 1
        %v168 = vrot.slane %v152, 1
        %v169 = vrot.slane %v153, 1
        %v170 = vrot.slane %v154, 1
        %v171 = vrot.slane %v155, 1
        %v172 = vrot.slane %v156, 1
        %v173 = vrot.slane %v157, 1
        %v174 = vrot.slane %v158, 1
        %v183 = vadd.f32 %v151, %v167
        %v184 = vadd.f32 %v152, %v168
        %v185 = vadd.f32 %v153, %v169
        %v186 = vadd.f32 %v154, %v170
        %v187 = vadd.f32 %v155, %v171
        %v188 = vadd.f32 %v156, %v172
        %v189 = vadd.f32 %v157, %v173
        %v190 = vadd.f32 %v158, %v174
        %v191 = vmul.f32 %v183, 0.25
        %v192 = vmul.f32 %v184, 0.25
        %v193 = vmul.f32 %v185, 0.25
        %v194 = vmul.f32 %v186, 0.25
        %v195 = vmul.f32 %v187, 0.25
        %v196 = vmul.f32 %v188, 0.25
        %v197 = vmul.f32 %v189, 0.25
        %v198 = vmul.f32 %v190, 0.25
        %199 = vst [vmem:[%s134] sm:$0x1] %v191
        %200 = vst [vmem:[%s134 + $0x1] sm:$0x1] %v192
        %201 = vst [vmem:[%s134 + $0x2] sm:$0x1] %v193
        %202 = vst [vmem:[%s134 + $0x3] sm:$0x1] %v194
        %203 = vst [vmem:[%s134 + $0x4] sm:$0x1] %v195
        %204 = vst [vmem:[%s134 + $0x5] sm:$0x1] %v196
        %205 = vst [vmem:[%s134 + $0x6] sm:$0x1] %v197
        %206 = vst [vmem:[%s134 + $0x7] sm:$0x1] %v198
        %s207 = sand.u32 %s52, 1
        %s208 = scalar_lea.sflag [#allocation4], %s207
        %s209 = sand.u32 %s52, 1
        %s210 = smul.addr %s209, 8
        %s211 = scalar_lea.vmem [#allocation5], %s210
        // Predicated region
        $region29: #{_lambda_.19} parent=23 // pred_check
          %p212 = pneg %p62
        $region30: #{_lambda_.19} parent=23 // pred_check_branch
          %214 = sbr.rel (%p212) target = $region32
        $region31: #{_lambda_.19} parent=23 // pred_region
          %s216 = ssub.s32 128, 128
          %217 = vsyncadd %s208, %s216
          %s218 = smul.addr %s18, 8
          %s219 = smul.addr %s218, 16
          %s220 = scalar_lea.hbm %s1, %s219
          %s221 = sshll.u32 %s211, 4
          %s222 = int_to_ptr.vmem [resolvable:$true] %s221
          %227 = dma.vmem_to_hbm [thread:$0]  %s222, 128, %s220, %s208, 16, 16, 1
        $region32: #{_lambda_.19} parent=23 // pred_fallthru
          _
      $region24: #{_lambda_.19} parent=5 // pred_fallthru
        _
      %p228 = scmp.le.s32.totalorder 2, %s13
      // Predicated region
      $region33: #{_lambda_.19} parent=5 // pred_check
        %p229 = pneg %p228
      $region34: #{_lambda_.19} parent=5 // pred_check_branch
        %231 = sbr.rel (%p229) target = $region36
      $region35: #{_lambda_.19} parent=5 // pred_region
        %s232 = ssub.s32 %s13, 2
        // Predicated region
        $region37: #{_lambda_.19} parent=35 // pred_check
          %p233 = pneg %p68
        $region38: #{_lambda_.19} parent=35 // pred_check_branch
          %235 = sbr.rel (%p233) target = $region40
        $region39: #{_lambda_.19} parent=35 // pred_region
          %s236 = sand.u32 %s53, 1
          %s237 = scalar_lea.sflag [#allocation4], %s236
          %s238 = sand.u32 %s53, 1
          %s239 = smul.addr %s238, 8
          %s240 = scalar_lea.vmem [#allocation5], %s239
          %241 = dma.done %s237, 128
        $region40: #{_lambda_.19} parent=35 // pred_fallthru
          _
      $region36: #{_lambda_.19} parent=5 // pred_fallthru
        _
    $region6: #{_lambda_.19} parent=1 // loop_footer
      %s17 = sadd.s32 1, %s13
    $region7: #{_lambda_.19} parent=1 // loop_footer_branch
      %12 = sbr.rel target = $region3
    $region8: #{_lambda_.19} parent=1 // loop_exit
      _
    %242 = vsyncpa [#allocation3], 1
    %s243 = scalar_lea.sflag [#allocation3], 1
    %244 = vsyncpa %s243, 1
    %245 = vsyncpa [#allocation4], 1
    %s246 = scalar_lea.sflag [#allocation4], 1
    %247 = vsyncpa %s246, 1

// kernel: _lambda_.20
$region0: #{_lambda_.20}
  #allocation0 [shape = 'u32[]', space=smem, size = 0x4, offset = 0x4, fixed_abs, tag = 'smem constant byte address 0x4 - core index']
  #allocation1 [shape = 'u32[144,128]{1,0:T(1,128)}', space=vmem, size = 0x12000, scoped, tag = 'internal scratch']
  #allocation2 [shape = 'f32[512,128]{1,0:T(8,128)}', space=vmem, size = 0x40000, scoped, tag = 'scratch operand']
  %s0 = inlined_call_operand.hbm [shape: f32[512,256], index: 0, kind: input, shape index: {}]
  %s1 = inlined_call_operand.hbm [shape: f32[256,128], index: 1, kind: input, shape index: {}]
  %s2 = inlined_call_operand.hbm [shape: f32[1,128], index: 2, kind: input, shape index: {}]
  %s3 = inlined_call_operand.hbm [shape: f32[512,128], index: 3, kind: output, shape index: {}]
  %s4 = sld [smem:[#allocation0]]
  $region42: #{_lambda_.20} parent=0
    _
  %s6 = ssub.s32 1, %s4
  %s7 = scalar_select 0, %s6, %s4
  $region1: #{_lambda_.20} parent=0
    #allocation3 [shape = 'u8[524288]{0}', space=vmem, size = 0x80000, scoped, tag = 'input window, operand 0, single buffered']
    #allocation4 [shape = 's32[1]{0}', space=sflag, size = 0x4, scoped, tag = 'scoped memory for _lambda_.20']
    #allocation5 [shape = 's32[1]{0}', space=sflag, size = 0x4, scoped, tag = 'scoped memory for _lambda_.20']
    #allocation6 [shape = 'u8[131072]{0}', space=vmem, size = 0x20000, scoped, tag = 'input window, operand 1, single buffered']
    #allocation7 [shape = 's32[1]{0}', space=sflag, size = 0x4, scoped, tag = 'scoped memory for _lambda_.20']
    #allocation8 [shape = 'u8[512]{0}', space=vmem, size = 0x400, scoped, tag = 'input window, operand 2, single buffered']
    #allocation9 [shape = 'u8[262144]{0}', space=vmem, size = 0x40000, scoped, tag = 'output window, operand 0, single buffered']
    %8 = vsyncpa [#allocation4], 0
    %9 = vsyncpa [#allocation7], 0
    %10 = vsyncpa [#allocation5], 0
    // Predicated region
    $region2: #{_lambda_.20} parent=1 // pred_check
      _
    $region3: #{_lambda_.20} parent=1 // pred_check_branch
      %12 = sbr.rel (0) target = $region5
    $region4: #{_lambda_.20} parent=1 // pred_region
      %s14 = ssub.s32 16384, 16384
      %15 = vsyncadd [#allocation4], %s14
      %s16 = sshll.u32 [#allocation3], 4
      %s17 = int_to_ptr.vmem [resolvable:$true] %s16
      %22 = dma.hbm_to_vmem [thread:$0]  %s0, 16384, %s17, [#allocation4], 256, 256, 16
    $region5: #{_lambda_.20} parent=1 // pred_fallthru
      _
    // Predicated region
    $region6: #{_lambda_.20} parent=1 // pred_check
      _
    $region7: #{_lambda_.20} parent=1 // pred_check_branch
      %24 = sbr.rel (0) target = $region9
    $region8: #{_lambda_.20} parent=1 // pred_region
      %s26 = ssub.s32 4096, 4096
      %27 = vsyncadd [#allocation7], %s26
      %s28 = sshll.u32 [#allocation6], 4
      %s29 = int_to_ptr.vmem [resolvable:$true] %s28
      %34 = dma.hbm_to_vmem [thread:$0]  %s1, 4096, %s29, [#allocation7], 128, 128, 8
    $region9: #{_lambda_.20} parent=1 // pred_fallthru
      _
    // Predicated region
    $region10: #{_lambda_.20} parent=1 // pred_check
      _
    $region11: #{_lambda_.20} parent=1 // pred_check_branch
      %36 = sbr.rel (0) target = $region13
    $region12: #{_lambda_.20} parent=1 // pred_region
      %s38 = ssub.s32 16, 16
      %39 = vsyncadd [#allocation7], %s38
      %s41 = sshll.u32 [#allocation8], 4
      %s42 = int_to_ptr.vmem [resolvable:$true] %s41
      %44 = dma.hbm_to_vmem [thread:$0]  %s2, 16, %s42, [#allocation7]
    $region13: #{_lambda_.20} parent=1 // pred_fallthru
      _
    // Predicated region
    $region14: #{_lambda_.20} parent=1 // pred_check
      _
    $region15: #{_lambda_.20} parent=1 // pred_check_branch
      %46 = sbr.rel (0) target = $region17
    $region16: #{_lambda_.20} parent=1 // pred_region
      %47 = dma.done [#allocation4], 16384
    $region17: #{_lambda_.20} parent=1 // pred_fallthru
      _
    // Predicated region
    $region18: #{_lambda_.20} parent=1 // pred_check
      _
    $region19: #{_lambda_.20} parent=1 // pred_check_branch
      %49 = sbr.rel (0) target = $region21
    $region20: #{_lambda_.20} parent=1 // pred_region
      %50 = dma.done [#allocation7], 4096
    $region21: #{_lambda_.20} parent=1 // pred_fallthru
      _
    // Predicated region
    $region22: #{_lambda_.20} parent=1 // pred_check
      _
    $region23: #{_lambda_.20} parent=1 // pred_check_branch
      %52 = sbr.rel (0) target = $region25
    $region24: #{_lambda_.20} parent=1 // pred_region
      %53 = dma.done [#allocation7], 16
    $region25: #{_lambda_.20} parent=1 // pred_fallthru
      _
    %p54 = scmp.eq.s32.totalorder 0, 0
    // Predicated region
    $region26: #{_lambda_.20} parent=1 // pred_check
      %p55 = pneg %p54
    $region27: #{_lambda_.20} parent=1 // pred_check_branch
      %57 = sbr.rel (%p55) target = $region29
    $region28: #{_lambda_.20} parent=1 // pred_region
      %58 = vst [vmem:[#allocation2] sm:$0xff] 0.0
      %59 = vst [vmem:[#allocation2 + $0x8] sm:$0xff] 0.0
      %60 = vst [vmem:[#allocation2 + $0x10] sm:$0xff] 0.0
      %61 = vst [vmem:[#allocation2 + $0x18] sm:$0xff] 0.0
      %62 = vst [vmem:[#allocation2 + $0x20] sm:$0xff] 0.0
      %63 = vst [vmem:[#allocation2 + $0x28] sm:$0xff] 0.0
      %64 = vst [vmem:[#allocation2 + $0x30] sm:$0xff] 0.0
      %65 = vst [vmem:[#allocation2 + $0x38] sm:$0xff] 0.0
      %66 = vst [vmem:[#allocation2 + $0x40] sm:$0xff] 0.0
      %67 = vst [vmem:[#allocation2 + $0x48] sm:$0xff] 0.0
      %68 = vst [vmem:[#allocation2 + $0x50] sm:$0xff] 0.0
      %69 = vst [vmem:[#allocation2 + $0x58] sm:$0xff] 0.0
      %70 = vst [vmem:[#allocation2 + $0x60] sm:$0xff] 0.0
      %71 = vst [vmem:[#allocation2 + $0x68] sm:$0xff] 0.0
      %72 = vst [vmem:[#allocation2 + $0x70] sm:$0xff] 0.0
      %73 = vst [vmem:[#allocation2 + $0x78] sm:$0xff] 0.0
      %74 = vst [vmem:[#allocation2 + $0x80] sm:$0xff] 0.0
      %75 = vst [vmem:[#allocation2 + $0x88] sm:$0xff] 0.0
      %76 = vst [vmem:[#allocation2 + $0x90] sm:$0xff] 0.0
      %77 = vst [vmem:[#allocation2 + $0x98] sm:$0xff] 0.0
      %78 = vst [vmem:[#allocation2 + $0xa0] sm:$0xff] 0.0
      %79 = vst [vmem:[#allocation2 + $0xa8] sm:$0xff] 0.0
      %80 = vst [vmem:[#allocation2 + $0xb0] sm:$0xff] 0.0
      %81 = vst [vmem:[#allocation2 + $0xb8] sm:$0xff] 0.0
      %82 = vst [vmem:[#allocation2 + $0xc0] sm:$0xff] 0.0
      %83 = vst [vmem:[#allocation2 + $0xc8] sm:$0xff] 0.0
      %84 = vst [vmem:[#allocation2 + $0xd0] sm:$0xff] 0.0
      %85 = vst [vmem:[#allocation2 + $0xd8] sm:$0xff] 0.0
      %86 = vst [vmem:[#allocation2 + $0xe0] sm:$0xff] 0.0
      %87 = vst [vmem:[#allocation2 + $0xe8] sm:$0xff] 0.0
      %88 = vst [vmem:[#allocation2 + $0xf0] sm:$0xff] 0.0
      %89 = vst [vmem:[#allocation2 + $0xf8] sm:$0xff] 0.0
      %90 = vst [vmem:[#allocation2 + $0x100] sm:$0xff] 0.0
      %91 = vst [vmem:[#allocation2 + $0x108] sm:$0xff] 0.0
      %92 = vst [vmem:[#allocation2 + $0x110] sm:$0xff] 0.0
      %93 = vst [vmem:[#allocation2 + $0x118] sm:$0xff] 0.0
      %94 = vst [vmem:[#allocation2 + $0x120] sm:$0xff] 0.0
      %95 = vst [vmem:[#allocation2 + $0x128] sm:$0xff] 0.0
      %96 = vst [vmem:[#allocation2 + $0x130] sm:$0xff] 0.0
      %97 = vst [vmem:[#allocation2 + $0x138] sm:$0xff] 0.0
      %98 = vst [vmem:[#allocation2 + $0x140] sm:$0xff] 0.0
      %99 = vst [vmem:[#allocation2 + $0x148] sm:$0xff] 0.0
      %100 = vst [vmem:[#allocation2 + $0x150] sm:$0xff] 0.0
      %101 = vst [vmem:[#allocation2 + $0x158] sm:$0xff] 0.0
      %102 = vst [vmem:[#allocation2 + $0x160] sm:$0xff] 0.0
      %103 = vst [vmem:[#allocation2 + $0x168] sm:$0xff] 0.0
      %104 = vst [vmem:[#allocation2 + $0x170] sm:$0xff] 0.0
      %105 = vst [vmem:[#allocation2 + $0x178] sm:$0xff] 0.0
      %106 = vst [vmem:[#allocation2 + $0x180] sm:$0xff] 0.0
      %107 = vst [vmem:[#allocation2 + $0x188] sm:$0xff] 0.0
      %108 = vst [vmem:[#allocation2 + $0x190] sm:$0xff] 0.0
      %109 = vst [vmem:[#allocation2 + $0x198] sm:$0xff] 0.0
      %110 = vst [vmem:[#allocation2 + $0x1a0] sm:$0xff] 0.0
      %111 = vst [vmem:[#allocation2 + $0x1a8] sm:$0xff] 0.0
      %112 = vst [vmem:[#allocation2 + $0x1b0] sm:$0xff] 0.0
      %113 = vst [vmem:[#allocation2 + $0x1b8] sm:$0xff] 0.0
      %114 = vst [vmem:[#allocation2 + $0x1c0] sm:$0xff] 0.0
      %115 = vst [vmem:[#allocation2 + $0x1c8] sm:$0xff] 0.0
      %116 = vst [vmem:[#allocation2 + $0x1d0] sm:$0xff] 0.0
      %117 = vst [vmem:[#allocation2 + $0x1d8] sm:$0xff] 0.0
      %118 = vst [vmem:[#allocation2 + $0x1e0] sm:$0xff] 0.0
      %119 = vst [vmem:[#allocation2 + $0x1e8] sm:$0xff] 0.0
      %120 = vst [vmem:[#allocation2 + $0x1f0] sm:$0xff] 0.0
      %121 = vst [vmem:[#allocation2 + $0x1f8] sm:$0xff] 0.0
    $region29: #{_lambda_.20} parent=1 // pred_fallthru
      _
    %v122 = vld [vmem:[#allocation3] sm:$0xff]
    %v123 = vld [vmem:[#allocation3 + $0x8] sm:$0xff]
    %v124 = vld [vmem:[#allocation3 + $0x10] sm:$0xff]
    %v125 = vld [vmem:[#allocation3 + $0x18] sm:$0xff]
    %v126 = vld [vmem:[#allocation3 + $0x20] sm:$0xff]
    %v127 = vld [vmem:[#allocation3 + $0x28] sm:$0xff]
    %v128 = vld [vmem:[#allocation3 + $0x30] sm:$0xff]
    %v129 = vld [vmem:[#allocation3 + $0x38] sm:$0xff]
    %v130 = vld [vmem:[#allocation3 + $0x40] sm:$0xff]
    %v131 = vld [vmem:[#allocation3 + $0x48] sm:$0xff]
    %v132 = vld [vmem:[#allocation3 + $0x50] sm:$0xff]
    %v133 = vld [vmem:[#allocation3 + $0x58] sm:$0xff]
    %v134 = vld [vmem:[#allocation3 + $0x60] sm:$0xff]
    %v135 = vld [vmem:[#allocation3 + $0x68] sm:$0xff]
    %v136 = vld [vmem:[#allocation3 + $0x70] sm:$0xff]
    %v137 = vld [vmem:[#allocation3 + $0x78] sm:$0xff]
    %v138 = vld [vmem:[#allocation3 + $0x80] sm:$0xff]
    %v139 = vld [vmem:[#allocation3 + $0x88] sm:$0xff]
    %v140 = vld [vmem:[#allocation3 + $0x90] sm:$0xff]
    %v141 = vld [vmem:[#allocation3 + $0x98] sm:$0xff]
    %v142 = vld [vmem:[#allocation3 + $0xa0] sm:$0xff]
    %v143 = vld [vmem:[#allocation3 + $0xa8] sm:$0xff]
    %v144 = vld [vmem:[#allocation3 + $0xb0] sm:$0xff]
    %v145 = vld [vmem:[#allocation3 + $0xb8] sm:$0xff]
    %v146 = vld [vmem:[#allocation3 + $0xc0] sm:$0xff]
    %v147 = vld [vmem:[#allocation3 + $0xc8] sm:$0xff]
    %v148 = vld [vmem:[#allocation3 + $0xd0] sm:$0xff]
    %v149 = vld [vmem:[#allocation3 + $0xd8] sm:$0xff]
    %v150 = vld [vmem:[#allocation3 + $0xe0] sm:$0xff]
    %v151 = vld [vmem:[#allocation3 + $0xe8] sm:$0xff]
    %v152 = vld [vmem:[#allocation3 + $0xf0] sm:$0xff]
    %v153 = vld [vmem:[#allocation3 + $0xf8] sm:$0xff]
    %v154 = vld [vmem:[#allocation3 + $0x100] sm:$0xff]
    %v155 = vld [vmem:[#allocation3 + $0x108] sm:$0xff]
    %v156 = vld [vmem:[#allocation3 + $0x110] sm:$0xff]
    %v157 = vld [vmem:[#allocation3 + $0x118] sm:$0xff]
    %v158 = vld [vmem:[#allocation3 + $0x120] sm:$0xff]
    %v159 = vld [vmem:[#allocation3 + $0x128] sm:$0xff]
    %v160 = vld [vmem:[#allocation3 + $0x130] sm:$0xff]
    %v161 = vld [vmem:[#allocation3 + $0x138] sm:$0xff]
    %v162 = vld [vmem:[#allocation3 + $0x140] sm:$0xff]
    %v163 = vld [vmem:[#allocation3 + $0x148] sm:$0xff]
    %v164 = vld [vmem:[#allocation3 + $0x150] sm:$0xff]
    %v165 = vld [vmem:[#allocation3 + $0x158] sm:$0xff]
    %v166 = vld [vmem:[#allocation3 + $0x160] sm:$0xff]
    %v167 = vld [vmem:[#allocation3 + $0x168] sm:$0xff]
    %v168 = vld [vmem:[#allocation3 + $0x170] sm:$0xff]
    %v169 = vld [vmem:[#allocation3 + $0x178] sm:$0xff]
    %v170 = vld [vmem:[#allocation3 + $0x180] sm:$0xff]
    %v171 = vld [vmem:[#allocation3 + $0x188] sm:$0xff]
    %v172 = vld [vmem:[#allocation3 + $0x190] sm:$0xff]
    %v173 = vld [vmem:[#allocation3 + $0x198] sm:$0xff]
    %v174 = vld [vmem:[#allocation3 + $0x1a0] sm:$0xff]
    %v175 = vld [vmem:[#allocation3 + $0x1a8] sm:$0xff]
    %v176 = vld [vmem:[#allocation3 + $0x1b0] sm:$0xff]
    %v177 = vld [vmem:[#allocation3 + $0x1b8] sm:$0xff]
    %v178 = vld [vmem:[#allocation3 + $0x1c0] sm:$0xff]
    %v179 = vld [vmem:[#allocation3 + $0x1c8] sm:$0xff]
    %v180 = vld [vmem:[#allocation3 + $0x1d0] sm:$0xff]
    %v181 = vld [vmem:[#allocation3 + $0x1d8] sm:$0xff]
    %v182 = vld [vmem:[#allocation3 + $0x1e0] sm:$0xff]
    %v183 = vld [vmem:[#allocation3 + $0x1e8] sm:$0xff]
    %v184 = vld [vmem:[#allocation3 + $0x1f0] sm:$0xff]
    %v185 = vld [vmem:[#allocation3 + $0x1f8] sm:$0xff]
    %v186 = vld [vmem:[#allocation3 + $0x200] sm:$0xff]
    %v187 = vld [vmem:[#allocation3 + $0x208] sm:$0xff]
    %v188 = vld [vmem:[#allocation3 + $0x210] sm:$0xff]
    %v189 = vld [vmem:[#allocation3 + $0x218] sm:$0xff]
    %v190 = vld [vmem:[#allocation3 + $0x220] sm:$0xff]
    %v191 = vld [vmem:[#allocation3 + $0x228] sm:$0xff]
    %v192 = vld [vmem:[#allocation3 + $0x230] sm:$0xff]
    %v193 = vld [vmem:[#allocation3 + $0x238] sm:$0xff]
    %v194 = vld [vmem:[#allocation3 + $0x240] sm:$0xff]
    %v195 = vld [vmem:[#allocation3 + $0x248] sm:$0xff]
    %v196 = vld [vmem:[#allocation3 + $0x250] sm:$0xff]
    %v197 = vld [vmem:[#allocation3 + $0x258] sm:$0xff]
    %v198 = vld [vmem:[#allocation3 + $0x260] sm:$0xff]
    %v199 = vld [vmem:[#allocation3 + $0x268] sm:$0xff]
    %v200 = vld [vmem:[#allocation3 + $0x270] sm:$0xff]
    %v201 = vld [vmem:[#allocation3 + $0x278] sm:$0xff]
    %v202 = vld [vmem:[#allocation3 + $0x280] sm:$0xff]
    %v203 = vld [vmem:[#allocation3 + $0x288] sm:$0xff]
    %v204 = vld [vmem:[#allocation3 + $0x290] sm:$0xff]
    %v205 = vld [vmem:[#allocation3 + $0x298] sm:$0xff]
    %v206 = vld [vmem:[#allocation3 + $0x2a0] sm:$0xff]
    %v207 = vld [vmem:[#allocation3 + $0x2a8] sm:$0xff]
    %v208 = vld [vmem:[#allocation3 + $0x2b0] sm:$0xff]
    %v209 = vld [vmem:[#allocation3 + $0x2b8] sm:$0xff]
    %v210 = vld [vmem:[#allocation3 + $0x2c0] sm:$0xff]
    %v211 = vld [vmem:[#allocation3 + $0x2c8] sm:$0xff]
    %v212 = vld [vmem:[#allocation3 + $0x2d0] sm:$0xff]
    %v213 = vld [vmem:[#allocation3 + $0x2d8] sm:$0xff]
    %v214 = vld [vmem:[#allocation3 + $0x2e0] sm:$0xff]
    %v215 = vld [vmem:[#allocation3 + $0x2e8] sm:$0xff]
    %v216 = vld [vmem:[#allocation3 + $0x2f0] sm:$0xff]
    %v217 = vld [vmem:[#allocation3 + $0x2f8] sm:$0xff]
    %v218 = vld [vmem:[#allocation3 + $0x300] sm:$0xff]
    %v219 = vld [vmem:[#allocation3 + $0x308] sm:$0xff]
    %v220 = vld [vmem:[#allocation3 + $0x310] sm:$0xff]
    %v221 = vld [vmem:[#allocation3 + $0x318] sm:$0xff]
    %v222 = vld [vmem:[#allocation3 + $0x320] sm:$0xff]
    %v223 = vld [vmem:[#allocation3 + $0x328] sm:$0xff]
    %v224 = vld [vmem:[#allocation3 + $0x330] sm:$0xff]
    %v225 = vld [vmem:[#allocation3 + $0x338] sm:$0xff]
    %v226 = vld [vmem:[#allocation3 + $0x340] sm:$0xff]
    %v227 = vld [vmem:[#allocation3 + $0x348] sm:$0xff]
    %v228 = vld [vmem:[#allocation3 + $0x350] sm:$0xff]
    %v229 = vld [vmem:[#allocation3 + $0x358] sm:$0xff]
    %v230 = vld [vmem:[#allocation3 + $0x360] sm:$0xff]
    %v231 = vld [vmem:[#allocation3 + $0x368] sm:$0xff]
    %v232 = vld [vmem:[#allocation3 + $0x370] sm:$0xff]
    %v233 = vld [vmem:[#allocation3 + $0x378] sm:$0xff]
    %v234 = vld [vmem:[#allocation3 + $0x380] sm:$0xff]
    %v235 = vld [vmem:[#allocation3 + $0x388] sm:$0xff]
    %v236 = vld [vmem:[#allocation3 + $0x390] sm:$0xff]
    %v237 = vld [vmem:[#allocation3 + $0x398] sm:$0xff]
    %v238 = vld [vmem:[#allocation3 + $0x3a0] sm:$0xff]
    %v239 = vld [vmem:[#allocation3 + $0x3a8] sm:$0xff]
    %v240 = vld [vmem:[#allocation3 + $0x3b0] sm:$0xff]
    %v241 = vld [vmem:[#allocation3 + $0x3b8] sm:$0xff]
    %v242 = vld [vmem:[#allocation3 + $0x3c0] sm:$0xff]
    %v243 = vld [vmem:[#allocation3 + $0x3c8] sm:$0xff]
    %v244 = vld [vmem:[#allocation3 + $0x3d0] sm:$0xff]
    %v245 = vld [vmem:[#allocation3 + $0x3d8] sm:$0xff]
    %v246 = vld [vmem:[#allocation3 + $0x3e0] sm:$0xff]
    %v247 = vld [vmem:[#allocation3 + $0x3e8] sm:$0xff]
    %v248 = vld [vmem:[#allocation3 + $0x3f0] sm:$0xff]
    %v249 = vld [vmem:[#allocation3 + $0x3f8] sm:$0xff]
    %v250 = vld [vmem:[#allocation6] sm:$0xff]
    %v251 = vld [vmem:[#allocation6 + $0x8] sm:$0xff]
    %v252 = vld [vmem:[#allocation6 + $0x10] sm:$0xff]
    %v253 = vld [vmem:[#allocation6 + $0x18] sm:$0xff]
    %v254 = vld [vmem:[#allocation6 + $0x20] sm:$0xff]
    %v255 = vld [vmem:[#allocation6 + $0x28] sm:$0xff]
    %v256 = vld [vmem:[#allocation6 + $0x30] sm:$0xff]
    %v257 = vld [vmem:[#allocation6 + $0x38] sm:$0xff]
    %v258 = vld [vmem:[#allocation6 + $0x40] sm:$0xff]
    %v259 = vld [vmem:[#allocation6 + $0x48] sm:$0xff]
    %v260 = vld [vmem:[#allocation6 + $0x50] sm:$0xff]
    %v261 = vld [vmem:[#allocation6 + $0x58] sm:$0xff]
    %v262 = vld [vmem:[#allocation6 + $0x60] sm:$0xff]
    %v263 = vld [vmem:[#allocation6 + $0x68] sm:$0xff]
    %v264 = vld [vmem:[#allocation6 + $0x70] sm:$0xff]
    %v265 = vld [vmem:[#allocation6 + $0x78] sm:$0xff]
    %v266 = vld [vmem:[#allocation6 + $0x80] sm:$0xff]
    %v267 = vld [vmem:[#allocation6 + $0x88] sm:$0xff]
    %v268 = vld [vmem:[#allocation6 + $0x90] sm:$0xff]
    %v269 = vld [vmem:[#allocation6 + $0x98] sm:$0xff]
    %v270 = vld [vmem:[#allocation6 + $0xa0] sm:$0xff]
    %v271 = vld [vmem:[#allocation6 + $0xa8] sm:$0xff]
    %v272 = vld [vmem:[#allocation6 + $0xb0] sm:$0xff]
    %v273 = vld [vmem:[#allocation6 + $0xb8] sm:$0xff]
    %v274 = vld [vmem:[#allocation6 + $0xc0] sm:$0xff]
    %v275 = vld [vmem:[#allocation6 + $0xc8] sm:$0xff]
    %v276 = vld [vmem:[#allocation6 + $0xd0] sm:$0xff]
    %v277 = vld [vmem:[#allocation6 + $0xd8] sm:$0xff]
    %v278 = vld [vmem:[#allocation6 + $0xe0] sm:$0xff]
    %v279 = vld [vmem:[#allocation6 + $0xe8] sm:$0xff]
    %v280 = vld [vmem:[#allocation6 + $0xf0] sm:$0xff]
    %v281 = vld [vmem:[#allocation6 + $0xf8] sm:$0xff]
    %vm282 = vcmp.ge.f32.partialorder %v122, 0.0
    %vm283 = vcmp.ge.f32.partialorder %v123, 0.0
    %vm284 = vcmp.ge.f32.partialorder %v124, 0.0
    %vm285 = vcmp.ge.f32.partialorder %v125, 0.0
    %vm286 = vcmp.ge.f32.partialorder %v126, 0.0
    %vm287 = vcmp.ge.f32.partialorder %v127, 0.0
    %vm288 = vcmp.ge.f32.partialorder %v128, 0.0
    %vm289 = vcmp.ge.f32.partialorder %v129, 0.0
    %vm290 = vcmp.ge.f32.partialorder %v130, 0.0
    %vm291 = vcmp.ge.f32.partialorder %v131, 0.0
    %vm292 = vcmp.ge.f32.partialorder %v132, 0.0
    %vm293 = vcmp.ge.f32.partialorder %v133, 0.0
    %vm294 = vcmp.ge.f32.partialorder %v134, 0.0
    %vm295 = vcmp.ge.f32.partialorder %v135, 0.0
    %vm296 = vcmp.ge.f32.partialorder %v136, 0.0
    %vm297 = vcmp.ge.f32.partialorder %v137, 0.0
    %vm298 = vcmp.ge.f32.partialorder %v138, 0.0
    %vm299 = vcmp.ge.f32.partialorder %v139, 0.0
    %vm300 = vcmp.ge.f32.partialorder %v140, 0.0
    %vm301 = vcmp.ge.f32.partialorder %v141, 0.0
    %vm302 = vcmp.ge.f32.partialorder %v142, 0.0
    %vm303 = vcmp.ge.f32.partialorder %v143, 0.0
    %vm304 = vcmp.ge.f32.partialorder %v144, 0.0
    %vm305 = vcmp.ge.f32.partialorder %v145, 0.0
    %vm306 = vcmp.ge.f32.partialorder %v146, 0.0
    %vm307 = vcmp.ge.f32.partialorder %v147, 0.0
    %vm308 = vcmp.ge.f32.partialorder %v148, 0.0
    %vm309 = vcmp.ge.f32.partialorder %v149, 0.0
    %vm310 = vcmp.ge.f32.partialorder %v150, 0.0
    %vm311 = vcmp.ge.f32.partialorder %v151, 0.0
    %vm312 = vcmp.ge.f32.partialorder %v152, 0.0
    %vm313 = vcmp.ge.f32.partialorder %v153, 0.0
    %vm314 = vcmp.ge.f32.partialorder %v154, 0.0
    %vm315 = vcmp.ge.f32.partialorder %v155, 0.0
    %vm316 = vcmp.ge.f32.partialorder %v156, 0.0
    %vm317 = vcmp.ge.f32.partialorder %v157, 0.0
    %vm318 = vcmp.ge.f32.partialorder %v158, 0.0
    %vm319 = vcmp.ge.f32.partialorder %v159, 0.0
    %vm320 = vcmp.ge.f32.partialorder %v160, 0.0
    %vm321 = vcmp.ge.f32.partialorder %v161, 0.0
    %vm322 = vcmp.ge.f32.partialorder %v162, 0.0
    %vm323 = vcmp.ge.f32.partialorder %v163, 0.0
    %vm324 = vcmp.ge.f32.partialorder %v164, 0.0
    %vm325 = vcmp.ge.f32.partialorder %v165, 0.0
    %vm326 = vcmp.ge.f32.partialorder %v166, 0.0
    %vm327 = vcmp.ge.f32.partialorder %v167, 0.0
    %vm328 = vcmp.ge.f32.partialorder %v168, 0.0
    %vm329 = vcmp.ge.f32.partialorder %v169, 0.0
    %vm330 = vcmp.ge.f32.partialorder %v170, 0.0
    %vm331 = vcmp.ge.f32.partialorder %v171, 0.0
    %vm332 = vcmp.ge.f32.partialorder %v172, 0.0
    %vm333 = vcmp.ge.f32.partialorder %v173, 0.0
    %vm334 = vcmp.ge.f32.partialorder %v174, 0.0
    %vm335 = vcmp.ge.f32.partialorder %v175, 0.0
    %vm336 = vcmp.ge.f32.partialorder %v176, 0.0
    %vm337 = vcmp.ge.f32.partialorder %v177, 0.0
    %vm338 = vcmp.ge.f32.partialorder %v178, 0.0
    %vm339 = vcmp.ge.f32.partialorder %v179, 0.0
    %vm340 = vcmp.ge.f32.partialorder %v180, 0.0
    %vm341 = vcmp.ge.f32.partialorder %v181, 0.0
    %vm342 = vcmp.ge.f32.partialorder %v182, 0.0
    %vm343 = vcmp.ge.f32.partialorder %v183, 0.0
    %vm344 = vcmp.ge.f32.partialorder %v184, 0.0
    %vm345 = vcmp.ge.f32.partialorder %v185, 0.0
    %vm346 = vcmp.ge.f32.partialorder %v186, 0.0
    %vm347 = vcmp.ge.f32.partialorder %v187, 0.0
    %vm348 = vcmp.ge.f32.partialorder %v188, 0.0
    %vm349 = vcmp.ge.f32.partialorder %v189, 0.0
    %vm350 = vcmp.ge.f32.partialorder %v190, 0.0
    %vm351 = vcmp.ge.f32.partialorder %v191, 0.0
    %vm352 = vcmp.ge.f32.partialorder %v192, 0.0
    %vm353 = vcmp.ge.f32.partialorder %v193, 0.0
    %vm354 = vcmp.ge.f32.partialorder %v194, 0.0
    %vm355 = vcmp.ge.f32.partialorder %v195, 0.0
    %vm356 = vcmp.ge.f32.partialorder %v196, 0.0
    %vm357 = vcmp.ge.f32.partialorder %v197, 0.0
    %vm358 = vcmp.ge.f32.partialorder %v198, 0.0
    %vm359 = vcmp.ge.f32.partialorder %v199, 0.0
    %vm360 = vcmp.ge.f32.partialorder %v200, 0.0
    %vm361 = vcmp.ge.f32.partialorder %v201, 0.0
    %vm362 = vcmp.ge.f32.partialorder %v202, 0.0
    %vm363 = vcmp.ge.f32.partialorder %v203, 0.0
    %vm364 = vcmp.ge.f32.partialorder %v204, 0.0
    %vm365 = vcmp.ge.f32.partialorder %v205, 0.0
    %vm366 = vcmp.ge.f32.partialorder %v206, 0.0
    %vm367 = vcmp.ge.f32.partialorder %v207, 0.0
    %vm368 = vcmp.ge.f32.partialorder %v208, 0.0
    %vm369 = vcmp.ge.f32.partialorder %v209, 0.0
    %vm370 = vcmp.ge.f32.partialorder %v210, 0.0
    %vm371 = vcmp.ge.f32.partialorder %v211, 0.0
    %vm372 = vcmp.ge.f32.partialorder %v212, 0.0
    %vm373 = vcmp.ge.f32.partialorder %v213, 0.0
    %vm374 = vcmp.ge.f32.partialorder %v214, 0.0
    %vm375 = vcmp.ge.f32.partialorder %v215, 0.0
    %vm376 = vcmp.ge.f32.partialorder %v216, 0.0
    %vm377 = vcmp.ge.f32.partialorder %v217, 0.0
    %vm378 = vcmp.ge.f32.partialorder %v218, 0.0
    %vm379 = vcmp.ge.f32.partialorder %v219, 0.0
    %vm380 = vcmp.ge.f32.partialorder %v220, 0.0
    %vm381 = vcmp.ge.f32.partialorder %v221, 0.0
    %vm382 = vcmp.ge.f32.partialorder %v222, 0.0
    %vm383 = vcmp.ge.f32.partialorder %v223, 0.0
    %vm384 = vcmp.ge.f32.partialorder %v224, 0.0
    %vm385 = vcmp.ge.f32.partialorder %v225, 0.0
    %vm386 = vcmp.ge.f32.partialorder %v226, 0.0
    %vm387 = vcmp.ge.f32.partialorder %v227, 0.0
    %vm388 = vcmp.ge.f32.partialorder %v228, 0.0
    %vm389 = vcmp.ge.f32.partialorder %v229, 0.0
    %vm390 = vcmp.ge.f32.partialorder %v230, 0.0
    %vm391 = vcmp.ge.f32.partialorder %v231, 0.0
    %vm392 = vcmp.ge.f32.partialorder %v232, 0.0
    %vm393 = vcmp.ge.f32.partialorder %v233, 0.0
    %vm394 = vcmp.ge.f32.partialorder %v234, 0.0
    %vm395 = vcmp.ge.f32.partialorder %v235, 0.0
    %vm396 = vcmp.ge.f32.partialorder %v236, 0.0
    %vm397 = vcmp.ge.f32.partialorder %v237, 0.0
    %vm398 = vcmp.ge.f32.partialorder %v238, 0.0
    %vm399 = vcmp.ge.f32.partialorder %v239, 0.0
    %vm400 = vcmp.ge.f32.partialorder %v240, 0.0
    %vm401 = vcmp.ge.f32.partialorder %v241, 0.0
    %vm402 = vcmp.ge.f32.partialorder %v242, 0.0
    %vm403 = vcmp.ge.f32.partialorder %v243, 0.0
    %vm404 = vcmp.ge.f32.partialorder %v244, 0.0
    %vm405 = vcmp.ge.f32.partialorder %v245, 0.0
    %vm406 = vcmp.ge.f32.partialorder %v246, 0.0
    %vm407 = vcmp.ge.f32.partialorder %v247, 0.0
    %vm408 = vcmp.ge.f32.partialorder %v248, 0.0
    %vm409 = vcmp.ge.f32.partialorder %v249, 0.0
    %v410 = vmul.f32 %v122, 0.2
    %v411 = vmul.f32 %v123, 0.2
    %v412 = vmul.f32 %v124, 0.2
    %v413 = vmul.f32 %v125, 0.2
    %v414 = vmul.f32 %v126, 0.2
    %v415 = vmul.f32 %v127, 0.2
    %v416 = vmul.f32 %v128, 0.2
    %v417 = vmul.f32 %v129, 0.2
    %v418 = vmul.f32 %v130, 0.2
    %v419 = vmul.f32 %v131, 0.2
    %v420 = vmul.f32 %v132, 0.2
    %v421 = vmul.f32 %v133, 0.2
    %v422 = vmul.f32 %v134, 0.2
    %v423 = vmul.f32 %v135, 0.2
    %v424 = vmul.f32 %v136, 0.2
    %v425 = vmul.f32 %v137, 0.2
    %v426 = vmul.f32 %v138, 0.2
    %v427 = vmul.f32 %v139, 0.2
    %v428 = vmul.f32 %v140, 0.2
    %v429 = vmul.f32 %v141, 0.2
    %v430 = vmul.f32 %v142, 0.2
    %v431 = vmul.f32 %v143, 0.2
    %v432 = vmul.f32 %v144, 0.2
    %v433 = vmul.f32 %v145, 0.2
    %v434 = vmul.f32 %v146, 0.2
    %v435 = vmul.f32 %v147, 0.2
    %v436 = vmul.f32 %v148, 0.2
    %v437 = vmul.f32 %v149, 0.2
    %v438 = vmul.f32 %v150, 0.2
    %v439 = vmul.f32 %v151, 0.2
    %v440 = vmul.f32 %v152, 0.2
    %v441 = vmul.f32 %v153, 0.2
    %v442 = vmul.f32 %v154, 0.2
    %v443 = vmul.f32 %v155, 0.2
    %v444 = vmul.f32 %v156, 0.2
    %v445 = vmul.f32 %v157, 0.2
    %v446 = vmul.f32 %v158, 0.2
    %v447 = vmul.f32 %v159, 0.2
    %v448 = vmul.f32 %v160, 0.2
    %v449 = vmul.f32 %v161, 0.2
    %v450 = vmul.f32 %v162, 0.2
    %v451 = vmul.f32 %v163, 0.2
    %v452 = vmul.f32 %v164, 0.2
    %v453 = vmul.f32 %v165, 0.2
    %v454 = vmul.f32 %v166, 0.2
    %v455 = vmul.f32 %v167, 0.2
    %v456 = vmul.f32 %v168, 0.2
    %v457 = vmul.f32 %v169, 0.2
    %v458 = vmul.f32 %v170, 0.2
    %v459 = vmul.f32 %v171, 0.2
    %v460 = vmul.f32 %v172, 0.2
    %v461 = vmul.f32 %v173, 0.2
    %v462 = vmul.f32 %v174, 0.2
    %v463 = vmul.f32 %v175, 0.2
    %v464 = vmul.f32 %v176, 0.2
    %v465 = vmul.f32 %v177, 0.2
    %v466 = vmul.f32 %v178, 0.2
    %v467 = vmul.f32 %v179, 0.2
    %v468 = vmul.f32 %v180, 0.2
    %v469 = vmul.f32 %v181, 0.2
    %v470 = vmul.f32 %v182, 0.2
    %v471 = vmul.f32 %v183, 0.2
    %v472 = vmul.f32 %v184, 0.2
    %v473 = vmul.f32 %v185, 0.2
    %v474 = vmul.f32 %v186, 0.2
    %v475 = vmul.f32 %v187, 0.2
    %v476 = vmul.f32 %v188, 0.2
    %v477 = vmul.f32 %v189, 0.2
    %v478 = vmul.f32 %v190, 0.2
    %v479 = vmul.f32 %v191, 0.2
    %v480 = vmul.f32 %v192, 0.2
    %v481 = vmul.f32 %v193, 0.2
    %v482 = vmul.f32 %v194, 0.2
    %v483 = vmul.f32 %v195, 0.2
    %v484 = vmul.f32 %v196, 0.2
    %v485 = vmul.f32 %v197, 0.2
    %v486 = vmul.f32 %v198, 0.2
    %v487 = vmul.f32 %v199, 0.2
    %v488 = vmul.f32 %v200, 0.2
    %v489 = vmul.f32 %v201, 0.2
    %v490 = vmul.f32 %v202, 0.2
    %v491 = vmul.f32 %v203, 0.2
    %v492 = vmul.f32 %v204, 0.2
    %v493 = vmul.f32 %v205, 0.2
    %v494 = vmul.f32 %v206, 0.2
    %v495 = vmul.f32 %v207, 0.2
    %v496 = vmul.f32 %v208, 0.2
    %v497 = vmul.f32 %v209, 0.2
    %v498 = vmul.f32 %v210, 0.2
    %v499 = vmul.f32 %v211, 0.2
    %v500 = vmul.f32 %v212, 0.2
    %v501 = vmul.f32 %v213, 0.2
    %v502 = vmul.f32 %v214, 0.2
    %v503 = vmul.f32 %v215, 0.2
    %v504 = vmul.f32 %v216, 0.2
    %v505 = vmul.f32 %v217, 0.2
    %v506 = vmul.f32 %v218, 0.2
    %v507 = vmul.f32 %v219, 0.2
    %v508 = vmul.f32 %v220, 0.2
    %v509 = vmul.f32 %v221, 0.2
    %v510 = vmul.f32 %v222, 0.2
    %v511 = vmul.f32 %v223, 0.2
    %v512 = vmul.f32 %v224, 0.2
    %v513 = vmul.f32 %v225, 0.2
    %v514 = vmul.f32 %v226, 0.2
    %v515 = vmul.f32 %v227, 0.2
    %v516 = vmul.f32 %v228, 0.2
    %v517 = vmul.f32 %v229, 0.2
    %v518 = vmul.f32 %v230, 0.2
    %v519 = vmul.f32 %v231, 0.2
    %v520 = vmul.f32 %v232, 0.2
    %v521 = vmul.f32 %v233, 0.2
    %v522 = vmul.f32 %v234, 0.2
    %v523 = vmul.f32 %v235, 0.2
    %v524 = vmul.f32 %v236, 0.2
    %v525 = vmul.f32 %v237, 0.2
    %v526 = vmul.f32 %v238, 0.2
    %v527 = vmul.f32 %v239, 0.2
    %v528 = vmul.f32 %v240, 0.2
    %v529 = vmul.f32 %v241, 0.2
    %v530 = vmul.f32 %v242, 0.2
    %v531 = vmul.f32 %v243, 0.2
    %v532 = vmul.f32 %v244, 0.2
    %v533 = vmul.f32 %v245, 0.2
    %v534 = vmul.f32 %v246, 0.2
    %v535 = vmul.f32 %v247, 0.2
    %v536 = vmul.f32 %v248, 0.2
    %v537 = vmul.f32 %v249, 0.2
    %v538 = vsel %vm282, %v122, %v410
    %v539 = vsel %vm283, %v123, %v411
    %v540 = vsel %vm284, %v124, %v412
    %v541 = vsel %vm285, %v125, %v413
    %v542 = vsel %vm286, %v126, %v414
    %v543 = vsel %vm287, %v127, %v415
    %v544 = vsel %vm288, %v128, %v416
    %v545 = vsel %vm289, %v129, %v417
    %v546 = vsel %vm290, %v130, %v418
    %v547 = vsel %vm291, %v131, %v419
    %v548 = vsel %vm292, %v132, %v420
    %v549 = vsel %vm293, %v133, %v421
    %v550 = vsel %vm294, %v134, %v422
    %v551 = vsel %vm295, %v135, %v423
    %v552 = vsel %vm296, %v136, %v424
    %v553 = vsel %vm297, %v137, %v425
    %v554 = vsel %vm298, %v138, %v426
    %v555 = vsel %vm299, %v139, %v427
    %v556 = vsel %vm300, %v140, %v428
    %v557 = vsel %vm301, %v141, %v429
    %v558 = vsel %vm302, %v142, %v430
    %v559 = vsel %vm303, %v143, %v431
    %v560 = vsel %vm304, %v144, %v432
    %v561 = vsel %vm305, %v145, %v433
    %v562 = vsel %vm306, %v146, %v434
    %v563 = vsel %vm307, %v147, %v435
    %v564 = vsel %vm308, %v148, %v436
    %v565 = vsel %vm309, %v149, %v437
    %v566 = vsel %vm310, %v150, %v438
    %v567 = vsel %vm311, %v151, %v439
    %v568 = vsel %vm312, %v152, %v440
    %v569 = vsel %vm313, %v153, %v441
    %v570 = vsel %vm314, %v154, %v442
    %v571 = vsel %vm315, %v155, %v443
    %v572 = vsel %vm316, %v156, %v444
    %v573 = vsel %vm317, %v157, %v445
    %v574 = vsel %vm318, %v158, %v446
    %v575 = vsel %vm319, %v159, %v447
    %v576 = vsel %vm320, %v160, %v448
    %v577 = vsel %vm321, %v161, %v449
    %v578 = vsel %vm322, %v162, %v450
    %v579 = vsel %vm323, %v163, %v451
    %v580 = vsel %vm324, %v164, %v452
    %v581 = vsel %vm325, %v165, %v453
    %v582 = vsel %vm326, %v166, %v454
    %v583 = vsel %vm327, %v167, %v455
    %v584 = vsel %vm328, %v168, %v456
    %v585 = vsel %vm329, %v169, %v457
    %v586 = vsel %vm330, %v170, %v458
    %v587 = vsel %vm331, %v171, %v459
    %v588 = vsel %vm332, %v172, %v460
    %v589 = vsel %vm333, %v173, %v461
    %v590 = vsel %vm334, %v174, %v462
    %v591 = vsel %vm335, %v175, %v463
    %v592 = vsel %vm336, %v176, %v464
    %v593 = vsel %vm337, %v177, %v465
    %v594 = vsel %vm338, %v178, %v466
    %v595 = vsel %vm339, %v179, %v467
    %v596 = vsel %vm340, %v180, %v468
    %v597 = vsel %vm341, %v181, %v469
    %v598 = vsel %vm342, %v182, %v470
    %v599 = vsel %vm343, %v183, %v471
    %v600 = vsel %vm344, %v184, %v472
    %v601 = vsel %vm345, %v185, %v473
    %v602 = vsel %vm346, %v186, %v474
    %v603 = vsel %vm347, %v187, %v475
    %v604 = vsel %vm348, %v188, %v476
    %v605 = vsel %vm349, %v189, %v477
    %v606 = vsel %vm350, %v190, %v478
    %v607 = vsel %vm351, %v191, %v479
    %v608 = vsel %vm352, %v192, %v480
    %v609 = vsel %vm353, %v193, %v481
    %v610 = vsel %vm354, %v194, %v482
    %v611 = vsel %vm355, %v195, %v483
    %v612 = vsel %vm356, %v196, %v484
    %v613 = vsel %vm357, %v197, %v485
    %v614 = vsel %vm358, %v198, %v486
    %v615 = vsel %vm359, %v199, %v487
    %v616 = vsel %vm360, %v200, %v488
    %v617 = vsel %vm361, %v201, %v489
    %v618 = vsel %vm362, %v202, %v490
    %v619 = vsel %vm363, %v203, %v491
    %v620 = vsel %vm364, %v204, %v492
    %v621 = vsel %vm365, %v205, %v493
    %v622 = vsel %vm366, %v206, %v494
    %v623 = vsel %vm367, %v207, %v495
    %v624 = vsel %vm368, %v208, %v496
    %v625 = vsel %vm369, %v209, %v497
    %v626 = vsel %vm370, %v210, %v498
    %v627 = vsel %vm371, %v211, %v499
    %v628 = vsel %vm372, %v212, %v500
    %v629 = vsel %vm373, %v213, %v501
    %v630 = vsel %vm374, %v214, %v502
    %v631 = vsel %vm375, %v215, %v503
    %v632 = vsel %vm376, %v216, %v504
    %v633 = vsel %vm377, %v217, %v505
    %v634 = vsel %vm378, %v218, %v506
    %v635 = vsel %vm379, %v219, %v507
    %v636 = vsel %vm380, %v220, %v508
    %v637 = vsel %vm381, %v221, %v509
    %v638 = vsel %vm382, %v222, %v510
    %v639 = vsel %vm383, %v223, %v511
    %v640 = vsel %vm384, %v224, %v512
    %v641 = vsel %vm385, %v225, %v513
    %v642 = vsel %vm386, %v226, %v514
    %v643 = vsel %vm387, %v227, %v515
    %v644 = vsel %vm388, %v228, %v516
    %v645 = vsel %vm389, %v229, %v517
    %v646 = vsel %vm390, %v230, %v518
    %v647 = vsel %vm391, %v231, %v519
    %v648 = vsel %vm392, %v232, %v520
    %v649 = vsel %vm393, %v233, %v521
    %v650 = vsel %vm394, %v234, %v522
    %v651 = vsel %vm395, %v235, %v523
    %v652 = vsel %vm396, %v236, %v524
    %v653 = vsel %vm397, %v237, %v525
    %v654 = vsel %vm398, %v238, %v526
    %v655 = vsel %vm399, %v239, %v527
    %v656 = vsel %vm400, %v240, %v528
    %v657 = vsel %vm401, %v241, %v529
    %v658 = vsel %vm402, %v242, %v530
    %v659 = vsel %vm403, %v243, %v531
    %v660 = vsel %vm404, %v244, %v532
    %v661 = vsel %vm405, %v245, %v533
    %v662 = vsel %vm406, %v246, %v534
    %v663 = vsel %vm407, %v247, %v535
    %v664 = vsel %vm408, %v248, %v536
    %v665 = vsel %vm409, %v249, %v537
    %v666 = vld [vmem:[#allocation2] sm:$0xff]
    %v667 = vld [vmem:[#allocation2 + $0x8] sm:$0xff]
    %v668 = vld [vmem:[#allocation2 + $0x10] sm:$0xff]
    %v669 = vld [vmem:[#allocation2 + $0x18] sm:$0xff]
    %v670 = vld [vmem:[#allocation2 + $0x20] sm:$0xff]
    %v671 = vld [vmem:[#allocation2 + $0x28] sm:$0xff]
    %v672 = vld [vmem:[#allocation2 + $0x30] sm:$0xff]
    %v673 = vld [vmem:[#allocation2 + $0x38] sm:$0xff]
    %v674 = vld [vmem:[#allocation2 + $0x40] sm:$0xff]
    %v675 = vld [vmem:[#allocation2 + $0x48] sm:$0xff]
    %v676 = vld [vmem:[#allocation2 + $0x50] sm:$0xff]
    %v677 = vld [vmem:[#allocation2 + $0x58] sm:$0xff]
    %v678 = vld [vmem:[#allocation2 + $0x60] sm:$0xff]
    %v679 = vld [vmem:[#allocation2 + $0x68] sm:$0xff]
    %v680 = vld [vmem:[#allocation2 + $0x70] sm:$0xff]
    %v681 = vld [vmem:[#allocation2 + $0x78] sm:$0xff]
    %v682 = vld [vmem:[#allocation2 + $0x80] sm:$0xff]
    %v683 = vld [vmem:[#allocation2 + $0x88] sm:$0xff]
    %v684 = vld [vmem:[#allocation2 + $0x90] sm:$0xff]
    %v685 = vld [vmem:[#allocation2 + $0x98] sm:$0xff]
    %v686 = vld [vmem:[#allocation2 + $0xa0] sm:$0xff]
    %v687 = vld [vmem:[#allocation2 + $0xa8] sm:$0xff]
    %v688 = vld [vmem:[#allocation2 + $0xb0] sm:$0xff]
    %v689 = vld [vmem:[#allocation2 + $0xb8] sm:$0xff]
    %v690 = vld [vmem:[#allocation2 + $0xc0] sm:$0xff]
    %v691 = vld [vmem:[#allocation2 + $0xc8] sm:$0xff]
    %v692 = vld [vmem:[#allocation2 + $0xd0] sm:$0xff]
    %v693 = vld [vmem:[#allocation2 + $0xd8] sm:$0xff]
    %v694 = vld [vmem:[#allocation2 + $0xe0] sm:$0xff]
    %v695 = vld [vmem:[#allocation2 + $0xe8] sm:$0xff]
    %v696 = vld [vmem:[#allocation2 + $0xf0] sm:$0xff]
    %v697 = vld [vmem:[#allocation2 + $0xf8] sm:$0xff]
    %v698 = vld [vmem:[#allocation2 + $0x100] sm:$0xff]
    %v699 = vld [vmem:[#allocation2 + $0x108] sm:$0xff]
    %v700 = vld [vmem:[#allocation2 + $0x110] sm:$0xff]
    %v701 = vld [vmem:[#allocation2 + $0x118] sm:$0xff]
    %v702 = vld [vmem:[#allocation2 + $0x120] sm:$0xff]
    %v703 = vld [vmem:[#allocation2 + $0x128] sm:$0xff]
    %v704 = vld [vmem:[#allocation2 + $0x130] sm:$0xff]
    %v705 = vld [vmem:[#allocation2 + $0x138] sm:$0xff]
    %v706 = vld [vmem:[#allocation2 + $0x140] sm:$0xff]
    %v707 = vld [vmem:[#allocation2 + $0x148] sm:$0xff]
    %v708 = vld [vmem:[#allocation2 + $0x150] sm:$0xff]
    %v709 = vld [vmem:[#allocation2 + $0x158] sm:$0xff]
    %v710 = vld [vmem:[#allocation2 + $0x160] sm:$0xff]
    %v711 = vld [vmem:[#allocation2 + $0x168] sm:$0xff]
    %v712 = vld [vmem:[#allocation2 + $0x170] sm:$0xff]
    %v713 = vld [vmem:[#allocation2 + $0x178] sm:$0xff]
    %v714 = vld [vmem:[#allocation2 + $0x180] sm:$0xff]
    %v715 = vld [vmem:[#allocation2 + $0x188] sm:$0xff]
    %v716 = vld [vmem:[#allocation2 + $0x190] sm:$0xff]
    %v717 = vld [vmem:[#allocation2 + $0x198] sm:$0xff]
    %v718 = vld [vmem:[#allocation2 + $0x1a0] sm:$0xff]
    %v719 = vld [vmem:[#allocation2 + $0x1a8] sm:$0xff]
    %v720 = vld [vmem:[#allocation2 + $0x1b0] sm:$0xff]
    %v721 = vld [vmem:[#allocation2 + $0x1b8] sm:$0xff]
    %v722 = vld [vmem:[#allocation2 + $0x1c0] sm:$0xff]
    %v723 = vld [vmem:[#allocation2 + $0x1c8] sm:$0xff]
    %v724 = vld [vmem:[#allocation2 + $0x1d0] sm:$0xff]
    %v725 = vld [vmem:[#allocation2 + $0x1d8] sm:$0xff]
    %v726 = vld [vmem:[#allocation2 + $0x1e0] sm:$0xff]
    %v727 = vld [vmem:[#allocation2 + $0x1e8] sm:$0xff]
    %v728 = vld [vmem:[#allocation2 + $0x1f0] sm:$0xff]
    %v729 = vld [vmem:[#allocation2 + $0x1f8] sm:$0xff]
    %730 = vmatprep.subr.mxu0 0.0
    %731 = vmatpush1.msra.mxu0 %v250
    %732 = vmatprep.subr.mxu0 0.0
    %733 = vmatpush1.msra.mxu0 %v251
    %734 = vmatprep.subr.mxu0 0.0
    %735 = vmatpush1.msra.mxu0 %v252
    %736 = vmatprep.subr.mxu0 0.0
    %737 = vmatpush1.msra.mxu0 %v253
    %738 = vmatprep.subr.mxu0 0.0
    %739 = vmatpush1.msra.mxu0 %v254
    %740 = vmatprep.subr.mxu0 0.0
    %741 = vmatpush1.msra.mxu0 %v255
    %742 = vmatprep.subr.mxu0 0.0
    %743 = vmatpush1.msra.mxu0 %v256
    %744 = vmatprep.subr.mxu0 0.0
    %745 = vmatpush1.msra.mxu0 %v257
    %746 = vmatprep.subr.mxu0 0.0
    %747 = vmatpush1.msra.mxu0 %v258
    %748 = vmatprep.subr.mxu0 0.0
    %749 = vmatpush1.msra.mxu0 %v259
    %750 = vmatprep.subr.mxu0 0.0
    %751 = vmatpush1.msra.mxu0 %v260
    %752 = vmatprep.subr.mxu0 0.0
    %753 = vmatpush1.msra.mxu0 %v261
    %754 = vmatprep.subr.mxu0 0.0
    %755 = vmatpush1.msra.mxu0 %v262
    %756 = vmatprep.subr.mxu0 0.0
    %757 = vmatpush1.msra.mxu0 %v263
    %758 = vmatprep.subr.mxu0 0.0
    %759 = vmatpush1.msra.mxu0 %v264
    %760 = vmatprep.subr.mxu0 0.0
    %761 = vmatpush1.msra.mxu0 %v265
    %762 = vmatprep.subr.mxu0 0.0
    %763 = vmatpush1.msra.mxu0 %v266
    %764 = vmatprep.subr.mxu0 0.0
    %765 = vmatpush1.msra.mxu0 %v267
    %766 = vmatprep.subr.mxu0 0.0
    %767 = vmatpush1.msra.mxu0 %v268
    %768 = vmatprep.subr.mxu0 0.0
    %769 = vmatpush1.msra.mxu0 %v269
    %770 = vmatprep.subr.mxu0 0.0
    %771 = vmatpush1.msra.mxu0 %v270
    %772 = vmatprep.subr.mxu0 0.0
    %773 = vmatpush1.msra.mxu0 %v271
    %774 = vmatprep.subr.mxu0 0.0
    %775 = vmatpush1.msra.mxu0 %v272
    %776 = vmatprep.subr.mxu0 0.0
    %777 = vmatpush1.msra.mxu0 %v273
    %778 = vmatprep.subr.mxu0 0.0
    %779 = vmatpush1.msra.mxu0 %v274
    %780 = vmatprep.subr.mxu0 0.0
    %781 = vmatpush1.msra.mxu0 %v275
    %782 = vmatprep.subr.mxu0 0.0
    %783 = vmatpush1.msra.mxu0 %v276
    %784 = vmatprep.subr.mxu0 0.0
    %785 = vmatpush1.msra.mxu0 %v277
    %786 = vmatprep.subr.mxu0 0.0
    %787 = vmatpush1.msra.mxu0 %v278
    %788 = vmatprep.subr.mxu0 0.0
    %789 = vmatpush1.msra.mxu0 %v279
    %790 = vmatprep.subr.mxu0 0.0
    %791 = vmatpush1.msra.mxu0 %v280
    %792 = vmatprep.subr.mxu0 0.0
    %793 = vmatpush1.msra.mxu0 %v281
    %794 = vmatprep.mubr.f32.mxu0 %v539
    %795 = vmatmul.mubr.f32.gmra.mrb[0].mxu0 %v538
    %v796 = vpop.f32.mrb[0].mxu0
    %v797 = vadd.f32 0.0, %v796
    %v798 = vpop.f32.mrb[0].mxu0
    %799 = vmatprep.mubr.f32.mxu0 %v541
    %800 = vmatmul.mubr.f32.gmra.mrb[0].mxu0 %v540
    %v801 = vpop.f32.mrb[0].mxu0
    %v802 = vadd.f32 0.0, %v801
    %v803 = vpop.f32.mrb[0].mxu0
    %804 = vmatprep.mubr.f32.mxu0 %v543
    %805 = vmatmul.mubr.f32.gmra.mrb[0].mxu0 %v542
    %v806 = vpop.f32.mrb[0].mxu0
    %v807 = vadd.f32 0.0, %v806
    %v808 = vpop.f32.mrb[0].mxu0
    %809 = vmatprep.mubr.f32.mxu0 %v545
    %810 = vmatmul.mubr.f32.gmra.mrb[0].mxu0 %v544
    %v811 = vpop.f32.mrb[0].mxu0
    %v812 = vadd.f32 0.0, %v811
    %v813 = vpop.f32.mrb[0].mxu0
    %814 = vmatprep.mubr.f32.mxu0 %v547
    %815 = vmatmul.mubr.f32.gmra.mrb[0].mxu0 %v546
    %v816 = vpop.f32.mrb[0].mxu0
    %v817 = vadd.f32 0.0, %v816
    %v818 = vpop.f32.mrb[0].mxu0
    %819 = vmatprep.mubr.f32.mxu0 %v549
    %820 = vmatmul.mubr.f32.gmra.mrb[0].mxu0 %v548
    %v821 = vpop.f32.mrb[0].mxu0
    %v822 = vadd.f32 0.0, %v821
    %v823 = vpop.f32.mrb[0].mxu0
    %824 = vmatprep.mubr.f32.mxu0 %v551
    %825 = vmatmul.mubr.f32.gmra.mrb[0].mxu0 %v550
    %v826 = vpop.f32.mrb[0].mxu0
    %v827 = vadd.f32 0.0, %v826
    %v828 = vpop.f32.mrb[0].mxu0
    %829 = vmatprep.mubr.f32.mxu0 %v553
    %830 = vmatmul.mubr.f32.gmra.mrb[0].mxu0 %v552
    %v831 = vpop.f32.mrb[0].mxu0
    %v832 = vadd.f32 0.0, %v831
    %v833 = vpop.f32.mrb[0].mxu0
    %834 = vmatprep.mubr.f32.mxu0 %v555
    %835 = vmatmul.mubr.f32.gmra.mrb[0].mxu0 %v554
    %v836 = vpop.f32.mrb[0].mxu0
    %v837 = vadd.f32 0.0, %v836
    %v838 = vpop.f32.mrb[0].mxu0
    %839 = vmatprep.mubr.f32.mxu0 %v557
    %840 = vmatmul.mubr.f32.gmra.mrb[0].mxu0 %v556
    %v841 = vpop.f32.mrb[0].mxu0
    %v842 = vadd.f32 0.0, %v841
    %v843 = vpop.f32.mrb[0].mxu0
    %844 = vmatprep.mubr.f32.mxu0 %v559
    %845 = vmatmul.mubr.f32.gmra.mrb[0].mxu0 %v558
    %v846 = vpop.f32.mrb[0].mxu0
    %v847 = vadd.f32 0.0, %v846
    %v848 = vpop.f32.mrb[0].mxu0
    %849 = vmatprep.mubr.f32.mxu0 %v561
    %850 = vmatmul.mubr.f32.gmra.mrb[0].mxu0 %v560
    %v851 = vpop.f32.mrb[0].mxu0
    %v852 = vadd.f32 0.0, %v851
    %v853 = vpop.f32.mrb[0].mxu0
    %854 = vmatprep.mubr.f32.mxu0 %v563
    %855 = vmatmul.mubr.f32.gmra.mrb[0].mxu0 %v562
    %v856 = vpop.f32.mrb[0].mxu0
    %v857 = vadd.f32 0.0, %v856
    %v858 = vpop.f32.mrb[0].mxu0
    %859 = vmatprep.mubr.f32.mxu0 %v565
    %860 = vmatmul.mubr.f32.gmra.mrb[0].mxu0 %v564
    %v861 = vpop.f32.mrb[0].mxu0
    %v862 = vadd.f32 0.0, %v861
    %v863 = vpop.f32.mrb[0].mxu0
    %864 = vmatprep.mubr.f32.mxu0 %v567
    %865 = vmatmul.mubr.f32.gmra.mrb[0].mxu0 %v566
    %v866 = vpop.f32.mrb[0].mxu0
    %v867 = vadd.f32 0.0, %v866
    %v868 = vpop.f32.mrb[0].mxu0
    %869 = vmatprep.mubr.f32.mxu0 %v569
    %870 = vmatmul.mubr.f32.gmra.mrb[0].mxu0 %v568
    %v871 = vpop.f32.mrb[0].mxu0
    %v872 = vadd.f32 0.0, %v871
    %v873 = vpop.f32.mrb[0].mxu0
    %874 = vmatprep.mubr.f32.mxu0 %v571
    %875 = vmatmul.mubr.f32.gmra.mrb[0].mxu0 %v570
    %v876 = vpop.f32.mrb[0].mxu0
    %v877 = vadd.f32 0.0, %v876
    %v878 = vpop.f32.mrb[0].mxu0
    %879 = vmatprep.mubr.f32.mxu0 %v573
    %880 = vmatmul.mubr.f32.gmra.mrb[0].mxu0 %v572
    %v881 = vpop.f32.mrb[0].mxu0
    %v882 = vadd.f32 0.0, %v881
    %v883 = vpop.f32.mrb[0].mxu0
    %884 = vmatprep.mubr.f32.mxu0 %v575
    %885 = vmatmul.mubr.f32.gmra.mrb[0].mxu0 %v574
    %v886 = vpop.f32.mrb[0].mxu0
    %v887 = vadd.f32 0.0, %v886
    %v888 = vpop.f32.mrb[0].mxu0
    %889 = vmatprep.mubr.f32.mxu0 %v577
    %890 = vmatmul.mubr.f32.gmra.mrb[0].mxu0 %v576
    %v891 = vpop.f32.mrb[0].mxu0
    %v892 = vadd.f32 0.0, %v891
    %v893 = vpop.f32.mrb[0].mxu0
    %894 = vmatprep.mubr.f32.mxu0 %v579
    %895 = vmatmul.mubr.f32.gmra.mrb[0].mxu0 %v578
    %v896 = vpop.f32.mrb[0].mxu0
    %v897 = vadd.f32 0.0, %v896
    %v898 = vpop.f32.mrb[0].mxu0
    %899 = vmatprep.mubr.f32.mxu0 %v581
    %900 = vmatmul.mubr.f32.gmra.mrb[0].mxu0 %v580
    %v901 = vpop.f32.mrb[0].mxu0
    %v902 = vadd.f32 0.0, %v901
    %v903 = vpop.f32.mrb[0].mxu0
    %904 = vmatprep.mubr.f32.mxu0 %v583
    %905 = vmatmul.mubr.f32.gmra.mrb[0].mxu0 %v582
    %v906 = vpop.f32.mrb[0].mxu0
    %v907 = vadd.f32 0.0, %v906
    %v908 = vpop.f32.mrb[0].mxu0
    %909 = vmatprep.mubr.f32.mxu0 %v585
    %910 = vmatmul.mubr.f32.gmra.mrb[0].mxu0 %v584
    %v911 = vpop.f32.mrb[0].mxu0
    %v912 = vadd.f32 0.0, %v911
    %v913 = vpop.f32.mrb[0].mxu0
    %914 = vmatprep.mubr.f32.mxu0 %v587
    %915 = vmatmul.mubr.f32.gmra.mrb[0].mxu0 %v586
    %v916 = vpop.f32.mrb[0].mxu0
    %v917 = vadd.f32 0.0, %v916
    %v918 = vpop.f32.mrb[0].mxu0
    %919 = vmatprep.mubr.f32.mxu0 %v589
    %920 = vmatmul.mubr.f32.gmra.mrb[0].mxu0 %v588
    %v921 = vpop.f32.mrb[0].mxu0
    %v922 = vadd.f32 0.0, %v921
    %v923 = vpop.f32.mrb[0].mxu0
    %924 = vmatprep.mubr.f32.mxu0 %v591
    %925 = vmatmul.mubr.f32.gmra.mrb[0].mxu0 %v590
    %v926 = vpop.f32.mrb[0].mxu0
    %v927 = vadd.f32 0.0, %v926
    %v928 = vpop.f32.mrb[0].mxu0
    %929 = vmatprep.mubr.f32.mxu0 %v593
    %930 = vmatmul.mubr.f32.gmra.mrb[0].mxu0 %v592
    %v931 = vpop.f32.mrb[0].mxu0
    %v932 = vadd.f32 0.0, %v931
    %v933 = vpop.f32.mrb[0].mxu0
    %934 = vmatprep.mubr.f32.mxu0 %v595
    %935 = vmatmul.mubr.f32.gmra.mrb[0].mxu0 %v594
    %v936 = vpop.f32.mrb[0].mxu0
    %v937 = vadd.f32 0.0, %v936
    %v938 = vpop.f32.mrb[0].mxu0
    %939 = vmatprep.mubr.f32.mxu0 %v597
    %940 = vmatmul.mubr.f32.gmra.mrb[0].mxu0 %v596
    %v941 = vpop.f32.mrb[0].mxu0
    %v942 = vadd.f32 0.0, %v941
    %v943 = vpop.f32.mrb[0].mxu0
    %944 = vmatprep.mubr.f32.mxu0 %v599
    %945 = vmatmul.mubr.f32.gmra.mrb[0].mxu0 %v598
    %v946 = vpop.f32.mrb[0].mxu0
    %v947 = vadd.f32 0.0, %v946
    %v948 = vpop.f32.mrb[0].mxu0
    %949 = vmatprep.mubr.f32.mxu0 %v601
    %950 = vmatmul.mubr.f32.gmra.mrb[0].mxu0 %v600
    %v951 = vpop.f32.mrb[0].mxu0
    %v952 = vadd.f32 0.0, %v951
    %v953 = vpop.f32.mrb[0].mxu0
    %954 = vmatprep.mubr.f32.mxu0 %v603
    %955 = vmatmul.mubr.f32.gmra.mrb[0].mxu0 %v602
    %v956 = vpop.f32.mrb[0].mxu0
    %v957 = vadd.f32 0.0, %v956
    %v958 = vpop.f32.mrb[0].mxu0
    %959 = vmatprep.mubr.f32.mxu0 %v605
    %960 = vmatmul.mubr.f32.gmra.mrb[0].mxu0 %v604
    %v961 = vpop.f32.mrb[0].mxu0
    %v962 = vadd.f32 0.0, %v961
    %v963 = vpop.f32.mrb[0].mxu0
    %964 = vmatprep.mubr.f32.mxu0 %v607
    %965 = vmatmul.mubr.f32.gmra.mrb[0].mxu0 %v606
    %v966 = vpop.f32.mrb[0].mxu0
    %v967 = vadd.f32 0.0, %v966
    %v968 = vpop.f32.mrb[0].mxu0
    %969 = vmatprep.mubr.f32.mxu0 %v609
    %970 = vmatmul.mubr.f32.gmra.mrb[0].mxu0 %v608
    %v971 = vpop.f32.mrb[0].mxu0
    %v972 = vadd.f32 0.0, %v971
    %v973 = vpop.f32.mrb[0].mxu0
    %974 = vmatprep.mubr.f32.mxu0 %v611
    %975 = vmatmul.mubr.f32.gmra.mrb[0].mxu0 %v610
    %v976 = vpop.f32.mrb[0].mxu0
    %v977 = vadd.f32 0.0, %v976
    %v978 = vpop.f32.mrb[0].mxu0
    %979 = vmatprep.mubr.f32.mxu0 %v613
    %980 = vmatmul.mubr.f32.gmra.mrb[0].mxu0 %v612
    %v981 = vpop.f32.mrb[0].mxu0
    %v982 = vadd.f32 0.0, %v981
    %v983 = vpop.f32.mrb[0].mxu0
    %984 = vmatprep.mubr.f32.mxu0 %v615
    %985 = vmatmul.mubr.f32.gmra.mrb[0].mxu0 %v614
    %v986 = vpop.f32.mrb[0].mxu0
    %v987 = vadd.f32 0.0, %v986
    %v988 = vpop.f32.mrb[0].mxu0
    %989 = vmatprep.mubr.f32.mxu0 %v617
    %990 = vmatmul.mubr.f32.gmra.mrb[0].mxu0 %v616
    %v991 = vpop.f32.mrb[0].mxu0
    %v992 = vadd.f32 0.0, %v991
    %v993 = vpop.f32.mrb[0].mxu0
    %994 = vmatprep.mubr.f32.mxu0 %v619
    %995 = vmatmul.mubr.f32.gmra.mrb[0].mxu0 %v618
    %v996 = vpop.f32.mrb[0].mxu0
    %v997 = vadd.f32 0.0, %v996
    %v998 = vpop.f32.mrb[0].mxu0
    %999 = vmatprep.mubr.f32.mxu0 %v621
    %1000 = vmatmul.mubr.f32.gmra.mrb[0].mxu0 %v620
    %v1001 = vpop.f32.mrb[0].mxu0
    %v1002 = vadd.f32 0.0, %v1001
    %v1003 = vpop.f32.mrb[0].mxu0
    %1004 = vmatprep.mubr.f32.mxu0 %v623
    %1005 = vmatmul.mubr.f32.gmra.mrb[0].mxu0 %v622
    %v1006 = vpop.f32.mrb[0].mxu0
    %v1007 = vadd.f32 0.0, %v1006
    %v1008 = vpop.f32.mrb[0].mxu0
    %1009 = vmatprep.mubr.f32.mxu0 %v625
    %1010 = vmatmul.mubr.f32.gmra.mrb[0].mxu0 %v624
    %v1011 = vpop.f32.mrb[0].mxu0
    %v1012 = vadd.f32 0.0, %v1011
    %v1013 = vpop.f32.mrb[0].mxu0
    %1014 = vmatprep.mubr.f32.mxu0 %v627
    %1015 = vmatmul.mubr.f32.gmra.mrb[0].mxu0 %v626
    %v1016 = vpop.f32.mrb[0].mxu0
    %v1017 = vadd.f32 0.0, %v1016
    %v1018 = vpop.f32.mrb[0].mxu0
    %1019 = vmatprep.mubr.f32.mxu0 %v629
    %1020 = vmatmul.mubr.f32.gmra.mrb[0].mxu0 %v628
    %v1021 = vpop.f32.mrb[0].mxu0
    %v1022 = vadd.f32 0.0, %v1021
    %v1023 = vpop.f32.mrb[0].mxu0
    %1024 = vmatprep.mubr.f32.mxu0 %v631
    %1025 = vmatmul.mubr.f32.gmra.mrb[0].mxu0 %v630
    %v1026 = vpop.f32.mrb[0].mxu0
    %v1027 = vadd.f32 0.0, %v1026
    %v1028 = vpop.f32.mrb[0].mxu0
    %1029 = vmatprep.mubr.f32.mxu0 %v633
    %1030 = vmatmul.mubr.f32.gmra.mrb[0].mxu0 %v632
    %v1031 = vpop.f32.mrb[0].mxu0
    %v1032 = vadd.f32 0.0, %v1031
    %v1033 = vpop.f32.mrb[0].mxu0
    %1034 = vmatprep.mubr.f32.mxu0 %v635
    %1035 = vmatmul.mubr.f32.gmra.mrb[0].mxu0 %v634
    %v1036 = vpop.f32.mrb[0].mxu0
    %v1037 = vadd.f32 0.0, %v1036
    %v1038 = vpop.f32.mrb[0].mxu0
    %1039 = vmatprep.mubr.f32.mxu0 %v637
    %1040 = vmatmul.mubr.f32.gmra.mrb[0].mxu0 %v636
    %v1041 = vpop.f32.mrb[0].mxu0
    %v1042 = vadd.f32 0.0, %v1041
    %v1043 = vpop.f32.mrb[0].mxu0
    %1044 = vmatprep.mubr.f32.mxu0 %v639
    %1045 = vmatmul.mubr.f32.gmra.mrb[0].mxu0 %v638
    %v1046 = vpop.f32.mrb[0].mxu0
    %v1047 = vadd.f32 0.0, %v1046
    %v1048 = vpop.f32.mrb[0].mxu0
    %1049 = vmatprep.mubr.f32.mxu0 %v641
    %1050 = vmatmul.mubr.f32.gmra.mrb[0].mxu0 %v640
    %v1051 = vpop.f32.mrb[0].mxu0
    %v1052 = vadd.f32 0.0, %v1051
    %v1053 = vpop.f32.mrb[0].mxu0
    %1054 = vmatprep.mubr.f32.mxu0 %v643
    %1055 = vmatmul.mubr.f32.gmra.mrb[0].mxu0 %v642
    %v1056 = vpop.f32.mrb[0].mxu0
    %v1057 = vadd.f32 0.0, %v1056
    %v1058 = vpop.f32.mrb[0].mxu0
    %1059 = vmatprep.mubr.f32.mxu0 %v645
    %1060 = vmatmul.mubr.f32.gmra.mrb[0].mxu0 %v644
    %v1061 = vpop.f32.mrb[0].mxu0
    %v1062 = vadd.f32 0.0, %v1061
    %v1063 = vpop.f32.mrb[0].mxu0
    %1064 = vmatprep.mubr.f32.mxu0 %v647
    %1065 = vmatmul.mubr.f32.gmra.mrb[0].mxu0 %v646
    %v1066 = vpop.f32.mrb[0].mxu0
    %v1067 = vadd.f32 0.0, %v1066
    %v1068 = vpop.f32.mrb[0].mxu0
    %1069 = vmatprep.mubr.f32.mxu0 %v649
    %1070 = vmatmul.mubr.f32.gmra.mrb[0].mxu0 %v648
    %v1071 = vpop.f32.mrb[0].mxu0
    %v1072 = vadd.f32 0.0, %v1071
    %v1073 = vpop.f32.mrb[0].mxu0
    %1074 = vmatprep.mubr.f32.mxu0 %v651
    %1075 = vmatmul.mubr.f32.gmra.mrb[0].mxu0 %v650
    %v1076 = vpop.f32.mrb[0].mxu0
    %v1077 = vadd.f32 0.0, %v1076
    %v1078 = vpop.f32.mrb[0].mxu0
    %1079 = vmatprep.mubr.f32.mxu0 %v653
    %1080 = vmatmul.mubr.f32.gmra.mrb[0].mxu0 %v652
    %v1081 = vpop.f32.mrb[0].mxu0
    %v1082 = vadd.f32 0.0, %v1081
    %v1083 = vpop.f32.mrb[0].mxu0
    %1084 = vmatprep.mubr.f32.mxu0 %v655
    %1085 = vmatmul.mubr.f32.gmra.mrb[0].mxu0 %v654
    %v1086 = vpop.f32.mrb[0].mxu0
    %v1087 = vadd.f32 0.0, %v1086
    %v1088 = vpop.f32.mrb[0].mxu0
    %1089 = vmatprep.mubr.f32.mxu0 %v657
    %1090 = vmatmul.mubr.f32.gmra.mrb[0].mxu0 %v656
    %v1091 = vpop.f32.mrb[0].mxu0
    %v1092 = vadd.f32 0.0, %v1091
    %v1093 = vpop.f32.mrb[0].mxu0
    %1094 = vmatprep.mubr.f32.mxu0 %v659
    %1095 = vmatmul.mubr.f32.gmra.mrb[0].mxu0 %v658
    %v1096 = vpop.f32.mrb[0].mxu0
    %v1097 = vadd.f32 0.0, %v1096
    %v1098 = vpop.f32.mrb[0].mxu0
    %1099 = vmatprep.mubr.f32.mxu0 %v661
    %1100 = vmatmul.mubr.f32.gmra.mrb[0].mxu0 %v660
    %v1101 = vpop.f32.mrb[0].mxu0
    %v1102 = vadd.f32 0.0, %v1101
    %v1103 = vpop.f32.mrb[0].mxu0
    %1104 = vmatprep.mubr.f32.mxu0 %v663
    %1105 = vmatmul.mubr.f32.gmra.mrb[0].mxu0 %v662
    %v1106 = vpop.f32.mrb[0].mxu0
    %v1107 = vadd.f32 0.0, %v1106
    %v1108 = vpop.f32.mrb[0].mxu0
    %1109 = vmatprep.mubr.f32.mxu0 %v665
    %1110 = vmatmul.mubr.f32.gmra.mrb[0].mxu0 %v664
    %v1111 = vpop.f32.mrb[0].mxu0
    %v1112 = vadd.f32 0.0, %v1111
    %v1113 = vpop.f32.mrb[0].mxu0
    %1114 = vdwg.mxu0
    %v1115 = vadd.f32 %v666, %v797
    %v1116 = vadd.f32 %v667, %v802
    %v1117 = vadd.f32 %v668, %v807
    %v1118 = vadd.f32 %v669, %v812
    %v1119 = vadd.f32 %v670, %v817
    %v1120 = vadd.f32 %v671, %v822
    %v1121 = vadd.f32 %v672, %v827
    %v1122 = vadd.f32 %v673, %v832
    %v1123 = vadd.f32 %v674, %v837
    %v1124 = vadd.f32 %v675, %v842
    %v1125 = vadd.f32 %v676, %v847
    %v1126 = vadd.f32 %v677, %v852
    %v1127 = vadd.f32 %v678, %v857
    %v1128 = vadd.f32 %v679, %v862
    %v1129 = vadd.f32 %v680, %v867
    %v1130 = vadd.f32 %v681, %v872
    %v1131 = vadd.f32 %v682, %v877
    %v1132 = vadd.f32 %v683, %v882
    %v1133 = vadd.f32 %v684, %v887
    %v1134 = vadd.f32 %v685, %v892
    %v1135 = vadd.f32 %v686, %v897
    %v1136 = vadd.f32 %v687, %v902
    %v1137 = vadd.f32 %v688, %v907
    %v1138 = vadd.f32 %v689, %v912
    %v1139 = vadd.f32 %v690, %v917
    %v1140 = vadd.f32 %v691, %v922
    %v1141 = vadd.f32 %v692, %v927
    %v1142 = vadd.f32 %v693, %v932
    %v1143 = vadd.f32 %v694, %v937
    %v1144 = vadd.f32 %v695, %v942
    %v1145 = vadd.f32 %v696, %v947
    %v1146 = vadd.f32 %v697, %v952
    %v1147 = vadd.f32 %v698, %v957
    %v1148 = vadd.f32 %v699, %v962
    %v1149 = vadd.f32 %v700, %v967
    %v1150 = vadd.f32 %v701, %v972
    %v1151 = vadd.f32 %v702, %v977
    %v1152 = vadd.f32 %v703, %v982
    %v1153 = vadd.f32 %v704, %v987
    %v1154 = vadd.f32 %v705, %v992
    %v1155 = vadd.f32 %v706, %v997
    %v1156 = vadd.f32 %v707, %v1002
    %v1157 = vadd.f32 %v708, %v1007
    %v1158 = vadd.f32 %v709, %v1012
    %v1159 = vadd.f32 %v710, %v1017
    %v1160 = vadd.f32 %v711, %v1022
    %v1161 = vadd.f32 %v712, %v1027
    %v1162 = vadd.f32 %v713, %v1032
    %v1163 = vadd.f32 %v714, %v1037
    %v1164 = vadd.f32 %v715, %v1042
    %v1165 = vadd.f32 %v716, %v1047
    %v1166 = vadd.f32 %v717, %v1052
    %v1167 = vadd.f32 %v718, %v1057
    %v1168 = vadd.f32 %v719, %v1062
    %v1169 = vadd.f32 %v720, %v1067
    %v1170 = vadd.f32 %v721, %v1072
    %v1171 = vadd.f32 %v722, %v1077
    %v1172 = vadd.f32 %v723, %v1082
    %v1173 = vadd.f32 %v724, %v1087
    %v1174 = vadd.f32 %v725, %v1092
    %v1175 = vadd.f32 %v726, %v1097
    %v1176 = vadd.f32 %v727, %v1102
    %v1177 = vadd.f32 %v728, %v1107
    %v1178 = vadd.f32 %v729, %v1112
    %1179 = vst [vmem:[#allocation2] sm:$0xff] %v1115
    %1180 = vst [vmem:[#allocation2 + $0x8] sm:$0xff] %v1116
    %1181 = vst [vmem:[#allocation2 + $0x10] sm:$0xff] %v1117
    %1182 = vst [vmem:[#allocation2 + $0x18] sm:$0xff] %v1118
    %1183 = vst [vmem:[#allocation2 + $0x20] sm:$0xff] %v1119
    %1184 = vst [vmem:[#allocation2 + $0x28] sm:$0xff] %v1120
    %1185 = vst [vmem:[#allocation2 + $0x30] sm:$0xff] %v1121
    %1186 = vst [vmem:[#allocation2 + $0x38] sm:$0xff] %v1122
    %1187 = vst [vmem:[#allocation2 + $0x40] sm:$0xff] %v1123
    %1188 = vst [vmem:[#allocation2 + $0x48] sm:$0xff] %v1124
    %1189 = vst [vmem:[#allocation2 + $0x50] sm:$0xff] %v1125
    %1190 = vst [vmem:[#allocation2 + $0x58] sm:$0xff] %v1126
    %1191 = vst [vmem:[#allocation2 + $0x60] sm:$0xff] %v1127
    %1192 = vst [vmem:[#allocation2 + $0x68] sm:$0xff] %v1128
    %1193 = vst [vmem:[#allocation2 + $0x70] sm:$0xff] %v1129
    %1194 = vst [vmem:[#allocation2 + $0x78] sm:$0xff] %v1130
    %1195 = vst [vmem:[#allocation2 + $0x80] sm:$0xff] %v1131
    %1196 = vst [vmem:[#allocation2 + $0x88] sm:$0xff] %v1132
    %1197 = vst [vmem:[#allocation2 + $0x90] sm:$0xff] %v1133
    %1198 = vst [vmem:[#allocation2 + $0x98] sm:$0xff] %v1134
    %1199 = vst [vmem:[#allocation2 + $0xa0] sm:$0xff] %v1135
    %1200 = vst [vmem:[#allocation2 + $0xa8] sm:$0xff] %v1136
    %1201 = vst [vmem:[#allocation2 + $0xb0] sm:$0xff] %v1137
    %1202 = vst [vmem:[#allocation2 + $0xb8] sm:$0xff] %v1138
    %1203 = vst [vmem:[#allocation2 + $0xc0] sm:$0xff] %v1139
    %1204 = vst [vmem:[#allocation2 + $0xc8] sm:$0xff] %v1140
    %1205 = vst [vmem:[#allocation2 + $0xd0] sm:$0xff] %v1141
    %1206 = vst [vmem:[#allocation2 + $0xd8] sm:$0xff] %v1142
    %1207 = vst [vmem:[#allocation2 + $0xe0] sm:$0xff] %v1143
    %1208 = vst [vmem:[#allocation2 + $0xe8] sm:$0xff] %v1144
    %1209 = vst [vmem:[#allocation2 + $0xf0] sm:$0xff] %v1145
    %1210 = vst [vmem:[#allocation2 + $0xf8] sm:$0xff] %v1146
    %1211 = vst [vmem:[#allocation2 + $0x100] sm:$0xff] %v1147
    %1212 = vst [vmem:[#allocation2 + $0x108] sm:$0xff] %v1148
    %1213 = vst [vmem:[#allocation2 + $0x110] sm:$0xff] %v1149
    %1214 = vst [vmem:[#allocation2 + $0x118] sm:$0xff] %v1150
    %1215 = vst [vmem:[#allocation2 + $0x120] sm:$0xff] %v1151
    %1216 = vst [vmem:[#allocation2 + $0x128] sm:$0xff] %v1152
    %1217 = vst [vmem:[#allocation2 + $0x130] sm:$0xff] %v1153
    %1218 = vst [vmem:[#allocation2 + $0x138] sm:$0xff] %v1154
    %1219 = vst [vmem:[#allocation2 + $0x140] sm:$0xff] %v1155
    %1220 = vst [vmem:[#allocation2 + $0x148] sm:$0xff] %v1156
    %1221 = vst [vmem:[#allocation2 + $0x150] sm:$0xff] %v1157
    %1222 = vst [vmem:[#allocation2 + $0x158] sm:$0xff] %v1158
    %1223 = vst [vmem:[#allocation2 + $0x160] sm:$0xff] %v1159
    %1224 = vst [vmem:[#allocation2 + $0x168] sm:$0xff] %v1160
    %1225 = vst [vmem:[#allocation2 + $0x170] sm:$0xff] %v1161
    %1226 = vst [vmem:[#allocation2 + $0x178] sm:$0xff] %v1162
    %1227 = vst [vmem:[#allocation2 + $0x180] sm:$0xff] %v1163
    %1228 = vst [vmem:[#allocation2 + $0x188] sm:$0xff] %v1164
    %1229 = vst [vmem:[#allocation2 + $0x190] sm:$0xff] %v1165
    %1230 = vst [vmem:[#allocation2 + $0x198] sm:$0xff] %v1166
    %1231 = vst [vmem:[#allocation2 + $0x1a0] sm:$0xff] %v1167
    %1232 = vst [vmem:[#allocation2 + $0x1a8] sm:$0xff] %v1168
    %1233 = vst [vmem:[#allocation2 + $0x1b0] sm:$0xff] %v1169
    %1234 = vst [vmem:[#allocation2 + $0x1b8] sm:$0xff] %v1170
    %1235 = vst [vmem:[#allocation2 + $0x1c0] sm:$0xff] %v1171
    %1236 = vst [vmem:[#allocation2 + $0x1c8] sm:$0xff] %v1172
    %1237 = vst [vmem:[#allocation2 + $0x1d0] sm:$0xff] %v1173
    %1238 = vst [vmem:[#allocation2 + $0x1d8] sm:$0xff] %v1174
    %1239 = vst [vmem:[#allocation2 + $0x1e0] sm:$0xff] %v1175
    %1240 = vst [vmem:[#allocation2 + $0x1e8] sm:$0xff] %v1176
    %1241 = vst [vmem:[#allocation2 + $0x1f0] sm:$0xff] %v1177
    %1242 = vst [vmem:[#allocation2 + $0x1f8] sm:$0xff] %v1178
    // Predicated region
    $region30: #{_lambda_.20} parent=1 // pred_check
      %p1243 = pneg %p54
    $region31: #{_lambda_.20} parent=1 // pred_check_branch
      %1245 = sbr.rel (%p1243) target = $region33
    $region32: #{_lambda_.20} parent=1 // pred_region
      %v1246 = vld [vmem:[#allocation2] sm:$0xff]
      %v1247 = vld [vmem:[#allocation2 + $0x8] sm:$0xff]
      %v1248 = vld [vmem:[#allocation2 + $0x10] sm:$0xff]
      %v1249 = vld [vmem:[#allocation2 + $0x18] sm:$0xff]
      %v1250 = vld [vmem:[#allocation2 + $0x20] sm:$0xff]
      %v1251 = vld [vmem:[#allocation2 + $0x28] sm:$0xff]
      %v1252 = vld [vmem:[#allocation2 + $0x30] sm:$0xff]
      %v1253 = vld [vmem:[#allocation2 + $0x38] sm:$0xff]
      %v1254 = vld [vmem:[#allocation2 + $0x40] sm:$0xff]
      %v1255 = vld [vmem:[#allocation2 + $0x48] sm:$0xff]
      %v1256 = vld [vmem:[#allocation2 + $0x50] sm:$0xff]
      %v1257 = vld [vmem:[#allocation2 + $0x58] sm:$0xff]
      %v1258 = vld [vmem:[#allocation2 + $0x60] sm:$0xff]
      %v1259 = vld [vmem:[#allocation2 + $0x68] sm:$0xff]
      %v1260 = vld [vmem:[#allocation2 + $0x70] sm:$0xff]
      %v1261 = vld [vmem:[#allocation2 + $0x78] sm:$0xff]
      %v1262 = vld [vmem:[#allocation2 + $0x80] sm:$0xff]
      %v1263 = vld [vmem:[#allocation2 + $0x88] sm:$0xff]
      %v1264 = vld [vmem:[#allocation2 + $0x90] sm:$0xff]
      %v1265 = vld [vmem:[#allocation2 + $0x98] sm:$0xff]
      %v1266 = vld [vmem:[#allocation2 + $0xa0] sm:$0xff]
      %v1267 = vld [vmem:[#allocation2 + $0xa8] sm:$0xff]
      %v1268 = vld [vmem:[#allocation2 + $0xb0] sm:$0xff]
      %v1269 = vld [vmem:[#allocation2 + $0xb8] sm:$0xff]
      %v1270 = vld [vmem:[#allocation2 + $0xc0] sm:$0xff]
      %v1271 = vld [vmem:[#allocation2 + $0xc8] sm:$0xff]
      %v1272 = vld [vmem:[#allocation2 + $0xd0] sm:$0xff]
      %v1273 = vld [vmem:[#allocation2 + $0xd8] sm:$0xff]
      %v1274 = vld [vmem:[#allocation2 + $0xe0] sm:$0xff]
      %v1275 = vld [vmem:[#allocation2 + $0xe8] sm:$0xff]
      %v1276 = vld [vmem:[#allocation2 + $0xf0] sm:$0xff]
      %v1277 = vld [vmem:[#allocation2 + $0xf8] sm:$0xff]
      %v1278 = vld [vmem:[#allocation2 + $0x100] sm:$0xff]
      %v1279 = vld [vmem:[#allocation2 + $0x108] sm:$0xff]
      %v1280 = vld [vmem:[#allocation2 + $0x110] sm:$0xff]
      %v1281 = vld [vmem:[#allocation2 + $0x118] sm:$0xff]
      %v1282 = vld [vmem:[#allocation2 + $0x120] sm:$0xff]
      %v1283 = vld [vmem:[#allocation2 + $0x128] sm:$0xff]
      %v1284 = vld [vmem:[#allocation2 + $0x130] sm:$0xff]
      %v1285 = vld [vmem:[#allocation2 + $0x138] sm:$0xff]
      %v1286 = vld [vmem:[#allocation2 + $0x140] sm:$0xff]
      %v1287 = vld [vmem:[#allocation2 + $0x148] sm:$0xff]
      %v1288 = vld [vmem:[#allocation2 + $0x150] sm:$0xff]
      %v1289 = vld [vmem:[#allocation2 + $0x158] sm:$0xff]
      %v1290 = vld [vmem:[#allocation2 + $0x160] sm:$0xff]
      %v1291 = vld [vmem:[#allocation2 + $0x168] sm:$0xff]
      %v1292 = vld [vmem:[#allocation2 + $0x170] sm:$0xff]
      %v1293 = vld [vmem:[#allocation2 + $0x178] sm:$0xff]
      %v1294 = vld [vmem:[#allocation2 + $0x180] sm:$0xff]
      %v1295 = vld [vmem:[#allocation2 + $0x188] sm:$0xff]
      %v1296 = vld [vmem:[#allocation2 + $0x190] sm:$0xff]
      %v1297 = vld [vmem:[#allocation2 + $0x198] sm:$0xff]
      %v1298 = vld [vmem:[#allocation2 + $0x1a0] sm:$0xff]
      %v1299 = vld [vmem:[#allocation2 + $0x1a8] sm:$0xff]
      %v1300 = vld [vmem:[#allocation2 + $0x1b0] sm:$0xff]
      %v1301 = vld [vmem:[#allocation2 + $0x1b8] sm:$0xff]
      %v1302 = vld [vmem:[#allocation2 + $0x1c0] sm:$0xff]
      %v1303 = vld [vmem:[#allocation2 + $0x1c8] sm:$0xff]
      %v1304 = vld [vmem:[#allocation2 + $0x1d0] sm:$0xff]
      %v1305 = vld [vmem:[#allocation2 + $0x1d8] sm:$0xff]
      %v1306 = vld [vmem:[#allocation2 + $0x1e0] sm:$0xff]
      %v1307 = vld [vmem:[#allocation2 + $0x1e8] sm:$0xff]
      %v1308 = vld [vmem:[#allocation2 + $0x1f0] sm:$0xff]
      %v1309 = vld [vmem:[#allocation2 + $0x1f8] sm:$0xff]
      %v1310 = vld [vmem:[#allocation8] sm:$0x1]
      %v1312 = vlaneseq
      %v1313 = vshrl.u32 %v1312, 7
      %v1314 = vsub.s32 0, %v1313
      %v1315 = vrot.slane %v1310, %v1314
      %v1317 = vadd.f32 %v1246, %v1315
      %v1318 = vadd.f32 %v1247, %v1315
      %v1319 = vadd.f32 %v1248, %v1315
      %v1320 = vadd.f32 %v1249, %v1315
      %v1321 = vadd.f32 %v1250, %v1315
      %v1322 = vadd.f32 %v1251, %v1315
      %v1323 = vadd.f32 %v1252, %v1315
      %v1324 = vadd.f32 %v1253, %v1315
      %v1325 = vadd.f32 %v1254, %v1315
      %v1326 = vadd.f32 %v1255, %v1315
      %v1327 = vadd.f32 %v1256, %v1315
      %v1328 = vadd.f32 %v1257, %v1315
      %v1329 = vadd.f32 %v1258, %v1315
      %v1330 = vadd.f32 %v1259, %v1315
      %v1331 = vadd.f32 %v1260, %v1315
      %v1332 = vadd.f32 %v1261, %v1315
      %v1333 = vadd.f32 %v1262, %v1315
      %v1334 = vadd.f32 %v1263, %v1315
      %v1335 = vadd.f32 %v1264, %v1315
      %v1336 = vadd.f32 %v1265, %v1315
      %v1337 = vadd.f32 %v1266, %v1315
      %v1338 = vadd.f32 %v1267, %v1315
      %v1339 = vadd.f32 %v1268, %v1315
      %v1340 = vadd.f32 %v1269, %v1315
      %v1341 = vadd.f32 %v1270, %v1315
      %v1342 = vadd.f32 %v1271, %v1315
      %v1343 = vadd.f32 %v1272, %v1315
      %v1344 = vadd.f32 %v1273, %v1315
      %v1345 = vadd.f32 %v1274, %v1315
      %v1346 = vadd.f32 %v1275, %v1315
      %v1347 = vadd.f32 %v1276, %v1315
      %v1348 = vadd.f32 %v1277, %v1315
      %v1349 = vadd.f32 %v1278, %v1315
      %v1350 = vadd.f32 %v1279, %v1315
      %v1351 = vadd.f32 %v1280, %v1315
      %v1352 = vadd.f32 %v1281, %v1315
      %v1353 = vadd.f32 %v1282, %v1315
      %v1354 = vadd.f32 %v1283, %v1315
      %v1355 = vadd.f32 %v1284, %v1315
      %v1356 = vadd.f32 %v1285, %v1315
      %v1357 = vadd.f32 %v1286, %v1315
      %v1358 = vadd.f32 %v1287, %v1315
      %v1359 = vadd.f32 %v1288, %v1315
      %v1360 = vadd.f32 %v1289, %v1315
      %v1361 = vadd.f32 %v1290, %v1315
      %v1362 = vadd.f32 %v1291, %v1315
      %v1363 = vadd.f32 %v1292, %v1315
      %v1364 = vadd.f32 %v1293, %v1315
      %v1365 = vadd.f32 %v1294, %v1315
      %v1366 = vadd.f32 %v1295, %v1315
      %v1367 = vadd.f32 %v1296, %v1315
      %v1368 = vadd.f32 %v1297, %v1315
      %v1369 = vadd.f32 %v1298, %v1315
      %v1370 = vadd.f32 %v1299, %v1315
      %v1371 = vadd.f32 %v1300, %v1315
      %v1372 = vadd.f32 %v1301, %v1315
      %v1373 = vadd.f32 %v1302, %v1315
      %v1374 = vadd.f32 %v1303, %v1315
      %v1375 = vadd.f32 %v1304, %v1315
      %v1376 = vadd.f32 %v1305, %v1315
      %v1377 = vadd.f32 %v1306, %v1315
      %v1378 = vadd.f32 %v1307, %v1315
      %v1379 = vadd.f32 %v1308, %v1315
      %v1380 = vadd.f32 %v1309, %v1315
      %1381 = vst [vmem:[#allocation9] sm:$0xff] %v1317
      %1382 = vst [vmem:[#allocation9 + $0x8] sm:$0xff] %v1318
      %1383 = vst [vmem:[#allocation9 + $0x10] sm:$0xff] %v1319
      %1384 = vst [vmem:[#allocation9 + $0x18] sm:$0xff] %v1320
      %1385 = vst [vmem:[#allocation9 + $0x20] sm:$0xff] %v1321
      %1386 = vst [vmem:[#allocation9 + $0x28] sm:$0xff] %v1322
      %1387 = vst [vmem:[#allocation9 + $0x30] sm:$0xff] %v1323
      %1388 = vst [vmem:[#allocation9 + $0x38] sm:$0xff] %v1324
      %1389 = vst [vmem:[#allocation9 + $0x40] sm:$0xff] %v1325
      %1390 = vst [vmem:[#allocation9 + $0x48] sm:$0xff] %v1326
      %1391 = vst [vmem:[#allocation9 + $0x50] sm:$0xff] %v1327
      %1392 = vst [vmem:[#allocation9 + $0x58] sm:$0xff] %v1328
      %1393 = vst [vmem:[#allocation9 + $0x60] sm:$0xff] %v1329
      %1394 = vst [vmem:[#allocation9 + $0x68] sm:$0xff] %v1330
      %1395 = vst [vmem:[#allocation9 + $0x70] sm:$0xff] %v1331
      %1396 = vst [vmem:[#allocation9 + $0x78] sm:$0xff] %v1332
      %1397 = vst [vmem:[#allocation9 + $0x80] sm:$0xff] %v1333
      %1398 = vst [vmem:[#allocation9 + $0x88] sm:$0xff] %v1334
      %1399 = vst [vmem:[#allocation9 + $0x90] sm:$0xff] %v1335
      %1400 = vst [vmem:[#allocation9 + $0x98] sm:$0xff] %v1336
      %1401 = vst [vmem:[#allocation9 + $0xa0] sm:$0xff] %v1337
      %1402 = vst [vmem:[#allocation9 + $0xa8] sm:$0xff] %v1338
      %1403 = vst [vmem:[#allocation9 + $0xb0] sm:$0xff] %v1339
      %1404 = vst [vmem:[#allocation9 + $0xb8] sm:$0xff] %v1340
      %1405 = vst [vmem:[#allocation9 + $0xc0] sm:$0xff] %v1341
      %1406 = vst [vmem:[#allocation9 + $0xc8] sm:$0xff] %v1342
      %1407 = vst [vmem:[#allocation9 + $0xd0] sm:$0xff] %v1343
      %1408 = vst [vmem:[#allocation9 + $0xd8] sm:$0xff] %v1344
      %1409 = vst [vmem:[#allocation9 + $0xe0] sm:$0xff] %v1345
      %1410 = vst [vmem:[#allocation9 + $0xe8] sm:$0xff] %v1346
      %1411 = vst [vmem:[#allocation9 + $0xf0] sm:$0xff] %v1347
      %1412 = vst [vmem:[#allocation9 + $0xf8] sm:$0xff] %v1348
      %1413 = vst [vmem:[#allocation9 + $0x100] sm:$0xff] %v1349
      %1414 = vst [vmem:[#allocation9 + $0x108] sm:$0xff] %v1350
      %1415 = vst [vmem:[#allocation9 + $0x110] sm:$0xff] %v1351
      %1416 = vst [vmem:[#allocation9 + $0x118] sm:$0xff] %v1352
      %1417 = vst [vmem:[#allocation9 + $0x120] sm:$0xff] %v1353
      %1418 = vst [vmem:[#allocation9 + $0x128] sm:$0xff] %v1354
      %1419 = vst [vmem:[#allocation9 + $0x130] sm:$0xff] %v1355
      %1420 = vst [vmem:[#allocation9 + $0x138] sm:$0xff] %v1356
      %1421 = vst [vmem:[#allocation9 + $0x140] sm:$0xff] %v1357
      %1422 = vst [vmem:[#allocation9 + $0x148] sm:$0xff] %v1358
      %1423 = vst [vmem:[#allocation9 + $0x150] sm:$0xff] %v1359
      %1424 = vst [vmem:[#allocation9 + $0x158] sm:$0xff] %v1360
      %1425 = vst [vmem:[#allocation9 + $0x160] sm:$0xff] %v1361
      %1426 = vst [vmem:[#allocation9 + $0x168] sm:$0xff] %v1362
      %1427 = vst [vmem:[#allocation9 + $0x170] sm:$0xff] %v1363
      %1428 = vst [vmem:[#allocation9 + $0x178] sm:$0xff] %v1364
      %1429 = vst [vmem:[#allocation9 + $0x180] sm:$0xff] %v1365
      %1430 = vst [vmem:[#allocation9 + $0x188] sm:$0xff] %v1366
      %1431 = vst [vmem:[#allocation9 + $0x190] sm:$0xff] %v1367
      %1432 = vst [vmem:[#allocation9 + $0x198] sm:$0xff] %v1368
      %1433 = vst [vmem:[#allocation9 + $0x1a0] sm:$0xff] %v1369
      %1434 = vst [vmem:[#allocation9 + $0x1a8] sm:$0xff] %v1370
      %1435 = vst [vmem:[#allocation9 + $0x1b0] sm:$0xff] %v1371
      %1436 = vst [vmem:[#allocation9 + $0x1b8] sm:$0xff] %v1372
      %1437 = vst [vmem:[#allocation9 + $0x1c0] sm:$0xff] %v1373
      %1438 = vst [vmem:[#allocation9 + $0x1c8] sm:$0xff] %v1374
      %1439 = vst [vmem:[#allocation9 + $0x1d0] sm:$0xff] %v1375
      %1440 = vst [vmem:[#allocation9 + $0x1d8] sm:$0xff] %v1376
      %1441 = vst [vmem:[#allocation9 + $0x1e0] sm:$0xff] %v1377
      %1442 = vst [vmem:[#allocation9 + $0x1e8] sm:$0xff] %v1378
      %1443 = vst [vmem:[#allocation9 + $0x1f0] sm:$0xff] %v1379
      %1444 = vst [vmem:[#allocation9 + $0x1f8] sm:$0xff] %v1380
    $region33: #{_lambda_.20} parent=1 // pred_fallthru
      _
    // Predicated region
    $region34: #{_lambda_.20} parent=1 // pred_check
      _
    $region35: #{_lambda_.20} parent=1 // pred_check_branch
      %1446 = sbr.rel (0) target = $region37
    $region36: #{_lambda_.20} parent=1 // pred_region
      %s1448 = ssub.s32 8192, 8192
      %1449 = vsyncadd [#allocation5], %s1448
      %s1450 = sshll.u32 [#allocation9], 4
      %s1451 = int_to_ptr.vmem [resolvable:$true] %s1450
      %1456 = dma.vmem_to_hbm [thread:$0]  %s1451, 8192, %s3, [#allocation5], 128, 128, 8
    $region37: #{_lambda_.20} parent=1 // pred_fallthru
      _
    // Predicated region
    $region38: #{_lambda_.20} parent=1 // pred_check
      _
    $region39: #{_lambda_.20} parent=1 // pred_check_branch
      %1458 = sbr.rel (0) target = $region41
    $region40: #{_lambda_.20} parent=1 // pred_region
      %1459 = dma.done [#allocation5], 8192
    $region41: #{_lambda_.20} parent=1 // pred_fallthru
      _
    %1460 = vsyncpa [#allocation4], 1
    %1461 = vsyncpa [#allocation7], 1
    %1462 = vsyncpa [#allocation5], 1

// kernel: _lambda_.22
$region0: #{_lambda_.22}
  #allocation0 [shape = 'u32[]', space=smem, size = 0x4, offset = 0x4, fixed_abs, tag = 'smem constant byte address 0x4 - core index']
  #allocation1 [shape = 'u32[144,128]{1,0:T(1,128)}', space=vmem, size = 0x12000, scoped, tag = 'internal scratch']
  #allocation2 [shape = 'f32[128,128]{1,0:T(8,128)}', space=vmem, size = 0x10000, scoped, tag = 'scratch operand']
  %s0 = inlined_call_operand.hbm [shape: f32[128,256], index: 0, kind: input, shape index: {}]
  %s1 = inlined_call_operand.hbm [shape: f32[256,128], index: 1, kind: input, shape index: {}]
  %s2 = inlined_call_operand.hbm [shape: f32[1,128], index: 2, kind: input, shape index: {}]
  %s3 = inlined_call_operand.hbm [shape: f32[128,128], index: 3, kind: input, shape index: {}]
  %s4 = inlined_call_operand.hbm [shape: f32[128,128], index: 4, kind: output, shape index: {}]
  %s5 = sld [smem:[#allocation0]]
  $region50: #{_lambda_.22} parent=0
    _
  %s7 = ssub.s32 1, %s5
  %s8 = scalar_select 0, %s7, %s5
  $region1: #{_lambda_.22} parent=0
    #allocation3 [shape = 'u8[131072]{0}', space=vmem, size = 0x20000, scoped, tag = 'input window, operand 0, single buffered']
    #allocation4 [shape = 's32[1]{0}', space=sflag, size = 0x4, scoped, tag = 'scoped memory for _lambda_.22']
    #allocation5 [shape = 's32[1]{0}', space=sflag, size = 0x4, scoped, tag = 'scoped memory for _lambda_.22']
    #allocation6 [shape = 'u8[131072]{0}', space=vmem, size = 0x20000, scoped, tag = 'input window, operand 1, single buffered']
    #allocation7 [shape = 's32[1]{0}', space=sflag, size = 0x4, scoped, tag = 'scoped memory for _lambda_.22']
    #allocation8 [shape = 'u8[512]{0}', space=vmem, size = 0x400, scoped, tag = 'input window, operand 2, single buffered']
    #allocation9 [shape = 'u8[65536]{0}', space=vmem, size = 0x10000, scoped, tag = 'input window, operand 3, single buffered']
    #allocation10 [shape = 's32[1]{0}', space=sflag, size = 0x4, scoped, tag = 'scoped memory for _lambda_.22']
    #allocation11 [shape = 'u8[65536]{0}', space=vmem, size = 0x10000, scoped, tag = 'output window, operand 0, single buffered']
    %9 = vsyncpa [#allocation4], 0
    %10 = vsyncpa [#allocation7], 0
    %11 = vsyncpa [#allocation10], 0
    %12 = vsyncpa [#allocation5], 0
    // Predicated region
    $region2: #{_lambda_.22} parent=1 // pred_check
      _
    $region3: #{_lambda_.22} parent=1 // pred_check_branch
      %14 = sbr.rel (0) target = $region5
    $region4: #{_lambda_.22} parent=1 // pred_region
      %s16 = ssub.s32 4096, 4096
      %17 = vsyncadd [#allocation4], %s16
      %s18 = sshll.u32 [#allocation3], 4
      %s19 = int_to_ptr.vmem [resolvable:$true] %s18
      %24 = dma.hbm_to_vmem [thread:$0]  %s0, 4096, %s19, [#allocation4], 256, 256, 16
    $region5: #{_lambda_.22} parent=1 // pred_fallthru
      _
    // Predicated region
    $region6: #{_lambda_.22} parent=1 // pred_check
      _
    $region7: #{_lambda_.22} parent=1 // pred_check_branch
      %26 = sbr.rel (0) target = $region9
    $region8: #{_lambda_.22} parent=1 // pred_region
      %s28 = ssub.s32 4096, 4096
      %29 = vsyncadd [#allocation7], %s28
      %s30 = sshll.u32 [#allocation6], 4
      %s31 = int_to_ptr.vmem [resolvable:$true] %s30
      %36 = dma.hbm_to_vmem [thread:$0]  %s1, 4096, %s31, [#allocation7], 128, 128, 8
    $region9: #{_lambda_.22} parent=1 // pred_fallthru
      _
    // Predicated region
    $region10: #{_lambda_.22} parent=1 // pred_check
      _
    $region11: #{_lambda_.22} parent=1 // pred_check_branch
      %38 = sbr.rel (0) target = $region13
    $region12: #{_lambda_.22} parent=1 // pred_region
      %s40 = ssub.s32 16, 16
      %41 = vsyncadd [#allocation7], %s40
      %s43 = sshll.u32 [#allocation8], 4
      %s44 = int_to_ptr.vmem [resolvable:$true] %s43
      %46 = dma.hbm_to_vmem [thread:$0]  %s2, 16, %s44, [#allocation7]
    $region13: #{_lambda_.22} parent=1 // pred_fallthru
      _
    // Predicated region
    $region14: #{_lambda_.22} parent=1 // pred_check
      _
    $region15: #{_lambda_.22} parent=1 // pred_check_branch
      %48 = sbr.rel (0) target = $region17
    $region16: #{_lambda_.22} parent=1 // pred_region
      %s50 = ssub.s32 2048, 2048
      %51 = vsyncadd [#allocation10], %s50
      %s52 = sshll.u32 [#allocation9], 4
      %s53 = int_to_ptr.vmem [resolvable:$true] %s52
      %58 = dma.hbm_to_vmem [thread:$0]  %s3, 2048, %s53, [#allocation10], 128, 128, 8
    $region17: #{_lambda_.22} parent=1 // pred_fallthru
      _
    // Predicated region
    $region18: #{_lambda_.22} parent=1 // pred_check
      _
    $region19: #{_lambda_.22} parent=1 // pred_check_branch
      %60 = sbr.rel (0) target = $region21
    $region20: #{_lambda_.22} parent=1 // pred_region
      %61 = dma.done [#allocation4], 4096
    $region21: #{_lambda_.22} parent=1 // pred_fallthru
      _
    // Predicated region
    $region22: #{_lambda_.22} parent=1 // pred_check
      _
    $region23: #{_lambda_.22} parent=1 // pred_check_branch
      %63 = sbr.rel (0) target = $region25
    $region24: #{_lambda_.22} parent=1 // pred_region
      %64 = dma.done [#allocation7], 4096
    $region25: #{_lambda_.22} parent=1 // pred_fallthru
      _
    // Predicated region
    $region26: #{_lambda_.22} parent=1 // pred_check
      _
    $region27: #{_lambda_.22} parent=1 // pred_check_branch
      %66 = sbr.rel (0) target = $region29
    $region28: #{_lambda_.22} parent=1 // pred_region
      %67 = dma.done [#allocation7], 16
    $region29: #{_lambda_.22} parent=1 // pred_fallthru
      _
    // Predicated region
    $region30: #{_lambda_.22} parent=1 // pred_check
      _
    $region31: #{_lambda_.22} parent=1 // pred_check_branch
      %69 = sbr.rel (0) target = $region33
    $region32: #{_lambda_.22} parent=1 // pred_region
      %70 = dma.done [#allocation10], 2048
    $region33: #{_lambda_.22} parent=1 // pred_fallthru
      _
    %p71 = scmp.eq.s32.totalorder 0, 0
    // Predicated region
    $region34: #{_lambda_.22} parent=1 // pred_check
      %p72 = pneg %p71
    $region35: #{_lambda_.22} parent=1 // pred_check_branch
      %74 = sbr.rel (%p72) target = $region37
    $region36: #{_lambda_.22} parent=1 // pred_region
      %75 = vst [vmem:[#allocation2] sm:$0xff] 0.0
      %76 = vst [vmem:[#allocation2 + $0x8] sm:$0xff] 0.0
      %77 = vst [vmem:[#allocation2 + $0x10] sm:$0xff] 0.0
      %78 = vst [vmem:[#allocation2 + $0x18] sm:$0xff] 0.0
      %79 = vst [vmem:[#allocation2 + $0x20] sm:$0xff] 0.0
      %80 = vst [vmem:[#allocation2 + $0x28] sm:$0xff] 0.0
      %81 = vst [vmem:[#allocation2 + $0x30] sm:$0xff] 0.0
      %82 = vst [vmem:[#allocation2 + $0x38] sm:$0xff] 0.0
      %83 = vst [vmem:[#allocation2 + $0x40] sm:$0xff] 0.0
      %84 = vst [vmem:[#allocation2 + $0x48] sm:$0xff] 0.0
      %85 = vst [vmem:[#allocation2 + $0x50] sm:$0xff] 0.0
      %86 = vst [vmem:[#allocation2 + $0x58] sm:$0xff] 0.0
      %87 = vst [vmem:[#allocation2 + $0x60] sm:$0xff] 0.0
      %88 = vst [vmem:[#allocation2 + $0x68] sm:$0xff] 0.0
      %89 = vst [vmem:[#allocation2 + $0x70] sm:$0xff] 0.0
      %90 = vst [vmem:[#allocation2 + $0x78] sm:$0xff] 0.0
    $region37: #{_lambda_.22} parent=1 // pred_fallthru
      _
    %v91 = vld [vmem:[#allocation3] sm:$0xff]
    %v92 = vld [vmem:[#allocation3 + $0x8] sm:$0xff]
    %v93 = vld [vmem:[#allocation3 + $0x10] sm:$0xff]
    %v94 = vld [vmem:[#allocation3 + $0x18] sm:$0xff]
    %v95 = vld [vmem:[#allocation3 + $0x20] sm:$0xff]
    %v96 = vld [vmem:[#allocation3 + $0x28] sm:$0xff]
    %v97 = vld [vmem:[#allocation3 + $0x30] sm:$0xff]
    %v98 = vld [vmem:[#allocation3 + $0x38] sm:$0xff]
    %v99 = vld [vmem:[#allocation3 + $0x40] sm:$0xff]
    %v100 = vld [vmem:[#allocation3 + $0x48] sm:$0xff]
    %v101 = vld [vmem:[#allocation3 + $0x50] sm:$0xff]
    %v102 = vld [vmem:[#allocation3 + $0x58] sm:$0xff]
    %v103 = vld [vmem:[#allocation3 + $0x60] sm:$0xff]
    %v104 = vld [vmem:[#allocation3 + $0x68] sm:$0xff]
    %v105 = vld [vmem:[#allocation3 + $0x70] sm:$0xff]
    %v106 = vld [vmem:[#allocation3 + $0x78] sm:$0xff]
    %v107 = vld [vmem:[#allocation3 + $0x80] sm:$0xff]
    %v108 = vld [vmem:[#allocation3 + $0x88] sm:$0xff]
    %v109 = vld [vmem:[#allocation3 + $0x90] sm:$0xff]
    %v110 = vld [vmem:[#allocation3 + $0x98] sm:$0xff]
    %v111 = vld [vmem:[#allocation3 + $0xa0] sm:$0xff]
    %v112 = vld [vmem:[#allocation3 + $0xa8] sm:$0xff]
    %v113 = vld [vmem:[#allocation3 + $0xb0] sm:$0xff]
    %v114 = vld [vmem:[#allocation3 + $0xb8] sm:$0xff]
    %v115 = vld [vmem:[#allocation3 + $0xc0] sm:$0xff]
    %v116 = vld [vmem:[#allocation3 + $0xc8] sm:$0xff]
    %v117 = vld [vmem:[#allocation3 + $0xd0] sm:$0xff]
    %v118 = vld [vmem:[#allocation3 + $0xd8] sm:$0xff]
    %v119 = vld [vmem:[#allocation3 + $0xe0] sm:$0xff]
    %v120 = vld [vmem:[#allocation3 + $0xe8] sm:$0xff]
    %v121 = vld [vmem:[#allocation3 + $0xf0] sm:$0xff]
    %v122 = vld [vmem:[#allocation3 + $0xf8] sm:$0xff]
    %v123 = vld [vmem:[#allocation6] sm:$0xff]
    %v124 = vld [vmem:[#allocation6 + $0x8] sm:$0xff]
    %v125 = vld [vmem:[#allocation6 + $0x10] sm:$0xff]
    %v126 = vld [vmem:[#allocation6 + $0x18] sm:$0xff]
    %v127 = vld [vmem:[#allocation6 + $0x20] sm:$0xff]
    %v128 = vld [vmem:[#allocation6 + $0x28] sm:$0xff]
    %v129 = vld [vmem:[#allocation6 + $0x30] sm:$0xff]
    %v130 = vld [vmem:[#allocation6 + $0x38] sm:$0xff]
    %v131 = vld [vmem:[#allocation6 + $0x40] sm:$0xff]
    %v132 = vld [vmem:[#allocation6 + $0x48] sm:$0xff]
    %v133 = vld [vmem:[#allocation6 + $0x50] sm:$0xff]
    %v134 = vld [vmem:[#allocation6 + $0x58] sm:$0xff]
    %v135 = vld [vmem:[#allocation6 + $0x60] sm:$0xff]
    %v136 = vld [vmem:[#allocation6 + $0x68] sm:$0xff]
    %v137 = vld [vmem:[#allocation6 + $0x70] sm:$0xff]
    %v138 = vld [vmem:[#allocation6 + $0x78] sm:$0xff]
    %v139 = vld [vmem:[#allocation6 + $0x80] sm:$0xff]
    %v140 = vld [vmem:[#allocation6 + $0x88] sm:$0xff]
    %v141 = vld [vmem:[#allocation6 + $0x90] sm:$0xff]
    %v142 = vld [vmem:[#allocation6 + $0x98] sm:$0xff]
    %v143 = vld [vmem:[#allocation6 + $0xa0] sm:$0xff]
    %v144 = vld [vmem:[#allocation6 + $0xa8] sm:$0xff]
    %v145 = vld [vmem:[#allocation6 + $0xb0] sm:$0xff]
    %v146 = vld [vmem:[#allocation6 + $0xb8] sm:$0xff]
    %v147 = vld [vmem:[#allocation6 + $0xc0] sm:$0xff]
    %v148 = vld [vmem:[#allocation6 + $0xc8] sm:$0xff]
    %v149 = vld [vmem:[#allocation6 + $0xd0] sm:$0xff]
    %v150 = vld [vmem:[#allocation6 + $0xd8] sm:$0xff]
    %v151 = vld [vmem:[#allocation6 + $0xe0] sm:$0xff]
    %v152 = vld [vmem:[#allocation6 + $0xe8] sm:$0xff]
    %v153 = vld [vmem:[#allocation6 + $0xf0] sm:$0xff]
    %v154 = vld [vmem:[#allocation6 + $0xf8] sm:$0xff]
    %v155 = vld [vmem:[#allocation2] sm:$0xff]
    %v156 = vld [vmem:[#allocation2 + $0x8] sm:$0xff]
    %v157 = vld [vmem:[#allocation2 + $0x10] sm:$0xff]
    %v158 = vld [vmem:[#allocation2 + $0x18] sm:$0xff]
    %v159 = vld [vmem:[#allocation2 + $0x20] sm:$0xff]
    %v160 = vld [vmem:[#allocation2 + $0x28] sm:$0xff]
    %v161 = vld [vmem:[#allocation2 + $0x30] sm:$0xff]
    %v162 = vld [vmem:[#allocation2 + $0x38] sm:$0xff]
    %v163 = vld [vmem:[#allocation2 + $0x40] sm:$0xff]
    %v164 = vld [vmem:[#allocation2 + $0x48] sm:$0xff]
    %v165 = vld [vmem:[#allocation2 + $0x50] sm:$0xff]
    %v166 = vld [vmem:[#allocation2 + $0x58] sm:$0xff]
    %v167 = vld [vmem:[#allocation2 + $0x60] sm:$0xff]
    %v168 = vld [vmem:[#allocation2 + $0x68] sm:$0xff]
    %v169 = vld [vmem:[#allocation2 + $0x70] sm:$0xff]
    %v170 = vld [vmem:[#allocation2 + $0x78] sm:$0xff]
    %171 = vmatprep.subr.mxu0 0.0
    %172 = vmatpush1.msra.mxu0 %v123
    %173 = vmatprep.subr.mxu0 0.0
    %174 = vmatpush1.msra.mxu0 %v124
    %175 = vmatprep.subr.mxu0 0.0
    %176 = vmatpush1.msra.mxu0 %v125
    %177 = vmatprep.subr.mxu0 0.0
    %178 = vmatpush1.msra.mxu0 %v126
    %179 = vmatprep.subr.mxu0 0.0
    %180 = vmatpush1.msra.mxu0 %v127
    %181 = vmatprep.subr.mxu0 0.0
    %182 = vmatpush1.msra.mxu0 %v128
    %183 = vmatprep.subr.mxu0 0.0
    %184 = vmatpush1.msra.mxu0 %v129
    %185 = vmatprep.subr.mxu0 0.0
    %186 = vmatpush1.msra.mxu0 %v130
    %187 = vmatprep.subr.mxu0 0.0
    %188 = vmatpush1.msra.mxu0 %v131
    %189 = vmatprep.subr.mxu0 0.0
    %190 = vmatpush1.msra.mxu0 %v132
    %191 = vmatprep.subr.mxu0 0.0
    %192 = vmatpush1.msra.mxu0 %v133
    %193 = vmatprep.subr.mxu0 0.0
    %194 = vmatpush1.msra.mxu0 %v134
    %195 = vmatprep.subr.mxu0 0.0
    %196 = vmatpush1.msra.mxu0 %v135
    %197 = vmatprep.subr.mxu0 0.0
    %198 = vmatpush1.msra.mxu0 %v136
    %199 = vmatprep.subr.mxu0 0.0
    %200 = vmatpush1.msra.mxu0 %v137
    %201 = vmatprep.subr.mxu0 0.0
    %202 = vmatpush1.msra.mxu0 %v138
    %203 = vmatprep.subr.mxu0 0.0
    %204 = vmatpush1.msra.mxu0 %v139
    %205 = vmatprep.subr.mxu0 0.0
    %206 = vmatpush1.msra.mxu0 %v140
    %207 = vmatprep.subr.mxu0 0.0
    %208 = vmatpush1.msra.mxu0 %v141
    %209 = vmatprep.subr.mxu0 0.0
    %210 = vmatpush1.msra.mxu0 %v142
    %211 = vmatprep.subr.mxu0 0.0
    %212 = vmatpush1.msra.mxu0 %v143
    %213 = vmatprep.subr.mxu0 0.0
    %214 = vmatpush1.msra.mxu0 %v144
    %215 = vmatprep.subr.mxu0 0.0
    %216 = vmatpush1.msra.mxu0 %v145
    %217 = vmatprep.subr.mxu0 0.0
    %218 = vmatpush1.msra.mxu0 %v146
    %219 = vmatprep.subr.mxu0 0.0
    %220 = vmatpush1.msra.mxu0 %v147
    %221 = vmatprep.subr.mxu0 0.0
    %222 = vmatpush1.msra.mxu0 %v148
    %223 = vmatprep.subr.mxu0 0.0
    %224 = vmatpush1.msra.mxu0 %v149
    %225 = vmatprep.subr.mxu0 0.0
    %226 = vmatpush1.msra.mxu0 %v150
    %227 = vmatprep.subr.mxu0 0.0
    %228 = vmatpush1.msra.mxu0 %v151
    %229 = vmatprep.subr.mxu0 0.0
    %230 = vmatpush1.msra.mxu0 %v152
    %231 = vmatprep.subr.mxu0 0.0
    %232 = vmatpush1.msra.mxu0 %v153
    %233 = vmatprep.subr.mxu0 0.0
    %234 = vmatpush1.msra.mxu0 %v154
    %235 = vmatprep.mubr.f32.mxu0 %v92
    %236 = vmatmul.mubr.f32.gmra.mrb[0].mxu0 %v91
    %v237 = vpop.f32.mrb[0].mxu0
    %v238 = vadd.f32 0.0, %v237
    %v239 = vpop.f32.mrb[0].mxu0
    %240 = vmatprep.mubr.f32.mxu0 %v94
    %241 = vmatmul.mubr.f32.gmra.mrb[0].mxu0 %v93
    %v242 = vpop.f32.mrb[0].mxu0
    %v243 = vadd.f32 0.0, %v242
    %v244 = vpop.f32.mrb[0].mxu0
    %245 = vmatprep.mubr.f32.mxu0 %v96
    %246 = vmatmul.mubr.f32.gmra.mrb[0].mxu0 %v95
    %v247 = vpop.f32.mrb[0].mxu0
    %v248 = vadd.f32 0.0, %v247
    %v249 = vpop.f32.mrb[0].mxu0
    %250 = vmatprep.mubr.f32.mxu0 %v98
    %251 = vmatmul.mubr.f32.gmra.mrb[0].mxu0 %v97
    %v252 = vpop.f32.mrb[0].mxu0
    %v253 = vadd.f32 0.0, %v252
    %v254 = vpop.f32.mrb[0].mxu0
    %255 = vmatprep.mubr.f32.mxu0 %v100
    %256 = vmatmul.mubr.f32.gmra.mrb[0].mxu0 %v99
    %v257 = vpop.f32.mrb[0].mxu0
    %v258 = vadd.f32 0.0, %v257
    %v259 = vpop.f32.mrb[0].mxu0
    %260 = vmatprep.mubr.f32.mxu0 %v102
    %261 = vmatmul.mubr.f32.gmra.mrb[0].mxu0 %v101
    %v262 = vpop.f32.mrb[0].mxu0
    %v263 = vadd.f32 0.0, %v262
    %v264 = vpop.f32.mrb[0].mxu0
    %265 = vmatprep.mubr.f32.mxu0 %v104
    %266 = vmatmul.mubr.f32.gmra.mrb[0].mxu0 %v103
    %v267 = vpop.f32.mrb[0].mxu0
    %v268 = vadd.f32 0.0, %v267
    %v269 = vpop.f32.mrb[0].mxu0
    %270 = vmatprep.mubr.f32.mxu0 %v106
    %271 = vmatmul.mubr.f32.gmra.mrb[0].mxu0 %v105
    %v272 = vpop.f32.mrb[0].mxu0
    %v273 = vadd.f32 0.0, %v272
    %v274 = vpop.f32.mrb[0].mxu0
    %275 = vmatprep.mubr.f32.mxu0 %v108
    %276 = vmatmul.mubr.f32.gmra.mrb[0].mxu0 %v107
    %v277 = vpop.f32.mrb[0].mxu0
    %v278 = vadd.f32 0.0, %v277
    %v279 = vpop.f32.mrb[0].mxu0
    %280 = vmatprep.mubr.f32.mxu0 %v110
    %281 = vmatmul.mubr.f32.gmra.mrb[0].mxu0 %v109
    %v282 = vpop.f32.mrb[0].mxu0
    %v283 = vadd.f32 0.0, %v282
    %v284 = vpop.f32.mrb[0].mxu0
    %285 = vmatprep.mubr.f32.mxu0 %v112
    %286 = vmatmul.mubr.f32.gmra.mrb[0].mxu0 %v111
    %v287 = vpop.f32.mrb[0].mxu0
    %v288 = vadd.f32 0.0, %v287
    %v289 = vpop.f32.mrb[0].mxu0
    %290 = vmatprep.mubr.f32.mxu0 %v114
    %291 = vmatmul.mubr.f32.gmra.mrb[0].mxu0 %v113
    %v292 = vpop.f32.mrb[0].mxu0
    %v293 = vadd.f32 0.0, %v292
    %v294 = vpop.f32.mrb[0].mxu0
    %295 = vmatprep.mubr.f32.mxu0 %v116
    %296 = vmatmul.mubr.f32.gmra.mrb[0].mxu0 %v115
    %v297 = vpop.f32.mrb[0].mxu0
    %v298 = vadd.f32 0.0, %v297
    %v299 = vpop.f32.mrb[0].mxu0
    %300 = vmatprep.mubr.f32.mxu0 %v118
    %301 = vmatmul.mubr.f32.gmra.mrb[0].mxu0 %v117
    %v302 = vpop.f32.mrb[0].mxu0
    %v303 = vadd.f32 0.0, %v302
    %v304 = vpop.f32.mrb[0].mxu0
    %305 = vmatprep.mubr.f32.mxu0 %v120
    %306 = vmatmul.mubr.f32.gmra.mrb[0].mxu0 %v119
    %v307 = vpop.f32.mrb[0].mxu0
    %v308 = vadd.f32 0.0, %v307
    %v309 = vpop.f32.mrb[0].mxu0
    %310 = vmatprep.mubr.f32.mxu0 %v122
    %311 = vmatmul.mubr.f32.gmra.mrb[0].mxu0 %v121
    %v312 = vpop.f32.mrb[0].mxu0
    %v313 = vadd.f32 0.0, %v312
    %v314 = vpop.f32.mrb[0].mxu0
    %315 = vdwg.mxu0
    %v316 = vadd.f32 %v155, %v238
    %v317 = vadd.f32 %v156, %v243
    %v318 = vadd.f32 %v157, %v248
    %v319 = vadd.f32 %v158, %v253
    %v320 = vadd.f32 %v159, %v258
    %v321 = vadd.f32 %v160, %v263
    %v322 = vadd.f32 %v161, %v268
    %v323 = vadd.f32 %v162, %v273
    %v324 = vadd.f32 %v163, %v278
    %v325 = vadd.f32 %v164, %v283
    %v326 = vadd.f32 %v165, %v288
    %v327 = vadd.f32 %v166, %v293
    %v328 = vadd.f32 %v167, %v298
    %v329 = vadd.f32 %v168, %v303
    %v330 = vadd.f32 %v169, %v308
    %v331 = vadd.f32 %v170, %v313
    %332 = vst [vmem:[#allocation2] sm:$0xff] %v316
    %333 = vst [vmem:[#allocation2 + $0x8] sm:$0xff] %v317
    %334 = vst [vmem:[#allocation2 + $0x10] sm:$0xff] %v318
    %335 = vst [vmem:[#allocation2 + $0x18] sm:$0xff] %v319
    %336 = vst [vmem:[#allocation2 + $0x20] sm:$0xff] %v320
    %337 = vst [vmem:[#allocation2 + $0x28] sm:$0xff] %v321
    %338 = vst [vmem:[#allocation2 + $0x30] sm:$0xff] %v322
    %339 = vst [vmem:[#allocation2 + $0x38] sm:$0xff] %v323
    %340 = vst [vmem:[#allocation2 + $0x40] sm:$0xff] %v324
    %341 = vst [vmem:[#allocation2 + $0x48] sm:$0xff] %v325
    %342 = vst [vmem:[#allocation2 + $0x50] sm:$0xff] %v326
    %343 = vst [vmem:[#allocation2 + $0x58] sm:$0xff] %v327
    %344 = vst [vmem:[#allocation2 + $0x60] sm:$0xff] %v328
    %345 = vst [vmem:[#allocation2 + $0x68] sm:$0xff] %v329
    %346 = vst [vmem:[#allocation2 + $0x70] sm:$0xff] %v330
    %347 = vst [vmem:[#allocation2 + $0x78] sm:$0xff] %v331
    // Predicated region
    $region38: #{_lambda_.22} parent=1 // pred_check
      %p348 = pneg %p71
    $region39: #{_lambda_.22} parent=1 // pred_check_branch
      %350 = sbr.rel (%p348) target = $region41
    $region40: #{_lambda_.22} parent=1 // pred_region
      %v351 = vld [vmem:[#allocation2] sm:$0xff]
      %v352 = vld [vmem:[#allocation2 + $0x8] sm:$0xff]
      %v353 = vld [vmem:[#allocation2 + $0x10] sm:$0xff]
      %v354 = vld [vmem:[#allocation2 + $0x18] sm:$0xff]
      %v355 = vld [vmem:[#allocation2 + $0x20] sm:$0xff]
      %v356 = vld [vmem:[#allocation2 + $0x28] sm:$0xff]
      %v357 = vld [vmem:[#allocation2 + $0x30] sm:$0xff]
      %v358 = vld [vmem:[#allocation2 + $0x38] sm:$0xff]
      %v359 = vld [vmem:[#allocation2 + $0x40] sm:$0xff]
      %v360 = vld [vmem:[#allocation2 + $0x48] sm:$0xff]
      %v361 = vld [vmem:[#allocation2 + $0x50] sm:$0xff]
      %v362 = vld [vmem:[#allocation2 + $0x58] sm:$0xff]
      %v363 = vld [vmem:[#allocation2 + $0x60] sm:$0xff]
      %v364 = vld [vmem:[#allocation2 + $0x68] sm:$0xff]
      %v365 = vld [vmem:[#allocation2 + $0x70] sm:$0xff]
      %v366 = vld [vmem:[#allocation2 + $0x78] sm:$0xff]
      %v367 = vld [vmem:[#allocation8] sm:$0x1]
      %v369 = vlaneseq
      %v370 = vshrl.u32 %v369, 7
      %v371 = vsub.s32 0, %v370
      %v372 = vrot.slane %v367, %v371
      %v374 = vadd.f32 %v351, %v372
      %v375 = vadd.f32 %v352, %v372
      %v376 = vadd.f32 %v353, %v372
      %v377 = vadd.f32 %v354, %v372
      %v378 = vadd.f32 %v355, %v372
      %v379 = vadd.f32 %v356, %v372
      %v380 = vadd.f32 %v357, %v372
      %v381 = vadd.f32 %v358, %v372
      %v382 = vadd.f32 %v359, %v372
      %v383 = vadd.f32 %v360, %v372
      %v384 = vadd.f32 %v361, %v372
      %v385 = vadd.f32 %v362, %v372
      %v386 = vadd.f32 %v363, %v372
      %v387 = vadd.f32 %v364, %v372
      %v388 = vadd.f32 %v365, %v372
      %v389 = vadd.f32 %v366, %v372
      %v390 = vld [vmem:[#allocation9] sm:$0xff]
      %v391 = vld [vmem:[#allocation9 + $0x8] sm:$0xff]
      %v392 = vld [vmem:[#allocation9 + $0x10] sm:$0xff]
      %v393 = vld [vmem:[#allocation9 + $0x18] sm:$0xff]
      %v394 = vld [vmem:[#allocation9 + $0x20] sm:$0xff]
      %v395 = vld [vmem:[#allocation9 + $0x28] sm:$0xff]
      %v396 = vld [vmem:[#allocation9 + $0x30] sm:$0xff]
      %v397 = vld [vmem:[#allocation9 + $0x38] sm:$0xff]
      %v398 = vld [vmem:[#allocation9 + $0x40] sm:$0xff]
      %v399 = vld [vmem:[#allocation9 + $0x48] sm:$0xff]
      %v400 = vld [vmem:[#allocation9 + $0x50] sm:$0xff]
      %v401 = vld [vmem:[#allocation9 + $0x58] sm:$0xff]
      %v402 = vld [vmem:[#allocation9 + $0x60] sm:$0xff]
      %v403 = vld [vmem:[#allocation9 + $0x68] sm:$0xff]
      %v404 = vld [vmem:[#allocation9 + $0x70] sm:$0xff]
      %v405 = vld [vmem:[#allocation9 + $0x78] sm:$0xff]
      %v406 = vadd.f32 %v374, %v390
      %v407 = vadd.f32 %v375, %v391
      %v408 = vadd.f32 %v376, %v392
      %v409 = vadd.f32 %v377, %v393
      %v410 = vadd.f32 %v378, %v394
      %v411 = vadd.f32 %v379, %v395
      %v412 = vadd.f32 %v380, %v396
      %v413 = vadd.f32 %v381, %v397
      %v414 = vadd.f32 %v382, %v398
      %v415 = vadd.f32 %v383, %v399
      %v416 = vadd.f32 %v384, %v400
      %v417 = vadd.f32 %v385, %v401
      %v418 = vadd.f32 %v386, %v402
      %v419 = vadd.f32 %v387, %v403
      %v420 = vadd.f32 %v388, %v404
      %v421 = vadd.f32 %v389, %v405
      %v422 = vmul.f32 %v406, 0.70710677
      %v423 = vmul.f32 %v407, 0.70710677
      %v424 = vmul.f32 %v408, 0.70710677
      %v425 = vmul.f32 %v409, 0.70710677
      %v426 = vmul.f32 %v410, 0.70710677
      %v427 = vmul.f32 %v411, 0.70710677
      %v428 = vmul.f32 %v412, 0.70710677
      %v429 = vmul.f32 %v413, 0.70710677
      %v430 = vmul.f32 %v414, 0.70710677
      %v431 = vmul.f32 %v415, 0.70710677
      %v432 = vmul.f32 %v416, 0.70710677
      %v433 = vmul.f32 %v417, 0.70710677
      %v434 = vmul.f32 %v418, 0.70710677
      %v435 = vmul.f32 %v419, 0.70710677
      %v436 = vmul.f32 %v420, 0.70710677
      %v437 = vmul.f32 %v421, 0.70710677
      %438 = vst [vmem:[#allocation11] sm:$0xff] %v422
      %439 = vst [vmem:[#allocation11 + $0x8] sm:$0xff] %v423
      %440 = vst [vmem:[#allocation11 + $0x10] sm:$0xff] %v424
      %441 = vst [vmem:[#allocation11 + $0x18] sm:$0xff] %v425
      %442 = vst [vmem:[#allocation11 + $0x20] sm:$0xff] %v426
      %443 = vst [vmem:[#allocation11 + $0x28] sm:$0xff] %v427
      %444 = vst [vmem:[#allocation11 + $0x30] sm:$0xff] %v428
      %445 = vst [vmem:[#allocation11 + $0x38] sm:$0xff] %v429
      %446 = vst [vmem:[#allocation11 + $0x40] sm:$0xff] %v430
      %447 = vst [vmem:[#allocation11 + $0x48] sm:$0xff] %v431
      %448 = vst [vmem:[#allocation11 + $0x50] sm:$0xff] %v432
      %449 = vst [vmem:[#allocation11 + $0x58] sm:$0xff] %v433
      %450 = vst [vmem:[#allocation11 + $0x60] sm:$0xff] %v434
      %451 = vst [vmem:[#allocation11 + $0x68] sm:$0xff] %v435
      %452 = vst [vmem:[#allocation11 + $0x70] sm:$0xff] %v436
      %453 = vst [vmem:[#allocation11 + $0x78] sm:$0xff] %v437
    $region41: #{_lambda_.22} parent=1 // pred_fallthru
      _
    // Predicated region
    $region42: #{_lambda_.22} parent=1 // pred_check
      _
    $region43: #{_lambda_.22} parent=1 // pred_check_branch
      %455 = sbr.rel (0) target = $region45
    $region44: #{_lambda_.22} parent=1 // pred_region
      %s457 = ssub.s32 2048, 2048
      %458 = vsyncadd [#allocation5], %s457
      %s459 = sshll.u32 [#allocation11], 4
      %s460 = int_to_ptr.vmem [resolvable:$true] %s459
      %465 = dma.vmem_to_hbm [thread:$0]  %s460, 2048, %s4, [#allocation5], 128, 128, 8
    $region45: #{_lambda_.22} parent=1 // pred_fallthru
      _
    // Predicated region
    $region46: #{_lambda_.22} parent=1 // pred_check
      _
    $region47: #{_lambda_.22} parent=1 // pred_check_branch
      %467 = sbr.rel (0) target = $region49
    $region48: #{_lambda_.22} parent=1 // pred_region
      %468 = dma.done [#allocation5], 2048
    $region49: #{_lambda_.22} parent=1 // pred_fallthru
      _
    %469 = vsyncpa [#allocation4], 1
    %470 = vsyncpa [#allocation7], 1
    %471 = vsyncpa [#allocation10], 1
    %472 = vsyncpa [#allocation5], 1

// kernel: _lambda_.24
$region0: #{_lambda_.24}
  #allocation0 [shape = 'u32[]', space=smem, size = 0x4, offset = 0x4, fixed_abs, tag = 'smem constant byte address 0x4 - core index']
  #allocation1 [shape = 'u32[144,128]{1,0:T(1,128)}', space=vmem, size = 0x12000, scoped, tag = 'internal scratch']
  %s0 = inlined_call_operand.hbm [shape: f32[2,16,128], index: 0, kind: input, shape index: {}]
  %s1 = inlined_call_operand.hbm [shape: f32[2,128], index: 1, kind: output, shape index: {}]
  %s2 = sld [smem:[#allocation0]]
  $region18: #{_lambda_.24} parent=0
    _
  %s4 = ssub.s32 1, %s2
  %s5 = scalar_select 0, %s4, %s2
  $region1: #{_lambda_.24} parent=0
    #allocation2 [shape = 'u8[16384]{0}', space=vmem, size = 0x4000, scoped, tag = 'input window, operand 0, single buffered']
    #allocation3 [shape = 's32[1]{0}', space=sflag, size = 0x4, scoped, tag = 'scoped memory for _lambda_.24']
    #allocation4 [shape = 's32[1]{0}', space=sflag, size = 0x4, scoped, tag = 'scoped memory for _lambda_.24']
    #allocation5 [shape = 'u8[1024]{0}', space=vmem, size = 0x400, scoped, tag = 'output window, operand 0, single buffered']
    %6 = vsyncpa [#allocation3], 0
    %7 = vsyncpa [#allocation4], 0
    // Predicated region
    $region2: #{_lambda_.24} parent=1 // pred_check
      _
    $region3: #{_lambda_.24} parent=1 // pred_check_branch
      %9 = sbr.rel (0) target = $region5
    $region4: #{_lambda_.24} parent=1 // pred_region
      %s11 = ssub.s32 512, 512
      %12 = vsyncadd [#allocation3], %s11
      %s13 = sshll.u32 [#allocation2], 4
      %s14 = int_to_ptr.vmem [resolvable:$true] %s13
      %19 = dma.hbm_to_vmem [thread:$0]  %s0, 512, %s14, [#allocation3], 128, 128, 8
    $region5: #{_lambda_.24} parent=1 // pred_fallthru
      _
    // Predicated region
    $region6: #{_lambda_.24} parent=1 // pred_check
      _
    $region7: #{_lambda_.24} parent=1 // pred_check_branch
      %21 = sbr.rel (0) target = $region9
    $region8: #{_lambda_.24} parent=1 // pred_region
      %22 = dma.done [#allocation3], 512
    $region9: #{_lambda_.24} parent=1 // pred_fallthru
      _
    %v23 = vld [vmem:[#allocation2] sm:$0xff]
    %v24 = vld [vmem:[#allocation2 + $0x8] sm:$0xff]
    %v25 = vld [vmem:[#allocation2 + $0x10] sm:$0xff]
    %v26 = vld [vmem:[#allocation2 + $0x18] sm:$0xff]
    %v27 = vadd.f32 %v23, %v24
    %v28 = vrot.slane %v27, 4
    %v29 = vadd.f32 %v27, %v28
    %v30 = vrot.slane %v29, 2
    %v31 = vadd.f32 %v29, %v30
    %v32 = vrot.slane %v31, 1
    %v33 = vadd.f32 %v31, %v32
    %v34 = vadd.f32 %v25, %v26
    %v35 = vrot.slane %v34, 4
    %v36 = vadd.f32 %v34, %v35
    %v37 = vrot.slane %v36, 2
    %v38 = vadd.f32 %v36, %v37
    %v39 = vrot.slane %v38, 1
    %v40 = vadd.f32 %v38, %v39
    %v41 = vrcp.pop 16.0
    %v42 = vmul.f32 %v33, %v41
    %v43 = vmul.f32 %v40, %v41
    %vm46 = vcmask 1041409
    %v47 = vsel %vm46, %v43, %v42
    %49 = vst [vmem:[#allocation5] sm:$0x3] %v47
    // Predicated region
    $region10: #{_lambda_.24} parent=1 // pred_check
      _
    $region11: #{_lambda_.24} parent=1 // pred_check_branch
      %51 = sbr.rel (0) target = $region13
    $region12: #{_lambda_.24} parent=1 // pred_region
      %s53 = ssub.s32 32, 32
      %54 = vsyncadd [#allocation4], %s53
      %s56 = sshll.u32 [#allocation5], 4
      %s57 = int_to_ptr.vmem [resolvable:$true] %s56
      %59 = dma.vmem_to_hbm [thread:$0]  %s57, 32, %s1, [#allocation4]
    $region13: #{_lambda_.24} parent=1 // pred_fallthru
      _
    // Predicated region
    $region14: #{_lambda_.24} parent=1 // pred_check
      _
    $region15: #{_lambda_.24} parent=1 // pred_check_branch
      %61 = sbr.rel (0) target = $region17
    $region16: #{_lambda_.24} parent=1 // pred_region
      %62 = dma.done [#allocation4], 32
    $region17: #{_lambda_.24} parent=1 // pred_fallthru
      _
    %63 = vsyncpa [#allocation3], 1
    %64 = vsyncpa [#allocation4], 1

// kernel: _lambda_.23
$region0: #{_lambda_.23}
  #allocation0 [shape = 'u32[]', space=smem, size = 0x4, offset = 0x4, fixed_abs, tag = 'smem constant byte address 0x4 - core index']
  #allocation1 [shape = 'u32[144,128]{1,0:T(1,128)}', space=vmem, size = 0x12000, scoped, tag = 'internal scratch']
  #allocation2 [shape = 'f32[32,128]{1,0:T(8,128)}', space=vmem, size = 0x4000, scoped, tag = 'scratch operand']
  %s0 = inlined_call_operand.hbm [shape: f32[32,512], index: 0, kind: input, shape index: {}]
  %s1 = inlined_call_operand.hbm [shape: f32[512,128], index: 1, kind: input, shape index: {}]
  %s2 = inlined_call_operand.hbm [shape: f32[1,128], index: 2, kind: input, shape index: {}]
  %s3 = inlined_call_operand.hbm [shape: f32[32,128], index: 3, kind: output, shape index: {}]
  %s4 = sld [smem:[#allocation0]]
  $region42: #{_lambda_.23} parent=0
    _
  %s6 = ssub.s32 1, %s4
  %s7 = scalar_select 0, %s6, %s4
  $region1: #{_lambda_.23} parent=0
    #allocation3 [shape = 'u8[65536]{0}', space=vmem, size = 0x10000, scoped, tag = 'input window, operand 0, single buffered']
    #allocation4 [shape = 's32[1]{0}', space=sflag, size = 0x4, scoped, tag = 'scoped memory for _lambda_.23']
    #allocation5 [shape = 's32[1]{0}', space=sflag, size = 0x4, scoped, tag = 'scoped memory for _lambda_.23']
    #allocation6 [shape = 'u8[262144]{0}', space=vmem, size = 0x40000, scoped, tag = 'input window, operand 1, single buffered']
    #allocation7 [shape = 's32[1]{0}', space=sflag, size = 0x4, scoped, tag = 'scoped memory for _lambda_.23']
    #allocation8 [shape = 'u8[512]{0}', space=vmem, size = 0x400, scoped, tag = 'input window, operand 2, single buffered']
    #allocation9 [shape = 'u8[16384]{0}', space=vmem, size = 0x4000, scoped, tag = 'output window, operand 0, single buffered']
    %8 = vsyncpa [#allocation4], 0
    %9 = vsyncpa [#allocation7], 0
    %10 = vsyncpa [#allocation5], 0
    // Predicated region
    $region2: #{_lambda_.23} parent=1 // pred_check
      _
    $region3: #{_lambda_.23} parent=1 // pred_check_branch
      %12 = sbr.rel (0) target = $region5
    $region4: #{_lambda_.23} parent=1 // pred_region
      %s14 = ssub.s32 2048, 2048
      %15 = vsyncadd [#allocation4], %s14
      %s16 = sshll.u32 [#allocation3], 4
      %s17 = int_to_ptr.vmem [resolvable:$true] %s16
      %22 = dma.hbm_to_vmem [thread:$0]  %s0, 2048, %s17, [#allocation4], 512, 512, 32
    $region5: #{_lambda_.23} parent=1 // pred_fallthru
      _
    // Predicated region
    $region6: #{_lambda_.23} parent=1 // pred_check
      _
    $region7: #{_lambda_.23} parent=1 // pred_check_branch
      %24 = sbr.rel (0) target = $region9
    $region8: #{_lambda_.23} parent=1 // pred_region
      %s26 = ssub.s32 8192, 8192
      %27 = vsyncadd [#allocation7], %s26
      %s28 = sshll.u32 [#allocation6], 4
      %s29 = int_to_ptr.vmem [resolvable:$true] %s28
      %34 = dma.hbm_to_vmem [thread:$0]  %s1, 8192, %s29, [#allocation7], 128, 128, 8
    $region9: #{_lambda_.23} parent=1 // pred_fallthru
      _
    // Predicated region
    $region10: #{_lambda_.23} parent=1 // pred_check
      _
    $region11: #{_lambda_.23} parent=1 // pred_check_branch
      %36 = sbr.rel (0) target = $region13
    $region12: #{_lambda_.23} parent=1 // pred_region
      %s38 = ssub.s32 16, 16
      %39 = vsyncadd [#allocation7], %s38
      %s41 = sshll.u32 [#allocation8], 4
      %s42 = int_to_ptr.vmem [resolvable:$true] %s41
      %44 = dma.hbm_to_vmem [thread:$0]  %s2, 16, %s42, [#allocation7]
    $region13: #{_lambda_.23} parent=1 // pred_fallthru
      _
    // Predicated region
    $region14: #{_lambda_.23} parent=1 // pred_check
      _
    $region15: #{_lambda_.23} parent=1 // pred_check_branch
      %46 = sbr.rel (0) target = $region17
    $region16: #{_lambda_.23} parent=1 // pred_region
      %47 = dma.done [#allocation4], 2048
    $region17: #{_lambda_.23} parent=1 // pred_fallthru
      _
    // Predicated region
    $region18: #{_lambda_.23} parent=1 // pred_check
      _
    $region19: #{_lambda_.23} parent=1 // pred_check_branch
      %49 = sbr.rel (0) target = $region21
    $region20: #{_lambda_.23} parent=1 // pred_region
      %50 = dma.done [#allocation7], 8192
    $region21: #{_lambda_.23} parent=1 // pred_fallthru
      _
    // Predicated region
    $region22: #{_lambda_.23} parent=1 // pred_check
      _
    $region23: #{_lambda_.23} parent=1 // pred_check_branch
      %52 = sbr.rel (0) target = $region25
    $region24: #{_lambda_.23} parent=1 // pred_region
      %53 = dma.done [#allocation7], 16
    $region25: #{_lambda_.23} parent=1 // pred_fallthru
      _
    %p54 = scmp.eq.s32.totalorder 0, 0
    // Predicated region
    $region26: #{_lambda_.23} parent=1 // pred_check
      %p55 = pneg %p54
    $region27: #{_lambda_.23} parent=1 // pred_check_branch
      %57 = sbr.rel (%p55) target = $region29
    $region28: #{_lambda_.23} parent=1 // pred_region
      %58 = vst [vmem:[#allocation2] sm:$0xff] 0.0
      %59 = vst [vmem:[#allocation2 + $0x8] sm:$0xff] 0.0
      %60 = vst [vmem:[#allocation2 + $0x10] sm:$0xff] 0.0
      %61 = vst [vmem:[#allocation2 + $0x18] sm:$0xff] 0.0
    $region29: #{_lambda_.23} parent=1 // pred_fallthru
      _
    %v62 = vld [vmem:[#allocation3] sm:$0xff]
    %v63 = vld [vmem:[#allocation3 + $0x8] sm:$0xff]
    %v64 = vld [vmem:[#allocation3 + $0x10] sm:$0xff]
    %v65 = vld [vmem:[#allocation3 + $0x18] sm:$0xff]
    %v66 = vld [vmem:[#allocation3 + $0x20] sm:$0xff]
    %v67 = vld [vmem:[#allocation3 + $0x28] sm:$0xff]
    %v68 = vld [vmem:[#allocation3 + $0x30] sm:$0xff]
    %v69 = vld [vmem:[#allocation3 + $0x38] sm:$0xff]
    %v70 = vld [vmem:[#allocation3 + $0x40] sm:$0xff]
    %v71 = vld [vmem:[#allocation3 + $0x48] sm:$0xff]
    %v72 = vld [vmem:[#allocation3 + $0x50] sm:$0xff]
    %v73 = vld [vmem:[#allocation3 + $0x58] sm:$0xff]
    %v74 = vld [vmem:[#allocation3 + $0x60] sm:$0xff]
    %v75 = vld [vmem:[#allocation3 + $0x68] sm:$0xff]
    %v76 = vld [vmem:[#allocation3 + $0x70] sm:$0xff]
    %v77 = vld [vmem:[#allocation3 + $0x78] sm:$0xff]
    %v78 = vld [vmem:[#allocation6] sm:$0xff]
    %v79 = vld [vmem:[#allocation6 + $0x8] sm:$0xff]
    %v80 = vld [vmem:[#allocation6 + $0x10] sm:$0xff]
    %v81 = vld [vmem:[#allocation6 + $0x18] sm:$0xff]
    %v82 = vld [vmem:[#allocation6 + $0x20] sm:$0xff]
    %v83 = vld [vmem:[#allocation6 + $0x28] sm:$0xff]
    %v84 = vld [vmem:[#allocation6 + $0x30] sm:$0xff]
    %v85 = vld [vmem:[#allocation6 + $0x38] sm:$0xff]
    %v86 = vld [vmem:[#allocation6 + $0x40] sm:$0xff]
    %v87 = vld [vmem:[#allocation6 + $0x48] sm:$0xff]
    %v88 = vld [vmem:[#allocation6 + $0x50] sm:$0xff]
    %v89 = vld [vmem:[#allocation6 + $0x58] sm:$0xff]
    %v90 = vld [vmem:[#allocation6 + $0x60] sm:$0xff]
    %v91 = vld [vmem:[#allocation6 + $0x68] sm:$0xff]
    %v92 = vld [vmem:[#allocation6 + $0x70] sm:$0xff]
    %v93 = vld [vmem:[#allocation6 + $0x78] sm:$0xff]
    %v94 = vld [vmem:[#allocation6 + $0x80] sm:$0xff]
    %v95 = vld [vmem:[#allocation6 + $0x88] sm:$0xff]
    %v96 = vld [vmem:[#allocation6 + $0x90] sm:$0xff]
    %v97 = vld [vmem:[#allocation6 + $0x98] sm:$0xff]
    %v98 = vld [vmem:[#allocation6 + $0xa0] sm:$0xff]
    %v99 = vld [vmem:[#allocation6 + $0xa8] sm:$0xff]
    %v100 = vld [vmem:[#allocation6 + $0xb0] sm:$0xff]
    %v101 = vld [vmem:[#allocation6 + $0xb8] sm:$0xff]
    %v102 = vld [vmem:[#allocation6 + $0xc0] sm:$0xff]
    %v103 = vld [vmem:[#allocation6 + $0xc8] sm:$0xff]
    %v104 = vld [vmem:[#allocation6 + $0xd0] sm:$0xff]
    %v105 = vld [vmem:[#allocation6 + $0xd8] sm:$0xff]
    %v106 = vld [vmem:[#allocation6 + $0xe0] sm:$0xff]
    %v107 = vld [vmem:[#allocation6 + $0xe8] sm:$0xff]
    %v108 = vld [vmem:[#allocation6 + $0xf0] sm:$0xff]
    %v109 = vld [vmem:[#allocation6 + $0xf8] sm:$0xff]
    %v110 = vld [vmem:[#allocation6 + $0x100] sm:$0xff]
    %v111 = vld [vmem:[#allocation6 + $0x108] sm:$0xff]
    %v112 = vld [vmem:[#allocation6 + $0x110] sm:$0xff]
    %v113 = vld [vmem:[#allocation6 + $0x118] sm:$0xff]
    %v114 = vld [vmem:[#allocation6 + $0x120] sm:$0xff]
    %v115 = vld [vmem:[#allocation6 + $0x128] sm:$0xff]
    %v116 = vld [vmem:[#allocation6 + $0x130] sm:$0xff]
    %v117 = vld [vmem:[#allocation6 + $0x138] sm:$0xff]
    %v118 = vld [vmem:[#allocation6 + $0x140] sm:$0xff]
    %v119 = vld [vmem:[#allocation6 + $0x148] sm:$0xff]
    %v120 = vld [vmem:[#allocation6 + $0x150] sm:$0xff]
    %v121 = vld [vmem:[#allocation6 + $0x158] sm:$0xff]
    %v122 = vld [vmem:[#allocation6 + $0x160] sm:$0xff]
    %v123 = vld [vmem:[#allocation6 + $0x168] sm:$0xff]
    %v124 = vld [vmem:[#allocation6 + $0x170] sm:$0xff]
    %v125 = vld [vmem:[#allocation6 + $0x178] sm:$0xff]
    %v126 = vld [vmem:[#allocation6 + $0x180] sm:$0xff]
    %v127 = vld [vmem:[#allocation6 + $0x188] sm:$0xff]
    %v128 = vld [vmem:[#allocation6 + $0x190] sm:$0xff]
    %v129 = vld [vmem:[#allocation6 + $0x198] sm:$0xff]
    %v130 = vld [vmem:[#allocation6 + $0x1a0] sm:$0xff]
    %v131 = vld [vmem:[#allocation6 + $0x1a8] sm:$0xff]
    %v132 = vld [vmem:[#allocation6 + $0x1b0] sm:$0xff]
    %v133 = vld [vmem:[#allocation6 + $0x1b8] sm:$0xff]
    %v134 = vld [vmem:[#allocation6 + $0x1c0] sm:$0xff]
    %v135 = vld [vmem:[#allocation6 + $0x1c8] sm:$0xff]
    %v136 = vld [vmem:[#allocation6 + $0x1d0] sm:$0xff]
    %v137 = vld [vmem:[#allocation6 + $0x1d8] sm:$0xff]
    %v138 = vld [vmem:[#allocation6 + $0x1e0] sm:$0xff]
    %v139 = vld [vmem:[#allocation6 + $0x1e8] sm:$0xff]
    %v140 = vld [vmem:[#allocation6 + $0x1f0] sm:$0xff]
    %v141 = vld [vmem:[#allocation6 + $0x1f8] sm:$0xff]
    %vm142 = vcmp.ge.f32.partialorder %v62, 0.0
    %vm143 = vcmp.ge.f32.partialorder %v63, 0.0
    %vm144 = vcmp.ge.f32.partialorder %v64, 0.0
    %vm145 = vcmp.ge.f32.partialorder %v65, 0.0
    %vm146 = vcmp.ge.f32.partialorder %v66, 0.0
    %vm147 = vcmp.ge.f32.partialorder %v67, 0.0
    %vm148 = vcmp.ge.f32.partialorder %v68, 0.0
    %vm149 = vcmp.ge.f32.partialorder %v69, 0.0
    %vm150 = vcmp.ge.f32.partialorder %v70, 0.0
    %vm151 = vcmp.ge.f32.partialorder %v71, 0.0
    %vm152 = vcmp.ge.f32.partialorder %v72, 0.0
    %vm153 = vcmp.ge.f32.partialorder %v73, 0.0
    %vm154 = vcmp.ge.f32.partialorder %v74, 0.0
    %vm155 = vcmp.ge.f32.partialorder %v75, 0.0
    %vm156 = vcmp.ge.f32.partialorder %v76, 0.0
    %vm157 = vcmp.ge.f32.partialorder %v77, 0.0
    %v158 = vmul.f32 %v62, 0.2
    %v159 = vmul.f32 %v63, 0.2
    %v160 = vmul.f32 %v64, 0.2
    %v161 = vmul.f32 %v65, 0.2
    %v162 = vmul.f32 %v66, 0.2
    %v163 = vmul.f32 %v67, 0.2
    %v164 = vmul.f32 %v68, 0.2
    %v165 = vmul.f32 %v69, 0.2
    %v166 = vmul.f32 %v70, 0.2
    %v167 = vmul.f32 %v71, 0.2
    %v168 = vmul.f32 %v72, 0.2
    %v169 = vmul.f32 %v73, 0.2
    %v170 = vmul.f32 %v74, 0.2
    %v171 = vmul.f32 %v75, 0.2
    %v172 = vmul.f32 %v76, 0.2
    %v173 = vmul.f32 %v77, 0.2
    %v174 = vsel %vm142, %v62, %v158
    %v175 = vsel %vm143, %v63, %v159
    %v176 = vsel %vm144, %v64, %v160
    %v177 = vsel %vm145, %v65, %v161
    %v178 = vsel %vm146, %v66, %v162
    %v179 = vsel %vm147, %v67, %v163
    %v180 = vsel %vm148, %v68, %v164
    %v181 = vsel %vm149, %v69, %v165
    %v182 = vsel %vm150, %v70, %v166
    %v183 = vsel %vm151, %v71, %v167
    %v184 = vsel %vm152, %v72, %v168
    %v185 = vsel %vm153, %v73, %v169
    %v186 = vsel %vm154, %v74, %v170
    %v187 = vsel %vm155, %v75, %v171
    %v188 = vsel %vm156, %v76, %v172
    %v189 = vsel %vm157, %v77, %v173
    %v190 = vld [vmem:[#allocation2] sm:$0xff]
    %v191 = vld [vmem:[#allocation2 + $0x8] sm:$0xff]
    %v192 = vld [vmem:[#allocation2 + $0x10] sm:$0xff]
    %v193 = vld [vmem:[#allocation2 + $0x18] sm:$0xff]
    %194 = vmatprep.subr.mxu0 0.0
    %195 = vmatpush1.msra.mxu0 %v78
    %196 = vmatprep.subr.mxu0 0.0
    %197 = vmatpush1.msra.mxu0 %v79
    %198 = vmatprep.subr.mxu0 0.0
    %199 = vmatpush1.msra.mxu0 %v80
    %200 = vmatprep.subr.mxu0 0.0
    %201 = vmatpush1.msra.mxu0 %v81
    %202 = vmatprep.subr.mxu0 0.0
    %203 = vmatpush1.msra.mxu0 %v82
    %204 = vmatprep.subr.mxu0 0.0
    %205 = vmatpush1.msra.mxu0 %v83
    %206 = vmatprep.subr.mxu0 0.0
    %207 = vmatpush1.msra.mxu0 %v84
    %208 = vmatprep.subr.mxu0 0.0
    %209 = vmatpush1.msra.mxu0 %v85
    %210 = vmatprep.subr.mxu0 0.0
    %211 = vmatpush1.msra.mxu0 %v86
    %212 = vmatprep.subr.mxu0 0.0
    %213 = vmatpush1.msra.mxu0 %v87
    %214 = vmatprep.subr.mxu0 0.0
    %215 = vmatpush1.msra.mxu0 %v88
    %216 = vmatprep.subr.mxu0 0.0
    %217 = vmatpush1.msra.mxu0 %v89
    %218 = vmatprep.subr.mxu0 0.0
    %219 = vmatpush1.msra.mxu0 %v90
    %220 = vmatprep.subr.mxu0 0.0
    %221 = vmatpush1.msra.mxu0 %v91
    %222 = vmatprep.subr.mxu0 0.0
    %223 = vmatpush1.msra.mxu0 %v92
    %224 = vmatprep.subr.mxu0 0.0
    %225 = vmatpush1.msra.mxu0 %v93
    %226 = vmatprep.subr.mxu0 0.0
    %227 = vmatpush1.msra.mxu0 %v94
    %228 = vmatprep.subr.mxu0 0.0
    %229 = vmatpush1.msra.mxu0 %v95
    %230 = vmatprep.subr.mxu0 0.0
    %231 = vmatpush1.msra.mxu0 %v96
    %232 = vmatprep.subr.mxu0 0.0
    %233 = vmatpush1.msra.mxu0 %v97
    %234 = vmatprep.subr.mxu0 0.0
    %235 = vmatpush1.msra.mxu0 %v98
    %236 = vmatprep.subr.mxu0 0.0
    %237 = vmatpush1.msra.mxu0 %v99
    %238 = vmatprep.subr.mxu0 0.0
    %239 = vmatpush1.msra.mxu0 %v100
    %240 = vmatprep.subr.mxu0 0.0
    %241 = vmatpush1.msra.mxu0 %v101
    %242 = vmatprep.subr.mxu0 0.0
    %243 = vmatpush1.msra.mxu0 %v102
    %244 = vmatprep.subr.mxu0 0.0
    %245 = vmatpush1.msra.mxu0 %v103
    %246 = vmatprep.subr.mxu0 0.0
    %247 = vmatpush1.msra.mxu0 %v104
    %248 = vmatprep.subr.mxu0 0.0
    %249 = vmatpush1.msra.mxu0 %v105
    %250 = vmatprep.subr.mxu0 0.0
    %251 = vmatpush1.msra.mxu0 %v106
    %252 = vmatprep.subr.mxu0 0.0
    %253 = vmatpush1.msra.mxu0 %v107
    %254 = vmatprep.subr.mxu0 0.0
    %255 = vmatpush1.msra.mxu0 %v108
    %256 = vmatprep.subr.mxu0 0.0
    %257 = vmatpush1.msra.mxu0 %v109
    %258 = vmatprep.mubr.f32.mxu0 %v175
    %259 = vmatmul.mubr.f32.gmra.mrb[0].mxu0 %v174
    %v260 = vpop.f32.mrb[0].mxu0
    %v261 = vadd.f32 0.0, %v260
    %v262 = vpop.f32.mrb[0].mxu0
    %263 = vmatprep.mubr.f32.mxu0 %v179
    %264 = vmatmul.mubr.f32.gmra.mrb[0].mxu0 %v178
    %v265 = vpop.f32.mrb[0].mxu0
    %v266 = vadd.f32 0.0, %v265
    %v267 = vpop.f32.mrb[0].mxu0
    %268 = vmatprep.mubr.f32.mxu0 %v183
    %269 = vmatmul.mubr.f32.gmra.mrb[0].mxu0 %v182
    %v270 = vpop.f32.mrb[0].mxu0
    %v271 = vadd.f32 0.0, %v270
    %v272 = vpop.f32.mrb[0].mxu0
    %273 = vmatprep.mubr.f32.mxu0 %v187
    %274 = vmatmul.mubr.f32.gmra.mrb[0].mxu0 %v186
    %v275 = vpop.f32.mrb[0].mxu0
    %v276 = vadd.f32 0.0, %v275
    %v277 = vpop.f32.mrb[0].mxu0
    %278 = vdwg.mxu0
    %279 = vmatprep.subr.mxu0 0.0
    %280 = vmatpush1.msra.mxu0 %v110
    %281 = vmatprep.subr.mxu0 0.0
    %282 = vmatpush1.msra.mxu0 %v111
    %283 = vmatprep.subr.mxu0 0.0
    %284 = vmatpush1.msra.mxu0 %v112
    %285 = vmatprep.subr.mxu0 0.0
    %286 = vmatpush1.msra.mxu0 %v113
    %287 = vmatprep.subr.mxu0 0.0
    %288 = vmatpush1.msra.mxu0 %v114
    %289 = vmatprep.subr.mxu0 0.0
    %290 = vmatpush1.msra.mxu0 %v115
    %291 = vmatprep.subr.mxu0 0.0
    %292 = vmatpush1.msra.mxu0 %v116
    %293 = vmatprep.subr.mxu0 0.0
    %294 = vmatpush1.msra.mxu0 %v117
    %295 = vmatprep.subr.mxu0 0.0
    %296 = vmatpush1.msra.mxu0 %v118
    %297 = vmatprep.subr.mxu0 0.0
    %298 = vmatpush1.msra.mxu0 %v119
    %299 = vmatprep.subr.mxu0 0.0
    %300 = vmatpush1.msra.mxu0 %v120
    %301 = vmatprep.subr.mxu0 0.0
    %302 = vmatpush1.msra.mxu0 %v121
    %303 = vmatprep.subr.mxu0 0.0
    %304 = vmatpush1.msra.mxu0 %v122
    %305 = vmatprep.subr.mxu0 0.0
    %306 = vmatpush1.msra.mxu0 %v123
    %307 = vmatprep.subr.mxu0 0.0
    %308 = vmatpush1.msra.mxu0 %v124
    %309 = vmatprep.subr.mxu0 0.0
    %310 = vmatpush1.msra.mxu0 %v125
    %311 = vmatprep.subr.mxu0 0.0
    %312 = vmatpush1.msra.mxu0 %v126
    %313 = vmatprep.subr.mxu0 0.0
    %314 = vmatpush1.msra.mxu0 %v127
    %315 = vmatprep.subr.mxu0 0.0
    %316 = vmatpush1.msra.mxu0 %v128
    %317 = vmatprep.subr.mxu0 0.0
    %318 = vmatpush1.msra.mxu0 %v129
    %319 = vmatprep.subr.mxu0 0.0
    %320 = vmatpush1.msra.mxu0 %v130
    %321 = vmatprep.subr.mxu0 0.0
    %322 = vmatpush1.msra.mxu0 %v131
    %323 = vmatprep.subr.mxu0 0.0
    %324 = vmatpush1.msra.mxu0 %v132
    %325 = vmatprep.subr.mxu0 0.0
    %326 = vmatpush1.msra.mxu0 %v133
    %327 = vmatprep.subr.mxu0 0.0
    %328 = vmatpush1.msra.mxu0 %v134
    %329 = vmatprep.subr.mxu0 0.0
    %330 = vmatpush1.msra.mxu0 %v135
    %331 = vmatprep.subr.mxu0 0.0
    %332 = vmatpush1.msra.mxu0 %v136
    %333 = vmatprep.subr.mxu0 0.0
    %334 = vmatpush1.msra.mxu0 %v137
    %335 = vmatprep.subr.mxu0 0.0
    %336 = vmatpush1.msra.mxu0 %v138
    %337 = vmatprep.subr.mxu0 0.0
    %338 = vmatpush1.msra.mxu0 %v139
    %339 = vmatprep.subr.mxu0 0.0
    %340 = vmatpush1.msra.mxu0 %v140
    %341 = vmatprep.subr.mxu0 0.0
    %342 = vmatpush1.msra.mxu0 %v141
    %343 = vmatprep.mubr.f32.mxu0 %v177
    %344 = vmatmul.mubr.f32.gmra.mrb[0].mxu0 %v176
    %v345 = vpop.f32.mrb[0].mxu0
    %v346 = vadd.f32 %v261, %v345
    %v347 = vpop.f32.mrb[0].mxu0
    %348 = vmatprep.mubr.f32.mxu0 %v181
    %349 = vmatmul.mubr.f32.gmra.mrb[0].mxu0 %v180
    %v350 = vpop.f32.mrb[0].mxu0
    %v351 = vadd.f32 %v266, %v350
    %v352 = vpop.f32.mrb[0].mxu0
    %353 = vmatprep.mubr.f32.mxu0 %v185
    %354 = vmatmul.mubr.f32.gmra.mrb[0].mxu0 %v184
    %v355 = vpop.f32.mrb[0].mxu0
    %v356 = vadd.f32 %v271, %v355
    %v357 = vpop.f32.mrb[0].mxu0
    %358 = vmatprep.mubr.f32.mxu0 %v189
    %359 = vmatmul.mubr.f32.gmra.mrb[0].mxu0 %v188
    %v360 = vpop.f32.mrb[0].mxu0
    %v361 = vadd.f32 %v276, %v360
    %v362 = vpop.f32.mrb[0].mxu0
    %363 = vdwg.mxu0
    %v364 = vadd.f32 %v190, %v346
    %v365 = vadd.f32 %v191, %v351
    %v366 = vadd.f32 %v192, %v356
    %v367 = vadd.f32 %v193, %v361
    %368 = vst [vmem:[#allocation2] sm:$0xff] %v364
    %369 = vst [vmem:[#allocation2 + $0x8] sm:$0xff] %v365
    %370 = vst [vmem:[#allocation2 + $0x10] sm:$0xff] %v366
    %371 = vst [vmem:[#allocation2 + $0x18] sm:$0xff] %v367
    // Predicated region
    $region30: #{_lambda_.23} parent=1 // pred_check
      %p372 = pneg %p54
    $region31: #{_lambda_.23} parent=1 // pred_check_branch
      %374 = sbr.rel (%p372) target = $region33
    $region32: #{_lambda_.23} parent=1 // pred_region
      %v375 = vld [vmem:[#allocation2] sm:$0xff]
      %v376 = vld [vmem:[#allocation2 + $0x8] sm:$0xff]
      %v377 = vld [vmem:[#allocation2 + $0x10] sm:$0xff]
      %v378 = vld [vmem:[#allocation2 + $0x18] sm:$0xff]
      %v379 = vld [vmem:[#allocation8] sm:$0x1]
      %v381 = vlaneseq
      %v382 = vshrl.u32 %v381, 7
      %v383 = vsub.s32 0, %v382
      %v384 = vrot.slane %v379, %v383
      %v386 = vadd.f32 %v375, %v384
      %v387 = vadd.f32 %v376, %v384
      %v388 = vadd.f32 %v377, %v384
      %v389 = vadd.f32 %v378, %v384
      %vm390 = vcmp.ge.f32.partialorder %v386, 0.0
      %vm391 = vcmp.ge.f32.partialorder %v387, 0.0
      %vm392 = vcmp.ge.f32.partialorder %v388, 0.0
      %vm393 = vcmp.ge.f32.partialorder %v389, 0.0
      %v394 = vmul.f32 %v386, 0.2
      %v395 = vmul.f32 %v387, 0.2
      %v396 = vmul.f32 %v388, 0.2
      %v397 = vmul.f32 %v389, 0.2
      %v398 = vsel %vm390, %v386, %v394
      %v399 = vsel %vm391, %v387, %v395
      %v400 = vsel %vm392, %v388, %v396
      %v401 = vsel %vm393, %v389, %v397
      %402 = vst [vmem:[#allocation9] sm:$0xff] %v398
      %403 = vst [vmem:[#allocation9 + $0x8] sm:$0xff] %v399
      %404 = vst [vmem:[#allocation9 + $0x10] sm:$0xff] %v400
      %405 = vst [vmem:[#allocation9 + $0x18] sm:$0xff] %v401
    $region33: #{_lambda_.23} parent=1 // pred_fallthru
      _
    // Predicated region
    $region34: #{_lambda_.23} parent=1 // pred_check
      _
    $region35: #{_lambda_.23} parent=1 // pred_check_branch
      %407 = sbr.rel (0) target = $region37
    $region36: #{_lambda_.23} parent=1 // pred_region
      %s409 = ssub.s32 512, 512
      %410 = vsyncadd [#allocation5], %s409
      %s411 = sshll.u32 [#allocation9], 4
      %s412 = int_to_ptr.vmem [resolvable:$true] %s411
      %417 = dma.vmem_to_hbm [thread:$0]  %s412, 512, %s3, [#allocation5], 128, 128, 8
    $region37: #{_lambda_.23} parent=1 // pred_fallthru
      _
    // Predicated region
    $region38: #{_lambda_.23} parent=1 // pred_check
      _
    $region39: #{_lambda_.23} parent=1 // pred_check_branch
      %419 = sbr.rel (0) target = $region41
    $region40: #{_lambda_.23} parent=1 // pred_region
      %420 = dma.done [#allocation5], 512
    $region41: #{_lambda_.23} parent=1 // pred_fallthru
      _
    %421 = vsyncpa [#allocation4], 1
    %422 = vsyncpa [#allocation7], 1
    %423 = vsyncpa [#allocation5], 1

// kernel: _lambda_.25
$region0: #{_lambda_.25}
  #allocation0 [shape = 'u32[]', space=smem, size = 0x4, offset = 0x4, fixed_abs, tag = 'smem constant byte address 0x4 - core index']
  #allocation1 [shape = 'u32[144,128]{1,0:T(1,128)}', space=vmem, size = 0x12000, scoped, tag = 'internal scratch']
  #allocation2 [shape = 'f32[8,128]{1,0:T(8,128)}', space=vmem, size = 0x1000, scoped, tag = 'scratch operand']
  %s0 = inlined_call_operand.hbm [shape: f32[8,128], index: 0, kind: input, shape index: {}]
  %s1 = inlined_call_operand.hbm [shape: f32[128,128], index: 1, kind: input, shape index: {}]
  %s2 = inlined_call_operand.hbm [shape: f32[1,128], index: 2, kind: input, shape index: {}]
  %s3 = inlined_call_operand.hbm [shape: f32[8,128], index: 3, kind: output, shape index: {}]
  %s4 = sld [smem:[#allocation0]]
  $region42: #{_lambda_.25} parent=0
    _
  %s6 = ssub.s32 1, %s4
  %s7 = scalar_select 0, %s6, %s4
  $region1: #{_lambda_.25} parent=0
    #allocation3 [shape = 'u8[4096]{0}', space=vmem, size = 0x1000, scoped, tag = 'input window, operand 0, single buffered']
    #allocation4 [shape = 's32[1]{0}', space=sflag, size = 0x4, scoped, tag = 'scoped memory for _lambda_.25']
    #allocation5 [shape = 's32[1]{0}', space=sflag, size = 0x4, scoped, tag = 'scoped memory for _lambda_.25']
    #allocation6 [shape = 'u8[65536]{0}', space=vmem, size = 0x10000, scoped, tag = 'input window, operand 1, single buffered']
    #allocation7 [shape = 's32[1]{0}', space=sflag, size = 0x4, scoped, tag = 'scoped memory for _lambda_.25']
    #allocation8 [shape = 'u8[512]{0}', space=vmem, size = 0x400, scoped, tag = 'input window, operand 2, single buffered']
    #allocation9 [shape = 'u8[4096]{0}', space=vmem, size = 0x1000, scoped, tag = 'output window, operand 0, single buffered']
    %8 = vsyncpa [#allocation4], 0
    %9 = vsyncpa [#allocation7], 0
    %10 = vsyncpa [#allocation5], 0
    // Predicated region
    $region2: #{_lambda_.25} parent=1 // pred_check
      _
    $region3: #{_lambda_.25} parent=1 // pred_check_branch
      %12 = sbr.rel (0) target = $region5
    $region4: #{_lambda_.25} parent=1 // pred_region
      %s14 = ssub.s32 128, 128
      %15 = vsyncadd [#allocation4], %s14
      %s17 = sshll.u32 [#allocation3], 4
      %s18 = int_to_ptr.vmem [resolvable:$true] %s17
      %20 = dma.hbm_to_vmem [thread:$0]  %s0, 128, %s18, [#allocation4]
    $region5: #{_lambda_.25} parent=1 // pred_fallthru
      _
    // Predicated region
    $region6: #{_lambda_.25} parent=1 // pred_check
      _
    $region7: #{_lambda_.25} parent=1 // pred_check_branch
      %22 = sbr.rel (0) target = $region9
    $region8: #{_lambda_.25} parent=1 // pred_region
      %s24 = ssub.s32 2048, 2048
      %25 = vsyncadd [#allocation7], %s24
      %s26 = sshll.u32 [#allocation6], 4
      %s27 = int_to_ptr.vmem [resolvable:$true] %s26
      %32 = dma.hbm_to_vmem [thread:$0]  %s1, 2048, %s27, [#allocation7], 128, 128, 8
    $region9: #{_lambda_.25} parent=1 // pred_fallthru
      _
    // Predicated region
    $region10: #{_lambda_.25} parent=1 // pred_check
      _
    $region11: #{_lambda_.25} parent=1 // pred_check_branch
      %34 = sbr.rel (0) target = $region13
    $region12: #{_lambda_.25} parent=1 // pred_region
      %s36 = ssub.s32 16, 16
      %37 = vsyncadd [#allocation7], %s36
      %s39 = sshll.u32 [#allocation8], 4
      %s40 = int_to_ptr.vmem [resolvable:$true] %s39
      %42 = dma.hbm_to_vmem [thread:$0]  %s2, 16, %s40, [#allocation7]
    $region13: #{_lambda_.25} parent=1 // pred_fallthru
      _
    // Predicated region
    $region14: #{_lambda_.25} parent=1 // pred_check
      _
    $region15: #{_lambda_.25} parent=1 // pred_check_branch
      %44 = sbr.rel (0) target = $region17
    $region16: #{_lambda_.25} parent=1 // pred_region
      %45 = dma.done [#allocation4], 128
    $region17: #{_lambda_.25} parent=1 // pred_fallthru
      _
    // Predicated region
    $region18: #{_lambda_.25} parent=1 // pred_check
      _
    $region19: #{_lambda_.25} parent=1 // pred_check_branch
      %47 = sbr.rel (0) target = $region21
    $region20: #{_lambda_.25} parent=1 // pred_region
      %48 = dma.done [#allocation7], 2048
    $region21: #{_lambda_.25} parent=1 // pred_fallthru
      _
    // Predicated region
    $region22: #{_lambda_.25} parent=1 // pred_check
      _
    $region23: #{_lambda_.25} parent=1 // pred_check_branch
      %50 = sbr.rel (0) target = $region25
    $region24: #{_lambda_.25} parent=1 // pred_region
      %51 = dma.done [#allocation7], 16
    $region25: #{_lambda_.25} parent=1 // pred_fallthru
      _
    %p52 = scmp.eq.s32.totalorder 0, 0
    // Predicated region
    $region26: #{_lambda_.25} parent=1 // pred_check
      %p53 = pneg %p52
    $region27: #{_lambda_.25} parent=1 // pred_check_branch
      %55 = sbr.rel (%p53) target = $region29
    $region28: #{_lambda_.25} parent=1 // pred_region
      %56 = vst [vmem:[#allocation2] sm:$0xff] 0.0
    $region29: #{_lambda_.25} parent=1 // pred_fallthru
      _
    %v57 = vld [vmem:[#allocation3] sm:$0xff]
    %v58 = vld [vmem:[#allocation6] sm:$0xff]
    %v59 = vld [vmem:[#allocation6 + $0x8] sm:$0xff]
    %v60 = vld [vmem:[#allocation6 + $0x10] sm:$0xff]
    %v61 = vld [vmem:[#allocation6 + $0x18] sm:$0xff]
    %v62 = vld [vmem:[#allocation6 + $0x20] sm:$0xff]
    %v63 = vld [vmem:[#allocation6 + $0x28] sm:$0xff]
    %v64 = vld [vmem:[#allocation6 + $0x30] sm:$0xff]
    %v65 = vld [vmem:[#allocation6 + $0x38] sm:$0xff]
    %v66 = vld [vmem:[#allocation6 + $0x40] sm:$0xff]
    %v67 = vld [vmem:[#allocation6 + $0x48] sm:$0xff]
    %v68 = vld [vmem:[#allocation6 + $0x50] sm:$0xff]
    %v69 = vld [vmem:[#allocation6 + $0x58] sm:$0xff]
    %v70 = vld [vmem:[#allocation6 + $0x60] sm:$0xff]
    %v71 = vld [vmem:[#allocation6 + $0x68] sm:$0xff]
    %v72 = vld [vmem:[#allocation6 + $0x70] sm:$0xff]
    %v73 = vld [vmem:[#allocation6 + $0x78] sm:$0xff]
    %v74 = vld [vmem:[#allocation2] sm:$0xff]
    %75 = vmatprep.subr.mxu0 0.0
    %76 = vmatpush1.msra.mxu0 %v58
    %77 = vmatprep.subr.mxu0 0.0
    %78 = vmatpush1.msra.mxu0 %v59
    %79 = vmatprep.subr.mxu0 0.0
    %80 = vmatpush1.msra.mxu0 %v60
    %81 = vmatprep.subr.mxu0 0.0
    %82 = vmatpush1.msra.mxu0 %v61
    %83 = vmatprep.subr.mxu0 0.0
    %84 = vmatpush1.msra.mxu0 %v62
    %85 = vmatprep.subr.mxu0 0.0
    %86 = vmatpush1.msra.mxu0 %v63
    %87 = vmatprep.subr.mxu0 0.0
    %88 = vmatpush1.msra.mxu0 %v64
    %89 = vmatprep.subr.mxu0 0.0
    %90 = vmatpush1.msra.mxu0 %v65
    %91 = vmatprep.subr.mxu0 0.0
    %92 = vmatpush1.msra.mxu0 %v66
    %93 = vmatprep.subr.mxu0 0.0
    %94 = vmatpush1.msra.mxu0 %v67
    %95 = vmatprep.subr.mxu0 0.0
    %96 = vmatpush1.msra.mxu0 %v68
    %97 = vmatprep.subr.mxu0 0.0
    %98 = vmatpush1.msra.mxu0 %v69
    %99 = vmatprep.subr.mxu0 0.0
    %100 = vmatpush1.msra.mxu0 %v70
    %101 = vmatprep.subr.mxu0 0.0
    %102 = vmatpush1.msra.mxu0 %v71
    %103 = vmatprep.subr.mxu0 0.0
    %104 = vmatpush1.msra.mxu0 %v72
    %105 = vmatprep.subr.mxu0 0.0
    %106 = vmatpush1.msra.mxu0 %v73
    %107 = vmatprep.subr.mxu0 0.0
    %108 = vmatpush1.msra.mxu0 0.0
    %109 = vmatprep.subr.mxu0 0.0
    %110 = vmatpush1.msra.mxu0 0.0
    %111 = vmatprep.subr.mxu0 0.0
    %112 = vmatpush1.msra.mxu0 0.0
    %113 = vmatprep.subr.mxu0 0.0
    %114 = vmatpush1.msra.mxu0 0.0
    %115 = vmatprep.subr.mxu0 0.0
    %116 = vmatpush1.msra.mxu0 0.0
    %117 = vmatprep.subr.mxu0 0.0
    %118 = vmatpush1.msra.mxu0 0.0
    %119 = vmatprep.subr.mxu0 0.0
    %120 = vmatpush1.msra.mxu0 0.0
    %121 = vmatprep.subr.mxu0 0.0
    %122 = vmatpush1.msra.mxu0 0.0
    %123 = vmatprep.subr.mxu0 0.0
    %124 = vmatpush1.msra.mxu0 0.0
    %125 = vmatprep.subr.mxu0 0.0
    %126 = vmatpush1.msra.mxu0 0.0
    %127 = vmatprep.subr.mxu0 0.0
    %128 = vmatpush1.msra.mxu0 0.0
    %129 = vmatprep.subr.mxu0 0.0
    %130 = vmatpush1.msra.mxu0 0.0
    %131 = vmatprep.subr.mxu0 0.0
    %132 = vmatpush1.msra.mxu0 0.0
    %133 = vmatprep.subr.mxu0 0.0
    %134 = vmatpush1.msra.mxu0 0.0
    %135 = vmatprep.subr.mxu0 0.0
    %136 = vmatpush1.msra.mxu0 0.0
    %137 = vmatprep.subr.mxu0 0.0
    %138 = vmatpush1.msra.mxu0 0.0
    %139 = vmatprep.mubr.f32.mxu0 0.0
    %140 = vmatmul.mubr.f32.gmra.mrb[0].mxu0 %v57
    %v141 = vpop.f32.mrb[0].mxu0
    %v142 = vadd.f32 0.0, %v141
    %v143 = vpop.f32.mrb[0].mxu0
    %144 = vdwg.mxu0
    %v145 = vadd.f32 %v74, %v142
    %146 = vst [vmem:[#allocation2] sm:$0xff] %v145
    // Predicated region
    $region30: #{_lambda_.25} parent=1 // pred_check
      %p147 = pneg %p52
    $region31: #{_lambda_.25} parent=1 // pred_check_branch
      %149 = sbr.rel (%p147) target = $region33
    $region32: #{_lambda_.25} parent=1 // pred_region
      %v150 = vld [vmem:[#allocation2] sm:$0xff]
      %v151 = vld [vmem:[#allocation8] sm:$0x1]
      %v153 = vlaneseq
      %v154 = vshrl.u32 %v153, 7
      %v155 = vsub.s32 0, %v154
      %v156 = vrot.slane %v151, %v155
      %v158 = vadd.f32 %v150, %v156
      %159 = vst [vmem:[#allocation9] sm:$0xff] %v158
    $region33: #{_lambda_.25} parent=1 // pred_fallthru
      _
    // Predicated region
    $region34: #{_lambda_.25} parent=1 // pred_check
      _
    $region35: #{_lambda_.25} parent=1 // pred_check_branch
      %161 = sbr.rel (0) target = $region37
    $region36: #{_lambda_.25} parent=1 // pred_region
      %s163 = ssub.s32 128, 128
      %164 = vsyncadd [#allocation5], %s163
      %s166 = sshll.u32 [#allocation9], 4
      %s167 = int_to_ptr.vmem [resolvable:$true] %s166
      %169 = dma.vmem_to_hbm [thread:$0]  %s167, 128, %s3, [#allocation5]
    $region37: #{_lambda_.25} parent=1 // pred_fallthru
      _
    // Predicated region
    $region38: #{_lambda_.25} parent=1 // pred_check
      _
    $region39: #{_lambda_.25} parent=1 // pred_check_branch
      %171 = sbr.rel (0) target = $region41
    $region40: #{_lambda_.25} parent=1 // pred_region
      %172 = dma.done [#allocation5], 128
    $region41: #{_lambda_.25} parent=1 // pred_fallthru
      _
    %173 = vsyncpa [#allocation4], 1
    %174 = vsyncpa [#allocation7], 1
    %175 = vsyncpa [#allocation5], 1

</llo_original>
